<compile_context>
chip_gen: v7x
topology: tpu7x:2x2x1
jax: 0.10.0
libtpu: 0.0.40
codegen_flags: <defaults>
</compile_context>

<pallas_src>
import math
from functools import partial

import jax
import jax.numpy as jnp
from jax.experimental import pallas as pl
from jax.experimental.pallas import tpu as pltpu


# ----------------------------- Pallas kernel ------------------------------ #

def _layernorm(x, gamma, beta, eps=1e-5):
    mu = jnp.mean(x, axis=-1, keepdims=True)
    var = jnp.mean((x - mu) ** 2, axis=-1, keepdims=True)
    return (x - mu) * jax.lax.rsqrt(var + eps) * gamma + beta


def vit_block_kernel(x_ref,
                     g1_ref, b1_ref,
                     wqkv_ref, bqkv_ref,            # (E, 3E) bf16, (1, 3E) f32
                     wo_ref, bo_ref,                # (E, E) bf16,  (1, E) f32
                     g2_ref, b2_ref,
                     w1_ref, b1m_ref,               # (E, M) bf16,  (1, M) f32
                     w2_ref, b2m_ref,               # (M, E) bf16,  (1, E) f32
                     o_ref,
                     *, num_heads, compress, approx_softmax_recip):
    f32 = jnp.float32
    bf16 = jnp.bfloat16

    Bt, S, E = x_ref.shape
    H = num_heads
    Dh = E // H

    x = x_ref[...].astype(f32).reshape(Bt * S, E)

    # ---- LayerNorm 1 (f32 statistics) ----
    n1 = _layernorm(x, g1_ref[0], b1_ref[0])

    # ---- Fused QKV projection: one lane-dense (Bt*S,E)x(E,3E) MXU matmul ----
    # 1/sqrt(Dh) is pre-folded into the Q columns of wqkv/bqkv (wrapper-side).
    qkv = jnp.dot(n1.astype(bf16), wqkv_ref[...],
                  preferred_element_type=f32) + bqkv_ref[0]           # (Bt*S,3E)

    def heads(t):  # (Bt*S, E) -> (Bt*H, S, Dh); small XLU transpose, has slack
        return (t.reshape(Bt, S, H, Dh)
                 .transpose(0, 2, 1, 3)
                 .reshape(Bt * H, S, Dh))

    q = heads(qkv[:, 0 * E:1 * E]).astype(bf16)
    k = heads(qkv[:, 1 * E:2 * E]).astype(bf16)
    v = heads(qkv[:, 2 * E:3 * E]).astype(bf16)

    # ---- Scores + softmax (f32 statistics) ----
    s = jnp.einsum('nqd,nkd->nqk', q, k,
                   preferred_element_type=f32)                        # (Bt*H,S,S)
    s = s - jnp.max(s, axis=-1, keepdims=True)
    p = jnp.exp(s)
    denom = jnp.sum(p, axis=-1, keepdims=True)
    if approx_softmax_recip:
        # EUP approximate reciprocal (~1e-3 relative); exact divide if disabled.
        p = p * pl.reciprocal(denom, approx=True)
    else:
        p = p / denom

    # ---- P @ V, then concatenate heads back to (Bt*S, E) ----
    a = jnp.einsum('nqk,nkd->nqd', p.astype(bf16), v,
                   preferred_element_type=f32)                        # (Bt*H,S,Dh)
    a = (a.reshape(Bt, H, S, Dh)
          .transpose(0, 2, 1, 3)
          .reshape(Bt * S, E))

    # ---- Output projection: ONE full-K (E) matmul ----
    attn = jnp.dot(a.astype(bf16), wo_ref[...],
                   preferred_element_type=f32) + bo_ref[0]

    # ---- residual 1 / LayerNorm 2 ----
    x1 = x + attn
    n2 = _layernorm(x1, g2_ref[0], b2_ref[0])

    # ---- MLP: Linear -> GELU (exact erf, matches nn.GELU default) -> Linear --
    h1 = jnp.dot(n2.astype(bf16), w1_ref[...],
                 preferred_element_type=f32) + b1m_ref[0]
    h1 = 0.5 * h1 * (1.0 + jax.lax.erf(h1 * (1.0 / math.sqrt(2.0))))
    mlp = jnp.dot(h1.astype(bf16), w2_ref[...],
                  preferred_element_type=f32) + b2m_ref[0]            # (Bt*S, E)

    # ---- int4 dynamic fake-quant of the MLP output, per (S, E) sequence ----
    if compress:
        mlp3 = mlp.reshape(Bt, S, E)
        absmax = jnp.max(jnp.abs(mlp3), axis=(1, 2), keepdims=True)   # (Bt,1,1)
        qscale = absmax * (1.0 / 7.0)
        safe = jnp.where(qscale > 0.0, qscale, 1.0)
        qv = jnp.clip(jnp.round(mlp3 / safe), -8.0, 7.0)
        mlp = jnp.where(qscale > 0.0, qv * safe, mlp3).reshape(Bt * S, E)

    # ---- residual 2 ----
    o_ref[...] = (x1 + mlp).reshape(Bt, S, E).astype(o_ref.dtype)


# ------------------------------- Wrapper ----------------------------------- #

def _physical_vmem_bytes():
    """Per-generation VMEM capacity; conservative (v7x) default on failure."""
    try:
        info = pltpu.get_tpu_info()
        for attr in ("vmem_capacity_bytes", "vmem_size_bytes", "vmem_bytes"):
            v = getattr(info, attr, None)
            if v:
                return int(v)
    except Exception:
        pass
    return 64 * 1024 * 1024


def edgeformer_vit_block(x, params, *, num_heads, compress=True,
                         block_b=None, approx_softmax_recip=True):
    B, S, E = x.shape
    H = num_heads
    Dh = E // H
    assert H * Dh == E
    bf16 = jnp.bfloat16
    f32 = jnp.float32
    mlp_hidden = params["w1_t"].shape[1]

    # ---- Wrapper-side (one-time) weight fusion / pre-scaling ----
    scale = 1.0 / math.sqrt(Dh)
    wqkv = jnp.concatenate(
        [params["wq_t"] * scale, params["wk_t"], params["wv_t"]],
        axis=1).astype(bf16)                                          # (E, 3E)
    bqkv = jnp.concatenate(
        [params["bq"] * scale, params["bk"], params["bv"]],
        axis=1).astype(f32)                                           # (1, 3E)

    param_list = [
        params["ln1_g"].astype(f32), params["ln1_b"].astype(f32),
        wqkv, bqkv,
        params["wo_t"].astype(bf16), params["bo"].astype(f32),
        params["ln2_g"].astype(f32), params["ln2_b"].astype(f32),
        params["w1_t"].astype(bf16), params["b1"].astype(f32),
        params["w2_t"].astype(bf16), params["b2"].astype(f32),
    ]

    # ---- Batch blocking: fatten grid steps but keep >= 2 steps (megacore) ----
    if block_b is None:
        block_b = 1
        for cand in range(B, 0, -1):
            if B % cand == 0 and B // cand >= min(2, B):
                block_b = cand
                break
    assert B % block_b == 0
    Bt = block_b
    n_steps = B // Bt

    def _nbytes(a):
        return int(a.size) * jnp.dtype(a.dtype).itemsize

    vmem_cap = max(32 * 1024 * 1024, _physical_vmem_bytes() - 16 * 1024 * 1024)

    def _build(single_buffer_weights):
        # Constant-index weight inputs: double-buffering buys nothing, so ask
        # for a single buffer when supported (saves VMEM on v7x at prod sizes).
        if single_buffer_weights:
            w_specs = [
                pl.BlockSpec(p.shape, lambda b, nd=p.ndim: (0,) * nd,
                             pipeline_mode=pl.Buffered(1))
                for p in param_list
            ]
        else:
            w_specs = [
                pl.BlockSpec(p.shape, lambda b, nd=p.ndim: (0,) * nd)
                for p in param_list
            ]

        x_spec = pl.BlockSpec((Bt, S, E), lambda b: (b, 0, 0))
        o_spec = pl.BlockSpec((Bt, S, E), lambda b: (b, 0, 0))

        # VMEM budget: weights (x1 or x2 buffers) + pipelined I/O slabs +
        # in-kernel f32 intermediates (scores/probs, qkv + splits, mlp hidden,
        # LN/residual temps), capped per generation with headroom.
        w_buf = 1 if single_buffer_weights else 2
        w_bytes = sum(_nbytes(p) for p in param_list)
        io_bytes = 2 * 2 * Bt * S * E * 4
        inter_bytes = Bt * (2 * H * S * S
                            + 2 * S * mlp_hidden
                            + 18 * S * E          # qkv + per-head splits/copies
                            + 24 * S * E) * 4     # LN / residual / attn temps
        vmem_limit = int(min(vmem_cap,
                             max(w_buf * w_bytes + io_bytes + inter_bytes,
                                 32 * 1024 * 1024)))

        kernel = partial(vit_block_kernel, num_heads=H, compress=compress,
                         approx_softmax_recip=approx_softmax_recip)

        return pl.pallas_call(
            kernel,
            out_shape=jax.ShapeDtypeStruct((B, S, E), x.dtype),
            grid_spec=pltpu.PrefetchScalarGridSpec(
                num_scalar_prefetch=0,
                grid=(n_steps,),
                in_specs=[x_spec] + w_specs,
                out_specs=o_spec,
            ),
            compiler_params=pltpu.CompilerParams(
                dimension_semantics=("parallel",),
                vmem_limit_bytes=vmem_limit,
            ),
        )

    if hasattr(pl, "Buffered"):
        try:
            return _build(True)(x, *param_list)
        except Exception:
            pass  # pipeline_mode=Buffered(1) unsupported here -> default buffering
    return _build(False)(x, *param_list)


# ----------------------- Pure-JAX reference (check) ------------------------ #

def reference(x, params, *, num_heads, compress=True, return_qstep=False):
    B, S, E = x.shape
    H = num_heads
    Dh = E // H
    f32 = jnp.float32
    bf = lambda t: t.astype(jnp.bfloat16)

    def ln(v, g, b, eps=1e-5):
        mu = jnp.mean(v, axis=-1, keepdims=True)
        var = jnp.mean((v - mu) ** 2, axis=-1, keepdims=True)
        return (v - mu) / jnp.sqrt(var + eps) * g + b

    n1 = ln(x, params["ln1_g"][0], params["ln1_b"][0])
    q = jnp.dot(bf(n1), bf(params["wq_t"]), preferred_element_type=f32) + params["bq"][0]
    k = jnp.dot(bf(n1), bf(params["wk_t"]), preferred_element_type=f32) + params["bk"][0]
    v = jnp.dot(bf(n1), bf(params["wv_t"]), preferred_element_type=f32) + params["bv"][0]
    q = q.reshape(B, S, H, Dh).transpose(0, 2, 1, 3) * (1.0 / math.sqrt(Dh))
    k = k.reshape(B, S, H, Dh).transpose(0, 2, 1, 3)
    v = v.reshape(B, S, H, Dh).transpose(0, 2, 1, 3)
    s = jnp.einsum("bhqd,bhkd->bhqk", bf(q), bf(k), preferred_element_type=f32)
    p = jax.nn.softmax(s, axis=-1)
    a = jnp.einsum("bhqk,bhkd->bhqd", bf(p), bf(v), preferred_element_type=f32)
    a = a.transpose(0, 2, 1, 3).reshape(B, S, E)
    attn = jnp.dot(bf(a), bf(params["wo_t"]), preferred_element_type=f32) + params["bo"][0]
    x1 = x + attn
    n2 = ln(x1, params["ln2_g"][0], params["ln2_b"][0])
    h = jnp.dot(bf(n2), bf(params["w1_t"]), preferred_element_type=f32) + params["b1"][0]
    h = 0.5 * h * (1.0 + jax.lax.erf(h / math.sqrt(2.0)))
    mlp = jnp.dot(bf(h), bf(params["w2_t"]), preferred_element_type=f32) + params["b2"][0]
    qstep = jnp.zeros((B, 1, 1), f32)
    if compress:
        absmax = jnp.max(jnp.abs(mlp), axis=(1, 2), keepdims=True)
        qscale = absmax / 7.0
        safe = jnp.where(qscale > 0, qscale, 1.0)
        qv = jnp.clip(jnp.round(mlp / safe), -8.0, 7.0)
        mlp = jnp.where(qscale > 0, qv * safe, mlp)
        qstep = safe
    out = x1 + mlp
    if return_qstep:
        return out, qstep
    return out


# --------------------------------- Main ------------------------------------ #

if __name__ == "__main__":
    B, S, E = 2, 16, 128          # lane-dense E (multiple of 128)
    num_heads = 4
    mlp_hidden = int(E * 4.0)

    key = jax.random.PRNGKey(0)
    keys = jax.random.split(key, 8)

    def w(k, shape, scale=0.05):
        return (scale * jax.random.normal(k, shape)).astype(jnp.float32)

    # Weights stored pre-transposed so the block computes `x @ W_t + b`.
    params = {
        "ln1_g": jnp.ones((1, E), jnp.float32),
        "ln1_b": jnp.zeros((1, E), jnp.float32),
        "wq_t": w(keys[0], (E, E)),
        "wk_t": w(keys[1], (E, E)),
        "wv_t": w(keys[2], (E, E)),
        "bq": jnp.full((1, E), 0.01, jnp.float32),
        "bk": jnp.full((1, E), -0.01, jnp.float32),
        "bv": jnp.full((1, E), 0.02, jnp.float32),
        "wo_t": w(keys[3], (E, E)),
        "bo": jnp.zeros((1, E), jnp.float32),
        "ln2_g": jnp.ones((1, E), jnp.float32),
        "ln2_b": jnp.zeros((1, E), jnp.float32),
        "w1_t": w(keys[4], (E, mlp_hidden)),
        "b1": jnp.full((1, mlp_hidden), 0.01, jnp.float32),
        "w2_t": w(keys[5], (mlp_hidden, E)),
        "b2": jnp.zeros((1, E), jnp.float32),
    }

    x = jax.random.normal(keys[6], (B, S, E), dtype=jnp.float32)

    # 1) Check without the quantizer (validates LN/MHA/MLP path).  Tolerance
    #    covers bf16 operand rounding, the folded attention scale and the
    #    approximate softmax reciprocal.
    out_nc = jax.block_until_ready(
        edgeformer_vit_block(x, params, num_heads=num_heads, compress=False))
    ref_nc = reference(x, params, num_heads=num_heads, compress=False)
    err_nc = float(jnp.max(jnp.abs(out_nc - ref_nc)))
    assert out_nc.shape == (B, S, E)
    assert err_nc < 5e-3, f"no-compress max abs err = {err_nc}"

    # 2) Check with int4 fake-quant; allow one quant step of slack because
    #    tiny bf16 matmul differences can flip a rounding boundary.
    out_c = jax.block_until_ready(
        edgeformer_vit_block(x, params, num_heads=num_heads, compress=True))
    ref_c, qstep = reference(x, params, num_heads=num_heads,
                             compress=True, return_qstep=True)
    err_c = float(jnp.max(jnp.abs(out_c - ref_c)))
    tol = float(jnp.max(qstep)) + 5e-3
    assert out_c.shape == (B, S, E)
    assert err_c < tol, f"compress max abs err = {err_c} (tol {tol})"

    print("KERNEL_OK")
</pallas_src>

<mosaic_0001>
module attributes {stable_mosaic.version = 11 : i64} {
  func.func @vit_block_kernel(%arg0: i32, %arg1: memref<1x16x128xf32, #tpu.memory_space<vmem>>, %arg2: memref<1x128xf32, #tpu.memory_space<vmem>>, %arg3: memref<1x128xf32, #tpu.memory_space<vmem>>, %arg4: memref<128x384xbf16, #tpu.memory_space<vmem>>, %arg5: memref<1x384xf32, #tpu.memory_space<vmem>>, %arg6: memref<128x128xbf16, #tpu.memory_space<vmem>>, %arg7: memref<1x128xf32, #tpu.memory_space<vmem>>, %arg8: memref<1x128xf32, #tpu.memory_space<vmem>>, %arg9: memref<1x128xf32, #tpu.memory_space<vmem>>, %arg10: memref<128x512xbf16, #tpu.memory_space<vmem>>, %arg11: memref<1x512xf32, #tpu.memory_space<vmem>>, %arg12: memref<512x128xbf16, #tpu.memory_space<vmem>>, %arg13: memref<1x128xf32, #tpu.memory_space<vmem>>, %arg14: memref<1x16x128xf32, #tpu.memory_space<vmem>>) attributes {dimension_semantics = [#tpu.dimension_semantics<parallel>], iteration_bounds = array<i64: 2>, scalar_prefetch = 0 : i64, scratch_operands = 0 : i64, tpu.core_type = #tpu.core_type<tc>, window_params = [{transform_indices = @transform_0, window_bounds = array<i64: 1, 16, 128>}, {pipeline_mode = #tpu.pipeline_mode<synchronous>, transform_indices = @transform_1, window_bounds = array<i64: 1, 128>}, {pipeline_mode = #tpu.pipeline_mode<synchronous>, transform_indices = @transform_2, window_bounds = array<i64: 1, 128>}, {pipeline_mode = #tpu.pipeline_mode<synchronous>, transform_indices = @transform_3, window_bounds = array<i64: 128, 384>}, {pipeline_mode = #tpu.pipeline_mode<synchronous>, transform_indices = @transform_4, window_bounds = array<i64: 1, 384>}, {pipeline_mode = #tpu.pipeline_mode<synchronous>, transform_indices = @transform_5, window_bounds = array<i64: 128, 128>}, {pipeline_mode = #tpu.pipeline_mode<synchronous>, transform_indices = @transform_6, window_bounds = array<i64: 1, 128>}, {pipeline_mode = #tpu.pipeline_mode<synchronous>, transform_indices = @transform_7, window_bounds = array<i64: 1, 128>}, {pipeline_mode = #tpu.pipeline_mode<synchronous>, transform_indices = @transform_8, window_bounds = array<i64: 1, 128>}, {pipeline_mode = #tpu.pipeline_mode<synchronous>, transform_indices = @transform_9, window_bounds = array<i64: 128, 512>}, {pipeline_mode = #tpu.pipeline_mode<synchronous>, transform_indices = @transform_10, window_bounds = array<i64: 1, 512>}, {pipeline_mode = #tpu.pipeline_mode<synchronous>, transform_indices = @transform_11, window_bounds = array<i64: 512, 128>}, {pipeline_mode = #tpu.pipeline_mode<synchronous>, transform_indices = @transform_12, window_bounds = array<i64: 1, 128>}, {transform_indices = @transform_13, window_bounds = array<i64: 1, 16, 128>}]} {
    %c0 = arith.constant 0 : index
    %c0_0 = arith.constant 0 : index
    %c0_1 = arith.constant 0 : index
    %0 = vector.load %arg1[%c0, %c0_0, %c0_1] : memref<1x16x128xf32, #tpu.memory_space<vmem>>, vector<1x16x128xf32>
    %1 = vector.shape_cast %0 : vector<1x16x128xf32> to vector<16x128xf32>
    %c0_2 = arith.constant 0 : index
    %c0_3 = arith.constant 0 : index
    %2 = vector.load %arg2[%c0_2, %c0_3] : memref<1x128xf32, #tpu.memory_space<vmem>>, vector<1x128xf32>
    %3 = vector.shape_cast %2 : vector<1x128xf32> to vector<128xf32>
    %c0_4 = arith.constant 0 : index
    %c0_5 = arith.constant 0 : index
    %4 = vector.load %arg3[%c0_4, %c0_5] : memref<1x128xf32, #tpu.memory_space<vmem>>, vector<1x128xf32>
    %5 = vector.shape_cast %4 : vector<1x128xf32> to vector<128xf32>
    %cst = arith.constant dense<0.000000e+00> : vector<16xf32>
    %6 = vector.multi_reduction <add>, %1, %cst [1] : vector<16x128xf32> to vector<16xf32>
    %7 = vector.shape_cast %6 : vector<16xf32> to vector<16x1xf32>
    %cst_6 = arith.constant 1.280000e+02 : f32
    %8 = vector.broadcast %cst_6 : f32 to vector<16x1xf32>
    %9 = arith.divf %7, %8 : vector<16x1xf32>
    %10 = vector.broadcast %9 : vector<16x1xf32> to vector<16x128xf32>
    %11 = arith.subf %1, %10 : vector<16x128xf32>
    %12 = arith.mulf %11, %11 : vector<16x128xf32>
    %cst_7 = arith.constant dense<0.000000e+00> : vector<16xf32>
    %13 = vector.multi_reduction <add>, %12, %cst_7 [1] : vector<16x128xf32> to vector<16xf32>
    %14 = vector.shape_cast %13 : vector<16xf32> to vector<16x1xf32>
    %cst_8 = arith.constant 1.280000e+02 : f32
    %15 = vector.broadcast %cst_8 : f32 to vector<16x1xf32>
    %16 = arith.divf %14, %15 : vector<16x1xf32>
    %17 = vector.broadcast %9 : vector<16x1xf32> to vector<16x128xf32>
    %18 = arith.subf %1, %17 : vector<16x128xf32>
    %cst_9 = arith.constant 9.99999974E-6 : f32
    %19 = vector.broadcast %cst_9 : f32 to vector<16x1xf32>
    %20 = arith.addf %16, %19 : vector<16x1xf32>
    %21 = math.rsqrt %20 : vector<16x1xf32>
    %22 = vector.broadcast %21 : vector<16x1xf32> to vector<16x128xf32>
    %23 = arith.mulf %18, %22 : vector<16x128xf32>
    %24 = vector.shape_cast %3 : vector<128xf32> to vector<1x128xf32>
    %25 = vector.broadcast %24 : vector<1x128xf32> to vector<16x128xf32>
    %26 = arith.mulf %23, %25 : vector<16x128xf32>
    %27 = vector.shape_cast %5 : vector<128xf32> to vector<1x128xf32>
    %28 = vector.broadcast %27 : vector<1x128xf32> to vector<16x128xf32>
    %29 = arith.addf %26, %28 : vector<16x128xf32>
    %30 = arith.truncf %29 : vector<16x128xf32> to vector<16x128xbf16>
    %c0_10 = arith.constant 0 : index
    %c0_11 = arith.constant 0 : index
    %31 = vector.load %arg4[%c0_10, %c0_11] : memref<128x384xbf16, #tpu.memory_space<vmem>>, vector<128x384xbf16>
    %cst_12 = arith.constant dense<0.000000e+00> : vector<16x384xf32>
    %32 = tpu.matmul %30, %31, %cst_12 {dimension_numbers = #tpu.dot_dimension_numbers<[1], [0], [0], [1], [0, 0, 1, 1], [], []>} : vector<16x128xbf16>, vector<128x384xbf16>, vector<16x384xf32> -> vector<16x384xf32>
    %c0_13 = arith.constant 0 : index
    %c0_14 = arith.constant 0 : index
    %33 = vector.load %arg5[%c0_13, %c0_14] : memref<1x384xf32, #tpu.memory_space<vmem>>, vector<1x384xf32>
    %34 = vector.shape_cast %33 : vector<1x384xf32> to vector<384xf32>
    %35 = vector.shape_cast %34 : vector<384xf32> to vector<1x384xf32>
    %36 = vector.broadcast %35 : vector<1x384xf32> to vector<16x384xf32>
    %37 = arith.addf %32, %36 : vector<16x384xf32>
    %38 = vector.extract_strided_slice %37 {offsets = [0, 0], sizes = [16, 128], strides = [1, 1]} : vector<16x384xf32> to vector<16x128xf32>
    %39 = vector.shape_cast %38 : vector<16x128xf32> to vector<1x16x4x32xf32>
    %40 = tpu.transpose %39, [0, 2, 1, 3] : vector<1x16x4x32xf32> -> vector<1x4x16x32xf32>
    %41 = vector.shape_cast %40 : vector<1x4x16x32xf32> to vector<4x16x32xf32>
    %42 = arith.truncf %41 : vector<4x16x32xf32> to vector<4x16x32xbf16>
    %43 = vector.extract_strided_slice %37 {offsets = [0, 128], sizes = [16, 128], strides = [1, 1]} : vector<16x384xf32> to vector<16x128xf32>
    %44 = vector.shape_cast %43 : vector<16x128xf32> to vector<1x16x4x32xf32>
    %45 = tpu.transpose %44, [0, 2, 1, 3] : vector<1x16x4x32xf32> -> vector<1x4x16x32xf32>
    %46 = vector.shape_cast %45 : vector<1x4x16x32xf32> to vector<4x16x32xf32>
    %47 = arith.truncf %46 : vector<4x16x32xf32> to vector<4x16x32xbf16>
    %48 = vector.extract_strided_slice %37 {offsets = [0, 256], sizes = [16, 128], strides = [1, 1]} : vector<16x384xf32> to vector<16x128xf32>
    %49 = vector.shape_cast %48 : vector<16x128xf32> to vector<1x16x4x32xf32>
    %50 = tpu.transpose %49, [0, 2, 1, 3] : vector<1x16x4x32xf32> -> vector<1x4x16x32xf32>
    %51 = vector.shape_cast %50 : vector<1x4x16x32xf32> to vector<4x16x32xf32>
    %52 = arith.truncf %51 : vector<4x16x32xf32> to vector<4x16x32xbf16>
    "tpu.trace_start"() <{level = 10 : i32, message = "nqd,nkd->nqk"}> : () -> ()
    %cst_15 = arith.constant dense<0.000000e+00> : vector<4x16x16xf32>
    %53 = tpu.matmul %42, %47, %cst_15 {dimension_numbers = #tpu.dot_dimension_numbers<[2], [2], [1], [1], [0, 0, 0, 1, 1, 1], [0], [0]>} : vector<4x16x32xbf16>, vector<4x16x32xbf16>, vector<4x16x16xf32> -> vector<4x16x16xf32>
    "tpu.trace_stop"() : () -> ()
    %cst_16 = arith.constant dense<0xFF800000> : vector<4x16xf32>
    %54 = vector.multi_reduction <maximumf>, %53, %cst_16 [2] : vector<4x16x16xf32> to vector<4x16xf32>
    %55 = vector.shape_cast %54 : vector<4x16xf32> to vector<4x16x1xf32>
    %56 = vector.broadcast %55 : vector<4x16x1xf32> to vector<4x16x16xf32>
    %57 = arith.subf %53, %56 : vector<4x16x16xf32>
    %58 = math.exp %57 : vector<4x16x16xf32>
    %cst_17 = arith.constant dense<0.000000e+00> : vector<4x16xf32>
    %59 = vector.multi_reduction <add>, %58, %cst_17 [2] : vector<4x16x16xf32> to vector<4x16xf32>
    %60 = vector.shape_cast %59 : vector<4x16xf32> to vector<4x16x1xf32>
    %61 = tpu.reciprocal %60 {approx = true} : vector<4x16x1xf32> -> vector<4x16x1xf32>
    %62 = vector.broadcast %61 : vector<4x16x1xf32> to vector<4x16x16xf32>
    %63 = arith.mulf %58, %62 : vector<4x16x16xf32>
    %64 = arith.truncf %63 : vector<4x16x16xf32> to vector<4x16x16xbf16>
    "tpu.trace_start"() <{level = 10 : i32, message = "nqk,nkd->nqd"}> : () -> ()
    %cst_18 = arith.constant dense<0.000000e+00> : vector<4x16x32xf32>
    %65 = tpu.matmul %64, %52, %cst_18 {dimension_numbers = #tpu.dot_dimension_numbers<[2], [1], [1], [2], [0, 0, 0, 1, 1, 2], [0], [0]>} : vector<4x16x16xbf16>, vector<4x16x32xbf16>, vector<4x16x32xf32> -> vector<4x16x32xf32>
    "tpu.trace_stop"() : () -> ()
    %66 = vector.shape_cast %65 : vector<4x16x32xf32> to vector<1x4x16x32xf32>
    %67 = tpu.transpose %66, [0, 2, 1, 3] : vector<1x4x16x32xf32> -> vector<1x16x4x32xf32>
    %68 = vector.shape_cast %67 : vector<1x16x4x32xf32> to vector<16x128xf32>
    %69 = arith.truncf %68 : vector<16x128xf32> to vector<16x128xbf16>
    %c0_19 = arith.constant 0 : index
    %c0_20 = arith.constant 0 : index
    %70 = vector.load %arg6[%c0_19, %c0_20] : memref<128x128xbf16, #tpu.memory_space<vmem>>, vector<128x128xbf16>
    %cst_21 = arith.constant dense<0.000000e+00> : vector<16x128xf32>
    %71 = tpu.matmul %69, %70, %cst_21 {dimension_numbers = #tpu.dot_dimension_numbers<[1], [0], [0], [1], [0, 0, 1, 1], [], []>} : vector<16x128xbf16>, vector<128x128xbf16>, vector<16x128xf32> -> vector<16x128xf32>
    %c0_22 = arith.constant 0 : index
    %c0_23 = arith.constant 0 : index
    %72 = vector.load %arg7[%c0_22, %c0_23] : memref<1x128xf32, #tpu.memory_space<vmem>>, vector<1x128xf32>
    %73 = vector.shape_cast %72 : vector<1x128xf32> to vector<128xf32>
    %74 = vector.shape_cast %73 : vector<128xf32> to vector<1x128xf32>
    %75 = vector.broadcast %74 : vector<1x128xf32> to vector<16x128xf32>
    %76 = arith.addf %71, %75 : vector<16x128xf32>
    %77 = arith.addf %1, %76 : vector<16x128xf32>
    %c0_24 = arith.constant 0 : index
    %c0_25 = arith.constant 0 : index
    %78 = vector.load %arg8[%c0_24, %c0_25] : memref<1x128xf32, #tpu.memory_space<vmem>>, vector<1x128xf32>
    %79 = vector.shape_cast %78 : vector<1x128xf32> to vector<128xf32>
    %c0_26 = arith.constant 0 : index
    %c0_27 = arith.constant 0 : index
    %80 = vector.load %arg9[%c0_26, %c0_27] : memref<1x128xf32, #tpu.memory_space<vmem>>, vector<1x128xf32>
    %81 = vector.shape_cast %80 : vector<1x128xf32> to vector<128xf32>
    %cst_28 = arith.constant dense<0.000000e+00> : vector<16xf32>
    %82 = vector.multi_reduction <add>, %77, %cst_28 [1] : vector<16x128xf32> to vector<16xf32>
    %83 = vector.shape_cast %82 : vector<16xf32> to vector<16x1xf32>
    %cst_29 = arith.constant 1.280000e+02 : f32
    %84 = vector.broadcast %cst_29 : f32 to vector<16x1xf32>
    %85 = arith.divf %83, %84 : vector<16x1xf32>
    %86 = vector.broadcast %85 : vector<16x1xf32> to vector<16x128xf32>
    %87 = arith.subf %77, %86 : vector<16x128xf32>
    %88 = arith.mulf %87, %87 : vector<16x128xf32>
    %cst_30 = arith.constant dense<0.000000e+00> : vector<16xf32>
    %89 = vector.multi_reduction <add>, %88, %cst_30 [1] : vector<16x128xf32> to vector<16xf32>
    %90 = vector.shape_cast %89 : vector<16xf32> to vector<16x1xf32>
    %cst_31 = arith.constant 1.280000e+02 : f32
    %91 = vector.broadcast %cst_31 : f32 to vector<16x1xf32>
    %92 = arith.divf %90, %91 : vector<16x1xf32>
    %93 = vector.broadcast %85 : vector<16x1xf32> to vector<16x128xf32>
    %94 = arith.subf %77, %93 : vector<16x128xf32>
    %cst_32 = arith.constant 9.99999974E-6 : f32
    %95 = vector.broadcast %cst_32 : f32 to vector<16x1xf32>
    %96 = arith.addf %92, %95 : vector<16x1xf32>
    %97 = math.rsqrt %96 : vector<16x1xf32>
    %98 = vector.broadcast %97 : vector<16x1xf32> to vector<16x128xf32>
    %99 = arith.mulf %94, %98 : vector<16x128xf32>
    %100 = vector.shape_cast %79 : vector<128xf32> to vector<1x128xf32>
    %101 = vector.broadcast %100 : vector<1x128xf32> to vector<16x128xf32>
    %102 = arith.mulf %99, %101 : vector<16x128xf32>
    %103 = vector.shape_cast %81 : vector<128xf32> to vector<1x128xf32>
    %104 = vector.broadcast %103 : vector<1x128xf32> to vector<16x128xf32>
    %105 = arith.addf %102, %104 : vector<16x128xf32>
    %106 = arith.truncf %105 : vector<16x128xf32> to vector<16x128xbf16>
    %c0_33 = arith.constant 0 : index
    %c0_34 = arith.constant 0 : index
    %107 = vector.load %arg10[%c0_33, %c0_34] : memref<128x512xbf16, #tpu.memory_space<vmem>>, vector<128x512xbf16>
    %cst_35 = arith.constant dense<0.000000e+00> : vector<16x512xf32>
    %108 = tpu.matmul %106, %107, %cst_35 {dimension_numbers = #tpu.dot_dimension_numbers<[1], [0], [0], [1], [0, 0, 1, 1], [], []>} : vector<16x128xbf16>, vector<128x512xbf16>, vector<16x512xf32> -> vector<16x512xf32>
    %c0_36 = arith.constant 0 : index
    %c0_37 = arith.constant 0 : index
    %109 = vector.load %arg11[%c0_36, %c0_37] : memref<1x512xf32, #tpu.memory_space<vmem>>, vector<1x512xf32>
    %110 = vector.shape_cast %109 : vector<1x512xf32> to vector<512xf32>
    %111 = vector.shape_cast %110 : vector<512xf32> to vector<1x512xf32>
    %112 = vector.broadcast %111 : vector<1x512xf32> to vector<16x512xf32>
    %113 = arith.addf %108, %112 : vector<16x512xf32>
    %cst_38 = arith.constant 5.000000e-01 : f32
    %114 = vector.broadcast %cst_38 : f32 to vector<16x512xf32>
    %115 = arith.mulf %114, %113 : vector<16x512xf32>
    %cst_39 = arith.constant 0.707106769 : f32
    %116 = vector.broadcast %cst_39 : f32 to vector<16x512xf32>
    %117 = arith.mulf %113, %116 : vector<16x512xf32>
    %118 = math.erf %117 : vector<16x512xf32>
    %cst_40 = arith.constant 1.000000e+00 : f32
    %119 = vector.broadcast %cst_40 : f32 to vector<16x512xf32>
    %120 = arith.addf %119, %118 : vector<16x512xf32>
    %121 = arith.mulf %115, %120 : vector<16x512xf32>
    %122 = arith.truncf %121 : vector<16x512xf32> to vector<16x512xbf16>
    %c0_41 = arith.constant 0 : index
    %c0_42 = arith.constant 0 : index
    %123 = vector.load %arg12[%c0_41, %c0_42] : memref<512x128xbf16, #tpu.memory_space<vmem>>, vector<512x128xbf16>
    %cst_43 = arith.constant dense<0.000000e+00> : vector<16x128xf32>
    %124 = tpu.matmul %122, %123, %cst_43 {dimension_numbers = #tpu.dot_dimension_numbers<[1], [0], [0], [1], [0, 0, 1, 1], [], []>} : vector<16x512xbf16>, vector<512x128xbf16>, vector<16x128xf32> -> vector<16x128xf32>
    %c0_44 = arith.constant 0 : index
    %c0_45 = arith.constant 0 : index
    %125 = vector.load %arg13[%c0_44, %c0_45] : memref<1x128xf32, #tpu.memory_space<vmem>>, vector<1x128xf32>
    %126 = vector.shape_cast %125 : vector<1x128xf32> to vector<128xf32>
    %127 = vector.shape_cast %126 : vector<128xf32> to vector<1x128xf32>
    %128 = vector.broadcast %127 : vector<1x128xf32> to vector<16x128xf32>
    %129 = arith.addf %124, %128 : vector<16x128xf32>
    %130 = arith.addf %77, %129 : vector<16x128xf32>
    %131 = vector.shape_cast %130 : vector<16x128xf32> to vector<1x16x128xf32>
    %c0_46 = arith.constant 0 : index
    %c0_47 = arith.constant 0 : index
    %c0_48 = arith.constant 0 : index
    %132 = vector.load %arg14[%c0_46, %c0_47, %c0_48] : memref<1x16x128xf32, #tpu.memory_space<vmem>>, vector<1x16x128xf32>
    tpu.vector_store %arg14[%c0_46, %c0_47, %c0_48], %131 {strides = array<i32>} : memref<1x16x128xf32, #tpu.memory_space<vmem>>, vector<1x16x128xf32>,
    return
  }
  func.func @transform_0(%arg0: i32) -> (i32, i32, i32) {
    %c0_i32 = arith.constant 0 : i32
    %c0_i32_0 = arith.constant 0 : i32
    %c0_i32_1 = arith.constant 0 : i32
    return %arg0, %c0_i32, %c0_i32_0 : i32, i32, i32
  }
  func.func @transform_1(%arg0: i32) -> (i32, i32) {
    %c0_i32 = arith.constant 0 : i32
    %c0_i32_0 = arith.constant 0 : i32
    %c0_i32_1 = arith.constant 0 : i32
    return %c0_i32, %c0_i32_0 : i32, i32
  }
  func.func @transform_2(%arg0: i32) -> (i32, i32) {
    %c0_i32 = arith.constant 0 : i32
    %c0_i32_0 = arith.constant 0 : i32
    %c0_i32_1 = arith.constant 0 : i32
    return %c0_i32, %c0_i32_0 : i32, i32
  }
  func.func @transform_3(%arg0: i32) -> (i32, i32) {
    %c0_i32 = arith.constant 0 : i32
    %c0_i32_0 = arith.constant 0 : i32
    %c0_i32_1 = arith.constant 0 : i32
    return %c0_i32, %c0_i32_0 : i32, i32
  }
  func.func @transform_4(%arg0: i32) -> (i32, i32) {
    %c0_i32 = arith.constant 0 : i32
    %c0_i32_0 = arith.constant 0 : i32
    %c0_i32_1 = arith.constant 0 : i32
    return %c0_i32, %c0_i32_0 : i32, i32
  }
  func.func @transform_5(%arg0: i32) -> (i32, i32) {
    %c0_i32 = arith.constant 0 : i32
    %c0_i32_0 = arith.constant 0 : i32
    %c0_i32_1 = arith.constant 0 : i32
    return %c0_i32, %c0_i32_0 : i32, i32
  }
  func.func @transform_6(%arg0: i32) -> (i32, i32) {
    %c0_i32 = arith.constant 0 : i32
    %c0_i32_0 = arith.constant 0 : i32
    %c0_i32_1 = arith.constant 0 : i32
    return %c0_i32, %c0_i32_0 : i32, i32
  }
  func.func @transform_7(%arg0: i32) -> (i32, i32) {
    %c0_i32 = arith.constant 0 : i32
    %c0_i32_0 = arith.constant 0 : i32
    %c0_i32_1 = arith.constant 0 : i32
    return %c0_i32, %c0_i32_0 : i32, i32
  }
  func.func @transform_8(%arg0: i32) -> (i32, i32) {
    %c0_i32 = arith.constant 0 : i32
    %c0_i32_0 = arith.constant 0 : i32
    %c0_i32_1 = arith.constant 0 : i32
    return %c0_i32, %c0_i32_0 : i32, i32
  }
  func.func @transform_9(%arg0: i32) -> (i32, i32) {
    %c0_i32 = arith.constant 0 : i32
    %c0_i32_0 = arith.constant 0 : i32
    %c0_i32_1 = arith.constant 0 : i32
    return %c0_i32, %c0_i32_0 : i32, i32
  }
  func.func @transform_10(%arg0: i32) -> (i32, i32) {
    %c0_i32 = arith.constant 0 : i32
    %c0_i32_0 = arith.constant 0 : i32
    %c0_i32_1 = arith.constant 0 : i32
    return %c0_i32, %c0_i32_0 : i32, i32
  }
  func.func @transform_11(%arg0: i32) -> (i32, i32) {
    %c0_i32 = arith.constant 0 : i32
    %c0_i32_0 = arith.constant 0 : i32
    %c0_i32_1 = arith.constant 0 : i32
    return %c0_i32, %c0_i32_0 : i32, i32
  }
  func.func @transform_12(%arg0: i32) -> (i32, i32) {
    %c0_i32 = arith.constant 0 : i32
    %c0_i32_0 = arith.constant 0 : i32
    %c0_i32_1 = arith.constant 0 : i32
    return %c0_i32, %c0_i32_0 : i32, i32
  }
  func.func @transform_13(%arg0: i32) -> (i32, i32, i32) {
    %c0_i32 = arith.constant 0 : i32
    %c0_i32_0 = arith.constant 0 : i32
    %c0_i32_1 = arith.constant 0 : i32
    return %arg0, %c0_i32, %c0_i32_0 : i32, i32, i32
  }
}

module attributes {stable_mosaic.version = 11 : i64} {
  func.func @vit_block_kernel(%arg0: i32, %arg1: memref<1x16x128xf32, #tpu.memory_space<vmem>>, %arg2: memref<1x128xf32, #tpu.memory_space<vmem>>, %arg3: memref<1x128xf32, #tpu.memory_space<vmem>>, %arg4: memref<128x384xbf16, #tpu.memory_space<vmem>>, %arg5: memref<1x384xf32, #tpu.memory_space<vmem>>, %arg6: memref<128x128xbf16, #tpu.memory_space<vmem>>, %arg7: memref<1x128xf32, #tpu.memory_space<vmem>>, %arg8: memref<1x128xf32, #tpu.memory_space<vmem>>, %arg9: memref<1x128xf32, #tpu.memory_space<vmem>>, %arg10: memref<128x512xbf16, #tpu.memory_space<vmem>>, %arg11: memref<1x512xf32, #tpu.memory_space<vmem>>, %arg12: memref<512x128xbf16, #tpu.memory_space<vmem>>, %arg13: memref<1x128xf32, #tpu.memory_space<vmem>>, %arg14: memref<1x16x128xf32, #tpu.memory_space<vmem>>) attributes {dimension_semantics = [#tpu.dimension_semantics<parallel>], iteration_bounds = array<i64: 2>, scalar_prefetch = 0 : i64, scratch_operands = 0 : i64, tpu.core_type = #tpu.core_type<tc>, window_params = [{transform_indices = @transform_0, window_bounds = array<i64: 1, 16, 128>}, {pipeline_mode = #tpu.pipeline_mode<synchronous>, transform_indices = @transform_1, window_bounds = array<i64: 1, 128>}, {pipeline_mode = #tpu.pipeline_mode<synchronous>, transform_indices = @transform_2, window_bounds = array<i64: 1, 128>}, {pipeline_mode = #tpu.pipeline_mode<synchronous>, transform_indices = @transform_3, window_bounds = array<i64: 128, 384>}, {pipeline_mode = #tpu.pipeline_mode<synchronous>, transform_indices = @transform_4, window_bounds = array<i64: 1, 384>}, {pipeline_mode = #tpu.pipeline_mode<synchronous>, transform_indices = @transform_5, window_bounds = array<i64: 128, 128>}, {pipeline_mode = #tpu.pipeline_mode<synchronous>, transform_indices = @transform_6, window_bounds = array<i64: 1, 128>}, {pipeline_mode = #tpu.pipeline_mode<synchronous>, transform_indices = @transform_7, window_bounds = array<i64: 1, 128>}, {pipeline_mode = #tpu.pipeline_mode<synchronous>, transform_indices = @transform_8, window_bounds = array<i64: 1, 128>}, {pipeline_mode = #tpu.pipeline_mode<synchronous>, transform_indices = @transform_9, window_bounds = array<i64: 128, 512>}, {pipeline_mode = #tpu.pipeline_mode<synchronous>, transform_indices = @transform_10, window_bounds = array<i64: 1, 512>}, {pipeline_mode = #tpu.pipeline_mode<synchronous>, transform_indices = @transform_11, window_bounds = array<i64: 512, 128>}, {pipeline_mode = #tpu.pipeline_mode<synchronous>, transform_indices = @transform_12, window_bounds = array<i64: 1, 128>}, {transform_indices = @transform_13, window_bounds = array<i64: 1, 16, 128>}]} {
    %c0 = arith.constant 0 : index
    %c0_0 = arith.constant 0 : index
    %c0_1 = arith.constant 0 : index
    %0 = vector.load %arg1[%c0, %c0_0, %c0_1] : memref<1x16x128xf32, #tpu.memory_space<vmem>>, vector<1x16x128xf32>
    %1 = vector.shape_cast %0 : vector<1x16x128xf32> to vector<16x128xf32>
    %c0_2 = arith.constant 0 : index
    %c0_3 = arith.constant 0 : index
    %2 = vector.load %arg2[%c0_2, %c0_3] : memref<1x128xf32, #tpu.memory_space<vmem>>, vector<1x128xf32>
    %3 = vector.shape_cast %2 : vector<1x128xf32> to vector<128xf32>
    %c0_4 = arith.constant 0 : index
    %c0_5 = arith.constant 0 : index
    %4 = vector.load %arg3[%c0_4, %c0_5] : memref<1x128xf32, #tpu.memory_space<vmem>>, vector<1x128xf32>
    %5 = vector.shape_cast %4 : vector<1x128xf32> to vector<128xf32>
    %cst = arith.constant dense<0.000000e+00> : vector<16xf32>
    %6 = vector.multi_reduction <add>, %1, %cst [1] : vector<16x128xf32> to vector<16xf32>
    %7 = vector.shape_cast %6 : vector<16xf32> to vector<16x1xf32>
    %cst_6 = arith.constant 1.280000e+02 : f32
    %8 = vector.broadcast %cst_6 : f32 to vector<16x1xf32>
    %9 = arith.divf %7, %8 : vector<16x1xf32>
    %10 = vector.broadcast %9 : vector<16x1xf32> to vector<16x128xf32>
    %11 = arith.subf %1, %10 : vector<16x128xf32>
    %12 = arith.mulf %11, %11 : vector<16x128xf32>
    %cst_7 = arith.constant dense<0.000000e+00> : vector<16xf32>
    %13 = vector.multi_reduction <add>, %12, %cst_7 [1] : vector<16x128xf32> to vector<16xf32>
    %14 = vector.shape_cast %13 : vector<16xf32> to vector<16x1xf32>
    %cst_8 = arith.constant 1.280000e+02 : f32
    %15 = vector.broadcast %cst_8 : f32 to vector<16x1xf32>
    %16 = arith.divf %14, %15 : vector<16x1xf32>
    %17 = vector.broadcast %9 : vector<16x1xf32> to vector<16x128xf32>
    %18 = arith.subf %1, %17 : vector<16x128xf32>
    %cst_9 = arith.constant 9.99999974E-6 : f32
    %19 = vector.broadcast %cst_9 : f32 to vector<16x1xf32>
    %20 = arith.addf %16, %19 : vector<16x1xf32>
    %21 = math.rsqrt %20 : vector<16x1xf32>
    %22 = vector.broadcast %21 : vector<16x1xf32> to vector<16x128xf32>
    %23 = arith.mulf %18, %22 : vector<16x128xf32>
    %24 = vector.shape_cast %3 : vector<128xf32> to vector<1x128xf32>
    %25 = vector.broadcast %24 : vector<1x128xf32> to vector<16x128xf32>
    %26 = arith.mulf %23, %25 : vector<16x128xf32>
    %27 = vector.shape_cast %5 : vector<128xf32> to vector<1x128xf32>
    %28 = vector.broadcast %27 : vector<1x128xf32> to vector<16x128xf32>
    %29 = arith.addf %26, %28 : vector<16x128xf32>
    %30 = arith.truncf %29 : vector<16x128xf32> to vector<16x128xbf16>
    %c0_10 = arith.constant 0 : index
    %c0_11 = arith.constant 0 : index
    %31 = vector.load %arg4[%c0_10, %c0_11] : memref<128x384xbf16, #tpu.memory_space<vmem>>, vector<128x384xbf16>
    %cst_12 = arith.constant dense<0.000000e+00> : vector<16x384xf32>
    %32 = tpu.matmul %30, %31, %cst_12 {dimension_numbers = #tpu.dot_dimension_numbers<[1], [0], [0], [1], [0, 0, 1, 1], [], []>} : vector<16x128xbf16>, vector<128x384xbf16>, vector<16x384xf32> -> vector<16x384xf32>
    %c0_13 = arith.constant 0 : index
    %c0_14 = arith.constant 0 : index
    %33 = vector.load %arg5[%c0_13, %c0_14] : memref<1x384xf32, #tpu.memory_space<vmem>>, vector<1x384xf32>
    %34 = vector.shape_cast %33 : vector<1x384xf32> to vector<384xf32>
    %35 = vector.shape_cast %34 : vector<384xf32> to vector<1x384xf32>
    %36 = vector.broadcast %35 : vector<1x384xf32> to vector<16x384xf32>
    %37 = arith.addf %32, %36 : vector<16x384xf32>
    %38 = vector.extract_strided_slice %37 {offsets = [0, 0], sizes = [16, 128], strides = [1, 1]} : vector<16x384xf32> to vector<16x128xf32>
    %39 = vector.shape_cast %38 : vector<16x128xf32> to vector<1x16x4x32xf32>
    %40 = tpu.transpose %39, [0, 2, 1, 3] : vector<1x16x4x32xf32> -> vector<1x4x16x32xf32>
    %41 = vector.shape_cast %40 : vector<1x4x16x32xf32> to vector<4x16x32xf32>
    %42 = arith.truncf %41 : vector<4x16x32xf32> to vector<4x16x32xbf16>
    %43 = vector.extract_strided_slice %37 {offsets = [0, 128], sizes = [16, 128], strides = [1, 1]} : vector<16x384xf32> to vector<16x128xf32>
    %44 = vector.shape_cast %43 : vector<16x128xf32> to vector<1x16x4x32xf32>
    %45 = tpu.transpose %44, [0, 2, 1, 3] : vector<1x16x4x32xf32> -> vector<1x4x16x32xf32>
    %46 = vector.shape_cast %45 : vector<1x4x16x32xf32> to vector<4x16x32xf32>
    %47 = arith.truncf %46 : vector<4x16x32xf32> to vector<4x16x32xbf16>
    %48 = vector.extract_strided_slice %37 {offsets = [0, 256], sizes = [16, 128], strides = [1, 1]} : vector<16x384xf32> to vector<16x128xf32>
    %49 = vector.shape_cast %48 : vector<16x128xf32> to vector<1x16x4x32xf32>
    %50 = tpu.transpose %49, [0, 2, 1, 3] : vector<1x16x4x32xf32> -> vector<1x4x16x32xf32>
    %51 = vector.shape_cast %50 : vector<1x4x16x32xf32> to vector<4x16x32xf32>
    %52 = arith.truncf %51 : vector<4x16x32xf32> to vector<4x16x32xbf16>
    "tpu.trace_start"() <{level = 10 : i32, message = "nqd,nkd->nqk"}> : () -> ()
    %cst_15 = arith.constant dense<0.000000e+00> : vector<4x16x16xf32>
    %53 = tpu.matmul %42, %47, %cst_15 {dimension_numbers = #tpu.dot_dimension_numbers<[2], [2], [1], [1], [0, 0, 0, 1, 1, 1], [0], [0]>} : vector<4x16x32xbf16>, vector<4x16x32xbf16>, vector<4x16x16xf32> -> vector<4x16x16xf32>
    "tpu.trace_stop"() : () -> ()
    %cst_16 = arith.constant dense<0xFF800000> : vector<4x16xf32>
    %54 = vector.multi_reduction <maximumf>, %53, %cst_16 [2] : vector<4x16x16xf32> to vector<4x16xf32>
    %55 = vector.shape_cast %54 : vector<4x16xf32> to vector<4x16x1xf32>
    %56 = vector.broadcast %55 : vector<4x16x1xf32> to vector<4x16x16xf32>
    %57 = arith.subf %53, %56 : vector<4x16x16xf32>
    %58 = math.exp %57 : vector<4x16x16xf32>
    %cst_17 = arith.constant dense<0.000000e+00> : vector<4x16xf32>
    %59 = vector.multi_reduction <add>, %58, %cst_17 [2] : vector<4x16x16xf32> to vector<4x16xf32>
    %60 = vector.shape_cast %59 : vector<4x16xf32> to vector<4x16x1xf32>
    %61 = tpu.reciprocal %60 {approx = true} : vector<4x16x1xf32> -> vector<4x16x1xf32>
    %62 = vector.broadcast %61 : vector<4x16x1xf32> to vector<4x16x16xf32>
    %63 = arith.mulf %58, %62 : vector<4x16x16xf32>
    %64 = arith.truncf %63 : vector<4x16x16xf32> to vector<4x16x16xbf16>
    "tpu.trace_start"() <{level = 10 : i32, message = "nqk,nkd->nqd"}> : () -> ()
    %cst_18 = arith.constant dense<0.000000e+00> : vector<4x16x32xf32>
    %65 = tpu.matmul %64, %52, %cst_18 {dimension_numbers = #tpu.dot_dimension_numbers<[2], [1], [1], [2], [0, 0, 0, 1, 1, 2], [0], [0]>} : vector<4x16x16xbf16>, vector<4x16x32xbf16>, vector<4x16x32xf32> -> vector<4x16x32xf32>
    "tpu.trace_stop"() : () -> ()
    %66 = vector.shape_cast %65 : vector<4x16x32xf32> to vector<1x4x16x32xf32>
    %67 = tpu.transpose %66, [0, 2, 1, 3] : vector<1x4x16x32xf32> -> vector<1x16x4x32xf32>
    %68 = vector.shape_cast %67 : vector<1x16x4x32xf32> to vector<16x128xf32>
    %69 = arith.truncf %68 : vector<16x128xf32> to vector<16x128xbf16>
    %c0_19 = arith.constant 0 : index
    %c0_20 = arith.constant 0 : index
    %70 = vector.load %arg6[%c0_19, %c0_20] : memref<128x128xbf16, #tpu.memory_space<vmem>>, vector<128x128xbf16>
    %cst_21 = arith.constant dense<0.000000e+00> : vector<16x128xf32>
    %71 = tpu.matmul %69, %70, %cst_21 {dimension_numbers = #tpu.dot_dimension_numbers<[1], [0], [0], [1], [0, 0, 1, 1], [], []>} : vector<16x128xbf16>, vector<128x128xbf16>, vector<16x128xf32> -> vector<16x128xf32>
    %c0_22 = arith.constant 0 : index
    %c0_23 = arith.constant 0 : index
    %72 = vector.load %arg7[%c0_22, %c0_23] : memref<1x128xf32, #tpu.memory_space<vmem>>, vector<1x128xf32>
    %73 = vector.shape_cast %72 : vector<1x128xf32> to vector<128xf32>
    %74 = vector.shape_cast %73 : vector<128xf32> to vector<1x128xf32>
    %75 = vector.broadcast %74 : vector<1x128xf32> to vector<16x128xf32>
    %76 = arith.addf %71, %75 : vector<16x128xf32>
    %77 = arith.addf %1, %76 : vector<16x128xf32>
    %c0_24 = arith.constant 0 : index
    %c0_25 = arith.constant 0 : index
    %78 = vector.load %arg8[%c0_24, %c0_25] : memref<1x128xf32, #tpu.memory_space<vmem>>, vector<1x128xf32>
    %79 = vector.shape_cast %78 : vector<1x128xf32> to vector<128xf32>
    %c0_26 = arith.constant 0 : index
    %c0_27 = arith.constant 0 : index
    %80 = vector.load %arg9[%c0_26, %c0_27] : memref<1x128xf32, #tpu.memory_space<vmem>>, vector<1x128xf32>
    %81 = vector.shape_cast %80 : vector<1x128xf32> to vector<128xf32>
    %cst_28 = arith.constant dense<0.000000e+00> : vector<16xf32>
    %82 = vector.multi_reduction <add>, %77, %cst_28 [1] : vector<16x128xf32> to vector<16xf32>
    %83 = vector.shape_cast %82 : vector<16xf32> to vector<16x1xf32>
    %cst_29 = arith.constant 1.280000e+02 : f32
    %84 = vector.broadcast %cst_29 : f32 to vector<16x1xf32>
    %85 = arith.divf %83, %84 : vector<16x1xf32>
    %86 = vector.broadcast %85 : vector<16x1xf32> to vector<16x128xf32>
    %87 = arith.subf %77, %86 : vector<16x128xf32>
    %88 = arith.mulf %87, %87 : vector<16x128xf32>
    %cst_30 = arith.constant dense<0.000000e+00> : vector<16xf32>
    %89 = vector.multi_reduction <add>, %88, %cst_30 [1] : vector<16x128xf32> to vector<16xf32>
    %90 = vector.shape_cast %89 : vector<16xf32> to vector<16x1xf32>
    %cst_31 = arith.constant 1.280000e+02 : f32
    %91 = vector.broadcast %cst_31 : f32 to vector<16x1xf32>
    %92 = arith.divf %90, %91 : vector<16x1xf32>
    %93 = vector.broadcast %85 : vector<16x1xf32> to vector<16x128xf32>
    %94 = arith.subf %77, %93 : vector<16x128xf32>
    %cst_32 = arith.constant 9.99999974E-6 : f32
    %95 = vector.broadcast %cst_32 : f32 to vector<16x1xf32>
    %96 = arith.addf %92, %95 : vector<16x1xf32>
    %97 = math.rsqrt %96 : vector<16x1xf32>
    %98 = vector.broadcast %97 : vector<16x1xf32> to vector<16x128xf32>
    %99 = arith.mulf %94, %98 : vector<16x128xf32>
    %100 = vector.shape_cast %79 : vector<128xf32> to vector<1x128xf32>
    %101 = vector.broadcast %100 : vector<1x128xf32> to vector<16x128xf32>
    %102 = arith.mulf %99, %101 : vector<16x128xf32>
    %103 = vector.shape_cast %81 : vector<128xf32> to vector<1x128xf32>
    %104 = vector.broadcast %103 : vector<1x128xf32> to vector<16x128xf32>
    %105 = arith.addf %102, %104 : vector<16x128xf32>
    %106 = arith.truncf %105 : vector<16x128xf32> to vector<16x128xbf16>
    %c0_33 = arith.constant 0 : index
    %c0_34 = arith.constant 0 : index
    %107 = vector.load %arg10[%c0_33, %c0_34] : memref<128x512xbf16, #tpu.memory_space<vmem>>, vector<128x512xbf16>
    %cst_35 = arith.constant dense<0.000000e+00> : vector<16x512xf32>
    %108 = tpu.matmul %106, %107, %cst_35 {dimension_numbers = #tpu.dot_dimension_numbers<[1], [0], [0], [1], [0, 0, 1, 1], [], []>} : vector<16x128xbf16>, vector<128x512xbf16>, vector<16x512xf32> -> vector<16x512xf32>
    %c0_36 = arith.constant 0 : index
    %c0_37 = arith.constant 0 : index
    %109 = vector.load %arg11[%c0_36, %c0_37] : memref<1x512xf32, #tpu.memory_space<vmem>>, vector<1x512xf32>
    %110 = vector.shape_cast %109 : vector<1x512xf32> to vector<512xf32>
    %111 = vector.shape_cast %110 : vector<512xf32> to vector<1x512xf32>
    %112 = vector.broadcast %111 : vector<1x512xf32> to vector<16x512xf32>
    %113 = arith.addf %108, %112 : vector<16x512xf32>
    %cst_38 = arith.constant 5.000000e-01 : f32
    %114 = vector.broadcast %cst_38 : f32 to vector<16x512xf32>
    %115 = arith.mulf %114, %113 : vector<16x512xf32>
    %cst_39 = arith.constant 0.707106769 : f32
    %116 = vector.broadcast %cst_39 : f32 to vector<16x512xf32>
    %117 = arith.mulf %113, %116 : vector<16x512xf32>
    %118 = math.erf %117 : vector<16x512xf32>
    %cst_40 = arith.constant 1.000000e+00 : f32
    %119 = vector.broadcast %cst_40 : f32 to vector<16x512xf32>
    %120 = arith.addf %119, %118 : vector<16x512xf32>
    %121 = arith.mulf %115, %120 : vector<16x512xf32>
    %122 = arith.truncf %121 : vector<16x512xf32> to vector<16x512xbf16>
    %c0_41 = arith.constant 0 : index
    %c0_42 = arith.constant 0 : index
    %123 = vector.load %arg12[%c0_41, %c0_42] : memref<512x128xbf16, #tpu.memory_space<vmem>>, vector<512x128xbf16>
    %cst_43 = arith.constant dense<0.000000e+00> : vector<16x128xf32>
    %124 = tpu.matmul %122, %123, %cst_43 {dimension_numbers = #tpu.dot_dimension_numbers<[1], [0], [0], [1], [0, 0, 1, 1], [], []>} : vector<16x512xbf16>, vector<512x128xbf16>, vector<16x128xf32> -> vector<16x128xf32>
    %c0_44 = arith.constant 0 : index
    %c0_45 = arith.constant 0 : index
    %125 = vector.load %arg13[%c0_44, %c0_45] : memref<1x128xf32, #tpu.memory_space<vmem>>, vector<1x128xf32>
    %126 = vector.shape_cast %125 : vector<1x128xf32> to vector<128xf32>
    %127 = vector.shape_cast %126 : vector<128xf32> to vector<1x128xf32>
    %128 = vector.broadcast %127 : vector<1x128xf32> to vector<16x128xf32>
    %129 = arith.addf %124, %128 : vector<16x128xf32>
    %130 = arith.addf %77, %129 : vector<16x128xf32>
    %131 = vector.shape_cast %130 : vector<16x128xf32> to vector<1x16x128xf32>
    %c0_46 = arith.constant 0 : index
    %c0_47 = arith.constant 0 : index
    %c0_48 = arith.constant 0 : index
    %132 = vector.load %arg14[%c0_46, %c0_47, %c0_48] : memref<1x16x128xf32, #tpu.memory_space<vmem>>, vector<1x16x128xf32>
    tpu.vector_store %arg14[%c0_46, %c0_47, %c0_48], %131 {strides = array<i32>} : memref<1x16x128xf32, #tpu.memory_space<vmem>>, vector<1x16x128xf32>,
    return
  }
  func.func @transform_0(%arg0: i32) -> (i32, i32, i32) {
    %c0_i32 = arith.constant 0 : i32
    %c0_i32_0 = arith.constant 0 : i32
    %c0_i32_1 = arith.constant 0 : i32
    return %arg0, %c0_i32, %c0_i32_0 : i32, i32, i32
  }
  func.func @transform_1(%arg0: i32) -> (i32, i32) {
    %c0_i32 = arith.constant 0 : i32
    %c0_i32_0 = arith.constant 0 : i32
    %c0_i32_1 = arith.constant 0 : i32
    return %c0_i32, %c0_i32_0 : i32, i32
  }
  func.func @transform_2(%arg0: i32) -> (i32, i32) {
    %c0_i32 = arith.constant 0 : i32
    %c0_i32_0 = arith.constant 0 : i32
    %c0_i32_1 = arith.constant 0 : i32
    return %c0_i32, %c0_i32_0 : i32, i32
  }
  func.func @transform_3(%arg0: i32) -> (i32, i32) {
    %c0_i32 = arith.constant 0 : i32
    %c0_i32_0 = arith.constant 0 : i32
    %c0_i32_1 = arith.constant 0 : i32
    return %c0_i32, %c0_i32_0 : i32, i32
  }
  func.func @transform_4(%arg0: i32) -> (i32, i32) {
    %c0_i32 = arith.constant 0 : i32
    %c0_i32_0 = arith.constant 0 : i32
    %c0_i32_1 = arith.constant 0 : i32
    return %c0_i32, %c0_i32_0 : i32, i32
  }
  func.func @transform_5(%arg0: i32) -> (i32, i32) {
    %c0_i32 = arith.constant 0 : i32
    %c0_i32_0 = arith.constant 0 : i32
    %c0_i32_1 = arith.constant 0 : i32
    return %c0_i32, %c0_i32_0 : i32, i32
  }
  func.func @transform_6(%arg0: i32) -> (i32, i32) {
    %c0_i32 = arith.constant 0 : i32
    %c0_i32_0 = arith.constant 0 : i32
    %c0_i32_1 = arith.constant 0 : i32
    return %c0_i32, %c0_i32_0 : i32, i32
  }
  func.func @transform_7(%arg0: i32) -> (i32, i32) {
    %c0_i32 = arith.constant 0 : i32
    %c0_i32_0 = arith.constant 0 : i32
    %c0_i32_1 = arith.constant 0 : i32
    return %c0_i32, %c0_i32_0 : i32, i32
  }
  func.func @transform_8(%arg0: i32) -> (i32, i32) {
    %c0_i32 = arith.constant 0 : i32
    %c0_i32_0 = arith.constant 0 : i32
    %c0_i32_1 = arith.constant 0 : i32
    return %c0_i32, %c0_i32_0 : i32, i32
  }
  func.func @transform_9(%arg0: i32) -> (i32, i32) {
    %c0_i32 = arith.constant 0 : i32
    %c0_i32_0 = arith.constant 0 : i32
    %c0_i32_1 = arith.constant 0 : i32
    return %c0_i32, %c0_i32_0 : i32, i32
  }
  func.func @transform_10(%arg0: i32) -> (i32, i32) {
    %c0_i32 = arith.constant 0 : i32
    %c0_i32_0 = arith.constant 0 : i32
    %c0_i32_1 = arith.constant 0 : i32
    return %c0_i32, %c0_i32_0 : i32, i32
  }
  func.func @transform_11(%arg0: i32) -> (i32, i32) {
    %c0_i32 = arith.constant 0 : i32
    %c0_i32_0 = arith.constant 0 : i32
    %c0_i32_1 = arith.constant 0 : i32
    return %c0_i32, %c0_i32_0 : i32, i32
  }
  func.func @transform_12(%arg0: i32) -> (i32, i32) {
    %c0_i32 = arith.constant 0 : i32
    %c0_i32_0 = arith.constant 0 : i32
    %c0_i32_1 = arith.constant 0 : i32
    return %c0_i32, %c0_i32_0 : i32, i32
  }
  func.func @transform_13(%arg0: i32) -> (i32, i32, i32) {
    %c0_i32 = arith.constant 0 : i32
    %c0_i32_0 = arith.constant 0 : i32
    %c0_i32_1 = arith.constant 0 : i32
    return %arg0, %c0_i32, %c0_i32_0 : i32, i32, i32
  }
}

</mosaic_0001>

<llo_original>
// kernel: tpu_custom_call.1
$region0: #{tpu_custom_call.1}
  #allocation0 [shape = 'u32[]', space=smem, size = 0x4, offset = 0x4, fixed_abs, tag = 'smem constant byte address 0x4 - core index']
  #allocation1 [shape = 'u32[144,128]{1,0:T(1,128)}', space=vmem, size = 0x12000, scoped, tag = 'internal scratch']
  %s0 = inlined_call_operand.hbm [shape: f32[2,16,128], index: 0, kind: input, shape index: {}]
  %s1 = inlined_call_operand.hbm [shape: f32[1,128], index: 1, kind: input, shape index: {}]
  %s2 = inlined_call_operand.hbm [shape: f32[1,128], index: 2, kind: input, shape index: {}]
  %s3 = inlined_call_operand.hbm [shape: bf16[128,384], index: 3, kind: input, shape index: {}]
  %s4 = inlined_call_operand.vmem [shape: f32[1,384], index: 4, kind: input, shape index: {}]
  %s5 = inlined_call_operand.hbm [shape: bf16[128,128], index: 5, kind: input, shape index: {}]
  %s6 = inlined_call_operand.vmem [shape: f32[1,128], index: 6, kind: input, shape index: {}]
  %s7 = inlined_call_operand.vmem [shape: f32[1,128], index: 7, kind: input, shape index: {}]
  %s8 = inlined_call_operand.vmem [shape: f32[1,128], index: 8, kind: input, shape index: {}]
  %s9 = inlined_call_operand.hbm [shape: bf16[128,512], index: 9, kind: input, shape index: {}]
  %s10 = inlined_call_operand.vmem [shape: f32[1,512], index: 10, kind: input, shape index: {}]
  %s11 = inlined_call_operand.hbm [shape: bf16[512,128], index: 11, kind: input, shape index: {}]
  %s12 = inlined_call_operand.vmem [shape: f32[1,128], index: 12, kind: input, shape index: {}]
  %s13 = inlined_call_operand.hbm [shape: f32[2,16,128], index: 13, kind: output, shape index: {}]
  %s14 = sld [smem:[#allocation0]]
  $region113: #{tpu_custom_call.1} parent=0
    _
  %s16 = ssub.s32 1, %s14
  %s17 = scalar_select 0, %s16, %s14
  $region1: #{tpu_custom_call.1} parent=0
    #allocation2 [shape = 'u8[16384]{0}', space=vmem, size = 0x4000, scoped, tag = 'input window, operand 0']
    #allocation3 [shape = 's32[2]{0}', space=sflag, size = 0x8, scoped, tag = 'scoped memory for tpu_custom_call.1']
    #allocation4 [shape = 's32[2]{0}', space=sflag, size = 0x8, scoped, tag = 'scoped memory for tpu_custom_call.1']
    #allocation5 [shape = 'u8[512]{0}', space=vmem, size = 0x400, scoped, tag = 'input window, operand 1, single buffered']
    #allocation6 [shape = 's32[1]{0}', space=sflag, size = 0x4, scoped, tag = 'scoped memory for tpu_custom_call.1']
    #allocation7 [shape = 'u8[512]{0}', space=vmem, size = 0x400, scoped, tag = 'input window, operand 2, single buffered']
    #allocation8 [shape = 'u8[98304]{0}', space=vmem, size = 0x18000, scoped, tag = 'input window, operand 3, single buffered']
    #allocation9 [shape = 's32[1]{0}', space=sflag, size = 0x4, scoped, tag = 'scoped memory for tpu_custom_call.1']
    #allocation10 [shape = 'u8[32768]{0}', space=vmem, size = 0x8000, scoped, tag = 'input window, operand 5, single buffered']
    #allocation11 [shape = 'u8[131072]{0}', space=vmem, size = 0x20000, scoped, tag = 'input window, operand 9, single buffered']
    #allocation12 [shape = 's32[1]{0}', space=sflag, size = 0x4, scoped, tag = 'scoped memory for tpu_custom_call.1']
    #allocation13 [shape = 'u8[131072]{0}', space=vmem, size = 0x20000, scoped, tag = 'input window, operand 11, single buffered']
    #allocation14 [shape = 'u8[16384]{0}', space=vmem, size = 0x4000, scoped, tag = 'output window, operand 0']
    %18 = vsyncpa [#allocation3], 0
    %s19 = scalar_lea.sflag [#allocation3], 1
    %20 = vsyncpa %s19, 0
    %21 = vsyncpa [#allocation6], 0
    %22 = vsyncpa [#allocation9], 0
    %23 = vsyncpa [#allocation12], 0
    %24 = vsyncpa [#allocation4], 0
    %s25 = scalar_lea.sflag [#allocation4], 1
    %26 = vsyncpa %s25, 0
    loop: start=0, step=1, limit=4
    $region2: #{tpu_custom_call.1} parent=1 // loop_pre_header
      _
    $region3: #{tpu_custom_call.1} parent=1 // loop_header
      %s28 = sphi 0, %s32
      %p29 = scmp.ge.s32.totalorder %s28, 4
      %s38 = sphi 0, %s40
      %s41 = sphi 0, %s38
      %s42 = sphi 0, %s41
      %s58 = sphi 0, %s42
      %s62 = sphi 0, %s62
      %s64 = sphi 0, %s62
      %s65 = sphi 0, %s64
      %s79 = sphi 0, %s65
      %s83 = sphi 0, %s83
      %s85 = sphi 0, %s83
      %s86 = sphi 0, %s85
      %s100 = sphi 0, %s86
      %s104 = sphi 0, %s104
      %s106 = sphi 0, %s104
      %s107 = sphi 0, %s106
      %s121 = sphi 0, %s107
      %s125 = sphi 0, %s125
      %s127 = sphi 0, %s125
      %s128 = sphi 0, %s127
      %s142 = sphi 0, %s128
      %s146 = sphi 0, %s146
      %s148 = sphi 0, %s146
      %s149 = sphi 0, %s148
      %s163 = sphi 0, %s149
      %s167 = sphi 0, %s167
      %s169 = sphi 0, %s167
      %s170 = sphi 0, %s169
      %s184 = sphi 0, %s170
      %s188 = sphi 0, %s188
      %s190 = sphi 0, %s188
      %s191 = sphi 0, %s190
      %s205 = sphi 0, %s191
      %s209 = sphi 0, %s209
      %s211 = sphi 0, %s209
      %s212 = sphi 0, %s211
      %s226 = sphi 0, %s212
      %s230 = sphi 0, %s230
      %s232 = sphi 0, %s230
      %s233 = sphi 0, %s232
      %s247 = sphi 0, %s233
      %s251 = sphi 0, %s251
      %s253 = sphi 0, %s251
      %s254 = sphi 0, %s253
      %s268 = sphi 0, %s254
      %s272 = sphi 0, %s272
      %s274 = sphi 0, %s272
      %s275 = sphi 0, %s274
      %s289 = sphi 0, %s275
      %s293 = sphi 0, %s293
      %s295 = sphi 0, %s293
      %s296 = sphi 0, %s295
      %s310 = sphi 0, %s296
      %s316 = sphi 0, %s318
      %s319 = sphi 0, %s316
      %s320 = sphi 0, %s319
      %s336 = sphi 0, %s320
    $region4: #{tpu_custom_call.1} parent=1 // loop_header_branch
      %31 = sbr.rel (%p29) target = $region8
    $region5: #{tpu_custom_call.1} parent=1 // loop_body
      %s33 = ssub.s32 %s28, 1
      %s34 = ssub.s32 %s28, 2
      %s35 = sadd.s32 %s28, 1
      %s36 = ssub.s32 %s28, %s35
      %p37 = scmp.eq.s32.totalorder %s36, 0
      %s39 = sadd.s32 %s38, 1
      %s40 = scalar_select %p37, %s38, %s39
      %p43 = pneg %p37
      %p44 = scmp.eq.s32.totalorder %s28, 1
      %p45 = por %p43, %p44
      %p46 = scmp.ne.s32.totalorder %s38, %s41
      %p47 = scmp.eq.s32.totalorder %s28, 0
      %p48 = por %p46, %p47
      %p49 = scmp.ne.s32.totalorder %s38, %s41
      %p50 = scmp.eq.s32.totalorder %s33, 1
      %p51 = por %p49, %p50
      %p52 = scmp.ne.s32.totalorder %s41, %s42
      %p53 = scmp.eq.s32.totalorder %s33, 0
      %p54 = por %p52, %p53
      %p55 = scmp.ne.s32.totalorder %s41, %s42
      %p56 = scmp.eq.s32.totalorder %s34, 1
      %p57 = por %p55, %p56
      %p59 = scmp.ne.s32.totalorder %s42, %s58
      %p60 = scmp.eq.s32.totalorder %s34, 0
      %p61 = por %p59, %p60
      %s63 = sadd.s32 %s62, 1
      %p66 = scmp.eq.s32.totalorder %s28, 1
      %p67 = scmp.ne.s32.totalorder %s62, %s64
      %p68 = scmp.eq.s32.totalorder %s28, 0
      %p69 = por %p67, %p68
      %p70 = scmp.ne.s32.totalorder %s62, %s64
      %p71 = scmp.eq.s32.totalorder %s33, 1
      %p72 = por %p70, %p71
      %p73 = scmp.ne.s32.totalorder %s64, %s65
      %p74 = scmp.eq.s32.totalorder %s33, 0
      %p75 = por %p73, %p74
      %p76 = scmp.ne.s32.totalorder %s64, %s65
      %p77 = scmp.eq.s32.totalorder %s34, 1
      %p78 = por %p76, %p77
      %p80 = scmp.ne.s32.totalorder %s65, %s79
      %p81 = scmp.eq.s32.totalorder %s34, 0
      %p82 = por %p80, %p81
      %s84 = sadd.s32 %s83, 1
      %p87 = scmp.eq.s32.totalorder %s28, 1
      %p88 = scmp.ne.s32.totalorder %s83, %s85
      %p89 = scmp.eq.s32.totalorder %s28, 0
      %p90 = por %p88, %p89
      %p91 = scmp.ne.s32.totalorder %s83, %s85
      %p92 = scmp.eq.s32.totalorder %s33, 1
      %p93 = por %p91, %p92
      %p94 = scmp.ne.s32.totalorder %s85, %s86
      %p95 = scmp.eq.s32.totalorder %s33, 0
      %p96 = por %p94, %p95
      %p97 = scmp.ne.s32.totalorder %s85, %s86
      %p98 = scmp.eq.s32.totalorder %s34, 1
      %p99 = por %p97, %p98
      %p101 = scmp.ne.s32.totalorder %s86, %s100
      %p102 = scmp.eq.s32.totalorder %s34, 0
      %p103 = por %p101, %p102
      %s105 = sadd.s32 %s104, 1
      %p108 = scmp.eq.s32.totalorder %s28, 1
      %p109 = scmp.ne.s32.totalorder %s104, %s106
      %p110 = scmp.eq.s32.totalorder %s28, 0
      %p111 = por %p109, %p110
      %p112 = scmp.ne.s32.totalorder %s104, %s106
      %p113 = scmp.eq.s32.totalorder %s33, 1
      %p114 = por %p112, %p113
      %p115 = scmp.ne.s32.totalorder %s106, %s107
      %p116 = scmp.eq.s32.totalorder %s33, 0
      %p117 = por %p115, %p116
      %p118 = scmp.ne.s32.totalorder %s106, %s107
      %p119 = scmp.eq.s32.totalorder %s34, 1
      %p120 = por %p118, %p119
      %p122 = scmp.ne.s32.totalorder %s107, %s121
      %p123 = scmp.eq.s32.totalorder %s34, 0
      %p124 = por %p122, %p123
      %s126 = sadd.s32 %s125, 1
      %p129 = scmp.eq.s32.totalorder %s28, 1
      %p130 = scmp.ne.s32.totalorder %s125, %s127
      %p131 = scmp.eq.s32.totalorder %s28, 0
      %p132 = por %p130, %p131
      %p133 = scmp.ne.s32.totalorder %s125, %s127
      %p134 = scmp.eq.s32.totalorder %s33, 1
      %p135 = por %p133, %p134
      %p136 = scmp.ne.s32.totalorder %s127, %s128
      %p137 = scmp.eq.s32.totalorder %s33, 0
      %p138 = por %p136, %p137
      %p139 = scmp.ne.s32.totalorder %s127, %s128
      %p140 = scmp.eq.s32.totalorder %s34, 1
      %p141 = por %p139, %p140
      %p143 = scmp.ne.s32.totalorder %s128, %s142
      %p144 = scmp.eq.s32.totalorder %s34, 0
      %p145 = por %p143, %p144
      %s147 = sadd.s32 %s146, 1
      %p150 = scmp.eq.s32.totalorder %s28, 1
      %p151 = scmp.ne.s32.totalorder %s146, %s148
      %p152 = scmp.eq.s32.totalorder %s28, 0
      %p153 = por %p151, %p152
      %p154 = scmp.ne.s32.totalorder %s146, %s148
      %p155 = scmp.eq.s32.totalorder %s33, 1
      %p156 = por %p154, %p155
      %p157 = scmp.ne.s32.totalorder %s148, %s149
      %p158 = scmp.eq.s32.totalorder %s33, 0
      %p159 = por %p157, %p158
      %p160 = scmp.ne.s32.totalorder %s148, %s149
      %p161 = scmp.eq.s32.totalorder %s34, 1
      %p162 = por %p160, %p161
      %p164 = scmp.ne.s32.totalorder %s149, %s163
      %p165 = scmp.eq.s32.totalorder %s34, 0
      %p166 = por %p164, %p165
      %s168 = sadd.s32 %s167, 1
      %p171 = scmp.eq.s32.totalorder %s28, 1
      %p172 = scmp.ne.s32.totalorder %s167, %s169
      %p173 = scmp.eq.s32.totalorder %s28, 0
      %p174 = por %p172, %p173
      %p175 = scmp.ne.s32.totalorder %s167, %s169
      %p176 = scmp.eq.s32.totalorder %s33, 1
      %p177 = por %p175, %p176
      %p178 = scmp.ne.s32.totalorder %s169, %s170
      %p179 = scmp.eq.s32.totalorder %s33, 0
      %p180 = por %p178, %p179
      %p181 = scmp.ne.s32.totalorder %s169, %s170
      %p182 = scmp.eq.s32.totalorder %s34, 1
      %p183 = por %p181, %p182
      %p185 = scmp.ne.s32.totalorder %s170, %s184
      %p186 = scmp.eq.s32.totalorder %s34, 0
      %p187 = por %p185, %p186
      %s189 = sadd.s32 %s188, 1
      %p192 = scmp.eq.s32.totalorder %s28, 1
      %p193 = scmp.ne.s32.totalorder %s188, %s190
      %p194 = scmp.eq.s32.totalorder %s28, 0
      %p195 = por %p193, %p194
      %p196 = scmp.ne.s32.totalorder %s188, %s190
      %p197 = scmp.eq.s32.totalorder %s33, 1
      %p198 = por %p196, %p197
      %p199 = scmp.ne.s32.totalorder %s190, %s191
      %p200 = scmp.eq.s32.totalorder %s33, 0
      %p201 = por %p199, %p200
      %p202 = scmp.ne.s32.totalorder %s190, %s191
      %p203 = scmp.eq.s32.totalorder %s34, 1
      %p204 = por %p202, %p203
      %p206 = scmp.ne.s32.totalorder %s191, %s205
      %p207 = scmp.eq.s32.totalorder %s34, 0
      %p208 = por %p206, %p207
      %s210 = sadd.s32 %s209, 1
      %p213 = scmp.eq.s32.totalorder %s28, 1
      %p214 = scmp.ne.s32.totalorder %s209, %s211
      %p215 = scmp.eq.s32.totalorder %s28, 0
      %p216 = por %p214, %p215
      %p217 = scmp.ne.s32.totalorder %s209, %s211
      %p218 = scmp.eq.s32.totalorder %s33, 1
      %p219 = por %p217, %p218
      %p220 = scmp.ne.s32.totalorder %s211, %s212
      %p221 = scmp.eq.s32.totalorder %s33, 0
      %p222 = por %p220, %p221
      %p223 = scmp.ne.s32.totalorder %s211, %s212
      %p224 = scmp.eq.s32.totalorder %s34, 1
      %p225 = por %p223, %p224
      %p227 = scmp.ne.s32.totalorder %s212, %s226
      %p228 = scmp.eq.s32.totalorder %s34, 0
      %p229 = por %p227, %p228
      %s231 = sadd.s32 %s230, 1
      %p234 = scmp.eq.s32.totalorder %s28, 1
      %p235 = scmp.ne.s32.totalorder %s230, %s232
      %p236 = scmp.eq.s32.totalorder %s28, 0
      %p237 = por %p235, %p236
      %p238 = scmp.ne.s32.totalorder %s230, %s232
      %p239 = scmp.eq.s32.totalorder %s33, 1
      %p240 = por %p238, %p239
      %p241 = scmp.ne.s32.totalorder %s232, %s233
      %p242 = scmp.eq.s32.totalorder %s33, 0
      %p243 = por %p241, %p242
      %p244 = scmp.ne.s32.totalorder %s232, %s233
      %p245 = scmp.eq.s32.totalorder %s34, 1
      %p246 = por %p244, %p245
      %p248 = scmp.ne.s32.totalorder %s233, %s247
      %p249 = scmp.eq.s32.totalorder %s34, 0
      %p250 = por %p248, %p249
      %s252 = sadd.s32 %s251, 1
      %p255 = scmp.eq.s32.totalorder %s28, 1
      %p256 = scmp.ne.s32.totalorder %s251, %s253
      %p257 = scmp.eq.s32.totalorder %s28, 0
      %p258 = por %p256, %p257
      %p259 = scmp.ne.s32.totalorder %s251, %s253
      %p260 = scmp.eq.s32.totalorder %s33, 1
      %p261 = por %p259, %p260
      %p262 = scmp.ne.s32.totalorder %s253, %s254
      %p263 = scmp.eq.s32.totalorder %s33, 0
      %p264 = por %p262, %p263
      %p265 = scmp.ne.s32.totalorder %s253, %s254
      %p266 = scmp.eq.s32.totalorder %s34, 1
      %p267 = por %p265, %p266
      %p269 = scmp.ne.s32.totalorder %s254, %s268
      %p270 = scmp.eq.s32.totalorder %s34, 0
      %p271 = por %p269, %p270
      %s273 = sadd.s32 %s272, 1
      %p276 = scmp.eq.s32.totalorder %s28, 1
      %p277 = scmp.ne.s32.totalorder %s272, %s274
      %p278 = scmp.eq.s32.totalorder %s28, 0
      %p279 = por %p277, %p278
      %p280 = scmp.ne.s32.totalorder %s272, %s274
      %p281 = scmp.eq.s32.totalorder %s33, 1
      %p282 = por %p280, %p281
      %p283 = scmp.ne.s32.totalorder %s274, %s275
      %p284 = scmp.eq.s32.totalorder %s33, 0
      %p285 = por %p283, %p284
      %p286 = scmp.ne.s32.totalorder %s274, %s275
      %p287 = scmp.eq.s32.totalorder %s34, 1
      %p288 = por %p286, %p287
      %p290 = scmp.ne.s32.totalorder %s275, %s289
      %p291 = scmp.eq.s32.totalorder %s34, 0
      %p292 = por %p290, %p291
      %s294 = sadd.s32 %s293, 1
      %p297 = scmp.eq.s32.totalorder %s28, 1
      %p298 = scmp.ne.s32.totalorder %s293, %s295
      %p299 = scmp.eq.s32.totalorder %s28, 0
      %p300 = por %p298, %p299
      %p301 = scmp.ne.s32.totalorder %s293, %s295
      %p302 = scmp.eq.s32.totalorder %s33, 1
      %p303 = por %p301, %p302
      %p304 = scmp.ne.s32.totalorder %s295, %s296
      %p305 = scmp.eq.s32.totalorder %s33, 0
      %p306 = por %p304, %p305
      %p307 = scmp.ne.s32.totalorder %s295, %s296
      %p308 = scmp.eq.s32.totalorder %s34, 1
      %p309 = por %p307, %p308
      %p311 = scmp.ne.s32.totalorder %s296, %s310
      %p312 = scmp.eq.s32.totalorder %s34, 0
      %p313 = por %p311, %p312
      %s314 = ssub.s32 %s28, %s35
      %p315 = scmp.eq.s32.totalorder %s314, 0
      %s317 = sadd.s32 %s316, 1
      %s318 = scalar_select %p315, %s316, %s317
      %p321 = pneg %p315
      %p322 = scmp.eq.s32.totalorder %s28, 1
      %p323 = por %p321, %p322
      %p324 = scmp.ne.s32.totalorder %s316, %s319
      %p325 = scmp.eq.s32.totalorder %s28, 0
      %p326 = por %p324, %p325
      %p327 = scmp.ne.s32.totalorder %s316, %s319
      %p328 = scmp.eq.s32.totalorder %s33, 1
      %p329 = por %p327, %p328
      %p330 = scmp.ne.s32.totalorder %s319, %s320
      %p331 = scmp.eq.s32.totalorder %s33, 0
      %p332 = por %p330, %p331
      %p333 = scmp.ne.s32.totalorder %s319, %s320
      %p334 = scmp.eq.s32.totalorder %s34, 1
      %p335 = por %p333, %p334
      %p337 = scmp.ne.s32.totalorder %s320, %s336
      %p338 = scmp.eq.s32.totalorder %s34, 0
      %p339 = por %p337, %p338
      %p340 = scmp.le.s32.totalorder 1, %s28
      %p341 = scmp.lt.s32.totalorder %s28, 3
      %p342 = pnand %p340, %p341
      %p343 = pneg %p342
      // Predicated region
      $region9: #{tpu_custom_call.1} parent=5 // pred_check
        _
      $region10: #{tpu_custom_call.1} parent=5 // pred_check_branch
        %345 = sbr.rel (%p342) target = $region12
      $region11: #{tpu_custom_call.1} parent=5 // pred_region
        %s346 = ssub.s32 %s28, 1
        // Predicated region
        $region13: #{tpu_custom_call.1} parent=11 // pred_check
          %p347 = pneg %p75
        $region14: #{tpu_custom_call.1} parent=11 // pred_check_branch
          %349 = sbr.rel (%p347) target = $region16
        $region15: #{tpu_custom_call.1} parent=11 // pred_region
          %s351 = ssub.s32 16, 16
          %352 = vsyncadd [#allocation6], %s351
          %s354 = sshll.u32 [#allocation5], 4
          %s355 = int_to_ptr.vmem [resolvable:$true] %s354
          %357 = dma.hbm_to_vmem [thread:$0]  %s1, 16, %s355, [#allocation6]
        $region16: #{tpu_custom_call.1} parent=11 // pred_fallthru
          _
        // Predicated region
        $region17: #{tpu_custom_call.1} parent=11 // pred_check
          %p358 = pneg %p96
        $region18: #{tpu_custom_call.1} parent=11 // pred_check_branch
          %360 = sbr.rel (%p358) target = $region20
        $region19: #{tpu_custom_call.1} parent=11 // pred_region
          %s362 = ssub.s32 16, 16
          %363 = vsyncadd [#allocation6], %s362
          %s365 = sshll.u32 [#allocation7], 4
          %s366 = int_to_ptr.vmem [resolvable:$true] %s365
          %368 = dma.hbm_to_vmem [thread:$0]  %s2, 16, %s366, [#allocation6]
        $region20: #{tpu_custom_call.1} parent=11 // pred_fallthru
          _
        // Predicated region
        $region21: #{tpu_custom_call.1} parent=11 // pred_check
          %p369 = pneg %p117
        $region22: #{tpu_custom_call.1} parent=11 // pred_check_branch
          %371 = sbr.rel (%p369) target = $region24
        $region23: #{tpu_custom_call.1} parent=11 // pred_region
          %s373 = ssub.s32 3072, 3072
          %374 = vsyncadd [#allocation9], %s373
          %s375 = sshll.u32 [#allocation8], 4
          %s376 = int_to_ptr.vmem [resolvable:$true] %s375
          %381 = dma.hbm_to_vmem [thread:$0]  %s3, 3072, %s376, [#allocation9], 192, 192, 12
        $region24: #{tpu_custom_call.1} parent=11 // pred_fallthru
          _
        // Predicated region
        $region25: #{tpu_custom_call.1} parent=11 // pred_check
          %p382 = pneg %p138
        $region26: #{tpu_custom_call.1} parent=11 // pred_check_branch
          %384 = sbr.rel (%p382) target = $region28
        $region27: #{tpu_custom_call.1} parent=11 // pred_region
          _
        $region28: #{tpu_custom_call.1} parent=11 // pred_fallthru
          _
        // Predicated region
        $region29: #{tpu_custom_call.1} parent=11 // pred_check
          %p385 = pneg %p159
        $region30: #{tpu_custom_call.1} parent=11 // pred_check_branch
          %387 = sbr.rel (%p385) target = $region32
        $region31: #{tpu_custom_call.1} parent=11 // pred_region
          %s389 = ssub.s32 1024, 1024
          %390 = vsyncadd [#allocation9], %s389
          %s391 = sshll.u32 [#allocation10], 4
          %s392 = int_to_ptr.vmem [resolvable:$true] %s391
          %397 = dma.hbm_to_vmem [thread:$0]  %s5, 1024, %s392, [#allocation9], 64, 64, 4
        $region32: #{tpu_custom_call.1} parent=11 // pred_fallthru
          _
        // Predicated region
        $region33: #{tpu_custom_call.1} parent=11 // pred_check
          %p398 = pneg %p180
        $region34: #{tpu_custom_call.1} parent=11 // pred_check_branch
          %400 = sbr.rel (%p398) target = $region36
        $region35: #{tpu_custom_call.1} parent=11 // pred_region
          _
        $region36: #{tpu_custom_call.1} parent=11 // pred_fallthru
          _
        // Predicated region
        $region37: #{tpu_custom_call.1} parent=11 // pred_check
          %p401 = pneg %p201
        $region38: #{tpu_custom_call.1} parent=11 // pred_check_branch
          %403 = sbr.rel (%p401) target = $region40
        $region39: #{tpu_custom_call.1} parent=11 // pred_region
          _
        $region40: #{tpu_custom_call.1} parent=11 // pred_fallthru
          _
        // Predicated region
        $region41: #{tpu_custom_call.1} parent=11 // pred_check
          %p404 = pneg %p222
        $region42: #{tpu_custom_call.1} parent=11 // pred_check_branch
          %406 = sbr.rel (%p404) target = $region44
        $region43: #{tpu_custom_call.1} parent=11 // pred_region
          _
        $region44: #{tpu_custom_call.1} parent=11 // pred_fallthru
          _
        // Predicated region
        $region45: #{tpu_custom_call.1} parent=11 // pred_check
          %p407 = pneg %p243
        $region46: #{tpu_custom_call.1} parent=11 // pred_check_branch
          %409 = sbr.rel (%p407) target = $region48
        $region47: #{tpu_custom_call.1} parent=11 // pred_region
          %s411 = ssub.s32 4096, 4096
          %412 = vsyncadd [#allocation12], %s411
          %s413 = sshll.u32 [#allocation11], 4
          %s414 = int_to_ptr.vmem [resolvable:$true] %s413
          %419 = dma.hbm_to_vmem [thread:$0]  %s9, 4096, %s414, [#allocation12], 256, 256, 16
        $region48: #{tpu_custom_call.1} parent=11 // pred_fallthru
          _
        // Predicated region
        $region49: #{tpu_custom_call.1} parent=11 // pred_check
          %p420 = pneg %p264
        $region50: #{tpu_custom_call.1} parent=11 // pred_check_branch
          %422 = sbr.rel (%p420) target = $region52
        $region51: #{tpu_custom_call.1} parent=11 // pred_region
          _
        $region52: #{tpu_custom_call.1} parent=11 // pred_fallthru
          _
        // Predicated region
        $region53: #{tpu_custom_call.1} parent=11 // pred_check
          %p423 = pneg %p285
        $region54: #{tpu_custom_call.1} parent=11 // pred_check_branch
          %425 = sbr.rel (%p423) target = $region56
        $region55: #{tpu_custom_call.1} parent=11 // pred_region
          %s427 = ssub.s32 4096, 4096
          %428 = vsyncadd [#allocation12], %s427
          %s429 = sshll.u32 [#allocation13], 4
          %s430 = int_to_ptr.vmem [resolvable:$true] %s429
          %435 = dma.hbm_to_vmem [thread:$0]  %s11, 4096, %s430, [#allocation12], 64, 64, 4
        $region56: #{tpu_custom_call.1} parent=11 // pred_fallthru
          _
        // Predicated region
        $region57: #{tpu_custom_call.1} parent=11 // pred_check
          %p436 = pneg %p306
        $region58: #{tpu_custom_call.1} parent=11 // pred_check_branch
          %438 = sbr.rel (%p436) target = $region60
        $region59: #{tpu_custom_call.1} parent=11 // pred_region
          _
        $region60: #{tpu_custom_call.1} parent=11 // pred_fallthru
          _
      $region12: #{tpu_custom_call.1} parent=5 // pred_fallthru
        _
      %p439 = scmp.lt.s32.totalorder %s28, 2
      // Predicated region
      $region61: #{tpu_custom_call.1} parent=5 // pred_check
        %p440 = pneg %p439
      $region62: #{tpu_custom_call.1} parent=5 // pred_check_branch
        %442 = sbr.rel (%p440) target = $region64
      $region63: #{tpu_custom_call.1} parent=5 // pred_region
        // Predicated region
        $region65: #{tpu_custom_call.1} parent=63 // pred_check
          %p443 = pneg %p48
        $region66: #{tpu_custom_call.1} parent=63 // pred_check_branch
          %445 = sbr.rel (%p443) target = $region68
        $region67: #{tpu_custom_call.1} parent=63 // pred_region
          %s446 = sand.u32 %s38, 1
          %s447 = scalar_lea.sflag [#allocation3], %s446
          %s448 = sand.u32 %s38, 1
          %s449 = smul.addr %s448, 16
          %s450 = scalar_lea.vmem [#allocation2], %s449
          %s452 = ssub.s32 256, 256
          %453 = vsyncadd %s447, %s452
          %s454 = smul.addr %s28, 2
          %s455 = smul.addr %s454, 128
          %s456 = scalar_lea.hbm %s0, %s455
          %s457 = sshll.u32 %s450, 4
          %s458 = int_to_ptr.vmem [resolvable:$true] %s457
          %463 = dma.hbm_to_vmem [thread:$0]  %s456, 256, %s458, %s447, 128, 128, 8
        $region68: #{tpu_custom_call.1} parent=63 // pred_fallthru
          _
      $region64: #{tpu_custom_call.1} parent=5 // pred_fallthru
        _
      %p464 = scmp.le.s32.totalorder 1, %s28
      %p465 = scmp.lt.s32.totalorder %s28, 3
      %p466 = pnand %p464, %p465
      %p467 = pneg %p466
      // Predicated region
      $region69: #{tpu_custom_call.1} parent=5 // pred_check
        _
      $region70: #{tpu_custom_call.1} parent=5 // pred_check_branch
        %469 = sbr.rel (%p466) target = $region72
      $region71: #{tpu_custom_call.1} parent=5 // pred_region
        %s470 = ssub.s32 %s28, 1
        %s471 = sand.u32 %s41, 1
        %s472 = scalar_lea.sflag [#allocation3], %s471
        %s473 = sand.u32 %s41, 1
        %s474 = smul.addr %s473, 16
        %s475 = scalar_lea.vmem [#allocation2], %s474
        // Predicated region
        $region73: #{tpu_custom_call.1} parent=71 // pred_check
          %p476 = pneg %p54
        $region74: #{tpu_custom_call.1} parent=71 // pred_check_branch
          %478 = sbr.rel (%p476) target = $region76
        $region75: #{tpu_custom_call.1} parent=71 // pred_region
          %479 = dma.done %s472, 256
        $region76: #{tpu_custom_call.1} parent=71 // pred_fallthru
          _
        // Predicated region
        $region77: #{tpu_custom_call.1} parent=71 // pred_check
          %p480 = pneg %p75
        $region78: #{tpu_custom_call.1} parent=71 // pred_check_branch
          %482 = sbr.rel (%p480) target = $region80
        $region79: #{tpu_custom_call.1} parent=71 // pred_region
          %483 = dma.done [#allocation6], 16
        $region80: #{tpu_custom_call.1} parent=71 // pred_fallthru
          _
        // Predicated region
        $region81: #{tpu_custom_call.1} parent=71 // pred_check
          %p484 = pneg %p96
        $region82: #{tpu_custom_call.1} parent=71 // pred_check_branch
          %486 = sbr.rel (%p484) target = $region84
        $region83: #{tpu_custom_call.1} parent=71 // pred_region
          %487 = dma.done [#allocation6], 16
        $region84: #{tpu_custom_call.1} parent=71 // pred_fallthru
          _
        // Predicated region
        $region85: #{tpu_custom_call.1} parent=71 // pred_check
          %p488 = pneg %p117
        $region86: #{tpu_custom_call.1} parent=71 // pred_check_branch
          %490 = sbr.rel (%p488) target = $region88
        $region87: #{tpu_custom_call.1} parent=71 // pred_region
          %491 = dma.done [#allocation9], 3072
        $region88: #{tpu_custom_call.1} parent=71 // pred_fallthru
          _
        // Predicated region
        $region89: #{tpu_custom_call.1} parent=71 // pred_check
          %p492 = pneg %p159
        $region90: #{tpu_custom_call.1} parent=71 // pred_check_branch
          %494 = sbr.rel (%p492) target = $region92
        $region91: #{tpu_custom_call.1} parent=71 // pred_region
          %495 = dma.done [#allocation9], 1024
        $region92: #{tpu_custom_call.1} parent=71 // pred_fallthru
          _
        // Predicated region
        $region93: #{tpu_custom_call.1} parent=71 // pred_check
          %p496 = pneg %p243
        $region94: #{tpu_custom_call.1} parent=71 // pred_check_branch
          %498 = sbr.rel (%p496) target = $region96
        $region95: #{tpu_custom_call.1} parent=71 // pred_region
          %499 = dma.done [#allocation12], 4096
        $region96: #{tpu_custom_call.1} parent=71 // pred_fallthru
          _
        // Predicated region
        $region97: #{tpu_custom_call.1} parent=71 // pred_check
          %p500 = pneg %p285
        $region98: #{tpu_custom_call.1} parent=71 // pred_check_branch
          %502 = sbr.rel (%p500) target = $region100
        $region99: #{tpu_custom_call.1} parent=71 // pred_region
          %503 = dma.done [#allocation12], 4096
        $region100: #{tpu_custom_call.1} parent=71 // pred_fallthru
          _
        %s504 = sand.u32 %s41, 1
        %s505 = scalar_lea.sflag [#allocation3], %s504
        %s506 = sand.u32 %s41, 1
        %s507 = smul.addr %s506, 16
        %s508 = scalar_lea.vmem [#allocation2], %s507
        %p509 = pneg %p54
        %p510 = pneg %p51
        %p511 = pneg %p75
        %p512 = pneg %p72
        %p513 = pneg %p96
        %p514 = pneg %p93
        %p515 = pneg %p117
        %p516 = pneg %p114
        %p517 = pneg %p138
        %p518 = pneg %p135
        %p519 = pneg %p159
        %p520 = pneg %p156
        %p521 = pneg %p180
        %p522 = pneg %p177
        %p523 = pneg %p201
        %p524 = pneg %p198
        %p525 = pneg %p222
        %p526 = pneg %p219
        %p527 = pneg %p243
        %p528 = pneg %p240
        %p529 = pneg %p264
        %p530 = pneg %p261
        %p531 = pneg %p285
        %p532 = pneg %p282
        %p533 = pneg %p306
        %p534 = pneg %p303
        %p535 = pneg %p332
        %p536 = pneg %p329
        %s537 = sand.u32 %s319, 1
        %s538 = scalar_lea.sflag [#allocation4], %s537
        %s539 = sand.u32 %s319, 1
        %s540 = smul.addr %s539, 16
        %s541 = scalar_lea.vmem [#allocation14], %s540
        %v543 = vld [vmem:[%s475] sm:$0xff]
        %v544 = vld [vmem:[%s475 + $0x8] sm:$0xff]
        %v545 = vld [vmem:[#allocation5] sm:$0x1]
        %v546 = vld [vmem:[#allocation7] sm:$0x1]
        %547 = vadd.xlane.f32.xlu0 %v543
        %v548 = vpop.xlane.xlu0 %547
        %549 = vadd.xlane.f32.xlu0 %v544
        %v550 = vpop.xlane.xlu0 %549
        %v551 = vrcp.pop 128.0
        %v552 = vmul.f32 %v548, %v551
        %v553 = vmul.f32 %v550, %v551
        %v554 = vsub.f32 %v543, %v552
        %v555 = vsub.f32 %v544, %v553
        %v556 = vmul.f32 %v554, %v554
        %v557 = vmul.f32 %v555, %v555
        %558 = vadd.xlane.f32.xlu0 %v556
        %v559 = vpop.xlane.xlu0 %558
        %560 = vadd.xlane.f32.xlu0 %v557
        %v561 = vpop.xlane.xlu0 %560
        %v562 = vmul.f32 %v559, %v551
        %v563 = vmul.f32 %v561, %v551
        %v564 = vadd.f32 %v562, 1e-05
        %v565 = vadd.f32 %v563, 1e-05
        %v566 = vrsqrt.pop %v564
        %v567 = vrsqrt.pop %v565
        %v568 = vmul.f32 %v554, %v566
        %v569 = vmul.f32 %v555, %v567
        %v571 = vlaneseq
        %v572 = vshrl.u32 %v571, 7
        %v573 = vsub.s32 0, %v572
        %v574 = vrot.slane %v545, %v573
        %v576 = vmul.f32 %v568, %v574
        %v577 = vmul.f32 %v569, %v574
        %v579 = vlaneseq
        %v580 = vshrl.u32 %v579, 7
        %v581 = vsub.s32 0, %v580
        %v582 = vrot.slane %v546, %v581
        %v584 = vadd.f32 %v576, %v582
        %v585 = vadd.f32 %v577, %v582
        %v586 = vpack.c.bf16 %v585, %v584
        %v587 = vld [vmem:[#allocation8] sm:$0xff]
        %v588 = vld [vmem:[#allocation8 + $0x8] sm:$0xf]
        %v589 = vld [vmem:[#allocation8 + $0xc] sm:$0xff]
        %v590 = vld [vmem:[#allocation8 + $0x14] sm:$0xf]
        %v591 = vld [vmem:[#allocation8 + $0x18] sm:$0xff]
        %v592 = vld [vmem:[#allocation8 + $0x20] sm:$0xf]
        %v593 = vld [vmem:[#allocation8 + $0x24] sm:$0xff]
        %v594 = vld [vmem:[#allocation8 + $0x2c] sm:$0xf]
        %v595 = vld [vmem:[#allocation8 + $0x30] sm:$0xff]
        %v596 = vld [vmem:[#allocation8 + $0x38] sm:$0xf]
        %v597 = vld [vmem:[#allocation8 + $0x3c] sm:$0xff]
        %v598 = vld [vmem:[#allocation8 + $0x44] sm:$0xf]
        %v599 = vld [vmem:[#allocation8 + $0x48] sm:$0xff]
        %v600 = vld [vmem:[#allocation8 + $0x50] sm:$0xf]
        %v601 = vld [vmem:[#allocation8 + $0x54] sm:$0xff]
        %v602 = vld [vmem:[#allocation8 + $0x5c] sm:$0xf]
        %v603 = vld [vmem:[#allocation8 + $0x60] sm:$0xff]
        %v604 = vld [vmem:[#allocation8 + $0x68] sm:$0xf]
        %v605 = vld [vmem:[#allocation8 + $0x6c] sm:$0xff]
        %v606 = vld [vmem:[#allocation8 + $0x74] sm:$0xf]
        %v607 = vld [vmem:[#allocation8 + $0x78] sm:$0xff]
        %v608 = vld [vmem:[#allocation8 + $0x80] sm:$0xf]
        %v609 = vld [vmem:[#allocation8 + $0x84] sm:$0xff]
        %v610 = vld [vmem:[#allocation8 + $0x8c] sm:$0xf]
        %v611 = vld [vmem:[#allocation8 + $0x90] sm:$0xff]
        %v612 = vld [vmem:[#allocation8 + $0x98] sm:$0xf]
        %v613 = vld [vmem:[#allocation8 + $0x9c] sm:$0xff]
        %v614 = vld [vmem:[#allocation8 + $0xa4] sm:$0xf]
        %v615 = vld [vmem:[#allocation8 + $0xa8] sm:$0xff]
        %v616 = vld [vmem:[#allocation8 + $0xb0] sm:$0xf]
        %v617 = vld [vmem:[#allocation8 + $0xb4] sm:$0xff]
        %v618 = vld [vmem:[#allocation8 + $0xbc] sm:$0xf]
        %v619 = vld [vmem:[%s4] sm:$0x7]
        %v621 = vlaneseq
        %v622 = vshrl.u32 %v621, 7
        %v623 = vsub.s32 0, %v622
        %v624 = vrot.slane %v619, %v623
        %v625 = vlaneseq
        %v626 = vshrl.u32 %v625, 7
        %v627 = vsub.s32 1, %v626
        %v628 = vrot.slane %v619, %v627
        %v629 = vlaneseq
        %v630 = vshrl.u32 %v629, 7
        %v631 = vsub.s32 2, %v630
        %v632 = vrot.slane %v619, %v631
        %v668 = vunpack.c.l.b16 %v587
        %v669 = vunpack.c.h.b16 %v587
        %v670 = vunpack.c.l.b16 %v588
        %v671 = vunpack.c.l.b16 %v589
        %v672 = vunpack.c.h.b16 %v589
        %v673 = vunpack.c.l.b16 %v590
        %v674 = vunpack.c.l.b16 %v591
        %v675 = vunpack.c.h.b16 %v591
        %v676 = vunpack.c.l.b16 %v592
        %v677 = vunpack.c.l.b16 %v593
        %v678 = vunpack.c.h.b16 %v593
        %v679 = vunpack.c.l.b16 %v594
        %v680 = vunpack.c.l.b16 %v595
        %v681 = vunpack.c.h.b16 %v595
        %v682 = vunpack.c.l.b16 %v596
        %v683 = vunpack.c.l.b16 %v597
        %v684 = vunpack.c.h.b16 %v597
        %v685 = vunpack.c.l.b16 %v598
        %v686 = vunpack.c.l.b16 %v599
        %v687 = vunpack.c.h.b16 %v599
        %v688 = vunpack.c.l.b16 %v600
        %v689 = vunpack.c.l.b16 %v601
        %v690 = vunpack.c.h.b16 %v601
        %v691 = vunpack.c.l.b16 %v602
        %v692 = vunpack.c.l.b16 %v603
        %v693 = vunpack.c.h.b16 %v603
        %v694 = vunpack.c.l.b16 %v604
        %v695 = vunpack.c.l.b16 %v605
        %v696 = vunpack.c.h.b16 %v605
        %v697 = vunpack.c.l.b16 %v606
        %v698 = vunpack.c.l.b16 %v607
        %v699 = vunpack.c.h.b16 %v607
        %v700 = vunpack.c.l.b16 %v608
        %v701 = vunpack.c.l.b16 %v609
        %v702 = vunpack.c.h.b16 %v609
        %v703 = vunpack.c.l.b16 %v610
        %v704 = vunpack.c.l.b16 %v611
        %v705 = vunpack.c.h.b16 %v611
        %v706 = vunpack.c.l.b16 %v612
        %v707 = vunpack.c.l.b16 %v613
        %v708 = vunpack.c.h.b16 %v613
        %v709 = vunpack.c.l.b16 %v614
        %v710 = vunpack.c.l.b16 %v615
        %v711 = vunpack.c.h.b16 %v615
        %v712 = vunpack.c.l.b16 %v616
        %v713 = vunpack.c.l.b16 %v617
        %v714 = vunpack.c.h.b16 %v617
        %v715 = vunpack.c.l.b16 %v618
        %v716 = vpack.c.b16 %v671, %v668
        %v717 = vpack.c.b16 %v672, %v669
        %v718 = vpack.c.b16 %v673, %v670
        %v719 = vpack.c.b16 %v677, %v674
        %v720 = vpack.c.b16 %v678, %v675
        %v721 = vpack.c.b16 %v679, %v676
        %v722 = vpack.c.b16 %v683, %v680
        %v723 = vpack.c.b16 %v684, %v681
        %v724 = vpack.c.b16 %v685, %v682
        %v725 = vpack.c.b16 %v689, %v686
        %v726 = vpack.c.b16 %v690, %v687
        %v727 = vpack.c.b16 %v691, %v688
        %v728 = vpack.c.b16 %v695, %v692
        %v729 = vpack.c.b16 %v696, %v693
        %v730 = vpack.c.b16 %v697, %v694
        %v731 = vpack.c.b16 %v701, %v698
        %v732 = vpack.c.b16 %v702, %v699
        %v733 = vpack.c.b16 %v703, %v700
        %v734 = vpack.c.b16 %v707, %v704
        %v735 = vpack.c.b16 %v708, %v705
        %v736 = vpack.c.b16 %v709, %v706
        %v737 = vpack.c.b16 %v713, %v710
        %v738 = vpack.c.b16 %v714, %v711
        %v739 = vpack.c.b16 %v715, %v712
        %764 = vmatprep.subr.bf16.mxu0 %v717
        %765 = vmatpush1.bf16.msra.mxu0 %v716
        %766 = vmatprep.subr.bf16.mxu0 %v720
        %767 = vmatpush1.bf16.msra.mxu0 %v719
        %768 = vmatprep.subr.bf16.mxu0 %v723
        %769 = vmatpush1.bf16.msra.mxu0 %v722
        %770 = vmatprep.subr.bf16.mxu0 %v726
        %771 = vmatpush1.bf16.msra.mxu0 %v725
        %772 = vmatprep.subr.bf16.mxu0 %v729
        %773 = vmatpush1.bf16.msra.mxu0 %v728
        %774 = vmatprep.subr.bf16.mxu0 %v732
        %775 = vmatpush1.bf16.msra.mxu0 %v731
        %776 = vmatprep.subr.bf16.mxu0 %v735
        %777 = vmatpush1.bf16.msra.mxu0 %v734
        %778 = vmatprep.subr.bf16.mxu0 %v738
        %779 = vmatpush1.bf16.msra.mxu0 %v737
        %780 = vmatprep.subr.bf16.mxu0 0
        %781 = vmatpush1.bf16.msra.mxu0 0
        %782 = vmatprep.subr.bf16.mxu0 0
        %783 = vmatpush1.bf16.msra.mxu0 0
        %784 = vmatprep.subr.bf16.mxu0 0
        %785 = vmatpush1.bf16.msra.mxu0 0
        %786 = vmatprep.subr.bf16.mxu0 0
        %787 = vmatpush1.bf16.msra.mxu0 0
        %788 = vmatprep.subr.bf16.mxu0 0
        %789 = vmatpush1.bf16.msra.mxu0 0
        %790 = vmatprep.subr.bf16.mxu0 0
        %791 = vmatpush1.bf16.msra.mxu0 0
        %792 = vmatprep.subr.bf16.mxu0 0
        %793 = vmatpush1.bf16.msra.mxu0 0
        %794 = vmatprep.subr.bf16.mxu0 0
        %795 = vmatpush1.bf16.msra.mxu0 0
        %796 = vmatprep.mubr.bf16.mxu0 0
        %797 = vmatmul.mubr.bf16.gmra.mrb[0].mxu0 %v586
        %v798 = vpop.f32.mrb[0].mxu0
        %v799 = vadd.f32 %v624, %v798
        %v800 = vpop.f32.mrb[0].mxu0
        %v801 = vadd.f32 %v628, %v800
        %v802 = vpop.f32.mrb[0].mxu0
        %v803 = vadd.f32 %v624, %v802
        %v804 = vpop.f32.mrb[0].mxu0
        %v805 = vadd.f32 %v628, %v804
        %806 = vdwg.mxu0
        %807 = vmatprep.subr.bf16.mxu0 0
        %808 = vmatpush1.bf16.msra.mxu0 %v718
        %809 = vmatprep.subr.bf16.mxu0 0
        %810 = vmatpush1.bf16.msra.mxu0 %v721
        %811 = vmatprep.subr.bf16.mxu0 0
        %812 = vmatpush1.bf16.msra.mxu0 %v724
        %813 = vmatprep.subr.bf16.mxu0 0
        %814 = vmatpush1.bf16.msra.mxu0 %v727
        %815 = vmatprep.subr.bf16.mxu0 0
        %816 = vmatpush1.bf16.msra.mxu0 %v730
        %817 = vmatprep.subr.bf16.mxu0 0
        %818 = vmatpush1.bf16.msra.mxu0 %v733
        %819 = vmatprep.subr.bf16.mxu0 0
        %820 = vmatpush1.bf16.msra.mxu0 %v736
        %821 = vmatprep.subr.bf16.mxu0 0
        %822 = vmatpush1.bf16.msra.mxu0 %v739
        %823 = vmatprep.subr.bf16.mxu0 0
        %824 = vmatpush1.bf16.msra.mxu0 0
        %825 = vmatprep.subr.bf16.mxu0 0
        %826 = vmatpush1.bf16.msra.mxu0 0
        %827 = vmatprep.subr.bf16.mxu0 0
        %828 = vmatpush1.bf16.msra.mxu0 0
        %829 = vmatprep.subr.bf16.mxu0 0
        %830 = vmatpush1.bf16.msra.mxu0 0
        %831 = vmatprep.subr.bf16.mxu0 0
        %832 = vmatpush1.bf16.msra.mxu0 0
        %833 = vmatprep.subr.bf16.mxu0 0
        %834 = vmatpush1.bf16.msra.mxu0 0
        %835 = vmatprep.subr.bf16.mxu0 0
        %836 = vmatpush1.bf16.msra.mxu0 0
        %837 = vmatprep.subr.bf16.mxu0 0
        %838 = vmatpush1.bf16.msra.mxu0 0
        %839 = vmatprep.mubr.bf16.mxu0 0
        %840 = vmatmul.mubr.bf16.gmra.mrb[0].mxu0 %v586
        %v841 = vpop.f32.mrb[0].mxu0
        %v842 = vadd.f32 %v632, %v841
        %v843 = vpop.f32.mrb[0].mxu0
        %v844 = vpop.f32.mrb[0].mxu0
        %v845 = vadd.f32 %v632, %v844
        %v846 = vpop.f32.mrb[0].mxu0
        %847 = vdwg.mxu0
        %850 = vrot.lane.b32.xlu0 %v799, 96
        %v851 = vpop.permute.xlu0 %850
        %852 = vrot.lane.b32.xlu0 %v803, 96
        %v853 = vpop.permute.xlu0 %852
        %856 = vrot.lane.b32.xlu0 %v799, 64
        %v857 = vpop.permute.xlu0 %856
        %858 = vrot.lane.b32.xlu0 %v803, 64
        %v859 = vpop.permute.xlu0 %858
        %862 = vrot.lane.b32.xlu0 %v799, 32
        %v863 = vpop.permute.xlu0 %862
        %864 = vrot.lane.b32.xlu0 %v803, 32
        %v865 = vpop.permute.xlu0 %864
        %v868 = vcombine.low %v799, %v857
        %v869 = vcombine.high %v799, %v857
        %v871 = vunpack.c.l.s4 1983009808
        %v872 = vunpack.c.0.s8 %v871
        %v873 = vlaneseq
        %v874 = vshrl.u32 %v873, 7
        %v875 = vsub.s32 %v872, %v874
        %v876 = vrot.slane %v868, %v875
        %v878 = vunpack.c.l.s4 1983009808
        %v879 = vunpack.c.0.s8 %v878
        %v880 = vlaneseq
        %v881 = vshrl.u32 %v880, 7
        %v882 = vsub.s32 %v879, %v881
        %v883 = vrot.slane %v869, %v882
        %v884 = vcombine.low %v851, %v863
        %v885 = vcombine.high %v851, %v863
        %v887 = vunpack.c.l.s4 1983009808
        %v888 = vunpack.c.0.s8 %v887
        %v889 = vlaneseq
        %v890 = vshrl.u32 %v889, 7
        %v891 = vsub.s32 %v888, %v890
        %v892 = vrot.slane %v884, %v891
        %v894 = vunpack.c.l.s4 1983009808
        %v895 = vunpack.c.0.s8 %v894
        %v896 = vlaneseq
        %v897 = vshrl.u32 %v896, 7
        %v898 = vsub.s32 %v895, %v897
        %v899 = vrot.slane %v885, %v898
        %v900 = vcombine.low %v876, %v892
        %v901 = vcombine.high %v876, %v892
        %v903 = vunpack.c.l.s4 1934713408
        %v904 = vunpack.c.0.s8 %v903
        %v905 = vlaneseq
        %v906 = vshrl.u32 %v905, 7
        %v907 = vsub.s32 %v904, %v906
        %v908 = vrot.slane %v900, %v907
        %v910 = vunpack.c.l.s4 1934713408
        %v911 = vunpack.c.0.s8 %v910
        %v912 = vlaneseq
        %v913 = vshrl.u32 %v912, 7
        %v914 = vsub.s32 %v911, %v913
        %v915 = vrot.slane %v901, %v914
        %v916 = vcombine.low %v883, %v899
        %v917 = vcombine.high %v883, %v899
        %v919 = vunpack.c.l.s4 1934713408
        %v920 = vunpack.c.0.s8 %v919
        %v921 = vlaneseq
        %v922 = vshrl.u32 %v921, 7
        %v923 = vsub.s32 %v920, %v922
        %v924 = vrot.slane %v916, %v923
        %v926 = vunpack.c.l.s4 1934713408
        %v927 = vunpack.c.0.s8 %v926
        %v928 = vlaneseq
        %v929 = vshrl.u32 %v928, 7
        %v930 = vsub.s32 %v927, %v929
        %v931 = vrot.slane %v917, %v930
        %v932 = vcombine.high %v908, 0.0
        %v933 = vcombine.high %v915, 0.0
        %v934 = vcombine.high %v924, 0.0
        %v935 = vcombine.high %v931, 0.0
        %v936 = vcombine.low %v803, %v859
        %v937 = vcombine.high %v803, %v859
        %v939 = vunpack.c.l.s4 1983009808
        %v940 = vunpack.c.0.s8 %v939
        %v941 = vlaneseq
        %v942 = vshrl.u32 %v941, 7
        %v943 = vsub.s32 %v940, %v942
        %v944 = vrot.slane %v936, %v943
        %v946 = vunpack.c.l.s4 1983009808
        %v947 = vunpack.c.0.s8 %v946
        %v948 = vlaneseq
        %v949 = vshrl.u32 %v948, 7
        %v950 = vsub.s32 %v947, %v949
        %v951 = vrot.slane %v937, %v950
        %v952 = vcombine.low %v853, %v865
        %v953 = vcombine.high %v853, %v865
        %v955 = vunpack.c.l.s4 1983009808
        %v956 = vunpack.c.0.s8 %v955
        %v957 = vlaneseq
        %v958 = vshrl.u32 %v957, 7
        %v959 = vsub.s32 %v956, %v958
        %v960 = vrot.slane %v952, %v959
        %v962 = vunpack.c.l.s4 1983009808
        %v963 = vunpack.c.0.s8 %v962
        %v964 = vlaneseq
        %v965 = vshrl.u32 %v964, 7
        %v966 = vsub.s32 %v963, %v965
        %v967 = vrot.slane %v953, %v966
        %v968 = vcombine.low %v944, %v960
        %v969 = vcombine.high %v944, %v960
        %v971 = vunpack.c.l.s4 1934713408
        %v972 = vunpack.c.0.s8 %v971
        %v973 = vlaneseq
        %v974 = vshrl.u32 %v973, 7
        %v975 = vsub.s32 %v972, %v974
        %v976 = vrot.slane %v968, %v975
        %v978 = vunpack.c.l.s4 1934713408
        %v979 = vunpack.c.0.s8 %v978
        %v980 = vlaneseq
        %v981 = vshrl.u32 %v980, 7
        %v982 = vsub.s32 %v979, %v981
        %v983 = vrot.slane %v969, %v982
        %v984 = vcombine.low %v951, %v967
        %v985 = vcombine.high %v951, %v967
        %v987 = vunpack.c.l.s4 1934713408
        %v988 = vunpack.c.0.s8 %v987
        %v989 = vlaneseq
        %v990 = vshrl.u32 %v989, 7
        %v991 = vsub.s32 %v988, %v990
        %v992 = vrot.slane %v984, %v991
        %v994 = vunpack.c.l.s4 1934713408
        %v995 = vunpack.c.0.s8 %v994
        %v996 = vlaneseq
        %v997 = vshrl.u32 %v996, 7
        %v998 = vsub.s32 %v995, %v997
        %v999 = vrot.slane %v985, %v998
        %v1000 = vcombine.high %v976, 0.0
        %v1001 = vcombine.high %v983, 0.0
        %v1002 = vcombine.high %v992, 0.0
        %v1003 = vcombine.high %v999, 0.0
        %v1004 = vcombine.low %v908, %v915
        %v1006 = vunpack.c.l.s4 1983009808
        %v1007 = vunpack.c.0.s8 %v1006
        %v1008 = vlaneseq
        %v1009 = vshrl.u32 %v1008, 7
        %v1010 = vsub.s32 %v1007, %v1009
        %v1011 = vrot.slane %v1004, %v1010
        %v1012 = vcombine.low %v932, %v933
        %v1014 = vunpack.c.l.s4 1983009808
        %v1015 = vunpack.c.0.s8 %v1014
        %v1016 = vlaneseq
        %v1017 = vshrl.u32 %v1016, 7
        %v1018 = vsub.s32 %v1015, %v1017
        %v1019 = vrot.slane %v1012, %v1018
        %v1020 = vcombine.low %v924, %v931
        %v1022 = vunpack.c.l.s4 1983009808
        %v1023 = vunpack.c.0.s8 %v1022
        %v1024 = vlaneseq
        %v1025 = vshrl.u32 %v1024, 7
        %v1026 = vsub.s32 %v1023, %v1025
        %v1027 = vrot.slane %v1020, %v1026
        %v1028 = vcombine.low %v934, %v935
        %v1030 = vunpack.c.l.s4 1983009808
        %v1031 = vunpack.c.0.s8 %v1030
        %v1032 = vlaneseq
        %v1033 = vshrl.u32 %v1032, 7
        %v1034 = vsub.s32 %v1031, %v1033
        %v1035 = vrot.slane %v1028, %v1034
        %v1036 = vcombine.low %v1011, %v1019
        %v1037 = vcombine.high %v1011, %v1019
        %v1039 = vunpack.c.l.s4 1934713408
        %v1040 = vunpack.c.0.s8 %v1039
        %v1041 = vlaneseq
        %v1042 = vshrl.u32 %v1041, 7
        %v1043 = vsub.s32 %v1040, %v1042
        %v1044 = vrot.slane %v1036, %v1043
        %v1046 = vunpack.c.l.s4 1934713408
        %v1047 = vunpack.c.0.s8 %v1046
        %v1048 = vlaneseq
        %v1049 = vshrl.u32 %v1048, 7
        %v1050 = vsub.s32 %v1047, %v1049
        %v1051 = vrot.slane %v1037, %v1050
        %v1052 = vcombine.low %v1027, %v1035
        %v1053 = vcombine.high %v1027, %v1035
        %v1055 = vunpack.c.l.s4 1934713408
        %v1056 = vunpack.c.0.s8 %v1055
        %v1057 = vlaneseq
        %v1058 = vshrl.u32 %v1057, 7
        %v1059 = vsub.s32 %v1056, %v1058
        %v1060 = vrot.slane %v1052, %v1059
        %v1062 = vunpack.c.l.s4 1934713408
        %v1063 = vunpack.c.0.s8 %v1062
        %v1064 = vlaneseq
        %v1065 = vshrl.u32 %v1064, 7
        %v1066 = vsub.s32 %v1063, %v1065
        %v1067 = vrot.slane %v1053, %v1066
        %v1068 = vcombine.low %v1044, %v1060
        %v1069 = vcombine.high %v1044, %v1060
        %v1070 = vcombine.low %v1051, %v1067
        %v1071 = vcombine.high %v1051, %v1067
        %v1072 = vcombine.low %v976, %v983
        %v1074 = vunpack.c.l.s4 1983009808
        %v1075 = vunpack.c.0.s8 %v1074
        %v1076 = vlaneseq
        %v1077 = vshrl.u32 %v1076, 7
        %v1078 = vsub.s32 %v1075, %v1077
        %v1079 = vrot.slane %v1072, %v1078
        %v1080 = vcombine.low %v1000, %v1001
        %v1082 = vunpack.c.l.s4 1983009808
        %v1083 = vunpack.c.0.s8 %v1082
        %v1084 = vlaneseq
        %v1085 = vshrl.u32 %v1084, 7
        %v1086 = vsub.s32 %v1083, %v1085
        %v1087 = vrot.slane %v1080, %v1086
        %v1088 = vcombine.low %v992, %v999
        %v1090 = vunpack.c.l.s4 1983009808
        %v1091 = vunpack.c.0.s8 %v1090
        %v1092 = vlaneseq
        %v1093 = vshrl.u32 %v1092, 7
        %v1094 = vsub.s32 %v1091, %v1093
        %v1095 = vrot.slane %v1088, %v1094
        %v1096 = vcombine.low %v1002, %v1003
        %v1098 = vunpack.c.l.s4 1983009808
        %v1099 = vunpack.c.0.s8 %v1098
        %v1100 = vlaneseq
        %v1101 = vshrl.u32 %v1100, 7
        %v1102 = vsub.s32 %v1099, %v1101
        %v1103 = vrot.slane %v1096, %v1102
        %v1104 = vcombine.low %v1079, %v1087
        %v1105 = vcombine.high %v1079, %v1087
        %v1107 = vunpack.c.l.s4 1934713408
        %v1108 = vunpack.c.0.s8 %v1107
        %v1109 = vlaneseq
        %v1110 = vshrl.u32 %v1109, 7
        %v1111 = vsub.s32 %v1108, %v1110
        %v1112 = vrot.slane %v1104, %v1111
        %v1114 = vunpack.c.l.s4 1934713408
        %v1115 = vunpack.c.0.s8 %v1114
        %v1116 = vlaneseq
        %v1117 = vshrl.u32 %v1116, 7
        %v1118 = vsub.s32 %v1115, %v1117
        %v1119 = vrot.slane %v1105, %v1118
        %v1120 = vcombine.low %v1095, %v1103
        %v1121 = vcombine.high %v1095, %v1103
        %v1123 = vunpack.c.l.s4 1934713408
        %v1124 = vunpack.c.0.s8 %v1123
        %v1125 = vlaneseq
        %v1126 = vshrl.u32 %v1125, 7
        %v1127 = vsub.s32 %v1124, %v1126
        %v1128 = vrot.slane %v1120, %v1127
        %v1130 = vunpack.c.l.s4 1934713408
        %v1131 = vunpack.c.0.s8 %v1130
        %v1132 = vlaneseq
        %v1133 = vshrl.u32 %v1132, 7
        %v1134 = vsub.s32 %v1131, %v1133
        %v1135 = vrot.slane %v1121, %v1134
        %v1136 = vcombine.low %v1112, %v1128
        %v1137 = vcombine.high %v1112, %v1128
        %v1138 = vcombine.low %v1119, %v1135
        %v1139 = vcombine.high %v1119, %v1135
        %v1140 = vpack.c.bf16 %v1136, %v1068
        %v1141 = vpack.c.bf16 %v1137, %v1069
        %v1142 = vpack.c.bf16 %v1138, %v1070
        %v1143 = vpack.c.bf16 %v1139, %v1071
        %1146 = vrot.lane.b32.xlu0 %v801, 96
        %v1147 = vpop.permute.xlu0 %1146
        %1148 = vrot.lane.b32.xlu0 %v805, 96
        %v1149 = vpop.permute.xlu0 %1148
        %1152 = vrot.lane.b32.xlu0 %v801, 64
        %v1153 = vpop.permute.xlu0 %1152
        %1154 = vrot.lane.b32.xlu0 %v805, 64
        %v1155 = vpop.permute.xlu0 %1154
        %1158 = vrot.lane.b32.xlu0 %v801, 32
        %v1159 = vpop.permute.xlu0 %1158
        %1160 = vrot.lane.b32.xlu0 %v805, 32
        %v1161 = vpop.permute.xlu0 %1160
        %v1164 = vcombine.low %v801, %v1153
        %v1165 = vcombine.high %v801, %v1153
        %v1167 = vunpack.c.l.s4 1983009808
        %v1168 = vunpack.c.0.s8 %v1167
        %v1169 = vlaneseq
        %v1170 = vshrl.u32 %v1169, 7
        %v1171 = vsub.s32 %v1168, %v1170
        %v1172 = vrot.slane %v1164, %v1171
        %v1174 = vunpack.c.l.s4 1983009808
        %v1175 = vunpack.c.0.s8 %v1174
        %v1176 = vlaneseq
        %v1177 = vshrl.u32 %v1176, 7
        %v1178 = vsub.s32 %v1175, %v1177
        %v1179 = vrot.slane %v1165, %v1178
        %v1180 = vcombine.low %v1147, %v1159
        %v1181 = vcombine.high %v1147, %v1159
        %v1183 = vunpack.c.l.s4 1983009808
        %v1184 = vunpack.c.0.s8 %v1183
        %v1185 = vlaneseq
        %v1186 = vshrl.u32 %v1185, 7
        %v1187 = vsub.s32 %v1184, %v1186
        %v1188 = vrot.slane %v1180, %v1187
        %v1190 = vunpack.c.l.s4 1983009808
        %v1191 = vunpack.c.0.s8 %v1190
        %v1192 = vlaneseq
        %v1193 = vshrl.u32 %v1192, 7
        %v1194 = vsub.s32 %v1191, %v1193
        %v1195 = vrot.slane %v1181, %v1194
        %v1196 = vcombine.low %v1172, %v1188
        %v1197 = vcombine.high %v1172, %v1188
        %v1199 = vunpack.c.l.s4 1934713408
        %v1200 = vunpack.c.0.s8 %v1199
        %v1201 = vlaneseq
        %v1202 = vshrl.u32 %v1201, 7
        %v1203 = vsub.s32 %v1200, %v1202
        %v1204 = vrot.slane %v1196, %v1203
        %v1206 = vunpack.c.l.s4 1934713408
        %v1207 = vunpack.c.0.s8 %v1206
        %v1208 = vlaneseq
        %v1209 = vshrl.u32 %v1208, 7
        %v1210 = vsub.s32 %v1207, %v1209
        %v1211 = vrot.slane %v1197, %v1210
        %v1212 = vcombine.low %v1179, %v1195
        %v1213 = vcombine.high %v1179, %v1195
        %v1215 = vunpack.c.l.s4 1934713408
        %v1216 = vunpack.c.0.s8 %v1215
        %v1217 = vlaneseq
        %v1218 = vshrl.u32 %v1217, 7
        %v1219 = vsub.s32 %v1216, %v1218
        %v1220 = vrot.slane %v1212, %v1219
        %v1222 = vunpack.c.l.s4 1934713408
        %v1223 = vunpack.c.0.s8 %v1222
        %v1224 = vlaneseq
        %v1225 = vshrl.u32 %v1224, 7
        %v1226 = vsub.s32 %v1223, %v1225
        %v1227 = vrot.slane %v1213, %v1226
        %v1228 = vcombine.high %v1204, 0.0
        %v1229 = vcombine.high %v1211, 0.0
        %v1230 = vcombine.high %v1220, 0.0
        %v1231 = vcombine.high %v1227, 0.0
        %v1232 = vcombine.low %v805, %v1155
        %v1233 = vcombine.high %v805, %v1155
        %v1235 = vunpack.c.l.s4 1983009808
        %v1236 = vunpack.c.0.s8 %v1235
        %v1237 = vlaneseq
        %v1238 = vshrl.u32 %v1237, 7
        %v1239 = vsub.s32 %v1236, %v1238
        %v1240 = vrot.slane %v1232, %v1239
        %v1242 = vunpack.c.l.s4 1983009808
        %v1243 = vunpack.c.0.s8 %v1242
        %v1244 = vlaneseq
        %v1245 = vshrl.u32 %v1244, 7
        %v1246 = vsub.s32 %v1243, %v1245
        %v1247 = vrot.slane %v1233, %v1246
        %v1248 = vcombine.low %v1149, %v1161
        %v1249 = vcombine.high %v1149, %v1161
        %v1251 = vunpack.c.l.s4 1983009808
        %v1252 = vunpack.c.0.s8 %v1251
        %v1253 = vlaneseq
        %v1254 = vshrl.u32 %v1253, 7
        %v1255 = vsub.s32 %v1252, %v1254
        %v1256 = vrot.slane %v1248, %v1255
        %v1258 = vunpack.c.l.s4 1983009808
        %v1259 = vunpack.c.0.s8 %v1258
        %v1260 = vlaneseq
        %v1261 = vshrl.u32 %v1260, 7
        %v1262 = vsub.s32 %v1259, %v1261
        %v1263 = vrot.slane %v1249, %v1262
        %v1264 = vcombine.low %v1240, %v1256
        %v1265 = vcombine.high %v1240, %v1256
        %v1267 = vunpack.c.l.s4 1934713408
        %v1268 = vunpack.c.0.s8 %v1267
        %v1269 = vlaneseq
        %v1270 = vshrl.u32 %v1269, 7
        %v1271 = vsub.s32 %v1268, %v1270
        %v1272 = vrot.slane %v1264, %v1271
        %v1274 = vunpack.c.l.s4 1934713408
        %v1275 = vunpack.c.0.s8 %v1274
        %v1276 = vlaneseq
        %v1277 = vshrl.u32 %v1276, 7
        %v1278 = vsub.s32 %v1275, %v1277
        %v1279 = vrot.slane %v1265, %v1278
        %v1280 = vcombine.low %v1247, %v1263
        %v1281 = vcombine.high %v1247, %v1263
        %v1283 = vunpack.c.l.s4 1934713408
        %v1284 = vunpack.c.0.s8 %v1283
        %v1285 = vlaneseq
        %v1286 = vshrl.u32 %v1285, 7
        %v1287 = vsub.s32 %v1284, %v1286
        %v1288 = vrot.slane %v1280, %v1287
        %v1290 = vunpack.c.l.s4 1934713408
        %v1291 = vunpack.c.0.s8 %v1290
        %v1292 = vlaneseq
        %v1293 = vshrl.u32 %v1292, 7
        %v1294 = vsub.s32 %v1291, %v1293
        %v1295 = vrot.slane %v1281, %v1294
        %v1296 = vcombine.high %v1272, 0.0
        %v1297 = vcombine.high %v1279, 0.0
        %v1298 = vcombine.high %v1288, 0.0
        %v1299 = vcombine.high %v1295, 0.0
        %v1300 = vcombine.low %v1204, %v1211
        %v1302 = vunpack.c.l.s4 1983009808
        %v1303 = vunpack.c.0.s8 %v1302
        %v1304 = vlaneseq
        %v1305 = vshrl.u32 %v1304, 7
        %v1306 = vsub.s32 %v1303, %v1305
        %v1307 = vrot.slane %v1300, %v1306
        %v1308 = vcombine.low %v1228, %v1229
        %v1310 = vunpack.c.l.s4 1983009808
        %v1311 = vunpack.c.0.s8 %v1310
        %v1312 = vlaneseq
        %v1313 = vshrl.u32 %v1312, 7
        %v1314 = vsub.s32 %v1311, %v1313
        %v1315 = vrot.slane %v1308, %v1314
        %v1316 = vcombine.low %v1220, %v1227
        %v1318 = vunpack.c.l.s4 1983009808
        %v1319 = vunpack.c.0.s8 %v1318
        %v1320 = vlaneseq
        %v1321 = vshrl.u32 %v1320, 7
        %v1322 = vsub.s32 %v1319, %v1321
        %v1323 = vrot.slane %v1316, %v1322
        %v1324 = vcombine.low %v1230, %v1231
        %v1326 = vunpack.c.l.s4 1983009808
        %v1327 = vunpack.c.0.s8 %v1326
        %v1328 = vlaneseq
        %v1329 = vshrl.u32 %v1328, 7
        %v1330 = vsub.s32 %v1327, %v1329
        %v1331 = vrot.slane %v1324, %v1330
        %v1332 = vcombine.low %v1307, %v1315
        %v1333 = vcombine.high %v1307, %v1315
        %v1335 = vunpack.c.l.s4 1934713408
        %v1336 = vunpack.c.0.s8 %v1335
        %v1337 = vlaneseq
        %v1338 = vshrl.u32 %v1337, 7
        %v1339 = vsub.s32 %v1336, %v1338
        %v1340 = vrot.slane %v1332, %v1339
        %v1342 = vunpack.c.l.s4 1934713408
        %v1343 = vunpack.c.0.s8 %v1342
        %v1344 = vlaneseq
        %v1345 = vshrl.u32 %v1344, 7
        %v1346 = vsub.s32 %v1343, %v1345
        %v1347 = vrot.slane %v1333, %v1346
        %v1348 = vcombine.low %v1323, %v1331
        %v1349 = vcombine.high %v1323, %v1331
        %v1351 = vunpack.c.l.s4 1934713408
        %v1352 = vunpack.c.0.s8 %v1351
        %v1353 = vlaneseq
        %v1354 = vshrl.u32 %v1353, 7
        %v1355 = vsub.s32 %v1352, %v1354
        %v1356 = vrot.slane %v1348, %v1355
        %v1358 = vunpack.c.l.s4 1934713408
        %v1359 = vunpack.c.0.s8 %v1358
        %v1360 = vlaneseq
        %v1361 = vshrl.u32 %v1360, 7
        %v1362 = vsub.s32 %v1359, %v1361
        %v1363 = vrot.slane %v1349, %v1362
        %v1364 = vcombine.low %v1340, %v1356
        %v1365 = vcombine.high %v1340, %v1356
        %v1366 = vcombine.low %v1347, %v1363
        %v1367 = vcombine.high %v1347, %v1363
        %v1368 = vcombine.low %v1272, %v1279
        %v1370 = vunpack.c.l.s4 1983009808
        %v1371 = vunpack.c.0.s8 %v1370
        %v1372 = vlaneseq
        %v1373 = vshrl.u32 %v1372, 7
        %v1374 = vsub.s32 %v1371, %v1373
        %v1375 = vrot.slane %v1368, %v1374
        %v1376 = vcombine.low %v1296, %v1297
        %v1378 = vunpack.c.l.s4 1983009808
        %v1379 = vunpack.c.0.s8 %v1378
        %v1380 = vlaneseq
        %v1381 = vshrl.u32 %v1380, 7
        %v1382 = vsub.s32 %v1379, %v1381
        %v1383 = vrot.slane %v1376, %v1382
        %v1384 = vcombine.low %v1288, %v1295
        %v1386 = vunpack.c.l.s4 1983009808
        %v1387 = vunpack.c.0.s8 %v1386
        %v1388 = vlaneseq
        %v1389 = vshrl.u32 %v1388, 7
        %v1390 = vsub.s32 %v1387, %v1389
        %v1391 = vrot.slane %v1384, %v1390
        %v1392 = vcombine.low %v1298, %v1299
        %v1394 = vunpack.c.l.s4 1983009808
        %v1395 = vunpack.c.0.s8 %v1394
        %v1396 = vlaneseq
        %v1397 = vshrl.u32 %v1396, 7
        %v1398 = vsub.s32 %v1395, %v1397
        %v1399 = vrot.slane %v1392, %v1398
        %v1400 = vcombine.low %v1375, %v1383
        %v1401 = vcombine.high %v1375, %v1383
        %v1403 = vunpack.c.l.s4 1934713408
        %v1404 = vunpack.c.0.s8 %v1403
        %v1405 = vlaneseq
        %v1406 = vshrl.u32 %v1405, 7
        %v1407 = vsub.s32 %v1404, %v1406
        %v1408 = vrot.slane %v1400, %v1407
        %v1410 = vunpack.c.l.s4 1934713408
        %v1411 = vunpack.c.0.s8 %v1410
        %v1412 = vlaneseq
        %v1413 = vshrl.u32 %v1412, 7
        %v1414 = vsub.s32 %v1411, %v1413
        %v1415 = vrot.slane %v1401, %v1414
        %v1416 = vcombine.low %v1391, %v1399
        %v1417 = vcombine.high %v1391, %v1399
        %v1419 = vunpack.c.l.s4 1934713408
        %v1420 = vunpack.c.0.s8 %v1419
        %v1421 = vlaneseq
        %v1422 = vshrl.u32 %v1421, 7
        %v1423 = vsub.s32 %v1420, %v1422
        %v1424 = vrot.slane %v1416, %v1423
        %v1426 = vunpack.c.l.s4 1934713408
        %v1427 = vunpack.c.0.s8 %v1426
        %v1428 = vlaneseq
        %v1429 = vshrl.u32 %v1428, 7
        %v1430 = vsub.s32 %v1427, %v1429
        %v1431 = vrot.slane %v1417, %v1430
        %v1432 = vcombine.low %v1408, %v1424
        %v1433 = vcombine.high %v1408, %v1424
        %v1434 = vcombine.low %v1415, %v1431
        %v1435 = vcombine.high %v1415, %v1431
        %v1436 = vpack.c.bf16 %v1432, %v1364
        %v1437 = vpack.c.bf16 %v1433, %v1365
        %v1438 = vpack.c.bf16 %v1434, %v1366
        %v1439 = vpack.c.bf16 %v1435, %v1367
        %1442 = vrot.lane.b32.xlu0 %v842, 96
        %v1443 = vpop.permute.xlu0 %1442
        %1444 = vrot.lane.b32.xlu0 %v845, 96
        %v1445 = vpop.permute.xlu0 %1444
        %1448 = vrot.lane.b32.xlu0 %v842, 64
        %v1449 = vpop.permute.xlu0 %1448
        %1450 = vrot.lane.b32.xlu0 %v845, 64
        %v1451 = vpop.permute.xlu0 %1450
        %1454 = vrot.lane.b32.xlu0 %v842, 32
        %v1455 = vpop.permute.xlu0 %1454
        %1456 = vrot.lane.b32.xlu0 %v845, 32
        %v1457 = vpop.permute.xlu0 %1456
        %v1460 = vcombine.low %v842, %v1449
        %v1461 = vcombine.high %v842, %v1449
        %v1463 = vunpack.c.l.s4 1983009808
        %v1464 = vunpack.c.0.s8 %v1463
        %v1465 = vlaneseq
        %v1466 = vshrl.u32 %v1465, 7
        %v1467 = vsub.s32 %v1464, %v1466
        %v1468 = vrot.slane %v1460, %v1467
        %v1470 = vunpack.c.l.s4 1983009808
        %v1471 = vunpack.c.0.s8 %v1470
        %v1472 = vlaneseq
        %v1473 = vshrl.u32 %v1472, 7
        %v1474 = vsub.s32 %v1471, %v1473
        %v1475 = vrot.slane %v1461, %v1474
        %v1476 = vcombine.low %v1443, %v1455
        %v1477 = vcombine.high %v1443, %v1455
        %v1479 = vunpack.c.l.s4 1983009808
        %v1480 = vunpack.c.0.s8 %v1479
        %v1481 = vlaneseq
        %v1482 = vshrl.u32 %v1481, 7
        %v1483 = vsub.s32 %v1480, %v1482
        %v1484 = vrot.slane %v1476, %v1483
        %v1486 = vunpack.c.l.s4 1983009808
        %v1487 = vunpack.c.0.s8 %v1486
        %v1488 = vlaneseq
        %v1489 = vshrl.u32 %v1488, 7
        %v1490 = vsub.s32 %v1487, %v1489
        %v1491 = vrot.slane %v1477, %v1490
        %v1492 = vcombine.low %v1468, %v1484
        %v1493 = vcombine.high %v1468, %v1484
        %v1495 = vunpack.c.l.s4 1934713408
        %v1496 = vunpack.c.0.s8 %v1495
        %v1497 = vlaneseq
        %v1498 = vshrl.u32 %v1497, 7
        %v1499 = vsub.s32 %v1496, %v1498
        %v1500 = vrot.slane %v1492, %v1499
        %v1502 = vunpack.c.l.s4 1934713408
        %v1503 = vunpack.c.0.s8 %v1502
        %v1504 = vlaneseq
        %v1505 = vshrl.u32 %v1504, 7
        %v1506 = vsub.s32 %v1503, %v1505
        %v1507 = vrot.slane %v1493, %v1506
        %v1508 = vcombine.low %v1475, %v1491
        %v1509 = vcombine.high %v1475, %v1491
        %v1511 = vunpack.c.l.s4 1934713408
        %v1512 = vunpack.c.0.s8 %v1511
        %v1513 = vlaneseq
        %v1514 = vshrl.u32 %v1513, 7
        %v1515 = vsub.s32 %v1512, %v1514
        %v1516 = vrot.slane %v1508, %v1515
        %v1518 = vunpack.c.l.s4 1934713408
        %v1519 = vunpack.c.0.s8 %v1518
        %v1520 = vlaneseq
        %v1521 = vshrl.u32 %v1520, 7
        %v1522 = vsub.s32 %v1519, %v1521
        %v1523 = vrot.slane %v1509, %v1522
        %v1524 = vcombine.high %v1500, 0.0
        %v1525 = vcombine.high %v1507, 0.0
        %v1526 = vcombine.high %v1516, 0.0
        %v1527 = vcombine.high %v1523, 0.0
        %v1528 = vcombine.low %v845, %v1451
        %v1529 = vcombine.high %v845, %v1451
        %v1531 = vunpack.c.l.s4 1983009808
        %v1532 = vunpack.c.0.s8 %v1531
        %v1533 = vlaneseq
        %v1534 = vshrl.u32 %v1533, 7
        %v1535 = vsub.s32 %v1532, %v1534
        %v1536 = vrot.slane %v1528, %v1535
        %v1538 = vunpack.c.l.s4 1983009808
        %v1539 = vunpack.c.0.s8 %v1538
        %v1540 = vlaneseq
        %v1541 = vshrl.u32 %v1540, 7
        %v1542 = vsub.s32 %v1539, %v1541
        %v1543 = vrot.slane %v1529, %v1542
        %v1544 = vcombine.low %v1445, %v1457
        %v1545 = vcombine.high %v1445, %v1457
        %v1547 = vunpack.c.l.s4 1983009808
        %v1548 = vunpack.c.0.s8 %v1547
        %v1549 = vlaneseq
        %v1550 = vshrl.u32 %v1549, 7
        %v1551 = vsub.s32 %v1548, %v1550
        %v1552 = vrot.slane %v1544, %v1551
        %v1554 = vunpack.c.l.s4 1983009808
        %v1555 = vunpack.c.0.s8 %v1554
        %v1556 = vlaneseq
        %v1557 = vshrl.u32 %v1556, 7
        %v1558 = vsub.s32 %v1555, %v1557
        %v1559 = vrot.slane %v1545, %v1558
        %v1560 = vcombine.low %v1536, %v1552
        %v1561 = vcombine.high %v1536, %v1552
        %v1563 = vunpack.c.l.s4 1934713408
        %v1564 = vunpack.c.0.s8 %v1563
        %v1565 = vlaneseq
        %v1566 = vshrl.u32 %v1565, 7
        %v1567 = vsub.s32 %v1564, %v1566
        %v1568 = vrot.slane %v1560, %v1567
        %v1570 = vunpack.c.l.s4 1934713408
        %v1571 = vunpack.c.0.s8 %v1570
        %v1572 = vlaneseq
        %v1573 = vshrl.u32 %v1572, 7
        %v1574 = vsub.s32 %v1571, %v1573
        %v1575 = vrot.slane %v1561, %v1574
        %v1576 = vcombine.low %v1543, %v1559
        %v1577 = vcombine.high %v1543, %v1559
        %v1579 = vunpack.c.l.s4 1934713408
        %v1580 = vunpack.c.0.s8 %v1579
        %v1581 = vlaneseq
        %v1582 = vshrl.u32 %v1581, 7
        %v1583 = vsub.s32 %v1580, %v1582
        %v1584 = vrot.slane %v1576, %v1583
        %v1586 = vunpack.c.l.s4 1934713408
        %v1587 = vunpack.c.0.s8 %v1586
        %v1588 = vlaneseq
        %v1589 = vshrl.u32 %v1588, 7
        %v1590 = vsub.s32 %v1587, %v1589
        %v1591 = vrot.slane %v1577, %v1590
        %v1592 = vcombine.high %v1568, 0.0
        %v1593 = vcombine.high %v1575, 0.0
        %v1594 = vcombine.high %v1584, 0.0
        %v1595 = vcombine.high %v1591, 0.0
        %v1596 = vcombine.low %v1500, %v1507
        %v1598 = vunpack.c.l.s4 1983009808
        %v1599 = vunpack.c.0.s8 %v1598
        %v1600 = vlaneseq
        %v1601 = vshrl.u32 %v1600, 7
        %v1602 = vsub.s32 %v1599, %v1601
        %v1603 = vrot.slane %v1596, %v1602
        %v1604 = vcombine.low %v1524, %v1525
        %v1606 = vunpack.c.l.s4 1983009808
        %v1607 = vunpack.c.0.s8 %v1606
        %v1608 = vlaneseq
        %v1609 = vshrl.u32 %v1608, 7
        %v1610 = vsub.s32 %v1607, %v1609
        %v1611 = vrot.slane %v1604, %v1610
        %v1612 = vcombine.low %v1516, %v1523
        %v1614 = vunpack.c.l.s4 1983009808
        %v1615 = vunpack.c.0.s8 %v1614
        %v1616 = vlaneseq
        %v1617 = vshrl.u32 %v1616, 7
        %v1618 = vsub.s32 %v1615, %v1617
        %v1619 = vrot.slane %v1612, %v1618
        %v1620 = vcombine.low %v1526, %v1527
        %v1622 = vunpack.c.l.s4 1983009808
        %v1623 = vunpack.c.0.s8 %v1622
        %v1624 = vlaneseq
        %v1625 = vshrl.u32 %v1624, 7
        %v1626 = vsub.s32 %v1623, %v1625
        %v1627 = vrot.slane %v1620, %v1626
        %v1628 = vcombine.low %v1603, %v1611
        %v1629 = vcombine.high %v1603, %v1611
        %v1631 = vunpack.c.l.s4 1934713408
        %v1632 = vunpack.c.0.s8 %v1631
        %v1633 = vlaneseq
        %v1634 = vshrl.u32 %v1633, 7
        %v1635 = vsub.s32 %v1632, %v1634
        %v1636 = vrot.slane %v1628, %v1635
        %v1638 = vunpack.c.l.s4 1934713408
        %v1639 = vunpack.c.0.s8 %v1638
        %v1640 = vlaneseq
        %v1641 = vshrl.u32 %v1640, 7
        %v1642 = vsub.s32 %v1639, %v1641
        %v1643 = vrot.slane %v1629, %v1642
        %v1644 = vcombine.low %v1619, %v1627
        %v1645 = vcombine.high %v1619, %v1627
        %v1647 = vunpack.c.l.s4 1934713408
        %v1648 = vunpack.c.0.s8 %v1647
        %v1649 = vlaneseq
        %v1650 = vshrl.u32 %v1649, 7
        %v1651 = vsub.s32 %v1648, %v1650
        %v1652 = vrot.slane %v1644, %v1651
        %v1654 = vunpack.c.l.s4 1934713408
        %v1655 = vunpack.c.0.s8 %v1654
        %v1656 = vlaneseq
        %v1657 = vshrl.u32 %v1656, 7
        %v1658 = vsub.s32 %v1655, %v1657
        %v1659 = vrot.slane %v1645, %v1658
        %v1660 = vcombine.low %v1636, %v1652
        %v1661 = vcombine.high %v1636, %v1652
        %v1662 = vcombine.low %v1643, %v1659
        %v1663 = vcombine.high %v1643, %v1659
        %v1664 = vcombine.low %v1568, %v1575
        %v1666 = vunpack.c.l.s4 1983009808
        %v1667 = vunpack.c.0.s8 %v1666
        %v1668 = vlaneseq
        %v1669 = vshrl.u32 %v1668, 7
        %v1670 = vsub.s32 %v1667, %v1669
        %v1671 = vrot.slane %v1664, %v1670
        %v1672 = vcombine.low %v1592, %v1593
        %v1674 = vunpack.c.l.s4 1983009808
        %v1675 = vunpack.c.0.s8 %v1674
        %v1676 = vlaneseq
        %v1677 = vshrl.u32 %v1676, 7
        %v1678 = vsub.s32 %v1675, %v1677
        %v1679 = vrot.slane %v1672, %v1678
        %v1680 = vcombine.low %v1584, %v1591
        %v1682 = vunpack.c.l.s4 1983009808
        %v1683 = vunpack.c.0.s8 %v1682
        %v1684 = vlaneseq
        %v1685 = vshrl.u32 %v1684, 7
        %v1686 = vsub.s32 %v1683, %v1685
        %v1687 = vrot.slane %v1680, %v1686
        %v1688 = vcombine.low %v1594, %v1595
        %v1690 = vunpack.c.l.s4 1983009808
        %v1691 = vunpack.c.0.s8 %v1690
        %v1692 = vlaneseq
        %v1693 = vshrl.u32 %v1692, 7
        %v1694 = vsub.s32 %v1691, %v1693
        %v1695 = vrot.slane %v1688, %v1694
        %v1696 = vcombine.low %v1671, %v1679
        %v1697 = vcombine.high %v1671, %v1679
        %v1699 = vunpack.c.l.s4 1934713408
        %v1700 = vunpack.c.0.s8 %v1699
        %v1701 = vlaneseq
        %v1702 = vshrl.u32 %v1701, 7
        %v1703 = vsub.s32 %v1700, %v1702
        %v1704 = vrot.slane %v1696, %v1703
        %v1706 = vunpack.c.l.s4 1934713408
        %v1707 = vunpack.c.0.s8 %v1706
        %v1708 = vlaneseq
        %v1709 = vshrl.u32 %v1708, 7
        %v1710 = vsub.s32 %v1707, %v1709
        %v1711 = vrot.slane %v1697, %v1710
        %v1712 = vcombine.low %v1687, %v1695
        %v1713 = vcombine.high %v1687, %v1695
        %v1715 = vunpack.c.l.s4 1934713408
        %v1716 = vunpack.c.0.s8 %v1715
        %v1717 = vlaneseq
        %v1718 = vshrl.u32 %v1717, 7
        %v1719 = vsub.s32 %v1716, %v1718
        %v1720 = vrot.slane %v1712, %v1719
        %v1722 = vunpack.c.l.s4 1934713408
        %v1723 = vunpack.c.0.s8 %v1722
        %v1724 = vlaneseq
        %v1725 = vshrl.u32 %v1724, 7
        %v1726 = vsub.s32 %v1723, %v1725
        %v1727 = vrot.slane %v1713, %v1726
        %v1728 = vcombine.low %v1704, %v1720
        %v1729 = vcombine.high %v1704, %v1720
        %v1730 = vcombine.low %v1711, %v1727
        %v1731 = vcombine.high %v1711, %v1727
        %v1732 = vpack.c.bf16 %v1728, %v1660
        %v1733 = vpack.c.bf16 %v1729, %v1661
        %v1734 = vpack.c.bf16 %v1730, %v1662
        %v1735 = vpack.c.bf16 %v1731, %v1663
        %vm1736 = vcmask 261120
        %v1738 = vsel %vm1736, %v1140, 0
        %v1741 = vsel %vm1736, %v1436, 0
        %1743 = vmatprep.subr.bf16.mxu0 0
        %1744 = vmatpush1.bf16.xpose.msra.mxu0 %v1741
        %1745 = vmatprep.subr.bf16.mxu0 0
        %1746 = vmatpush1.bf16.xpose.msra.mxu0 0
        %1747 = vmatprep.subr.bf16.mxu0 0
        %1748 = vmatpush1.bf16.xpose.msra.mxu0 0
        %1749 = vmatprep.subr.bf16.mxu0 0
        %1750 = vmatpush1.bf16.xpose.msra.mxu0 0
        %1751 = vmatprep.subr.bf16.mxu0 0
        %1752 = vmatpush1.bf16.xpose.msra.mxu0 0
        %1753 = vmatprep.subr.bf16.mxu0 0
        %1754 = vmatpush1.bf16.xpose.msra.mxu0 0
        %1755 = vmatprep.subr.bf16.mxu0 0
        %1756 = vmatpush1.bf16.xpose.msra.mxu0 0
        %1757 = vmatprep.subr.bf16.mxu0 0
        %1758 = vmatpush1.bf16.xpose.msra.mxu0 0
        %1759 = vmatprep.subr.bf16.mxu0 0
        %1760 = vmatpush1.bf16.xpose.msra.mxu0 0
        %1761 = vmatprep.subr.bf16.mxu0 0
        %1762 = vmatpush1.bf16.xpose.msra.mxu0 0
        %1763 = vmatprep.subr.bf16.mxu0 0
        %1764 = vmatpush1.bf16.xpose.msra.mxu0 0
        %1765 = vmatprep.subr.bf16.mxu0 0
        %1766 = vmatpush1.bf16.xpose.msra.mxu0 0
        %1767 = vmatprep.subr.bf16.mxu0 0
        %1768 = vmatpush1.bf16.xpose.msra.mxu0 0
        %1769 = vmatprep.subr.bf16.mxu0 0
        %1770 = vmatpush1.bf16.xpose.msra.mxu0 0
        %1771 = vmatprep.subr.bf16.mxu0 0
        %1772 = vmatpush1.bf16.xpose.msra.mxu0 0
        %1773 = vmatprep.subr.bf16.mxu0 0
        %1774 = vmatpush1.bf16.xpose.msra.mxu0 0
        %1775 = vmatprep.mubr.bf16.mxu0 0
        %1776 = vmatmul.mubr.bf16.gmra.mrb[0].mxu0 %v1738
        %v1777 = vpop.f32.mrb[0].mxu0
        %v1778 = vadd.f32 0.0, %v1777
        %v1779 = vpop.f32.mrb[0].mxu0
        %v1780 = vpop.f32.mrb[0].mxu0
        %v1781 = vadd.f32 0.0, %v1780
        %v1782 = vpop.f32.mrb[0].mxu0
        %1783 = vdwg.mxu0
        %v1785 = vsel %vm1736, %v1141, 0
        %v1788 = vsel %vm1736, %v1437, 0
        %1790 = vmatprep.subr.bf16.mxu0 0
        %1791 = vmatpush1.bf16.xpose.msra.mxu0 %v1788
        %1792 = vmatprep.subr.bf16.mxu0 0
        %1793 = vmatpush1.bf16.xpose.msra.mxu0 0
        %1794 = vmatprep.subr.bf16.mxu0 0
        %1795 = vmatpush1.bf16.xpose.msra.mxu0 0
        %1796 = vmatprep.subr.bf16.mxu0 0
        %1797 = vmatpush1.bf16.xpose.msra.mxu0 0
        %1798 = vmatprep.subr.bf16.mxu0 0
        %1799 = vmatpush1.bf16.xpose.msra.mxu0 0
        %1800 = vmatprep.subr.bf16.mxu0 0
        %1801 = vmatpush1.bf16.xpose.msra.mxu0 0
        %1802 = vmatprep.subr.bf16.mxu0 0
        %1803 = vmatpush1.bf16.xpose.msra.mxu0 0
        %1804 = vmatprep.subr.bf16.mxu0 0
        %1805 = vmatpush1.bf16.xpose.msra.mxu0 0
        %1806 = vmatprep.subr.bf16.mxu0 0
        %1807 = vmatpush1.bf16.xpose.msra.mxu0 0
        %1808 = vmatprep.subr.bf16.mxu0 0
        %1809 = vmatpush1.bf16.xpose.msra.mxu0 0
        %1810 = vmatprep.subr.bf16.mxu0 0
        %1811 = vmatpush1.bf16.xpose.msra.mxu0 0
        %1812 = vmatprep.subr.bf16.mxu0 0
        %1813 = vmatpush1.bf16.xpose.msra.mxu0 0
        %1814 = vmatprep.subr.bf16.mxu0 0
        %1815 = vmatpush1.bf16.xpose.msra.mxu0 0
        %1816 = vmatprep.subr.bf16.mxu0 0
        %1817 = vmatpush1.bf16.xpose.msra.mxu0 0
        %1818 = vmatprep.subr.bf16.mxu0 0
        %1819 = vmatpush1.bf16.xpose.msra.mxu0 0
        %1820 = vmatprep.subr.bf16.mxu0 0
        %1821 = vmatpush1.bf16.xpose.msra.mxu0 0
        %1822 = vmatprep.mubr.bf16.mxu0 0
        %1823 = vmatmul.mubr.bf16.gmra.mrb[0].mxu0 %v1785
        %v1824 = vpop.f32.mrb[0].mxu0
        %v1825 = vadd.f32 0.0, %v1824
        %v1826 = vpop.f32.mrb[0].mxu0
        %v1827 = vpop.f32.mrb[0].mxu0
        %v1828 = vadd.f32 0.0, %v1827
        %v1829 = vpop.f32.mrb[0].mxu0
        %1830 = vdwg.mxu0
        %v1832 = vsel %vm1736, %v1142, 0
        %v1835 = vsel %vm1736, %v1438, 0
        %1837 = vmatprep.subr.bf16.mxu0 0
        %1838 = vmatpush1.bf16.xpose.msra.mxu0 %v1835
        %1839 = vmatprep.subr.bf16.mxu0 0
        %1840 = vmatpush1.bf16.xpose.msra.mxu0 0
        %1841 = vmatprep.subr.bf16.mxu0 0
        %1842 = vmatpush1.bf16.xpose.msra.mxu0 0
        %1843 = vmatprep.subr.bf16.mxu0 0
        %1844 = vmatpush1.bf16.xpose.msra.mxu0 0
        %1845 = vmatprep.subr.bf16.mxu0 0
        %1846 = vmatpush1.bf16.xpose.msra.mxu0 0
        %1847 = vmatprep.subr.bf16.mxu0 0
        %1848 = vmatpush1.bf16.xpose.msra.mxu0 0
        %1849 = vmatprep.subr.bf16.mxu0 0
        %1850 = vmatpush1.bf16.xpose.msra.mxu0 0
        %1851 = vmatprep.subr.bf16.mxu0 0
        %1852 = vmatpush1.bf16.xpose.msra.mxu0 0
        %1853 = vmatprep.subr.bf16.mxu0 0
        %1854 = vmatpush1.bf16.xpose.msra.mxu0 0
        %1855 = vmatprep.subr.bf16.mxu0 0
        %1856 = vmatpush1.bf16.xpose.msra.mxu0 0
        %1857 = vmatprep.subr.bf16.mxu0 0
        %1858 = vmatpush1.bf16.xpose.msra.mxu0 0
        %1859 = vmatprep.subr.bf16.mxu0 0
        %1860 = vmatpush1.bf16.xpose.msra.mxu0 0
        %1861 = vmatprep.subr.bf16.mxu0 0
        %1862 = vmatpush1.bf16.xpose.msra.mxu0 0
        %1863 = vmatprep.subr.bf16.mxu0 0
        %1864 = vmatpush1.bf16.xpose.msra.mxu0 0
        %1865 = vmatprep.subr.bf16.mxu0 0
        %1866 = vmatpush1.bf16.xpose.msra.mxu0 0
        %1867 = vmatprep.subr.bf16.mxu0 0
        %1868 = vmatpush1.bf16.xpose.msra.mxu0 0
        %1869 = vmatprep.mubr.bf16.mxu0 0
        %1870 = vmatmul.mubr.bf16.gmra.mrb[0].mxu0 %v1832
        %v1871 = vpop.f32.mrb[0].mxu0
        %v1872 = vadd.f32 0.0, %v1871
        %v1873 = vpop.f32.mrb[0].mxu0
        %v1874 = vpop.f32.mrb[0].mxu0
        %v1875 = vadd.f32 0.0, %v1874
        %v1876 = vpop.f32.mrb[0].mxu0
        %1877 = vdwg.mxu0
        %v1879 = vsel %vm1736, %v1143, 0
        %v1882 = vsel %vm1736, %v1439, 0
        %1884 = vmatprep.subr.bf16.mxu0 0
        %1885 = vmatpush1.bf16.xpose.msra.mxu0 %v1882
        %1886 = vmatprep.subr.bf16.mxu0 0
        %1887 = vmatpush1.bf16.xpose.msra.mxu0 0
        %1888 = vmatprep.subr.bf16.mxu0 0
        %1889 = vmatpush1.bf16.xpose.msra.mxu0 0
        %1890 = vmatprep.subr.bf16.mxu0 0
        %1891 = vmatpush1.bf16.xpose.msra.mxu0 0
        %1892 = vmatprep.subr.bf16.mxu0 0
        %1893 = vmatpush1.bf16.xpose.msra.mxu0 0
        %1894 = vmatprep.subr.bf16.mxu0 0
        %1895 = vmatpush1.bf16.xpose.msra.mxu0 0
        %1896 = vmatprep.subr.bf16.mxu0 0
        %1897 = vmatpush1.bf16.xpose.msra.mxu0 0
        %1898 = vmatprep.subr.bf16.mxu0 0
        %1899 = vmatpush1.bf16.xpose.msra.mxu0 0
        %1900 = vmatprep.subr.bf16.mxu0 0
        %1901 = vmatpush1.bf16.xpose.msra.mxu0 0
        %1902 = vmatprep.subr.bf16.mxu0 0
        %1903 = vmatpush1.bf16.xpose.msra.mxu0 0
        %1904 = vmatprep.subr.bf16.mxu0 0
        %1905 = vmatpush1.bf16.xpose.msra.mxu0 0
        %1906 = vmatprep.subr.bf16.mxu0 0
        %1907 = vmatpush1.bf16.xpose.msra.mxu0 0
        %1908 = vmatprep.subr.bf16.mxu0 0
        %1909 = vmatpush1.bf16.xpose.msra.mxu0 0
        %1910 = vmatprep.subr.bf16.mxu0 0
        %1911 = vmatpush1.bf16.xpose.msra.mxu0 0
        %1912 = vmatprep.subr.bf16.mxu0 0
        %1913 = vmatpush1.bf16.xpose.msra.mxu0 0
        %1914 = vmatprep.subr.bf16.mxu0 0
        %1915 = vmatpush1.bf16.xpose.msra.mxu0 0
        %1916 = vmatprep.mubr.bf16.mxu0 0
        %1917 = vmatmul.mubr.bf16.gmra.mrb[0].mxu0 %v1879
        %v1918 = vpop.f32.mrb[0].mxu0
        %v1919 = vadd.f32 0.0, %v1918
        %v1920 = vpop.f32.mrb[0].mxu0
        %v1921 = vpop.f32.mrb[0].mxu0
        %v1922 = vadd.f32 0.0, %v1921
        %v1923 = vpop.f32.mrb[0].mxu0
        %1924 = vdwg.mxu0
        %vm1925 = vcmask 130048
        %v1926 = vsel %vm1925, %v1778, -inf
        %1927 = vmax.xlane.f32.xlu0 %v1926
        %v1928 = vpop.xlane.xlu0 %1927
        %v1929 = vsel %vm1925, %v1781, -inf
        %1930 = vmax.xlane.f32.xlu0 %v1929
        %v1931 = vpop.xlane.xlu0 %1930
        %v1932 = vsel %vm1925, %v1825, -inf
        %1933 = vmax.xlane.f32.xlu0 %v1932
        %v1934 = vpop.xlane.xlu0 %1933
        %v1935 = vsel %vm1925, %v1828, -inf
        %1936 = vmax.xlane.f32.xlu0 %v1935
        %v1937 = vpop.xlane.xlu0 %1936
        %v1938 = vsel %vm1925, %v1872, -inf
        %1939 = vmax.xlane.f32.xlu0 %v1938
        %v1940 = vpop.xlane.xlu0 %1939
        %v1941 = vsel %vm1925, %v1875, -inf
        %1942 = vmax.xlane.f32.xlu0 %v1941
        %v1943 = vpop.xlane.xlu0 %1942
        %v1944 = vsel %vm1925, %v1919, -inf
        %1945 = vmax.xlane.f32.xlu0 %v1944
        %v1946 = vpop.xlane.xlu0 %1945
        %v1947 = vsel %vm1925, %v1922, -inf
        %1948 = vmax.xlane.f32.xlu0 %v1947
        %v1949 = vpop.xlane.xlu0 %1948
        %v1950 = vsub.f32 %v1778, %v1928
        %v1951 = vsub.f32 %v1781, %v1931
        %v1952 = vsub.f32 %v1825, %v1934
        %v1953 = vsub.f32 %v1828, %v1937
        %v1954 = vsub.f32 %v1872, %v1940
        %v1955 = vsub.f32 %v1875, %v1943
        %v1956 = vsub.f32 %v1919, %v1946
        %v1957 = vsub.f32 %v1922, %v1949
        %v1958 = vmul.f32 %v1950, 1.442695
        %v1959 = vpow.pop %v1958
        %v1960 = vmul.f32 %v1951, 1.442695
        %v1961 = vpow.pop %v1960
        %v1962 = vmul.f32 %v1952, 1.442695
        %v1963 = vpow.pop %v1962
        %v1964 = vmul.f32 %v1953, 1.442695
        %v1965 = vpow.pop %v1964
        %v1966 = vmul.f32 %v1954, 1.442695
        %v1967 = vpow.pop %v1966
        %v1968 = vmul.f32 %v1955, 1.442695
        %v1969 = vpow.pop %v1968
        %v1970 = vmul.f32 %v1956, 1.442695
        %v1971 = vpow.pop %v1970
        %v1972 = vmul.f32 %v1957, 1.442695
        %v1973 = vpow.pop %v1972
        %v1974 = vsel %vm1925, %v1959, 0.0
        %1975 = vadd.xlane.f32.xlu0 %v1974
        %v1976 = vpop.xlane.xlu0 %1975
        %v1977 = vsel %vm1925, %v1961, 0.0
        %1978 = vadd.xlane.f32.xlu0 %v1977
        %v1979 = vpop.xlane.xlu0 %1978
        %v1980 = vsel %vm1925, %v1963, 0.0
        %1981 = vadd.xlane.f32.xlu0 %v1980
        %v1982 = vpop.xlane.xlu0 %1981
        %v1983 = vsel %vm1925, %v1965, 0.0
        %1984 = vadd.xlane.f32.xlu0 %v1983
        %v1985 = vpop.xlane.xlu0 %1984
        %v1986 = vsel %vm1925, %v1967, 0.0
        %1987 = vadd.xlane.f32.xlu0 %v1986
        %v1988 = vpop.xlane.xlu0 %1987
        %v1989 = vsel %vm1925, %v1969, 0.0
        %1990 = vadd.xlane.f32.xlu0 %v1989
        %v1991 = vpop.xlane.xlu0 %1990
        %v1992 = vsel %vm1925, %v1971, 0.0
        %1993 = vadd.xlane.f32.xlu0 %v1992
        %v1994 = vpop.xlane.xlu0 %1993
        %v1995 = vsel %vm1925, %v1973, 0.0
        %1996 = vadd.xlane.f32.xlu0 %v1995
        %v1997 = vpop.xlane.xlu0 %1996
        %v1998 = vrcp.pop %v1976
        %v1999 = vrcp.pop %v1979
        %v2000 = vrcp.pop %v1982
        %v2001 = vrcp.pop %v1985
        %v2002 = vrcp.pop %v1988
        %v2003 = vrcp.pop %v1991
        %v2004 = vrcp.pop %v1994
        %v2005 = vrcp.pop %v1997
        %v2006 = vmul.f32 %v1959, %v1998
        %v2007 = vmul.f32 %v1961, %v1999
        %v2008 = vmul.f32 %v1963, %v2000
        %v2009 = vmul.f32 %v1965, %v2001
        %v2010 = vmul.f32 %v1967, %v2002
        %v2011 = vmul.f32 %v1969, %v2003
        %v2012 = vmul.f32 %v1971, %v2004
        %v2013 = vmul.f32 %v1973, %v2005
        %v2014 = vpack.c.bf16 %v2007, %v2006
        %v2015 = vpack.c.bf16 %v2009, %v2008
        %v2016 = vpack.c.bf16 %v2011, %v2010
        %v2017 = vpack.c.bf16 %v2013, %v2012
        %v2019 = vsel %vm1925, %v2014, 0
        %2021 = vmatprep.subr.bf16.mxu0 0
        %2022 = vmatpush1.bf16.msra.mxu0 %v1732
        %2023 = vmatprep.subr.bf16.mxu0 0
        %2024 = vmatpush1.bf16.msra.mxu0 0
        %2025 = vmatprep.subr.bf16.mxu0 0
        %2026 = vmatpush1.bf16.msra.mxu0 0
        %2027 = vmatprep.subr.bf16.mxu0 0
        %2028 = vmatpush1.bf16.msra.mxu0 0
        %2029 = vmatprep.subr.bf16.mxu0 0
        %2030 = vmatpush1.bf16.msra.mxu0 0
        %2031 = vmatprep.subr.bf16.mxu0 0
        %2032 = vmatpush1.bf16.msra.mxu0 0
        %2033 = vmatprep.subr.bf16.mxu0 0
        %2034 = vmatpush1.bf16.msra.mxu0 0
        %2035 = vmatprep.subr.bf16.mxu0 0
        %2036 = vmatpush1.bf16.msra.mxu0 0
        %2037 = vmatprep.subr.bf16.mxu0 0
        %2038 = vmatpush1.bf16.msra.mxu0 0
        %2039 = vmatprep.subr.bf16.mxu0 0
        %2040 = vmatpush1.bf16.msra.mxu0 0
        %2041 = vmatprep.subr.bf16.mxu0 0
        %2042 = vmatpush1.bf16.msra.mxu0 0
        %2043 = vmatprep.subr.bf16.mxu0 0
        %2044 = vmatpush1.bf16.msra.mxu0 0
        %2045 = vmatprep.subr.bf16.mxu0 0
        %2046 = vmatpush1.bf16.msra.mxu0 0
        %2047 = vmatprep.subr.bf16.mxu0 0
        %2048 = vmatpush1.bf16.msra.mxu0 0
        %2049 = vmatprep.subr.bf16.mxu0 0
        %2050 = vmatpush1.bf16.msra.mxu0 0
        %2051 = vmatprep.subr.bf16.mxu0 0
        %2052 = vmatpush1.bf16.msra.mxu0 0
        %2053 = vmatprep.mubr.bf16.mxu0 0
        %2054 = vmatmul.mubr.bf16.gmra.mrb[0].mxu0 %v2019
        %v2055 = vpop.f32.mrb[0].mxu0
        %v2056 = vadd.f32 0.0, %v2055
        %v2057 = vpop.f32.mrb[0].mxu0
        %v2058 = vpop.f32.mrb[0].mxu0
        %v2059 = vadd.f32 0.0, %v2058
        %v2060 = vpop.f32.mrb[0].mxu0
        %2061 = vdwg.mxu0
        %v2063 = vsel %vm1925, %v2015, 0
        %2065 = vmatprep.subr.bf16.mxu0 0
        %2066 = vmatpush1.bf16.msra.mxu0 %v1733
        %2067 = vmatprep.subr.bf16.mxu0 0
        %2068 = vmatpush1.bf16.msra.mxu0 0
        %2069 = vmatprep.subr.bf16.mxu0 0
        %2070 = vmatpush1.bf16.msra.mxu0 0
        %2071 = vmatprep.subr.bf16.mxu0 0
        %2072 = vmatpush1.bf16.msra.mxu0 0
        %2073 = vmatprep.subr.bf16.mxu0 0
        %2074 = vmatpush1.bf16.msra.mxu0 0
        %2075 = vmatprep.subr.bf16.mxu0 0
        %2076 = vmatpush1.bf16.msra.mxu0 0
        %2077 = vmatprep.subr.bf16.mxu0 0
        %2078 = vmatpush1.bf16.msra.mxu0 0
        %2079 = vmatprep.subr.bf16.mxu0 0
        %2080 = vmatpush1.bf16.msra.mxu0 0
        %2081 = vmatprep.subr.bf16.mxu0 0
        %2082 = vmatpush1.bf16.msra.mxu0 0
        %2083 = vmatprep.subr.bf16.mxu0 0
        %2084 = vmatpush1.bf16.msra.mxu0 0
        %2085 = vmatprep.subr.bf16.mxu0 0
        %2086 = vmatpush1.bf16.msra.mxu0 0
        %2087 = vmatprep.subr.bf16.mxu0 0
        %2088 = vmatpush1.bf16.msra.mxu0 0
        %2089 = vmatprep.subr.bf16.mxu0 0
        %2090 = vmatpush1.bf16.msra.mxu0 0
        %2091 = vmatprep.subr.bf16.mxu0 0
        %2092 = vmatpush1.bf16.msra.mxu0 0
        %2093 = vmatprep.subr.bf16.mxu0 0
        %2094 = vmatpush1.bf16.msra.mxu0 0
        %2095 = vmatprep.subr.bf16.mxu0 0
        %2096 = vmatpush1.bf16.msra.mxu0 0
        %2097 = vmatprep.mubr.bf16.mxu0 0
        %2098 = vmatmul.mubr.bf16.gmra.mrb[0].mxu0 %v2063
        %v2099 = vpop.f32.mrb[0].mxu0
        %v2100 = vadd.f32 0.0, %v2099
        %v2101 = vpop.f32.mrb[0].mxu0
        %v2102 = vpop.f32.mrb[0].mxu0
        %v2103 = vadd.f32 0.0, %v2102
        %v2104 = vpop.f32.mrb[0].mxu0
        %2105 = vdwg.mxu0
        %v2107 = vsel %vm1925, %v2016, 0
        %2109 = vmatprep.subr.bf16.mxu0 0
        %2110 = vmatpush1.bf16.msra.mxu0 %v1734
        %2111 = vmatprep.subr.bf16.mxu0 0
        %2112 = vmatpush1.bf16.msra.mxu0 0
        %2113 = vmatprep.subr.bf16.mxu0 0
        %2114 = vmatpush1.bf16.msra.mxu0 0
        %2115 = vmatprep.subr.bf16.mxu0 0
        %2116 = vmatpush1.bf16.msra.mxu0 0
        %2117 = vmatprep.subr.bf16.mxu0 0
        %2118 = vmatpush1.bf16.msra.mxu0 0
        %2119 = vmatprep.subr.bf16.mxu0 0
        %2120 = vmatpush1.bf16.msra.mxu0 0
        %2121 = vmatprep.subr.bf16.mxu0 0
        %2122 = vmatpush1.bf16.msra.mxu0 0
        %2123 = vmatprep.subr.bf16.mxu0 0
        %2124 = vmatpush1.bf16.msra.mxu0 0
        %2125 = vmatprep.subr.bf16.mxu0 0
        %2126 = vmatpush1.bf16.msra.mxu0 0
        %2127 = vmatprep.subr.bf16.mxu0 0
        %2128 = vmatpush1.bf16.msra.mxu0 0
        %2129 = vmatprep.subr.bf16.mxu0 0
        %2130 = vmatpush1.bf16.msra.mxu0 0
        %2131 = vmatprep.subr.bf16.mxu0 0
        %2132 = vmatpush1.bf16.msra.mxu0 0
        %2133 = vmatprep.subr.bf16.mxu0 0
        %2134 = vmatpush1.bf16.msra.mxu0 0
        %2135 = vmatprep.subr.bf16.mxu0 0
        %2136 = vmatpush1.bf16.msra.mxu0 0
        %2137 = vmatprep.subr.bf16.mxu0 0
        %2138 = vmatpush1.bf16.msra.mxu0 0
        %2139 = vmatprep.subr.bf16.mxu0 0
        %2140 = vmatpush1.bf16.msra.mxu0 0
        %2141 = vmatprep.mubr.bf16.mxu0 0
        %2142 = vmatmul.mubr.bf16.gmra.mrb[0].mxu0 %v2107
        %v2143 = vpop.f32.mrb[0].mxu0
        %v2144 = vadd.f32 0.0, %v2143
        %v2145 = vpop.f32.mrb[0].mxu0
        %v2146 = vpop.f32.mrb[0].mxu0
        %v2147 = vadd.f32 0.0, %v2146
        %v2148 = vpop.f32.mrb[0].mxu0
        %2149 = vdwg.mxu0
        %v2151 = vsel %vm1925, %v2017, 0
        %2153 = vmatprep.subr.bf16.mxu0 0
        %2154 = vmatpush1.bf16.msra.mxu0 %v1735
        %2155 = vmatprep.subr.bf16.mxu0 0
        %2156 = vmatpush1.bf16.msra.mxu0 0
        %2157 = vmatprep.subr.bf16.mxu0 0
        %2158 = vmatpush1.bf16.msra.mxu0 0
        %2159 = vmatprep.subr.bf16.mxu0 0
        %2160 = vmatpush1.bf16.msra.mxu0 0
        %2161 = vmatprep.subr.bf16.mxu0 0
        %2162 = vmatpush1.bf16.msra.mxu0 0
        %2163 = vmatprep.subr.bf16.mxu0 0
        %2164 = vmatpush1.bf16.msra.mxu0 0
        %2165 = vmatprep.subr.bf16.mxu0 0
        %2166 = vmatpush1.bf16.msra.mxu0 0
        %2167 = vmatprep.subr.bf16.mxu0 0
        %2168 = vmatpush1.bf16.msra.mxu0 0
        %2169 = vmatprep.subr.bf16.mxu0 0
        %2170 = vmatpush1.bf16.msra.mxu0 0
        %2171 = vmatprep.subr.bf16.mxu0 0
        %2172 = vmatpush1.bf16.msra.mxu0 0
        %2173 = vmatprep.subr.bf16.mxu0 0
        %2174 = vmatpush1.bf16.msra.mxu0 0
        %2175 = vmatprep.subr.bf16.mxu0 0
        %2176 = vmatpush1.bf16.msra.mxu0 0
        %2177 = vmatprep.subr.bf16.mxu0 0
        %2178 = vmatpush1.bf16.msra.mxu0 0
        %2179 = vmatprep.subr.bf16.mxu0 0
        %2180 = vmatpush1.bf16.msra.mxu0 0
        %2181 = vmatprep.subr.bf16.mxu0 0
        %2182 = vmatpush1.bf16.msra.mxu0 0
        %2183 = vmatprep.subr.bf16.mxu0 0
        %2184 = vmatpush1.bf16.msra.mxu0 0
        %2185 = vmatprep.mubr.bf16.mxu0 0
        %2186 = vmatmul.mubr.bf16.gmra.mrb[0].mxu0 %v2151
        %v2187 = vpop.f32.mrb[0].mxu0
        %v2188 = vadd.f32 0.0, %v2187
        %v2189 = vpop.f32.mrb[0].mxu0
        %v2190 = vpop.f32.mrb[0].mxu0
        %v2191 = vadd.f32 0.0, %v2190
        %v2192 = vpop.f32.mrb[0].mxu0
        %2193 = vdwg.mxu0
        %v2194 = vcombine.low %v2056, %v2144
        %v2195 = vcombine.high %v2056, %v2144
        %v2197 = vunpack.c.l.s4 1983009808
        %v2198 = vunpack.c.0.s8 %v2197
        %v2199 = vlaneseq
        %v2200 = vshrl.u32 %v2199, 7
        %v2201 = vsub.s32 %v2198, %v2200
        %v2202 = vrot.slane %v2194, %v2201
        %v2204 = vunpack.c.l.s4 1983009808
        %v2205 = vunpack.c.0.s8 %v2204
        %v2206 = vlaneseq
        %v2207 = vshrl.u32 %v2206, 7
        %v2208 = vsub.s32 %v2205, %v2207
        %v2209 = vrot.slane %v2195, %v2208
        %v2210 = vcombine.low %v2100, %v2188
        %v2211 = vcombine.high %v2100, %v2188
        %v2213 = vunpack.c.l.s4 1983009808
        %v2214 = vunpack.c.0.s8 %v2213
        %v2215 = vlaneseq
        %v2216 = vshrl.u32 %v2215, 7
        %v2217 = vsub.s32 %v2214, %v2216
        %v2218 = vrot.slane %v2210, %v2217
        %v2220 = vunpack.c.l.s4 1983009808
        %v2221 = vunpack.c.0.s8 %v2220
        %v2222 = vlaneseq
        %v2223 = vshrl.u32 %v2222, 7
        %v2224 = vsub.s32 %v2221, %v2223
        %v2225 = vrot.slane %v2211, %v2224
        %v2226 = vcombine.low %v2202, %v2218
        %v2227 = vcombine.high %v2202, %v2218
        %v2229 = vunpack.c.l.s4 1934713408
        %v2230 = vunpack.c.0.s8 %v2229
        %v2231 = vlaneseq
        %v2232 = vshrl.u32 %v2231, 7
        %v2233 = vsub.s32 %v2230, %v2232
        %v2234 = vrot.slane %v2226, %v2233
        %v2236 = vunpack.c.l.s4 1934713408
        %v2237 = vunpack.c.0.s8 %v2236
        %v2238 = vlaneseq
        %v2239 = vshrl.u32 %v2238, 7
        %v2240 = vsub.s32 %v2237, %v2239
        %v2241 = vrot.slane %v2227, %v2240
        %v2242 = vcombine.low %v2209, %v2225
        %v2243 = vcombine.high %v2209, %v2225
        %v2245 = vunpack.c.l.s4 1934713408
        %v2246 = vunpack.c.0.s8 %v2245
        %v2247 = vlaneseq
        %v2248 = vshrl.u32 %v2247, 7
        %v2249 = vsub.s32 %v2246, %v2248
        %v2250 = vrot.slane %v2242, %v2249
        %v2252 = vunpack.c.l.s4 1934713408
        %v2253 = vunpack.c.0.s8 %v2252
        %v2254 = vlaneseq
        %v2255 = vshrl.u32 %v2254, 7
        %v2256 = vsub.s32 %v2253, %v2255
        %v2257 = vrot.slane %v2243, %v2256
        %v2258 = vcombine.high %v2234, 0.0
        %v2259 = vcombine.high %v2241, 0.0
        %v2260 = vcombine.high %v2250, 0.0
        %v2261 = vcombine.high %v2257, 0.0
        %v2262 = vcombine.low %v2059, %v2147
        %v2263 = vcombine.high %v2059, %v2147
        %v2265 = vunpack.c.l.s4 1983009808
        %v2266 = vunpack.c.0.s8 %v2265
        %v2267 = vlaneseq
        %v2268 = vshrl.u32 %v2267, 7
        %v2269 = vsub.s32 %v2266, %v2268
        %v2270 = vrot.slane %v2262, %v2269
        %v2272 = vunpack.c.l.s4 1983009808
        %v2273 = vunpack.c.0.s8 %v2272
        %v2274 = vlaneseq
        %v2275 = vshrl.u32 %v2274, 7
        %v2276 = vsub.s32 %v2273, %v2275
        %v2277 = vrot.slane %v2263, %v2276
        %v2278 = vcombine.low %v2103, %v2191
        %v2279 = vcombine.high %v2103, %v2191
        %v2281 = vunpack.c.l.s4 1983009808
        %v2282 = vunpack.c.0.s8 %v2281
        %v2283 = vlaneseq
        %v2284 = vshrl.u32 %v2283, 7
        %v2285 = vsub.s32 %v2282, %v2284
        %v2286 = vrot.slane %v2278, %v2285
        %v2288 = vunpack.c.l.s4 1983009808
        %v2289 = vunpack.c.0.s8 %v2288
        %v2290 = vlaneseq
        %v2291 = vshrl.u32 %v2290, 7
        %v2292 = vsub.s32 %v2289, %v2291
        %v2293 = vrot.slane %v2279, %v2292
        %v2294 = vcombine.low %v2270, %v2286
        %v2295 = vcombine.high %v2270, %v2286
        %v2297 = vunpack.c.l.s4 1934713408
        %v2298 = vunpack.c.0.s8 %v2297
        %v2299 = vlaneseq
        %v2300 = vshrl.u32 %v2299, 7
        %v2301 = vsub.s32 %v2298, %v2300
        %v2302 = vrot.slane %v2294, %v2301
        %v2304 = vunpack.c.l.s4 1934713408
        %v2305 = vunpack.c.0.s8 %v2304
        %v2306 = vlaneseq
        %v2307 = vshrl.u32 %v2306, 7
        %v2308 = vsub.s32 %v2305, %v2307
        %v2309 = vrot.slane %v2295, %v2308
        %v2310 = vcombine.low %v2277, %v2293
        %v2311 = vcombine.high %v2277, %v2293
        %v2313 = vunpack.c.l.s4 1934713408
        %v2314 = vunpack.c.0.s8 %v2313
        %v2315 = vlaneseq
        %v2316 = vshrl.u32 %v2315, 7
        %v2317 = vsub.s32 %v2314, %v2316
        %v2318 = vrot.slane %v2310, %v2317
        %v2320 = vunpack.c.l.s4 1934713408
        %v2321 = vunpack.c.0.s8 %v2320
        %v2322 = vlaneseq
        %v2323 = vshrl.u32 %v2322, 7
        %v2324 = vsub.s32 %v2321, %v2323
        %v2325 = vrot.slane %v2311, %v2324
        %v2326 = vcombine.high %v2302, 0.0
        %v2327 = vcombine.high %v2309, 0.0
        %v2328 = vcombine.high %v2318, 0.0
        %v2329 = vcombine.high %v2325, 0.0
        %v2330 = vcombine.low %v2234, %v2241
        %v2332 = vunpack.c.l.s4 1983009808
        %v2333 = vunpack.c.0.s8 %v2332
        %v2334 = vlaneseq
        %v2335 = vshrl.u32 %v2334, 7
        %v2336 = vsub.s32 %v2333, %v2335
        %v2337 = vrot.slane %v2330, %v2336
        %v2338 = vcombine.low %v2258, %v2259
        %v2340 = vunpack.c.l.s4 1983009808
        %v2341 = vunpack.c.0.s8 %v2340
        %v2342 = vlaneseq
        %v2343 = vshrl.u32 %v2342, 7
        %v2344 = vsub.s32 %v2341, %v2343
        %v2345 = vrot.slane %v2338, %v2344
        %v2346 = vcombine.low %v2250, %v2257
        %v2348 = vunpack.c.l.s4 1983009808
        %v2349 = vunpack.c.0.s8 %v2348
        %v2350 = vlaneseq
        %v2351 = vshrl.u32 %v2350, 7
        %v2352 = vsub.s32 %v2349, %v2351
        %v2353 = vrot.slane %v2346, %v2352
        %v2354 = vcombine.low %v2260, %v2261
        %v2356 = vunpack.c.l.s4 1983009808
        %v2357 = vunpack.c.0.s8 %v2356
        %v2358 = vlaneseq
        %v2359 = vshrl.u32 %v2358, 7
        %v2360 = vsub.s32 %v2357, %v2359
        %v2361 = vrot.slane %v2354, %v2360
        %v2362 = vcombine.low %v2337, %v2345
        %v2363 = vcombine.high %v2337, %v2345
        %v2365 = vunpack.c.l.s4 1934713408
        %v2366 = vunpack.c.0.s8 %v2365
        %v2367 = vlaneseq
        %v2368 = vshrl.u32 %v2367, 7
        %v2369 = vsub.s32 %v2366, %v2368
        %v2370 = vrot.slane %v2362, %v2369
        %v2372 = vunpack.c.l.s4 1934713408
        %v2373 = vunpack.c.0.s8 %v2372
        %v2374 = vlaneseq
        %v2375 = vshrl.u32 %v2374, 7
        %v2376 = vsub.s32 %v2373, %v2375
        %v2377 = vrot.slane %v2363, %v2376
        %v2378 = vcombine.low %v2353, %v2361
        %v2379 = vcombine.high %v2353, %v2361
        %v2381 = vunpack.c.l.s4 1934713408
        %v2382 = vunpack.c.0.s8 %v2381
        %v2383 = vlaneseq
        %v2384 = vshrl.u32 %v2383, 7
        %v2385 = vsub.s32 %v2382, %v2384
        %v2386 = vrot.slane %v2378, %v2385
        %v2388 = vunpack.c.l.s4 1934713408
        %v2389 = vunpack.c.0.s8 %v2388
        %v2390 = vlaneseq
        %v2391 = vshrl.u32 %v2390, 7
        %v2392 = vsub.s32 %v2389, %v2391
        %v2393 = vrot.slane %v2379, %v2392
        %v2394 = vcombine.low %v2370, %v2386
        %v2395 = vcombine.high %v2370, %v2386
        %v2396 = vcombine.low %v2377, %v2393
        %v2397 = vcombine.high %v2377, %v2393
        %v2398 = vcombine.low %v2302, %v2309
        %v2400 = vunpack.c.l.s4 1983009808
        %v2401 = vunpack.c.0.s8 %v2400
        %v2402 = vlaneseq
        %v2403 = vshrl.u32 %v2402, 7
        %v2404 = vsub.s32 %v2401, %v2403
        %v2405 = vrot.slane %v2398, %v2404
        %v2406 = vcombine.low %v2326, %v2327
        %v2408 = vunpack.c.l.s4 1983009808
        %v2409 = vunpack.c.0.s8 %v2408
        %v2410 = vlaneseq
        %v2411 = vshrl.u32 %v2410, 7
        %v2412 = vsub.s32 %v2409, %v2411
        %v2413 = vrot.slane %v2406, %v2412
        %v2414 = vcombine.low %v2318, %v2325
        %v2416 = vunpack.c.l.s4 1983009808
        %v2417 = vunpack.c.0.s8 %v2416
        %v2418 = vlaneseq
        %v2419 = vshrl.u32 %v2418, 7
        %v2420 = vsub.s32 %v2417, %v2419
        %v2421 = vrot.slane %v2414, %v2420
        %v2422 = vcombine.low %v2328, %v2329
        %v2424 = vunpack.c.l.s4 1983009808
        %v2425 = vunpack.c.0.s8 %v2424
        %v2426 = vlaneseq
        %v2427 = vshrl.u32 %v2426, 7
        %v2428 = vsub.s32 %v2425, %v2427
        %v2429 = vrot.slane %v2422, %v2428
        %v2430 = vcombine.low %v2405, %v2413
        %v2431 = vcombine.high %v2405, %v2413
        %v2433 = vunpack.c.l.s4 1934713408
        %v2434 = vunpack.c.0.s8 %v2433
        %v2435 = vlaneseq
        %v2436 = vshrl.u32 %v2435, 7
        %v2437 = vsub.s32 %v2434, %v2436
        %v2438 = vrot.slane %v2430, %v2437
        %v2440 = vunpack.c.l.s4 1934713408
        %v2441 = vunpack.c.0.s8 %v2440
        %v2442 = vlaneseq
        %v2443 = vshrl.u32 %v2442, 7
        %v2444 = vsub.s32 %v2441, %v2443
        %v2445 = vrot.slane %v2431, %v2444
        %v2446 = vcombine.low %v2421, %v2429
        %v2447 = vcombine.high %v2421, %v2429
        %v2449 = vunpack.c.l.s4 1934713408
        %v2450 = vunpack.c.0.s8 %v2449
        %v2451 = vlaneseq
        %v2452 = vshrl.u32 %v2451, 7
        %v2453 = vsub.s32 %v2450, %v2452
        %v2454 = vrot.slane %v2446, %v2453
        %v2456 = vunpack.c.l.s4 1934713408
        %v2457 = vunpack.c.0.s8 %v2456
        %v2458 = vlaneseq
        %v2459 = vshrl.u32 %v2458, 7
        %v2460 = vsub.s32 %v2457, %v2459
        %v2461 = vrot.slane %v2447, %v2460
        %v2462 = vcombine.low %v2438, %v2454
        %v2463 = vcombine.high %v2438, %v2454
        %v2464 = vcombine.low %v2445, %v2461
        %v2465 = vcombine.high %v2445, %v2461
        %2468 = vrot.lane.b32.xlu0 %v2395, 32
        %v2469 = vpop.permute.xlu0 %2468
        %2470 = vrot.lane.b32.xlu0 %v2463, 32
        %v2471 = vpop.permute.xlu0 %2470
        %2476 = vrot.lane.b32.xlu0 %v2396, 64
        %v2477 = vpop.permute.xlu0 %2476
        %2478 = vrot.lane.b32.xlu0 %v2464, 64
        %v2479 = vpop.permute.xlu0 %2478
        %2484 = vrot.lane.b32.xlu0 %v2397, 96
        %v2485 = vpop.permute.xlu0 %2484
        %2486 = vrot.lane.b32.xlu0 %v2465, 96
        %v2487 = vpop.permute.xlu0 %2486
        %v2490 = vsel %vm1736, %v2394, %v2469
        %v2491 = vsel %vm1736, %v2462, %v2471
        %vm2492 = vcmask 523264
        %v2493 = vsel %vm2492, %v2490, %v2477
        %v2494 = vsel %vm2492, %v2491, %v2479
        %vm2495 = vcmask 785408
        %v2496 = vsel %vm2495, %v2493, %v2485
        %v2497 = vsel %vm2495, %v2494, %v2487
        %v2498 = vpack.c.bf16 %v2497, %v2496
        %v2499 = vld [vmem:[#allocation10] sm:$0xf]
        %v2500 = vld [vmem:[#allocation10 + $0x4] sm:$0xf]
        %v2501 = vld [vmem:[#allocation10 + $0x8] sm:$0xf]
        %v2502 = vld [vmem:[#allocation10 + $0xc] sm:$0xf]
        %v2503 = vld [vmem:[#allocation10 + $0x10] sm:$0xf]
        %v2504 = vld [vmem:[#allocation10 + $0x14] sm:$0xf]
        %v2505 = vld [vmem:[#allocation10 + $0x18] sm:$0xf]
        %v2506 = vld [vmem:[#allocation10 + $0x1c] sm:$0xf]
        %v2507 = vld [vmem:[#allocation10 + $0x20] sm:$0xf]
        %v2508 = vld [vmem:[#allocation10 + $0x24] sm:$0xf]
        %v2509 = vld [vmem:[#allocation10 + $0x28] sm:$0xf]
        %v2510 = vld [vmem:[#allocation10 + $0x2c] sm:$0xf]
        %v2511 = vld [vmem:[#allocation10 + $0x30] sm:$0xf]
        %v2512 = vld [vmem:[#allocation10 + $0x34] sm:$0xf]
        %v2513 = vld [vmem:[#allocation10 + $0x38] sm:$0xf]
        %v2514 = vld [vmem:[#allocation10 + $0x3c] sm:$0xf]
        %v2515 = vld [vmem:[%s6] sm:$0x1]
        %v2517 = vlaneseq
        %v2518 = vshrl.u32 %v2517, 7
        %v2519 = vsub.s32 0, %v2518
        %v2520 = vrot.slane %v2515, %v2519
        %v2538 = vunpack.c.l.b16 %v2499
        %v2539 = vunpack.c.l.b16 %v2500
        %v2540 = vunpack.c.l.b16 %v2501
        %v2541 = vunpack.c.l.b16 %v2502
        %v2542 = vunpack.c.l.b16 %v2503
        %v2543 = vunpack.c.l.b16 %v2504
        %v2544 = vunpack.c.l.b16 %v2505
        %v2545 = vunpack.c.l.b16 %v2506
        %v2546 = vunpack.c.l.b16 %v2507
        %v2547 = vunpack.c.l.b16 %v2508
        %v2548 = vunpack.c.l.b16 %v2509
        %v2549 = vunpack.c.l.b16 %v2510
        %v2550 = vunpack.c.l.b16 %v2511
        %v2551 = vunpack.c.l.b16 %v2512
        %v2552 = vunpack.c.l.b16 %v2513
        %v2553 = vunpack.c.l.b16 %v2514
        %v2554 = vpack.c.b16 %v2539, %v2538
        %v2555 = vpack.c.b16 %v2541, %v2540
        %v2556 = vpack.c.b16 %v2543, %v2542
        %v2557 = vpack.c.b16 %v2545, %v2544
        %v2558 = vpack.c.b16 %v2547, %v2546
        %v2559 = vpack.c.b16 %v2549, %v2548
        %v2560 = vpack.c.b16 %v2551, %v2550
        %v2561 = vpack.c.b16 %v2553, %v2552
        %2570 = vmatprep.subr.bf16.mxu0 0
        %2571 = vmatpush1.bf16.msra.mxu0 %v2554
        %2572 = vmatprep.subr.bf16.mxu0 0
        %2573 = vmatpush1.bf16.msra.mxu0 %v2555
        %2574 = vmatprep.subr.bf16.mxu0 0
        %2575 = vmatpush1.bf16.msra.mxu0 %v2556
        %2576 = vmatprep.subr.bf16.mxu0 0
        %2577 = vmatpush1.bf16.msra.mxu0 %v2557
        %2578 = vmatprep.subr.bf16.mxu0 0
        %2579 = vmatpush1.bf16.msra.mxu0 %v2558
        %2580 = vmatprep.subr.bf16.mxu0 0
        %2581 = vmatpush1.bf16.msra.mxu0 %v2559
        %2582 = vmatprep.subr.bf16.mxu0 0
        %2583 = vmatpush1.bf16.msra.mxu0 %v2560
        %2584 = vmatprep.subr.bf16.mxu0 0
        %2585 = vmatpush1.bf16.msra.mxu0 %v2561
        %2586 = vmatprep.subr.bf16.mxu0 0
        %2587 = vmatpush1.bf16.msra.mxu0 0
        %2588 = vmatprep.subr.bf16.mxu0 0
        %2589 = vmatpush1.bf16.msra.mxu0 0
        %2590 = vmatprep.subr.bf16.mxu0 0
        %2591 = vmatpush1.bf16.msra.mxu0 0
        %2592 = vmatprep.subr.bf16.mxu0 0
        %2593 = vmatpush1.bf16.msra.mxu0 0
        %2594 = vmatprep.subr.bf16.mxu0 0
        %2595 = vmatpush1.bf16.msra.mxu0 0
        %2596 = vmatprep.subr.bf16.mxu0 0
        %2597 = vmatpush1.bf16.msra.mxu0 0
        %2598 = vmatprep.subr.bf16.mxu0 0
        %2599 = vmatpush1.bf16.msra.mxu0 0
        %2600 = vmatprep.subr.bf16.mxu0 0
        %2601 = vmatpush1.bf16.msra.mxu0 0
        %2602 = vmatprep.mubr.bf16.mxu0 0
        %2603 = vmatmul.mubr.bf16.gmra.mrb[0].mxu0 %v2498
        %v2604 = vpop.f32.mrb[0].mxu0
        %v2605 = vadd.f32 %v2520, %v2604
        %v2606 = vpop.f32.mrb[0].mxu0
        %v2607 = vpop.f32.mrb[0].mxu0
        %v2608 = vadd.f32 %v2520, %v2607
        %v2609 = vpop.f32.mrb[0].mxu0
        %2610 = vdwg.mxu0
        %v2611 = vadd.f32 %v543, %v2605
        %v2612 = vadd.f32 %v544, %v2608
        %v2613 = vld [vmem:[%s7] sm:$0x1]
        %v2614 = vld [vmem:[%s8] sm:$0x1]
        %2615 = vadd.xlane.f32.xlu0 %v2611
        %v2616 = vpop.xlane.xlu0 %2615
        %2617 = vadd.xlane.f32.xlu0 %v2612
        %v2618 = vpop.xlane.xlu0 %2617
        %v2619 = vmul.f32 %v2616, %v551
        %v2620 = vmul.f32 %v2618, %v551
        %v2621 = vsub.f32 %v2611, %v2619
        %v2622 = vsub.f32 %v2612, %v2620
        %v2623 = vmul.f32 %v2621, %v2621
        %v2624 = vmul.f32 %v2622, %v2622
        %2625 = vadd.xlane.f32.xlu0 %v2623
        %v2626 = vpop.xlane.xlu0 %2625
        %2627 = vadd.xlane.f32.xlu0 %v2624
        %v2628 = vpop.xlane.xlu0 %2627
        %v2629 = vmul.f32 %v2626, %v551
        %v2630 = vmul.f32 %v2628, %v551
        %v2631 = vadd.f32 %v2629, 1e-05
        %v2632 = vadd.f32 %v2630, 1e-05
        %v2633 = vrsqrt.pop %v2631
        %v2634 = vrsqrt.pop %v2632
        %v2635 = vmul.f32 %v2621, %v2633
        %v2636 = vmul.f32 %v2622, %v2634
        %v2638 = vlaneseq
        %v2639 = vshrl.u32 %v2638, 7
        %v2640 = vsub.s32 0, %v2639
        %v2641 = vrot.slane %v2613, %v2640
        %v2643 = vmul.f32 %v2635, %v2641
        %v2644 = vmul.f32 %v2636, %v2641
        %v2646 = vlaneseq
        %v2647 = vshrl.u32 %v2646, 7
        %v2648 = vsub.s32 0, %v2647
        %v2649 = vrot.slane %v2614, %v2648
        %v2651 = vadd.f32 %v2643, %v2649
        %v2652 = vadd.f32 %v2644, %v2649
        %v2653 = vpack.c.bf16 %v2652, %v2651
        %v2654 = vld [vmem:[#allocation11] sm:$0xff]
        %v2655 = vld [vmem:[#allocation11 + $0x8] sm:$0xff]
        %v2656 = vld [vmem:[#allocation11 + $0x10] sm:$0xff]
        %v2657 = vld [vmem:[#allocation11 + $0x18] sm:$0xff]
        %v2658 = vld [vmem:[#allocation11 + $0x20] sm:$0xff]
        %v2659 = vld [vmem:[#allocation11 + $0x28] sm:$0xff]
        %v2660 = vld [vmem:[#allocation11 + $0x30] sm:$0xff]
        %v2661 = vld [vmem:[#allocation11 + $0x38] sm:$0xff]
        %v2662 = vld [vmem:[#allocation11 + $0x40] sm:$0xff]
        %v2663 = vld [vmem:[#allocation11 + $0x48] sm:$0xff]
        %v2664 = vld [vmem:[#allocation11 + $0x50] sm:$0xff]
        %v2665 = vld [vmem:[#allocation11 + $0x58] sm:$0xff]
        %v2666 = vld [vmem:[#allocation11 + $0x60] sm:$0xff]
        %v2667 = vld [vmem:[#allocation11 + $0x68] sm:$0xff]
        %v2668 = vld [vmem:[#allocation11 + $0x70] sm:$0xff]
        %v2669 = vld [vmem:[#allocation11 + $0x78] sm:$0xff]
        %v2670 = vld [vmem:[#allocation11 + $0x80] sm:$0xff]
        %v2671 = vld [vmem:[#allocation11 + $0x88] sm:$0xff]
        %v2672 = vld [vmem:[#allocation11 + $0x90] sm:$0xff]
        %v2673 = vld [vmem:[#allocation11 + $0x98] sm:$0xff]
        %v2674 = vld [vmem:[#allocation11 + $0xa0] sm:$0xff]
        %v2675 = vld [vmem:[#allocation11 + $0xa8] sm:$0xff]
        %v2676 = vld [vmem:[#allocation11 + $0xb0] sm:$0xff]
        %v2677 = vld [vmem:[#allocation11 + $0xb8] sm:$0xff]
        %v2678 = vld [vmem:[#allocation11 + $0xc0] sm:$0xff]
        %v2679 = vld [vmem:[#allocation11 + $0xc8] sm:$0xff]
        %v2680 = vld [vmem:[#allocation11 + $0xd0] sm:$0xff]
        %v2681 = vld [vmem:[#allocation11 + $0xd8] sm:$0xff]
        %v2682 = vld [vmem:[#allocation11 + $0xe0] sm:$0xff]
        %v2683 = vld [vmem:[#allocation11 + $0xe8] sm:$0xff]
        %v2684 = vld [vmem:[#allocation11 + $0xf0] sm:$0xff]
        %v2685 = vld [vmem:[#allocation11 + $0xf8] sm:$0xff]
        %v2686 = vld [vmem:[%s10] sm:$0xf]
        %v2688 = vlaneseq
        %v2689 = vshrl.u32 %v2688, 7
        %v2690 = vsub.s32 0, %v2689
        %v2691 = vrot.slane %v2686, %v2690
        %v2692 = vlaneseq
        %v2693 = vshrl.u32 %v2692, 7
        %v2694 = vsub.s32 1, %v2693
        %v2695 = vrot.slane %v2686, %v2694
        %v2696 = vlaneseq
        %v2697 = vshrl.u32 %v2696, 7
        %v2698 = vsub.s32 2, %v2697
        %v2699 = vrot.slane %v2686, %v2698
        %v2700 = vlaneseq
        %v2701 = vshrl.u32 %v2700, 7
        %v2702 = vsub.s32 3, %v2701
        %v2703 = vrot.slane %v2686, %v2702
        %v2740 = vunpack.c.l.b16 %v2654
        %v2741 = vunpack.c.h.b16 %v2654
        %v2742 = vunpack.c.l.b16 %v2655
        %v2743 = vunpack.c.h.b16 %v2655
        %v2744 = vunpack.c.l.b16 %v2656
        %v2745 = vunpack.c.h.b16 %v2656
        %v2746 = vunpack.c.l.b16 %v2657
        %v2747 = vunpack.c.h.b16 %v2657
        %v2748 = vunpack.c.l.b16 %v2658
        %v2749 = vunpack.c.h.b16 %v2658
        %v2750 = vunpack.c.l.b16 %v2659
        %v2751 = vunpack.c.h.b16 %v2659
        %v2752 = vunpack.c.l.b16 %v2660
        %v2753 = vunpack.c.h.b16 %v2660
        %v2754 = vunpack.c.l.b16 %v2661
        %v2755 = vunpack.c.h.b16 %v2661
        %v2756 = vunpack.c.l.b16 %v2662
        %v2757 = vunpack.c.h.b16 %v2662
        %v2758 = vunpack.c.l.b16 %v2663
        %v2759 = vunpack.c.h.b16 %v2663
        %v2760 = vunpack.c.l.b16 %v2664
        %v2761 = vunpack.c.h.b16 %v2664
        %v2762 = vunpack.c.l.b16 %v2665
        %v2763 = vunpack.c.h.b16 %v2665
        %v2764 = vunpack.c.l.b16 %v2666
        %v2765 = vunpack.c.h.b16 %v2666
        %v2766 = vunpack.c.l.b16 %v2667
        %v2767 = vunpack.c.h.b16 %v2667
        %v2768 = vunpack.c.l.b16 %v2668
        %v2769 = vunpack.c.h.b16 %v2668
        %v2770 = vunpack.c.l.b16 %v2669
        %v2771 = vunpack.c.h.b16 %v2669
        %v2772 = vunpack.c.l.b16 %v2670
        %v2773 = vunpack.c.h.b16 %v2670
        %v2774 = vunpack.c.l.b16 %v2671
        %v2775 = vunpack.c.h.b16 %v2671
        %v2776 = vunpack.c.l.b16 %v2672
        %v2777 = vunpack.c.h.b16 %v2672
        %v2778 = vunpack.c.l.b16 %v2673
        %v2779 = vunpack.c.h.b16 %v2673
        %v2780 = vunpack.c.l.b16 %v2674
        %v2781 = vunpack.c.h.b16 %v2674
        %v2782 = vunpack.c.l.b16 %v2675
        %v2783 = vunpack.c.h.b16 %v2675
        %v2784 = vunpack.c.l.b16 %v2676
        %v2785 = vunpack.c.h.b16 %v2676
        %v2786 = vunpack.c.l.b16 %v2677
        %v2787 = vunpack.c.h.b16 %v2677
        %v2788 = vunpack.c.l.b16 %v2678
        %v2789 = vunpack.c.h.b16 %v2678
        %v2790 = vunpack.c.l.b16 %v2679
        %v2791 = vunpack.c.h.b16 %v2679
        %v2792 = vunpack.c.l.b16 %v2680
        %v2793 = vunpack.c.h.b16 %v2680
        %v2794 = vunpack.c.l.b16 %v2681
        %v2795 = vunpack.c.h.b16 %v2681
        %v2796 = vunpack.c.l.b16 %v2682
        %v2797 = vunpack.c.h.b16 %v2682
        %v2798 = vunpack.c.l.b16 %v2683
        %v2799 = vunpack.c.h.b16 %v2683
        %v2800 = vunpack.c.l.b16 %v2684
        %v2801 = vunpack.c.h.b16 %v2684
        %v2802 = vunpack.c.l.b16 %v2685
        %v2803 = vunpack.c.h.b16 %v2685
        %v2804 = vpack.c.b16 %v2744, %v2740
        %v2805 = vpack.c.b16 %v2745, %v2741
        %v2806 = vpack.c.b16 %v2746, %v2742
        %v2807 = vpack.c.b16 %v2747, %v2743
        %v2808 = vpack.c.b16 %v2752, %v2748
        %v2809 = vpack.c.b16 %v2753, %v2749
        %v2810 = vpack.c.b16 %v2754, %v2750
        %v2811 = vpack.c.b16 %v2755, %v2751
        %v2812 = vpack.c.b16 %v2760, %v2756
        %v2813 = vpack.c.b16 %v2761, %v2757
        %v2814 = vpack.c.b16 %v2762, %v2758
        %v2815 = vpack.c.b16 %v2763, %v2759
        %v2816 = vpack.c.b16 %v2768, %v2764
        %v2817 = vpack.c.b16 %v2769, %v2765
        %v2818 = vpack.c.b16 %v2770, %v2766
        %v2819 = vpack.c.b16 %v2771, %v2767
        %v2820 = vpack.c.b16 %v2776, %v2772
        %v2821 = vpack.c.b16 %v2777, %v2773
        %v2822 = vpack.c.b16 %v2778, %v2774
        %v2823 = vpack.c.b16 %v2779, %v2775
        %v2824 = vpack.c.b16 %v2784, %v2780
        %v2825 = vpack.c.b16 %v2785, %v2781
        %v2826 = vpack.c.b16 %v2786, %v2782
        %v2827 = vpack.c.b16 %v2787, %v2783
        %v2828 = vpack.c.b16 %v2792, %v2788
        %v2829 = vpack.c.b16 %v2793, %v2789
        %v2830 = vpack.c.b16 %v2794, %v2790
        %v2831 = vpack.c.b16 %v2795, %v2791
        %v2832 = vpack.c.b16 %v2800, %v2796
        %v2833 = vpack.c.b16 %v2801, %v2797
        %v2834 = vpack.c.b16 %v2802, %v2798
        %v2835 = vpack.c.b16 %v2803, %v2799
        %2868 = vmatprep.subr.bf16.mxu0 %v2805
        %2869 = vmatpush1.bf16.msra.mxu0 %v2804
        %2870 = vmatprep.subr.bf16.mxu0 %v2809
        %2871 = vmatpush1.bf16.msra.mxu0 %v2808
        %2872 = vmatprep.subr.bf16.mxu0 %v2813
        %2873 = vmatpush1.bf16.msra.mxu0 %v2812
        %2874 = vmatprep.subr.bf16.mxu0 %v2817
        %2875 = vmatpush1.bf16.msra.mxu0 %v2816
        %2876 = vmatprep.subr.bf16.mxu0 %v2821
        %2877 = vmatpush1.bf16.msra.mxu0 %v2820
        %2878 = vmatprep.subr.bf16.mxu0 %v2825
        %2879 = vmatpush1.bf16.msra.mxu0 %v2824
        %2880 = vmatprep.subr.bf16.mxu0 %v2829
        %2881 = vmatpush1.bf16.msra.mxu0 %v2828
        %2882 = vmatprep.subr.bf16.mxu0 %v2833
        %2883 = vmatpush1.bf16.msra.mxu0 %v2832
        %2884 = vmatprep.subr.bf16.mxu0 0
        %2885 = vmatpush1.bf16.msra.mxu0 0
        %2886 = vmatprep.subr.bf16.mxu0 0
        %2887 = vmatpush1.bf16.msra.mxu0 0
        %2888 = vmatprep.subr.bf16.mxu0 0
        %2889 = vmatpush1.bf16.msra.mxu0 0
        %2890 = vmatprep.subr.bf16.mxu0 0
        %2891 = vmatpush1.bf16.msra.mxu0 0
        %2892 = vmatprep.subr.bf16.mxu0 0
        %2893 = vmatpush1.bf16.msra.mxu0 0
        %2894 = vmatprep.subr.bf16.mxu0 0
        %2895 = vmatpush1.bf16.msra.mxu0 0
        %2896 = vmatprep.subr.bf16.mxu0 0
        %2897 = vmatpush1.bf16.msra.mxu0 0
        %2898 = vmatprep.subr.bf16.mxu0 0
        %2899 = vmatpush1.bf16.msra.mxu0 0
        %2900 = vmatprep.mubr.bf16.mxu0 0
        %2901 = vmatmul.mubr.bf16.gmra.mrb[0].mxu0 %v2653
        %v2902 = vpop.f32.mrb[0].mxu0
        %v2903 = vadd.f32 %v2691, %v2902
        %v2904 = vpop.f32.mrb[0].mxu0
        %v2905 = vadd.f32 %v2695, %v2904
        %v2906 = vpop.f32.mrb[0].mxu0
        %v2907 = vadd.f32 %v2691, %v2906
        %v2908 = vpop.f32.mrb[0].mxu0
        %v2909 = vadd.f32 %v2695, %v2908
        %2910 = vdwg.mxu0
        %2911 = vmatprep.subr.bf16.mxu0 %v2807
        %2912 = vmatpush1.bf16.msra.mxu0 %v2806
        %2913 = vmatprep.subr.bf16.mxu0 %v2811
        %2914 = vmatpush1.bf16.msra.mxu0 %v2810
        %2915 = vmatprep.subr.bf16.mxu0 %v2815
        %2916 = vmatpush1.bf16.msra.mxu0 %v2814
        %2917 = vmatprep.subr.bf16.mxu0 %v2819
        %2918 = vmatpush1.bf16.msra.mxu0 %v2818
        %2919 = vmatprep.subr.bf16.mxu0 %v2823
        %2920 = vmatpush1.bf16.msra.mxu0 %v2822
        %2921 = vmatprep.subr.bf16.mxu0 %v2827
        %2922 = vmatpush1.bf16.msra.mxu0 %v2826
        %2923 = vmatprep.subr.bf16.mxu0 %v2831
        %2924 = vmatpush1.bf16.msra.mxu0 %v2830
        %2925 = vmatprep.subr.bf16.mxu0 %v2835
        %2926 = vmatpush1.bf16.msra.mxu0 %v2834
        %2927 = vmatprep.subr.bf16.mxu0 0
        %2928 = vmatpush1.bf16.msra.mxu0 0
        %2929 = vmatprep.subr.bf16.mxu0 0
        %2930 = vmatpush1.bf16.msra.mxu0 0
        %2931 = vmatprep.subr.bf16.mxu0 0
        %2932 = vmatpush1.bf16.msra.mxu0 0
        %2933 = vmatprep.subr.bf16.mxu0 0
        %2934 = vmatpush1.bf16.msra.mxu0 0
        %2935 = vmatprep.subr.bf16.mxu0 0
        %2936 = vmatpush1.bf16.msra.mxu0 0
        %2937 = vmatprep.subr.bf16.mxu0 0
        %2938 = vmatpush1.bf16.msra.mxu0 0
        %2939 = vmatprep.subr.bf16.mxu0 0
        %2940 = vmatpush1.bf16.msra.mxu0 0
        %2941 = vmatprep.subr.bf16.mxu0 0
        %2942 = vmatpush1.bf16.msra.mxu0 0
        %2943 = vmatprep.mubr.bf16.mxu0 0
        %2944 = vmatmul.mubr.bf16.gmra.mrb[0].mxu0 %v2653
        %v2945 = vpop.f32.mrb[0].mxu0
        %v2946 = vadd.f32 %v2699, %v2945
        %v2947 = vpop.f32.mrb[0].mxu0
        %v2948 = vadd.f32 %v2703, %v2947
        %v2949 = vpop.f32.mrb[0].mxu0
        %v2950 = vadd.f32 %v2699, %v2949
        %v2951 = vpop.f32.mrb[0].mxu0
        %v2952 = vadd.f32 %v2703, %v2951
        %2953 = vdwg.mxu0
        %v2954 = vmul.f32 %v2903, 0.5
        %v2955 = vmul.f32 %v2905, 0.5
        %v2956 = vmul.f32 %v2946, 0.5
        %v2957 = vmul.f32 %v2948, 0.5
        %v2958 = vmul.f32 %v2907, 0.5
        %v2959 = vmul.f32 %v2909, 0.5
        %v2960 = vmul.f32 %v2950, 0.5
        %v2961 = vmul.f32 %v2952, 0.5
        %v2962 = vmul.f32 %v2903, 0.70710677
        %v2963 = vmul.f32 %v2905, 0.70710677
        %v2964 = vmul.f32 %v2946, 0.70710677
        %v2965 = vmul.f32 %v2948, 0.70710677
        %v2966 = vmul.f32 %v2907, 0.70710677
        %v2967 = vmul.f32 %v2909, 0.70710677
        %v2968 = vmul.f32 %v2950, 0.70710677
        %v2969 = vmul.f32 %v2952, 0.70710677
        %v2970 = verf.f32.pop %v2962
        %v2971 = verf.f32.pop %v2963
        %v2972 = verf.f32.pop %v2964
        %v2973 = verf.f32.pop %v2965
        %v2974 = verf.f32.pop %v2966
        %v2975 = verf.f32.pop %v2967
        %v2976 = verf.f32.pop %v2968
        %v2977 = verf.f32.pop %v2969
        %v2978 = vadd.f32 %v2970, 1.0
        %v2979 = vadd.f32 %v2971, 1.0
        %v2980 = vadd.f32 %v2972, 1.0
        %v2981 = vadd.f32 %v2973, 1.0
        %v2982 = vadd.f32 %v2974, 1.0
        %v2983 = vadd.f32 %v2975, 1.0
        %v2984 = vadd.f32 %v2976, 1.0
        %v2985 = vadd.f32 %v2977, 1.0
        %v2986 = vmul.f32 %v2954, %v2978
        %v2987 = vmul.f32 %v2955, %v2979
        %v2988 = vmul.f32 %v2956, %v2980
        %v2989 = vmul.f32 %v2957, %v2981
        %v2990 = vmul.f32 %v2958, %v2982
        %v2991 = vmul.f32 %v2959, %v2983
        %v2992 = vmul.f32 %v2960, %v2984
        %v2993 = vmul.f32 %v2961, %v2985
        %v2994 = vpack.c.bf16 %v2990, %v2986
        %v2995 = vpack.c.bf16 %v2991, %v2987
        %v2996 = vpack.c.bf16 %v2992, %v2988
        %v2997 = vpack.c.bf16 %v2993, %v2989
        %v2998 = vld [vmem:[#allocation13] sm:$0xf]
        %v2999 = vld [vmem:[#allocation13 + $0x4] sm:$0xf]
        %v3000 = vld [vmem:[#allocation13 + $0x8] sm:$0xf]
        %v3001 = vld [vmem:[#allocation13 + $0xc] sm:$0xf]
        %v3002 = vld [vmem:[#allocation13 + $0x10] sm:$0xf]
        %v3003 = vld [vmem:[#allocation13 + $0x14] sm:$0xf]
        %v3004 = vld [vmem:[#allocation13 + $0x18] sm:$0xf]
        %v3005 = vld [vmem:[#allocation13 + $0x1c] sm:$0xf]
        %v3006 = vld [vmem:[#allocation13 + $0x20] sm:$0xf]
        %v3007 = vld [vmem:[#allocation13 + $0x24] sm:$0xf]
        %v3008 = vld [vmem:[#allocation13 + $0x28] sm:$0xf]
        %v3009 = vld [vmem:[#allocation13 + $0x2c] sm:$0xf]
        %v3010 = vld [vmem:[#allocation13 + $0x30] sm:$0xf]
        %v3011 = vld [vmem:[#allocation13 + $0x34] sm:$0xf]
        %v3012 = vld [vmem:[#allocation13 + $0x38] sm:$0xf]
        %v3013 = vld [vmem:[#allocation13 + $0x3c] sm:$0xf]
        %v3014 = vld [vmem:[#allocation13 + $0x40] sm:$0xf]
        %v3015 = vld [vmem:[#allocation13 + $0x44] sm:$0xf]
        %v3016 = vld [vmem:[#allocation13 + $0x48] sm:$0xf]
        %v3017 = vld [vmem:[#allocation13 + $0x4c] sm:$0xf]
        %v3018 = vld [vmem:[#allocation13 + $0x50] sm:$0xf]
        %v3019 = vld [vmem:[#allocation13 + $0x54] sm:$0xf]
        %v3020 = vld [vmem:[#allocation13 + $0x58] sm:$0xf]
        %v3021 = vld [vmem:[#allocation13 + $0x5c] sm:$0xf]
        %v3022 = vld [vmem:[#allocation13 + $0x60] sm:$0xf]
        %v3023 = vld [vmem:[#allocation13 + $0x64] sm:$0xf]
        %v3024 = vld [vmem:[#allocation13 + $0x68] sm:$0xf]
        %v3025 = vld [vmem:[#allocation13 + $0x6c] sm:$0xf]
        %v3026 = vld [vmem:[#allocation13 + $0x70] sm:$0xf]
        %v3027 = vld [vmem:[#allocation13 + $0x74] sm:$0xf]
        %v3028 = vld [vmem:[#allocation13 + $0x78] sm:$0xf]
        %v3029 = vld [vmem:[#allocation13 + $0x7c] sm:$0xf]
        %v3030 = vld [vmem:[#allocation13 + $0x80] sm:$0xf]
        %v3031 = vld [vmem:[#allocation13 + $0x84] sm:$0xf]
        %v3032 = vld [vmem:[#allocation13 + $0x88] sm:$0xf]
        %v3033 = vld [vmem:[#allocation13 + $0x8c] sm:$0xf]
        %v3034 = vld [vmem:[#allocation13 + $0x90] sm:$0xf]
        %v3035 = vld [vmem:[#allocation13 + $0x94] sm:$0xf]
        %v3036 = vld [vmem:[#allocation13 + $0x98] sm:$0xf]
        %v3037 = vld [vmem:[#allocation13 + $0x9c] sm:$0xf]
        %v3038 = vld [vmem:[#allocation13 + $0xa0] sm:$0xf]
        %v3039 = vld [vmem:[#allocation13 + $0xa4] sm:$0xf]
        %v3040 = vld [vmem:[#allocation13 + $0xa8] sm:$0xf]
        %v3041 = vld [vmem:[#allocation13 + $0xac] sm:$0xf]
        %v3042 = vld [vmem:[#allocation13 + $0xb0] sm:$0xf]
        %v3043 = vld [vmem:[#allocation13 + $0xb4] sm:$0xf]
        %v3044 = vld [vmem:[#allocation13 + $0xb8] sm:$0xf]
        %v3045 = vld [vmem:[#allocation13 + $0xbc] sm:$0xf]
        %v3046 = vld [vmem:[#allocation13 + $0xc0] sm:$0xf]
        %v3047 = vld [vmem:[#allocation13 + $0xc4] sm:$0xf]
        %v3048 = vld [vmem:[#allocation13 + $0xc8] sm:$0xf]
        %v3049 = vld [vmem:[#allocation13 + $0xcc] sm:$0xf]
        %v3050 = vld [vmem:[#allocation13 + $0xd0] sm:$0xf]
        %v3051 = vld [vmem:[#allocation13 + $0xd4] sm:$0xf]
        %v3052 = vld [vmem:[#allocation13 + $0xd8] sm:$0xf]
        %v3053 = vld [vmem:[#allocation13 + $0xdc] sm:$0xf]
        %v3054 = vld [vmem:[#allocation13 + $0xe0] sm:$0xf]
        %v3055 = vld [vmem:[#allocation13 + $0xe4] sm:$0xf]
        %v3056 = vld [vmem:[#allocation13 + $0xe8] sm:$0xf]
        %v3057 = vld [vmem:[#allocation13 + $0xec] sm:$0xf]
        %v3058 = vld [vmem:[#allocation13 + $0xf0] sm:$0xf]
        %v3059 = vld [vmem:[#allocation13 + $0xf4] sm:$0xf]
        %v3060 = vld [vmem:[#allocation13 + $0xf8] sm:$0xf]
        %v3061 = vld [vmem:[#allocation13 + $0xfc] sm:$0xf]
        %v3062 = vld [vmem:[%s12] sm:$0x1]
        %v3064 = vlaneseq
        %v3065 = vshrl.u32 %v3064, 7
        %v3066 = vsub.s32 0, %v3065
        %v3067 = vrot.slane %v3062, %v3066
        %v3133 = vunpack.c.l.b16 %v2998
        %v3134 = vunpack.c.l.b16 %v2999
        %v3135 = vunpack.c.l.b16 %v3000
        %v3136 = vunpack.c.l.b16 %v3001
        %v3137 = vunpack.c.l.b16 %v3002
        %v3138 = vunpack.c.l.b16 %v3003
        %v3139 = vunpack.c.l.b16 %v3004
        %v3140 = vunpack.c.l.b16 %v3005
        %v3141 = vunpack.c.l.b16 %v3006
        %v3142 = vunpack.c.l.b16 %v3007
        %v3143 = vunpack.c.l.b16 %v3008
        %v3144 = vunpack.c.l.b16 %v3009
        %v3145 = vunpack.c.l.b16 %v3010
        %v3146 = vunpack.c.l.b16 %v3011
        %v3147 = vunpack.c.l.b16 %v3012
        %v3148 = vunpack.c.l.b16 %v3013
        %v3149 = vunpack.c.l.b16 %v3014
        %v3150 = vunpack.c.l.b16 %v3015
        %v3151 = vunpack.c.l.b16 %v3016
        %v3152 = vunpack.c.l.b16 %v3017
        %v3153 = vunpack.c.l.b16 %v3018
        %v3154 = vunpack.c.l.b16 %v3019
        %v3155 = vunpack.c.l.b16 %v3020
        %v3156 = vunpack.c.l.b16 %v3021
        %v3157 = vunpack.c.l.b16 %v3022
        %v3158 = vunpack.c.l.b16 %v3023
        %v3159 = vunpack.c.l.b16 %v3024
        %v3160 = vunpack.c.l.b16 %v3025
        %v3161 = vunpack.c.l.b16 %v3026
        %v3162 = vunpack.c.l.b16 %v3027
        %v3163 = vunpack.c.l.b16 %v3028
        %v3164 = vunpack.c.l.b16 %v3029
        %v3165 = vunpack.c.l.b16 %v3030
        %v3166 = vunpack.c.l.b16 %v3031
        %v3167 = vunpack.c.l.b16 %v3032
        %v3168 = vunpack.c.l.b16 %v3033
        %v3169 = vunpack.c.l.b16 %v3034
        %v3170 = vunpack.c.l.b16 %v3035
        %v3171 = vunpack.c.l.b16 %v3036
        %v3172 = vunpack.c.l.b16 %v3037
        %v3173 = vunpack.c.l.b16 %v3038
        %v3174 = vunpack.c.l.b16 %v3039
        %v3175 = vunpack.c.l.b16 %v3040
        %v3176 = vunpack.c.l.b16 %v3041
        %v3177 = vunpack.c.l.b16 %v3042
        %v3178 = vunpack.c.l.b16 %v3043
        %v3179 = vunpack.c.l.b16 %v3044
        %v3180 = vunpack.c.l.b16 %v3045
        %v3181 = vunpack.c.l.b16 %v3046
        %v3182 = vunpack.c.l.b16 %v3047
        %v3183 = vunpack.c.l.b16 %v3048
        %v3184 = vunpack.c.l.b16 %v3049
        %v3185 = vunpack.c.l.b16 %v3050
        %v3186 = vunpack.c.l.b16 %v3051
        %v3187 = vunpack.c.l.b16 %v3052
        %v3188 = vunpack.c.l.b16 %v3053
        %v3189 = vunpack.c.l.b16 %v3054
        %v3190 = vunpack.c.l.b16 %v3055
        %v3191 = vunpack.c.l.b16 %v3056
        %v3192 = vunpack.c.l.b16 %v3057
        %v3193 = vunpack.c.l.b16 %v3058
        %v3194 = vunpack.c.l.b16 %v3059
        %v3195 = vunpack.c.l.b16 %v3060
        %v3196 = vunpack.c.l.b16 %v3061
        %v3197 = vpack.c.b16 %v3134, %v3133
        %v3198 = vpack.c.b16 %v3136, %v3135
        %v3199 = vpack.c.b16 %v3138, %v3137
        %v3200 = vpack.c.b16 %v3140, %v3139
        %v3201 = vpack.c.b16 %v3142, %v3141
        %v3202 = vpack.c.b16 %v3144, %v3143
        %v3203 = vpack.c.b16 %v3146, %v3145
        %v3204 = vpack.c.b16 %v3148, %v3147
        %v3205 = vpack.c.b16 %v3150, %v3149
        %v3206 = vpack.c.b16 %v3152, %v3151
        %v3207 = vpack.c.b16 %v3154, %v3153
        %v3208 = vpack.c.b16 %v3156, %v3155
        %v3209 = vpack.c.b16 %v3158, %v3157
        %v3210 = vpack.c.b16 %v3160, %v3159
        %v3211 = vpack.c.b16 %v3162, %v3161
        %v3212 = vpack.c.b16 %v3164, %v3163
        %v3213 = vpack.c.b16 %v3166, %v3165
        %v3214 = vpack.c.b16 %v3168, %v3167
        %v3215 = vpack.c.b16 %v3170, %v3169
        %v3216 = vpack.c.b16 %v3172, %v3171
        %v3217 = vpack.c.b16 %v3174, %v3173
        %v3218 = vpack.c.b16 %v3176, %v3175
        %v3219 = vpack.c.b16 %v3178, %v3177
        %v3220 = vpack.c.b16 %v3180, %v3179
        %v3221 = vpack.c.b16 %v3182, %v3181
        %v3222 = vpack.c.b16 %v3184, %v3183
        %v3223 = vpack.c.b16 %v3186, %v3185
        %v3224 = vpack.c.b16 %v3188, %v3187
        %v3225 = vpack.c.b16 %v3190, %v3189
        %v3226 = vpack.c.b16 %v3192, %v3191
        %v3227 = vpack.c.b16 %v3194, %v3193
        %v3228 = vpack.c.b16 %v3196, %v3195
        %3261 = vmatprep.subr.bf16.mxu0 0
        %3262 = vmatpush1.bf16.msra.mxu0 %v3197
        %3263 = vmatprep.subr.bf16.mxu0 0
        %3264 = vmatpush1.bf16.msra.mxu0 %v3198
        %3265 = vmatprep.subr.bf16.mxu0 0
        %3266 = vmatpush1.bf16.msra.mxu0 %v3199
        %3267 = vmatprep.subr.bf16.mxu0 0
        %3268 = vmatpush1.bf16.msra.mxu0 %v3200
        %3269 = vmatprep.subr.bf16.mxu0 0
        %3270 = vmatpush1.bf16.msra.mxu0 %v3201
        %3271 = vmatprep.subr.bf16.mxu0 0
        %3272 = vmatpush1.bf16.msra.mxu0 %v3202
        %3273 = vmatprep.subr.bf16.mxu0 0
        %3274 = vmatpush1.bf16.msra.mxu0 %v3203
        %3275 = vmatprep.subr.bf16.mxu0 0
        %3276 = vmatpush1.bf16.msra.mxu0 %v3204
        %3277 = vmatprep.subr.bf16.mxu0 0
        %3278 = vmatpush1.bf16.msra.mxu0 %v3205
        %3279 = vmatprep.subr.bf16.mxu0 0
        %3280 = vmatpush1.bf16.msra.mxu0 %v3206
        %3281 = vmatprep.subr.bf16.mxu0 0
        %3282 = vmatpush1.bf16.msra.mxu0 %v3207
        %3283 = vmatprep.subr.bf16.mxu0 0
        %3284 = vmatpush1.bf16.msra.mxu0 %v3208
        %3285 = vmatprep.subr.bf16.mxu0 0
        %3286 = vmatpush1.bf16.msra.mxu0 %v3209
        %3287 = vmatprep.subr.bf16.mxu0 0
        %3288 = vmatpush1.bf16.msra.mxu0 %v3210
        %3289 = vmatprep.subr.bf16.mxu0 0
        %3290 = vmatpush1.bf16.msra.mxu0 %v3211
        %3291 = vmatprep.subr.bf16.mxu0 0
        %3292 = vmatpush1.bf16.msra.mxu0 %v3212
        %3293 = vmatprep.mubr.bf16.mxu0 %v2995
        %3294 = vmatmul.mubr.bf16.gmra.mrb[0].mxu0 %v2994
        %v3295 = vpop.f32.mrb[0].mxu0
        %v3296 = vadd.f32 %v3067, %v3295
        %v3297 = vpop.f32.mrb[0].mxu0
        %v3298 = vpop.f32.mrb[0].mxu0
        %v3299 = vadd.f32 %v3067, %v3298
        %v3300 = vpop.f32.mrb[0].mxu0
        %3301 = vdwg.mxu0
        %3302 = vmatprep.subr.bf16.mxu0 0
        %3303 = vmatpush1.bf16.msra.mxu0 %v3213
        %3304 = vmatprep.subr.bf16.mxu0 0
        %3305 = vmatpush1.bf16.msra.mxu0 %v3214
        %3306 = vmatprep.subr.bf16.mxu0 0
        %3307 = vmatpush1.bf16.msra.mxu0 %v3215
        %3308 = vmatprep.subr.bf16.mxu0 0
        %3309 = vmatpush1.bf16.msra.mxu0 %v3216
        %3310 = vmatprep.subr.bf16.mxu0 0
        %3311 = vmatpush1.bf16.msra.mxu0 %v3217
        %3312 = vmatprep.subr.bf16.mxu0 0
        %3313 = vmatpush1.bf16.msra.mxu0 %v3218
        %3314 = vmatprep.subr.bf16.mxu0 0
        %3315 = vmatpush1.bf16.msra.mxu0 %v3219
        %3316 = vmatprep.subr.bf16.mxu0 0
        %3317 = vmatpush1.bf16.msra.mxu0 %v3220
        %3318 = vmatprep.subr.bf16.mxu0 0
        %3319 = vmatpush1.bf16.msra.mxu0 %v3221
        %3320 = vmatprep.subr.bf16.mxu0 0
        %3321 = vmatpush1.bf16.msra.mxu0 %v3222
        %3322 = vmatprep.subr.bf16.mxu0 0
        %3323 = vmatpush1.bf16.msra.mxu0 %v3223
        %3324 = vmatprep.subr.bf16.mxu0 0
        %3325 = vmatpush1.bf16.msra.mxu0 %v3224
        %3326 = vmatprep.subr.bf16.mxu0 0
        %3327 = vmatpush1.bf16.msra.mxu0 %v3225
        %3328 = vmatprep.subr.bf16.mxu0 0
        %3329 = vmatpush1.bf16.msra.mxu0 %v3226
        %3330 = vmatprep.subr.bf16.mxu0 0
        %3331 = vmatpush1.bf16.msra.mxu0 %v3227
        %3332 = vmatprep.subr.bf16.mxu0 0
        %3333 = vmatpush1.bf16.msra.mxu0 %v3228
        %3334 = vmatprep.mubr.bf16.mxu0 %v2997
        %3335 = vmatmul.mubr.bf16.gmra.mrb[0].mxu0 %v2996
        %v3336 = vpop.f32.mrb[0].mxu0
        %v3337 = vadd.f32 %v3296, %v3336
        %v3338 = vpop.f32.mrb[0].mxu0
        %v3339 = vpop.f32.mrb[0].mxu0
        %v3340 = vadd.f32 %v3299, %v3339
        %v3341 = vpop.f32.mrb[0].mxu0
        %3342 = vdwg.mxu0
        %v3343 = vadd.f32 %v2611, %v3337
        %v3344 = vadd.f32 %v2612, %v3340
        %3345 = vst [vmem:[%s541] sm:$0xff] %v3343
        %3346 = vst [vmem:[%s541 + $0x8] sm:$0xff] %v3344
        %s3347 = sand.u32 %s319, 1
        %s3348 = scalar_lea.sflag [#allocation4], %s3347
        %s3349 = sand.u32 %s319, 1
        %s3350 = smul.addr %s3349, 16
        %s3351 = scalar_lea.vmem [#allocation14], %s3350
        // Predicated region
        $region101: #{tpu_custom_call.1} parent=71 // pred_check
          %p3352 = pneg %p329
        $region102: #{tpu_custom_call.1} parent=71 // pred_check_branch
          %3354 = sbr.rel (%p3352) target = $region104
        $region103: #{tpu_custom_call.1} parent=71 // pred_region
          %s3356 = ssub.s32 256, 256
          %3357 = vsyncadd %s3348, %s3356
          %s3358 = smul.addr %s33, 2
          %s3359 = smul.addr %s3358, 128
          %s3360 = scalar_lea.hbm %s13, %s3359
          %s3361 = sshll.u32 %s3351, 4
          %s3362 = int_to_ptr.vmem [resolvable:$true] %s3361
          %3367 = dma.vmem_to_hbm [thread:$0]  %s3362, 256, %s3360, %s3348, 128, 128, 8
        $region104: #{tpu_custom_call.1} parent=71 // pred_fallthru
          _
      $region72: #{tpu_custom_call.1} parent=5 // pred_fallthru
        _
      %p3368 = scmp.le.s32.totalorder 2, %s28
      // Predicated region
      $region105: #{tpu_custom_call.1} parent=5 // pred_check
        %p3369 = pneg %p3368
      $region106: #{tpu_custom_call.1} parent=5 // pred_check_branch
        %3371 = sbr.rel (%p3369) target = $region108
      $region107: #{tpu_custom_call.1} parent=5 // pred_region
        %s3372 = ssub.s32 %s28, 2
        // Predicated region
        $region109: #{tpu_custom_call.1} parent=107 // pred_check
          %p3373 = pneg %p335
        $region110: #{tpu_custom_call.1} parent=107 // pred_check_branch
          %3375 = sbr.rel (%p3373) target = $region112
        $region111: #{tpu_custom_call.1} parent=107 // pred_region
          %s3376 = sand.u32 %s320, 1
          %s3377 = scalar_lea.sflag [#allocation4], %s3376
          %s3378 = sand.u32 %s320, 1
          %s3379 = smul.addr %s3378, 16
          %s3380 = scalar_lea.vmem [#allocation14], %s3379
          %3381 = dma.done %s3377, 256
        $region112: #{tpu_custom_call.1} parent=107 // pred_fallthru
          _
      $region108: #{tpu_custom_call.1} parent=5 // pred_fallthru
        _
    $region6: #{tpu_custom_call.1} parent=1 // loop_footer
      %s32 = sadd.s32 1, %s28
    $region7: #{tpu_custom_call.1} parent=1 // loop_footer_branch
      %27 = sbr.rel target = $region3
    $region8: #{tpu_custom_call.1} parent=1 // loop_exit
      _
    %3382 = vsyncpa [#allocation3], 1
    %s3383 = scalar_lea.sflag [#allocation3], 1
    %3384 = vsyncpa %s3383, 1
    %3385 = vsyncpa [#allocation6], 1
    %3386 = vsyncpa [#allocation9], 1
    %3387 = vsyncpa [#allocation12], 1
    %3388 = vsyncpa [#allocation4], 1
    %s3389 = scalar_lea.sflag [#allocation4], 1
    %3390 = vsyncpa %s3389, 1

// kernel: tpu_custom_call.1
$region0: #{tpu_custom_call.1}
  #allocation0 [shape = 'u32[]', space=smem, size = 0x4, offset = 0x4, fixed_abs, tag = 'smem constant byte address 0x4 - core index']
  #allocation1 [shape = 'u32[144,128]{1,0:T(1,128)}', space=vmem, size = 0x12000, scoped, tag = 'internal scratch']
  %s0 = inlined_call_operand.hbm [shape: f32[2,16,128], index: 0, kind: input, shape index: {}]
  %s1 = inlined_call_operand.hbm [shape: f32[1,128], index: 1, kind: input, shape index: {}]
  %s2 = inlined_call_operand.hbm [shape: f32[1,128], index: 2, kind: input, shape index: {}]
  %s3 = inlined_call_operand.hbm [shape: bf16[128,384], index: 3, kind: input, shape index: {}]
  %s4 = inlined_call_operand.vmem [shape: f32[1,384], index: 4, kind: input, shape index: {}]
  %s5 = inlined_call_operand.hbm [shape: bf16[128,128], index: 5, kind: input, shape index: {}]
  %s6 = inlined_call_operand.vmem [shape: f32[1,128], index: 6, kind: input, shape index: {}]
  %s7 = inlined_call_operand.vmem [shape: f32[1,128], index: 7, kind: input, shape index: {}]
  %s8 = inlined_call_operand.vmem [shape: f32[1,128], index: 8, kind: input, shape index: {}]
  %s9 = inlined_call_operand.hbm [shape: bf16[128,512], index: 9, kind: input, shape index: {}]
  %s10 = inlined_call_operand.vmem [shape: f32[1,512], index: 10, kind: input, shape index: {}]
  %s11 = inlined_call_operand.hbm [shape: bf16[512,128], index: 11, kind: input, shape index: {}]
  %s12 = inlined_call_operand.vmem [shape: f32[1,128], index: 12, kind: input, shape index: {}]
  %s13 = inlined_call_operand.hbm [shape: f32[2,16,128], index: 13, kind: output, shape index: {}]
  %s14 = sld [smem:[#allocation0]]
  $region113: #{tpu_custom_call.1} parent=0
    _
  %s16 = ssub.s32 1, %s14
  %s17 = scalar_select 0, %s16, %s14
  $region1: #{tpu_custom_call.1} parent=0
    #allocation2 [shape = 'u8[16384]{0}', space=vmem, size = 0x4000, scoped, tag = 'input window, operand 0']
    #allocation3 [shape = 's32[2]{0}', space=sflag, size = 0x8, scoped, tag = 'scoped memory for tpu_custom_call.1']
    #allocation4 [shape = 's32[2]{0}', space=sflag, size = 0x8, scoped, tag = 'scoped memory for tpu_custom_call.1']
    #allocation5 [shape = 'u8[512]{0}', space=vmem, size = 0x400, scoped, tag = 'input window, operand 1, single buffered']
    #allocation6 [shape = 's32[1]{0}', space=sflag, size = 0x4, scoped, tag = 'scoped memory for tpu_custom_call.1']
    #allocation7 [shape = 'u8[512]{0}', space=vmem, size = 0x400, scoped, tag = 'input window, operand 2, single buffered']
    #allocation8 [shape = 'u8[98304]{0}', space=vmem, size = 0x18000, scoped, tag = 'input window, operand 3, single buffered']
    #allocation9 [shape = 's32[1]{0}', space=sflag, size = 0x4, scoped, tag = 'scoped memory for tpu_custom_call.1']
    #allocation10 [shape = 'u8[32768]{0}', space=vmem, size = 0x8000, scoped, tag = 'input window, operand 5, single buffered']
    #allocation11 [shape = 'u8[131072]{0}', space=vmem, size = 0x20000, scoped, tag = 'input window, operand 9, single buffered']
    #allocation12 [shape = 's32[1]{0}', space=sflag, size = 0x4, scoped, tag = 'scoped memory for tpu_custom_call.1']
    #allocation13 [shape = 'u8[131072]{0}', space=vmem, size = 0x20000, scoped, tag = 'input window, operand 11, single buffered']
    #allocation14 [shape = 'u8[16384]{0}', space=vmem, size = 0x4000, scoped, tag = 'output window, operand 0']
    %18 = vsyncpa [#allocation3], 0
    %s19 = scalar_lea.sflag [#allocation3], 1
    %20 = vsyncpa %s19, 0
    %21 = vsyncpa [#allocation6], 0
    %22 = vsyncpa [#allocation9], 0
    %23 = vsyncpa [#allocation12], 0
    %24 = vsyncpa [#allocation4], 0
    %s25 = scalar_lea.sflag [#allocation4], 1
    %26 = vsyncpa %s25, 0
    loop: start=0, step=1, limit=4
    $region2: #{tpu_custom_call.1} parent=1 // loop_pre_header
      _
    $region3: #{tpu_custom_call.1} parent=1 // loop_header
      %s28 = sphi 0, %s32
      %p29 = scmp.ge.s32.totalorder %s28, 4
      %s38 = sphi 0, %s40
      %s41 = sphi 0, %s38
      %s42 = sphi 0, %s41
      %s58 = sphi 0, %s42
      %s62 = sphi 0, %s62
      %s64 = sphi 0, %s62
      %s65 = sphi 0, %s64
      %s79 = sphi 0, %s65
      %s83 = sphi 0, %s83
      %s85 = sphi 0, %s83
      %s86 = sphi 0, %s85
      %s100 = sphi 0, %s86
      %s104 = sphi 0, %s104
      %s106 = sphi 0, %s104
      %s107 = sphi 0, %s106
      %s121 = sphi 0, %s107
      %s125 = sphi 0, %s125
      %s127 = sphi 0, %s125
      %s128 = sphi 0, %s127
      %s142 = sphi 0, %s128
      %s146 = sphi 0, %s146
      %s148 = sphi 0, %s146
      %s149 = sphi 0, %s148
      %s163 = sphi 0, %s149
      %s167 = sphi 0, %s167
      %s169 = sphi 0, %s167
      %s170 = sphi 0, %s169
      %s184 = sphi 0, %s170
      %s188 = sphi 0, %s188
      %s190 = sphi 0, %s188
      %s191 = sphi 0, %s190
      %s205 = sphi 0, %s191
      %s209 = sphi 0, %s209
      %s211 = sphi 0, %s209
      %s212 = sphi 0, %s211
      %s226 = sphi 0, %s212
      %s230 = sphi 0, %s230
      %s232 = sphi 0, %s230
      %s233 = sphi 0, %s232
      %s247 = sphi 0, %s233
      %s251 = sphi 0, %s251
      %s253 = sphi 0, %s251
      %s254 = sphi 0, %s253
      %s268 = sphi 0, %s254
      %s272 = sphi 0, %s272
      %s274 = sphi 0, %s272
      %s275 = sphi 0, %s274
      %s289 = sphi 0, %s275
      %s293 = sphi 0, %s293
      %s295 = sphi 0, %s293
      %s296 = sphi 0, %s295
      %s310 = sphi 0, %s296
      %s316 = sphi 0, %s318
      %s319 = sphi 0, %s316
      %s320 = sphi 0, %s319
      %s336 = sphi 0, %s320
    $region4: #{tpu_custom_call.1} parent=1 // loop_header_branch
      %31 = sbr.rel (%p29) target = $region8
    $region5: #{tpu_custom_call.1} parent=1 // loop_body
      %s33 = ssub.s32 %s28, 1
      %s34 = ssub.s32 %s28, 2
      %s35 = sadd.s32 %s28, 1
      %s36 = ssub.s32 %s28, %s35
      %p37 = scmp.eq.s32.totalorder %s36, 0
      %s39 = sadd.s32 %s38, 1
      %s40 = scalar_select %p37, %s38, %s39
      %p43 = pneg %p37
      %p44 = scmp.eq.s32.totalorder %s28, 1
      %p45 = por %p43, %p44
      %p46 = scmp.ne.s32.totalorder %s38, %s41
      %p47 = scmp.eq.s32.totalorder %s28, 0
      %p48 = por %p46, %p47
      %p49 = scmp.ne.s32.totalorder %s38, %s41
      %p50 = scmp.eq.s32.totalorder %s33, 1
      %p51 = por %p49, %p50
      %p52 = scmp.ne.s32.totalorder %s41, %s42
      %p53 = scmp.eq.s32.totalorder %s33, 0
      %p54 = por %p52, %p53
      %p55 = scmp.ne.s32.totalorder %s41, %s42
      %p56 = scmp.eq.s32.totalorder %s34, 1
      %p57 = por %p55, %p56
      %p59 = scmp.ne.s32.totalorder %s42, %s58
      %p60 = scmp.eq.s32.totalorder %s34, 0
      %p61 = por %p59, %p60
      %s63 = sadd.s32 %s62, 1
      %p66 = scmp.eq.s32.totalorder %s28, 1
      %p67 = scmp.ne.s32.totalorder %s62, %s64
      %p68 = scmp.eq.s32.totalorder %s28, 0
      %p69 = por %p67, %p68
      %p70 = scmp.ne.s32.totalorder %s62, %s64
      %p71 = scmp.eq.s32.totalorder %s33, 1
      %p72 = por %p70, %p71
      %p73 = scmp.ne.s32.totalorder %s64, %s65
      %p74 = scmp.eq.s32.totalorder %s33, 0
      %p75 = por %p73, %p74
      %p76 = scmp.ne.s32.totalorder %s64, %s65
      %p77 = scmp.eq.s32.totalorder %s34, 1
      %p78 = por %p76, %p77
      %p80 = scmp.ne.s32.totalorder %s65, %s79
      %p81 = scmp.eq.s32.totalorder %s34, 0
      %p82 = por %p80, %p81
      %s84 = sadd.s32 %s83, 1
      %p87 = scmp.eq.s32.totalorder %s28, 1
      %p88 = scmp.ne.s32.totalorder %s83, %s85
      %p89 = scmp.eq.s32.totalorder %s28, 0
      %p90 = por %p88, %p89
      %p91 = scmp.ne.s32.totalorder %s83, %s85
      %p92 = scmp.eq.s32.totalorder %s33, 1
      %p93 = por %p91, %p92
      %p94 = scmp.ne.s32.totalorder %s85, %s86
      %p95 = scmp.eq.s32.totalorder %s33, 0
      %p96 = por %p94, %p95
      %p97 = scmp.ne.s32.totalorder %s85, %s86
      %p98 = scmp.eq.s32.totalorder %s34, 1
      %p99 = por %p97, %p98
      %p101 = scmp.ne.s32.totalorder %s86, %s100
      %p102 = scmp.eq.s32.totalorder %s34, 0
      %p103 = por %p101, %p102
      %s105 = sadd.s32 %s104, 1
      %p108 = scmp.eq.s32.totalorder %s28, 1
      %p109 = scmp.ne.s32.totalorder %s104, %s106
      %p110 = scmp.eq.s32.totalorder %s28, 0
      %p111 = por %p109, %p110
      %p112 = scmp.ne.s32.totalorder %s104, %s106
      %p113 = scmp.eq.s32.totalorder %s33, 1
      %p114 = por %p112, %p113
      %p115 = scmp.ne.s32.totalorder %s106, %s107
      %p116 = scmp.eq.s32.totalorder %s33, 0
      %p117 = por %p115, %p116
      %p118 = scmp.ne.s32.totalorder %s106, %s107
      %p119 = scmp.eq.s32.totalorder %s34, 1
      %p120 = por %p118, %p119
      %p122 = scmp.ne.s32.totalorder %s107, %s121
      %p123 = scmp.eq.s32.totalorder %s34, 0
      %p124 = por %p122, %p123
      %s126 = sadd.s32 %s125, 1
      %p129 = scmp.eq.s32.totalorder %s28, 1
      %p130 = scmp.ne.s32.totalorder %s125, %s127
      %p131 = scmp.eq.s32.totalorder %s28, 0
      %p132 = por %p130, %p131
      %p133 = scmp.ne.s32.totalorder %s125, %s127
      %p134 = scmp.eq.s32.totalorder %s33, 1
      %p135 = por %p133, %p134
      %p136 = scmp.ne.s32.totalorder %s127, %s128
      %p137 = scmp.eq.s32.totalorder %s33, 0
      %p138 = por %p136, %p137
      %p139 = scmp.ne.s32.totalorder %s127, %s128
      %p140 = scmp.eq.s32.totalorder %s34, 1
      %p141 = por %p139, %p140
      %p143 = scmp.ne.s32.totalorder %s128, %s142
      %p144 = scmp.eq.s32.totalorder %s34, 0
      %p145 = por %p143, %p144
      %s147 = sadd.s32 %s146, 1
      %p150 = scmp.eq.s32.totalorder %s28, 1
      %p151 = scmp.ne.s32.totalorder %s146, %s148
      %p152 = scmp.eq.s32.totalorder %s28, 0
      %p153 = por %p151, %p152
      %p154 = scmp.ne.s32.totalorder %s146, %s148
      %p155 = scmp.eq.s32.totalorder %s33, 1
      %p156 = por %p154, %p155
      %p157 = scmp.ne.s32.totalorder %s148, %s149
      %p158 = scmp.eq.s32.totalorder %s33, 0
      %p159 = por %p157, %p158
      %p160 = scmp.ne.s32.totalorder %s148, %s149
      %p161 = scmp.eq.s32.totalorder %s34, 1
      %p162 = por %p160, %p161
      %p164 = scmp.ne.s32.totalorder %s149, %s163
      %p165 = scmp.eq.s32.totalorder %s34, 0
      %p166 = por %p164, %p165
      %s168 = sadd.s32 %s167, 1
      %p171 = scmp.eq.s32.totalorder %s28, 1
      %p172 = scmp.ne.s32.totalorder %s167, %s169
      %p173 = scmp.eq.s32.totalorder %s28, 0
      %p174 = por %p172, %p173
      %p175 = scmp.ne.s32.totalorder %s167, %s169
      %p176 = scmp.eq.s32.totalorder %s33, 1
      %p177 = por %p175, %p176
      %p178 = scmp.ne.s32.totalorder %s169, %s170
      %p179 = scmp.eq.s32.totalorder %s33, 0
      %p180 = por %p178, %p179
      %p181 = scmp.ne.s32.totalorder %s169, %s170
      %p182 = scmp.eq.s32.totalorder %s34, 1
      %p183 = por %p181, %p182
      %p185 = scmp.ne.s32.totalorder %s170, %s184
      %p186 = scmp.eq.s32.totalorder %s34, 0
      %p187 = por %p185, %p186
      %s189 = sadd.s32 %s188, 1
      %p192 = scmp.eq.s32.totalorder %s28, 1
      %p193 = scmp.ne.s32.totalorder %s188, %s190
      %p194 = scmp.eq.s32.totalorder %s28, 0
      %p195 = por %p193, %p194
      %p196 = scmp.ne.s32.totalorder %s188, %s190
      %p197 = scmp.eq.s32.totalorder %s33, 1
      %p198 = por %p196, %p197
      %p199 = scmp.ne.s32.totalorder %s190, %s191
      %p200 = scmp.eq.s32.totalorder %s33, 0
      %p201 = por %p199, %p200
      %p202 = scmp.ne.s32.totalorder %s190, %s191
      %p203 = scmp.eq.s32.totalorder %s34, 1
      %p204 = por %p202, %p203
      %p206 = scmp.ne.s32.totalorder %s191, %s205
      %p207 = scmp.eq.s32.totalorder %s34, 0
      %p208 = por %p206, %p207
      %s210 = sadd.s32 %s209, 1
      %p213 = scmp.eq.s32.totalorder %s28, 1
      %p214 = scmp.ne.s32.totalorder %s209, %s211
      %p215 = scmp.eq.s32.totalorder %s28, 0
      %p216 = por %p214, %p215
      %p217 = scmp.ne.s32.totalorder %s209, %s211
      %p218 = scmp.eq.s32.totalorder %s33, 1
      %p219 = por %p217, %p218
      %p220 = scmp.ne.s32.totalorder %s211, %s212
      %p221 = scmp.eq.s32.totalorder %s33, 0
      %p222 = por %p220, %p221
      %p223 = scmp.ne.s32.totalorder %s211, %s212
      %p224 = scmp.eq.s32.totalorder %s34, 1
      %p225 = por %p223, %p224
      %p227 = scmp.ne.s32.totalorder %s212, %s226
      %p228 = scmp.eq.s32.totalorder %s34, 0
      %p229 = por %p227, %p228
      %s231 = sadd.s32 %s230, 1
      %p234 = scmp.eq.s32.totalorder %s28, 1
      %p235 = scmp.ne.s32.totalorder %s230, %s232
      %p236 = scmp.eq.s32.totalorder %s28, 0
      %p237 = por %p235, %p236
      %p238 = scmp.ne.s32.totalorder %s230, %s232
      %p239 = scmp.eq.s32.totalorder %s33, 1
      %p240 = por %p238, %p239
      %p241 = scmp.ne.s32.totalorder %s232, %s233
      %p242 = scmp.eq.s32.totalorder %s33, 0
      %p243 = por %p241, %p242
      %p244 = scmp.ne.s32.totalorder %s232, %s233
      %p245 = scmp.eq.s32.totalorder %s34, 1
      %p246 = por %p244, %p245
      %p248 = scmp.ne.s32.totalorder %s233, %s247
      %p249 = scmp.eq.s32.totalorder %s34, 0
      %p250 = por %p248, %p249
      %s252 = sadd.s32 %s251, 1
      %p255 = scmp.eq.s32.totalorder %s28, 1
      %p256 = scmp.ne.s32.totalorder %s251, %s253
      %p257 = scmp.eq.s32.totalorder %s28, 0
      %p258 = por %p256, %p257
      %p259 = scmp.ne.s32.totalorder %s251, %s253
      %p260 = scmp.eq.s32.totalorder %s33, 1
      %p261 = por %p259, %p260
      %p262 = scmp.ne.s32.totalorder %s253, %s254
      %p263 = scmp.eq.s32.totalorder %s33, 0
      %p264 = por %p262, %p263
      %p265 = scmp.ne.s32.totalorder %s253, %s254
      %p266 = scmp.eq.s32.totalorder %s34, 1
      %p267 = por %p265, %p266
      %p269 = scmp.ne.s32.totalorder %s254, %s268
      %p270 = scmp.eq.s32.totalorder %s34, 0
      %p271 = por %p269, %p270
      %s273 = sadd.s32 %s272, 1
      %p276 = scmp.eq.s32.totalorder %s28, 1
      %p277 = scmp.ne.s32.totalorder %s272, %s274
      %p278 = scmp.eq.s32.totalorder %s28, 0
      %p279 = por %p277, %p278
      %p280 = scmp.ne.s32.totalorder %s272, %s274
      %p281 = scmp.eq.s32.totalorder %s33, 1
      %p282 = por %p280, %p281
      %p283 = scmp.ne.s32.totalorder %s274, %s275
      %p284 = scmp.eq.s32.totalorder %s33, 0
      %p285 = por %p283, %p284
      %p286 = scmp.ne.s32.totalorder %s274, %s275
      %p287 = scmp.eq.s32.totalorder %s34, 1
      %p288 = por %p286, %p287
      %p290 = scmp.ne.s32.totalorder %s275, %s289
      %p291 = scmp.eq.s32.totalorder %s34, 0
      %p292 = por %p290, %p291
      %s294 = sadd.s32 %s293, 1
      %p297 = scmp.eq.s32.totalorder %s28, 1
      %p298 = scmp.ne.s32.totalorder %s293, %s295
      %p299 = scmp.eq.s32.totalorder %s28, 0
      %p300 = por %p298, %p299
      %p301 = scmp.ne.s32.totalorder %s293, %s295
      %p302 = scmp.eq.s32.totalorder %s33, 1
      %p303 = por %p301, %p302
      %p304 = scmp.ne.s32.totalorder %s295, %s296
      %p305 = scmp.eq.s32.totalorder %s33, 0
      %p306 = por %p304, %p305
      %p307 = scmp.ne.s32.totalorder %s295, %s296
      %p308 = scmp.eq.s32.totalorder %s34, 1
      %p309 = por %p307, %p308
      %p311 = scmp.ne.s32.totalorder %s296, %s310
      %p312 = scmp.eq.s32.totalorder %s34, 0
      %p313 = por %p311, %p312
      %s314 = ssub.s32 %s28, %s35
      %p315 = scmp.eq.s32.totalorder %s314, 0
      %s317 = sadd.s32 %s316, 1
      %s318 = scalar_select %p315, %s316, %s317
      %p321 = pneg %p315
      %p322 = scmp.eq.s32.totalorder %s28, 1
      %p323 = por %p321, %p322
      %p324 = scmp.ne.s32.totalorder %s316, %s319
      %p325 = scmp.eq.s32.totalorder %s28, 0
      %p326 = por %p324, %p325
      %p327 = scmp.ne.s32.totalorder %s316, %s319
      %p328 = scmp.eq.s32.totalorder %s33, 1
      %p329 = por %p327, %p328
      %p330 = scmp.ne.s32.totalorder %s319, %s320
      %p331 = scmp.eq.s32.totalorder %s33, 0
      %p332 = por %p330, %p331
      %p333 = scmp.ne.s32.totalorder %s319, %s320
      %p334 = scmp.eq.s32.totalorder %s34, 1
      %p335 = por %p333, %p334
      %p337 = scmp.ne.s32.totalorder %s320, %s336
      %p338 = scmp.eq.s32.totalorder %s34, 0
      %p339 = por %p337, %p338
      %p340 = scmp.le.s32.totalorder 1, %s28
      %p341 = scmp.lt.s32.totalorder %s28, 3
      %p342 = pnand %p340, %p341
      %p343 = pneg %p342
      // Predicated region
      $region9: #{tpu_custom_call.1} parent=5 // pred_check
        _
      $region10: #{tpu_custom_call.1} parent=5 // pred_check_branch
        %345 = sbr.rel (%p342) target = $region12
      $region11: #{tpu_custom_call.1} parent=5 // pred_region
        %s346 = ssub.s32 %s28, 1
        // Predicated region
        $region13: #{tpu_custom_call.1} parent=11 // pred_check
          %p347 = pneg %p75
        $region14: #{tpu_custom_call.1} parent=11 // pred_check_branch
          %349 = sbr.rel (%p347) target = $region16
        $region15: #{tpu_custom_call.1} parent=11 // pred_region
          %s351 = ssub.s32 16, 16
          %352 = vsyncadd [#allocation6], %s351
          %s354 = sshll.u32 [#allocation5], 4
          %s355 = int_to_ptr.vmem [resolvable:$true] %s354
          %357 = dma.hbm_to_vmem [thread:$0]  %s1, 16, %s355, [#allocation6]
        $region16: #{tpu_custom_call.1} parent=11 // pred_fallthru
          _
        // Predicated region
        $region17: #{tpu_custom_call.1} parent=11 // pred_check
          %p358 = pneg %p96
        $region18: #{tpu_custom_call.1} parent=11 // pred_check_branch
          %360 = sbr.rel (%p358) target = $region20
        $region19: #{tpu_custom_call.1} parent=11 // pred_region
          %s362 = ssub.s32 16, 16
          %363 = vsyncadd [#allocation6], %s362
          %s365 = sshll.u32 [#allocation7], 4
          %s366 = int_to_ptr.vmem [resolvable:$true] %s365
          %368 = dma.hbm_to_vmem [thread:$0]  %s2, 16, %s366, [#allocation6]
        $region20: #{tpu_custom_call.1} parent=11 // pred_fallthru
          _
        // Predicated region
        $region21: #{tpu_custom_call.1} parent=11 // pred_check
          %p369 = pneg %p117
        $region22: #{tpu_custom_call.1} parent=11 // pred_check_branch
          %371 = sbr.rel (%p369) target = $region24
        $region23: #{tpu_custom_call.1} parent=11 // pred_region
          %s373 = ssub.s32 3072, 3072
          %374 = vsyncadd [#allocation9], %s373
          %s375 = sshll.u32 [#allocation8], 4
          %s376 = int_to_ptr.vmem [resolvable:$true] %s375
          %381 = dma.hbm_to_vmem [thread:$0]  %s3, 3072, %s376, [#allocation9], 192, 192, 12
        $region24: #{tpu_custom_call.1} parent=11 // pred_fallthru
          _
        // Predicated region
        $region25: #{tpu_custom_call.1} parent=11 // pred_check
          %p382 = pneg %p138
        $region26: #{tpu_custom_call.1} parent=11 // pred_check_branch
          %384 = sbr.rel (%p382) target = $region28
        $region27: #{tpu_custom_call.1} parent=11 // pred_region
          _
        $region28: #{tpu_custom_call.1} parent=11 // pred_fallthru
          _
        // Predicated region
        $region29: #{tpu_custom_call.1} parent=11 // pred_check
          %p385 = pneg %p159
        $region30: #{tpu_custom_call.1} parent=11 // pred_check_branch
          %387 = sbr.rel (%p385) target = $region32
        $region31: #{tpu_custom_call.1} parent=11 // pred_region
          %s389 = ssub.s32 1024, 1024
          %390 = vsyncadd [#allocation9], %s389
          %s391 = sshll.u32 [#allocation10], 4
          %s392 = int_to_ptr.vmem [resolvable:$true] %s391
          %397 = dma.hbm_to_vmem [thread:$0]  %s5, 1024, %s392, [#allocation9], 64, 64, 4
        $region32: #{tpu_custom_call.1} parent=11 // pred_fallthru
          _
        // Predicated region
        $region33: #{tpu_custom_call.1} parent=11 // pred_check
          %p398 = pneg %p180
        $region34: #{tpu_custom_call.1} parent=11 // pred_check_branch
          %400 = sbr.rel (%p398) target = $region36
        $region35: #{tpu_custom_call.1} parent=11 // pred_region
          _
        $region36: #{tpu_custom_call.1} parent=11 // pred_fallthru
          _
        // Predicated region
        $region37: #{tpu_custom_call.1} parent=11 // pred_check
          %p401 = pneg %p201
        $region38: #{tpu_custom_call.1} parent=11 // pred_check_branch
          %403 = sbr.rel (%p401) target = $region40
        $region39: #{tpu_custom_call.1} parent=11 // pred_region
          _
        $region40: #{tpu_custom_call.1} parent=11 // pred_fallthru
          _
        // Predicated region
        $region41: #{tpu_custom_call.1} parent=11 // pred_check
          %p404 = pneg %p222
        $region42: #{tpu_custom_call.1} parent=11 // pred_check_branch
          %406 = sbr.rel (%p404) target = $region44
        $region43: #{tpu_custom_call.1} parent=11 // pred_region
          _
        $region44: #{tpu_custom_call.1} parent=11 // pred_fallthru
          _
        // Predicated region
        $region45: #{tpu_custom_call.1} parent=11 // pred_check
          %p407 = pneg %p243
        $region46: #{tpu_custom_call.1} parent=11 // pred_check_branch
          %409 = sbr.rel (%p407) target = $region48
        $region47: #{tpu_custom_call.1} parent=11 // pred_region
          %s411 = ssub.s32 4096, 4096
          %412 = vsyncadd [#allocation12], %s411
          %s413 = sshll.u32 [#allocation11], 4
          %s414 = int_to_ptr.vmem [resolvable:$true] %s413
          %419 = dma.hbm_to_vmem [thread:$0]  %s9, 4096, %s414, [#allocation12], 256, 256, 16
        $region48: #{tpu_custom_call.1} parent=11 // pred_fallthru
          _
        // Predicated region
        $region49: #{tpu_custom_call.1} parent=11 // pred_check
          %p420 = pneg %p264
        $region50: #{tpu_custom_call.1} parent=11 // pred_check_branch
          %422 = sbr.rel (%p420) target = $region52
        $region51: #{tpu_custom_call.1} parent=11 // pred_region
          _
        $region52: #{tpu_custom_call.1} parent=11 // pred_fallthru
          _
        // Predicated region
        $region53: #{tpu_custom_call.1} parent=11 // pred_check
          %p423 = pneg %p285
        $region54: #{tpu_custom_call.1} parent=11 // pred_check_branch
          %425 = sbr.rel (%p423) target = $region56
        $region55: #{tpu_custom_call.1} parent=11 // pred_region
          %s427 = ssub.s32 4096, 4096
          %428 = vsyncadd [#allocation12], %s427
          %s429 = sshll.u32 [#allocation13], 4
          %s430 = int_to_ptr.vmem [resolvable:$true] %s429
          %435 = dma.hbm_to_vmem [thread:$0]  %s11, 4096, %s430, [#allocation12], 64, 64, 4
        $region56: #{tpu_custom_call.1} parent=11 // pred_fallthru
          _
        // Predicated region
        $region57: #{tpu_custom_call.1} parent=11 // pred_check
          %p436 = pneg %p306
        $region58: #{tpu_custom_call.1} parent=11 // pred_check_branch
          %438 = sbr.rel (%p436) target = $region60
        $region59: #{tpu_custom_call.1} parent=11 // pred_region
          _
        $region60: #{tpu_custom_call.1} parent=11 // pred_fallthru
          _
      $region12: #{tpu_custom_call.1} parent=5 // pred_fallthru
        _
      %p439 = scmp.lt.s32.totalorder %s28, 2
      // Predicated region
      $region61: #{tpu_custom_call.1} parent=5 // pred_check
        %p440 = pneg %p439
      $region62: #{tpu_custom_call.1} parent=5 // pred_check_branch
        %442 = sbr.rel (%p440) target = $region64
      $region63: #{tpu_custom_call.1} parent=5 // pred_region
        // Predicated region
        $region65: #{tpu_custom_call.1} parent=63 // pred_check
          %p443 = pneg %p48
        $region66: #{tpu_custom_call.1} parent=63 // pred_check_branch
          %445 = sbr.rel (%p443) target = $region68
        $region67: #{tpu_custom_call.1} parent=63 // pred_region
          %s446 = sand.u32 %s38, 1
          %s447 = scalar_lea.sflag [#allocation3], %s446
          %s448 = sand.u32 %s38, 1
          %s449 = smul.addr %s448, 16
          %s450 = scalar_lea.vmem [#allocation2], %s449
          %s452 = ssub.s32 256, 256
          %453 = vsyncadd %s447, %s452
          %s454 = smul.addr %s28, 2
          %s455 = smul.addr %s454, 128
          %s456 = scalar_lea.hbm %s0, %s455
          %s457 = sshll.u32 %s450, 4
          %s458 = int_to_ptr.vmem [resolvable:$true] %s457
          %463 = dma.hbm_to_vmem [thread:$0]  %s456, 256, %s458, %s447, 128, 128, 8
        $region68: #{tpu_custom_call.1} parent=63 // pred_fallthru
          _
      $region64: #{tpu_custom_call.1} parent=5 // pred_fallthru
        _
      %p464 = scmp.le.s32.totalorder 1, %s28
      %p465 = scmp.lt.s32.totalorder %s28, 3
      %p466 = pnand %p464, %p465
      %p467 = pneg %p466
      // Predicated region
      $region69: #{tpu_custom_call.1} parent=5 // pred_check
        _
      $region70: #{tpu_custom_call.1} parent=5 // pred_check_branch
        %469 = sbr.rel (%p466) target = $region72
      $region71: #{tpu_custom_call.1} parent=5 // pred_region
        %s470 = ssub.s32 %s28, 1
        %s471 = sand.u32 %s41, 1
        %s472 = scalar_lea.sflag [#allocation3], %s471
        %s473 = sand.u32 %s41, 1
        %s474 = smul.addr %s473, 16
        %s475 = scalar_lea.vmem [#allocation2], %s474
        // Predicated region
        $region73: #{tpu_custom_call.1} parent=71 // pred_check
          %p476 = pneg %p54
        $region74: #{tpu_custom_call.1} parent=71 // pred_check_branch
          %478 = sbr.rel (%p476) target = $region76
        $region75: #{tpu_custom_call.1} parent=71 // pred_region
          %479 = dma.done %s472, 256
        $region76: #{tpu_custom_call.1} parent=71 // pred_fallthru
          _
        // Predicated region
        $region77: #{tpu_custom_call.1} parent=71 // pred_check
          %p480 = pneg %p75
        $region78: #{tpu_custom_call.1} parent=71 // pred_check_branch
          %482 = sbr.rel (%p480) target = $region80
        $region79: #{tpu_custom_call.1} parent=71 // pred_region
          %483 = dma.done [#allocation6], 16
        $region80: #{tpu_custom_call.1} parent=71 // pred_fallthru
          _
        // Predicated region
        $region81: #{tpu_custom_call.1} parent=71 // pred_check
          %p484 = pneg %p96
        $region82: #{tpu_custom_call.1} parent=71 // pred_check_branch
          %486 = sbr.rel (%p484) target = $region84
        $region83: #{tpu_custom_call.1} parent=71 // pred_region
          %487 = dma.done [#allocation6], 16
        $region84: #{tpu_custom_call.1} parent=71 // pred_fallthru
          _
        // Predicated region
        $region85: #{tpu_custom_call.1} parent=71 // pred_check
          %p488 = pneg %p117
        $region86: #{tpu_custom_call.1} parent=71 // pred_check_branch
          %490 = sbr.rel (%p488) target = $region88
        $region87: #{tpu_custom_call.1} parent=71 // pred_region
          %491 = dma.done [#allocation9], 3072
        $region88: #{tpu_custom_call.1} parent=71 // pred_fallthru
          _
        // Predicated region
        $region89: #{tpu_custom_call.1} parent=71 // pred_check
          %p492 = pneg %p159
        $region90: #{tpu_custom_call.1} parent=71 // pred_check_branch
          %494 = sbr.rel (%p492) target = $region92
        $region91: #{tpu_custom_call.1} parent=71 // pred_region
          %495 = dma.done [#allocation9], 1024
        $region92: #{tpu_custom_call.1} parent=71 // pred_fallthru
          _
        // Predicated region
        $region93: #{tpu_custom_call.1} parent=71 // pred_check
          %p496 = pneg %p243
        $region94: #{tpu_custom_call.1} parent=71 // pred_check_branch
          %498 = sbr.rel (%p496) target = $region96
        $region95: #{tpu_custom_call.1} parent=71 // pred_region
          %499 = dma.done [#allocation12], 4096
        $region96: #{tpu_custom_call.1} parent=71 // pred_fallthru
          _
        // Predicated region
        $region97: #{tpu_custom_call.1} parent=71 // pred_check
          %p500 = pneg %p285
        $region98: #{tpu_custom_call.1} parent=71 // pred_check_branch
          %502 = sbr.rel (%p500) target = $region100
        $region99: #{tpu_custom_call.1} parent=71 // pred_region
          %503 = dma.done [#allocation12], 4096
        $region100: #{tpu_custom_call.1} parent=71 // pred_fallthru
          _
        %s504 = sand.u32 %s41, 1
        %s505 = scalar_lea.sflag [#allocation3], %s504
        %s506 = sand.u32 %s41, 1
        %s507 = smul.addr %s506, 16
        %s508 = scalar_lea.vmem [#allocation2], %s507
        %p509 = pneg %p54
        %p510 = pneg %p51
        %p511 = pneg %p75
        %p512 = pneg %p72
        %p513 = pneg %p96
        %p514 = pneg %p93
        %p515 = pneg %p117
        %p516 = pneg %p114
        %p517 = pneg %p138
        %p518 = pneg %p135
        %p519 = pneg %p159
        %p520 = pneg %p156
        %p521 = pneg %p180
        %p522 = pneg %p177
        %p523 = pneg %p201
        %p524 = pneg %p198
        %p525 = pneg %p222
        %p526 = pneg %p219
        %p527 = pneg %p243
        %p528 = pneg %p240
        %p529 = pneg %p264
        %p530 = pneg %p261
        %p531 = pneg %p285
        %p532 = pneg %p282
        %p533 = pneg %p306
        %p534 = pneg %p303
        %p535 = pneg %p332
        %p536 = pneg %p329
        %s537 = sand.u32 %s319, 1
        %s538 = scalar_lea.sflag [#allocation4], %s537
        %s539 = sand.u32 %s319, 1
        %s540 = smul.addr %s539, 16
        %s541 = scalar_lea.vmem [#allocation14], %s540
        %v543 = vld [vmem:[%s475] sm:$0xff]
        %v544 = vld [vmem:[%s475 + $0x8] sm:$0xff]
        %v545 = vld [vmem:[#allocation5] sm:$0x1]
        %v546 = vld [vmem:[#allocation7] sm:$0x1]
        %547 = vadd.xlane.f32.xlu0 %v543
        %v548 = vpop.xlane.xlu0 %547
        %549 = vadd.xlane.f32.xlu0 %v544
        %v550 = vpop.xlane.xlu0 %549
        %v551 = vrcp.pop 128.0
        %v552 = vmul.f32 %v548, %v551
        %v553 = vmul.f32 %v550, %v551
        %v554 = vsub.f32 %v543, %v552
        %v555 = vsub.f32 %v544, %v553
        %v556 = vmul.f32 %v554, %v554
        %v557 = vmul.f32 %v555, %v555
        %558 = vadd.xlane.f32.xlu0 %v556
        %v559 = vpop.xlane.xlu0 %558
        %560 = vadd.xlane.f32.xlu0 %v557
        %v561 = vpop.xlane.xlu0 %560
        %v562 = vmul.f32 %v559, %v551
        %v563 = vmul.f32 %v561, %v551
        %v564 = vadd.f32 %v562, 1e-05
        %v565 = vadd.f32 %v563, 1e-05
        %v566 = vrsqrt.pop %v564
        %v567 = vrsqrt.pop %v565
        %v568 = vmul.f32 %v554, %v566
        %v569 = vmul.f32 %v555, %v567
        %v571 = vlaneseq
        %v572 = vshrl.u32 %v571, 7
        %v573 = vsub.s32 0, %v572
        %v574 = vrot.slane %v545, %v573
        %v576 = vmul.f32 %v568, %v574
        %v577 = vmul.f32 %v569, %v574
        %v579 = vlaneseq
        %v580 = vshrl.u32 %v579, 7
        %v581 = vsub.s32 0, %v580
        %v582 = vrot.slane %v546, %v581
        %v584 = vadd.f32 %v576, %v582
        %v585 = vadd.f32 %v577, %v582
        %v586 = vpack.c.bf16 %v585, %v584
        %v587 = vld [vmem:[#allocation8] sm:$0xff]
        %v588 = vld [vmem:[#allocation8 + $0x8] sm:$0xf]
        %v589 = vld [vmem:[#allocation8 + $0xc] sm:$0xff]
        %v590 = vld [vmem:[#allocation8 + $0x14] sm:$0xf]
        %v591 = vld [vmem:[#allocation8 + $0x18] sm:$0xff]
        %v592 = vld [vmem:[#allocation8 + $0x20] sm:$0xf]
        %v593 = vld [vmem:[#allocation8 + $0x24] sm:$0xff]
        %v594 = vld [vmem:[#allocation8 + $0x2c] sm:$0xf]
        %v595 = vld [vmem:[#allocation8 + $0x30] sm:$0xff]
        %v596 = vld [vmem:[#allocation8 + $0x38] sm:$0xf]
        %v597 = vld [vmem:[#allocation8 + $0x3c] sm:$0xff]
        %v598 = vld [vmem:[#allocation8 + $0x44] sm:$0xf]
        %v599 = vld [vmem:[#allocation8 + $0x48] sm:$0xff]
        %v600 = vld [vmem:[#allocation8 + $0x50] sm:$0xf]
        %v601 = vld [vmem:[#allocation8 + $0x54] sm:$0xff]
        %v602 = vld [vmem:[#allocation8 + $0x5c] sm:$0xf]
        %v603 = vld [vmem:[#allocation8 + $0x60] sm:$0xff]
        %v604 = vld [vmem:[#allocation8 + $0x68] sm:$0xf]
        %v605 = vld [vmem:[#allocation8 + $0x6c] sm:$0xff]
        %v606 = vld [vmem:[#allocation8 + $0x74] sm:$0xf]
        %v607 = vld [vmem:[#allocation8 + $0x78] sm:$0xff]
        %v608 = vld [vmem:[#allocation8 + $0x80] sm:$0xf]
        %v609 = vld [vmem:[#allocation8 + $0x84] sm:$0xff]
        %v610 = vld [vmem:[#allocation8 + $0x8c] sm:$0xf]
        %v611 = vld [vmem:[#allocation8 + $0x90] sm:$0xff]
        %v612 = vld [vmem:[#allocation8 + $0x98] sm:$0xf]
        %v613 = vld [vmem:[#allocation8 + $0x9c] sm:$0xff]
        %v614 = vld [vmem:[#allocation8 + $0xa4] sm:$0xf]
        %v615 = vld [vmem:[#allocation8 + $0xa8] sm:$0xff]
        %v616 = vld [vmem:[#allocation8 + $0xb0] sm:$0xf]
        %v617 = vld [vmem:[#allocation8 + $0xb4] sm:$0xff]
        %v618 = vld [vmem:[#allocation8 + $0xbc] sm:$0xf]
        %v619 = vld [vmem:[%s4] sm:$0x7]
        %v621 = vlaneseq
        %v622 = vshrl.u32 %v621, 7
        %v623 = vsub.s32 0, %v622
        %v624 = vrot.slane %v619, %v623
        %v625 = vlaneseq
        %v626 = vshrl.u32 %v625, 7
        %v627 = vsub.s32 1, %v626
        %v628 = vrot.slane %v619, %v627
        %v629 = vlaneseq
        %v630 = vshrl.u32 %v629, 7
        %v631 = vsub.s32 2, %v630
        %v632 = vrot.slane %v619, %v631
        %v668 = vunpack.c.l.b16 %v587
        %v669 = vunpack.c.h.b16 %v587
        %v670 = vunpack.c.l.b16 %v588
        %v671 = vunpack.c.l.b16 %v589
        %v672 = vunpack.c.h.b16 %v589
        %v673 = vunpack.c.l.b16 %v590
        %v674 = vunpack.c.l.b16 %v591
        %v675 = vunpack.c.h.b16 %v591
        %v676 = vunpack.c.l.b16 %v592
        %v677 = vunpack.c.l.b16 %v593
        %v678 = vunpack.c.h.b16 %v593
        %v679 = vunpack.c.l.b16 %v594
        %v680 = vunpack.c.l.b16 %v595
        %v681 = vunpack.c.h.b16 %v595
        %v682 = vunpack.c.l.b16 %v596
        %v683 = vunpack.c.l.b16 %v597
        %v684 = vunpack.c.h.b16 %v597
        %v685 = vunpack.c.l.b16 %v598
        %v686 = vunpack.c.l.b16 %v599
        %v687 = vunpack.c.h.b16 %v599
        %v688 = vunpack.c.l.b16 %v600
        %v689 = vunpack.c.l.b16 %v601
        %v690 = vunpack.c.h.b16 %v601
        %v691 = vunpack.c.l.b16 %v602
        %v692 = vunpack.c.l.b16 %v603
        %v693 = vunpack.c.h.b16 %v603
        %v694 = vunpack.c.l.b16 %v604
        %v695 = vunpack.c.l.b16 %v605
        %v696 = vunpack.c.h.b16 %v605
        %v697 = vunpack.c.l.b16 %v606
        %v698 = vunpack.c.l.b16 %v607
        %v699 = vunpack.c.h.b16 %v607
        %v700 = vunpack.c.l.b16 %v608
        %v701 = vunpack.c.l.b16 %v609
        %v702 = vunpack.c.h.b16 %v609
        %v703 = vunpack.c.l.b16 %v610
        %v704 = vunpack.c.l.b16 %v611
        %v705 = vunpack.c.h.b16 %v611
        %v706 = vunpack.c.l.b16 %v612
        %v707 = vunpack.c.l.b16 %v613
        %v708 = vunpack.c.h.b16 %v613
        %v709 = vunpack.c.l.b16 %v614
        %v710 = vunpack.c.l.b16 %v615
        %v711 = vunpack.c.h.b16 %v615
        %v712 = vunpack.c.l.b16 %v616
        %v713 = vunpack.c.l.b16 %v617
        %v714 = vunpack.c.h.b16 %v617
        %v715 = vunpack.c.l.b16 %v618
        %v716 = vpack.c.b16 %v671, %v668
        %v717 = vpack.c.b16 %v672, %v669
        %v718 = vpack.c.b16 %v673, %v670
        %v719 = vpack.c.b16 %v677, %v674
        %v720 = vpack.c.b16 %v678, %v675
        %v721 = vpack.c.b16 %v679, %v676
        %v722 = vpack.c.b16 %v683, %v680
        %v723 = vpack.c.b16 %v684, %v681
        %v724 = vpack.c.b16 %v685, %v682
        %v725 = vpack.c.b16 %v689, %v686
        %v726 = vpack.c.b16 %v690, %v687
        %v727 = vpack.c.b16 %v691, %v688
        %v728 = vpack.c.b16 %v695, %v692
        %v729 = vpack.c.b16 %v696, %v693
        %v730 = vpack.c.b16 %v697, %v694
        %v731 = vpack.c.b16 %v701, %v698
        %v732 = vpack.c.b16 %v702, %v699
        %v733 = vpack.c.b16 %v703, %v700
        %v734 = vpack.c.b16 %v707, %v704
        %v735 = vpack.c.b16 %v708, %v705
        %v736 = vpack.c.b16 %v709, %v706
        %v737 = vpack.c.b16 %v713, %v710
        %v738 = vpack.c.b16 %v714, %v711
        %v739 = vpack.c.b16 %v715, %v712
        %764 = vmatprep.subr.bf16.mxu0 %v717
        %765 = vmatpush1.bf16.msra.mxu0 %v716
        %766 = vmatprep.subr.bf16.mxu0 %v720
        %767 = vmatpush1.bf16.msra.mxu0 %v719
        %768 = vmatprep.subr.bf16.mxu0 %v723
        %769 = vmatpush1.bf16.msra.mxu0 %v722
        %770 = vmatprep.subr.bf16.mxu0 %v726
        %771 = vmatpush1.bf16.msra.mxu0 %v725
        %772 = vmatprep.subr.bf16.mxu0 %v729
        %773 = vmatpush1.bf16.msra.mxu0 %v728
        %774 = vmatprep.subr.bf16.mxu0 %v732
        %775 = vmatpush1.bf16.msra.mxu0 %v731
        %776 = vmatprep.subr.bf16.mxu0 %v735
        %777 = vmatpush1.bf16.msra.mxu0 %v734
        %778 = vmatprep.subr.bf16.mxu0 %v738
        %779 = vmatpush1.bf16.msra.mxu0 %v737
        %780 = vmatprep.subr.bf16.mxu0 0
        %781 = vmatpush1.bf16.msra.mxu0 0
        %782 = vmatprep.subr.bf16.mxu0 0
        %783 = vmatpush1.bf16.msra.mxu0 0
        %784 = vmatprep.subr.bf16.mxu0 0
        %785 = vmatpush1.bf16.msra.mxu0 0
        %786 = vmatprep.subr.bf16.mxu0 0
        %787 = vmatpush1.bf16.msra.mxu0 0
        %788 = vmatprep.subr.bf16.mxu0 0
        %789 = vmatpush1.bf16.msra.mxu0 0
        %790 = vmatprep.subr.bf16.mxu0 0
        %791 = vmatpush1.bf16.msra.mxu0 0
        %792 = vmatprep.subr.bf16.mxu0 0
        %793 = vmatpush1.bf16.msra.mxu0 0
        %794 = vmatprep.subr.bf16.mxu0 0
        %795 = vmatpush1.bf16.msra.mxu0 0
        %796 = vmatprep.mubr.bf16.mxu0 0
        %797 = vmatmul.mubr.bf16.gmra.mrb[0].mxu0 %v586
        %v798 = vpop.f32.mrb[0].mxu0
        %v799 = vadd.f32 %v624, %v798
        %v800 = vpop.f32.mrb[0].mxu0
        %v801 = vadd.f32 %v628, %v800
        %v802 = vpop.f32.mrb[0].mxu0
        %v803 = vadd.f32 %v624, %v802
        %v804 = vpop.f32.mrb[0].mxu0
        %v805 = vadd.f32 %v628, %v804
        %806 = vdwg.mxu0
        %807 = vmatprep.subr.bf16.mxu0 0
        %808 = vmatpush1.bf16.msra.mxu0 %v718
        %809 = vmatprep.subr.bf16.mxu0 0
        %810 = vmatpush1.bf16.msra.mxu0 %v721
        %811 = vmatprep.subr.bf16.mxu0 0
        %812 = vmatpush1.bf16.msra.mxu0 %v724
        %813 = vmatprep.subr.bf16.mxu0 0
        %814 = vmatpush1.bf16.msra.mxu0 %v727
        %815 = vmatprep.subr.bf16.mxu0 0
        %816 = vmatpush1.bf16.msra.mxu0 %v730
        %817 = vmatprep.subr.bf16.mxu0 0
        %818 = vmatpush1.bf16.msra.mxu0 %v733
        %819 = vmatprep.subr.bf16.mxu0 0
        %820 = vmatpush1.bf16.msra.mxu0 %v736
        %821 = vmatprep.subr.bf16.mxu0 0
        %822 = vmatpush1.bf16.msra.mxu0 %v739
        %823 = vmatprep.subr.bf16.mxu0 0
        %824 = vmatpush1.bf16.msra.mxu0 0
        %825 = vmatprep.subr.bf16.mxu0 0
        %826 = vmatpush1.bf16.msra.mxu0 0
        %827 = vmatprep.subr.bf16.mxu0 0
        %828 = vmatpush1.bf16.msra.mxu0 0
        %829 = vmatprep.subr.bf16.mxu0 0
        %830 = vmatpush1.bf16.msra.mxu0 0
        %831 = vmatprep.subr.bf16.mxu0 0
        %832 = vmatpush1.bf16.msra.mxu0 0
        %833 = vmatprep.subr.bf16.mxu0 0
        %834 = vmatpush1.bf16.msra.mxu0 0
        %835 = vmatprep.subr.bf16.mxu0 0
        %836 = vmatpush1.bf16.msra.mxu0 0
        %837 = vmatprep.subr.bf16.mxu0 0
        %838 = vmatpush1.bf16.msra.mxu0 0
        %839 = vmatprep.mubr.bf16.mxu0 0
        %840 = vmatmul.mubr.bf16.gmra.mrb[0].mxu0 %v586
        %v841 = vpop.f32.mrb[0].mxu0
        %v842 = vadd.f32 %v632, %v841
        %v843 = vpop.f32.mrb[0].mxu0
        %v844 = vpop.f32.mrb[0].mxu0
        %v845 = vadd.f32 %v632, %v844
        %v846 = vpop.f32.mrb[0].mxu0
        %847 = vdwg.mxu0
        %850 = vrot.lane.b32.xlu0 %v799, 96
        %v851 = vpop.permute.xlu0 %850
        %852 = vrot.lane.b32.xlu0 %v803, 96
        %v853 = vpop.permute.xlu0 %852
        %856 = vrot.lane.b32.xlu0 %v799, 64
        %v857 = vpop.permute.xlu0 %856
        %858 = vrot.lane.b32.xlu0 %v803, 64
        %v859 = vpop.permute.xlu0 %858
        %862 = vrot.lane.b32.xlu0 %v799, 32
        %v863 = vpop.permute.xlu0 %862
        %864 = vrot.lane.b32.xlu0 %v803, 32
        %v865 = vpop.permute.xlu0 %864
        %v868 = vcombine.low %v799, %v857
        %v869 = vcombine.high %v799, %v857
        %v871 = vunpack.c.l.s4 1983009808
        %v872 = vunpack.c.0.s8 %v871
        %v873 = vlaneseq
        %v874 = vshrl.u32 %v873, 7
        %v875 = vsub.s32 %v872, %v874
        %v876 = vrot.slane %v868, %v875
        %v878 = vunpack.c.l.s4 1983009808
        %v879 = vunpack.c.0.s8 %v878
        %v880 = vlaneseq
        %v881 = vshrl.u32 %v880, 7
        %v882 = vsub.s32 %v879, %v881
        %v883 = vrot.slane %v869, %v882
        %v884 = vcombine.low %v851, %v863
        %v885 = vcombine.high %v851, %v863
        %v887 = vunpack.c.l.s4 1983009808
        %v888 = vunpack.c.0.s8 %v887
        %v889 = vlaneseq
        %v890 = vshrl.u32 %v889, 7
        %v891 = vsub.s32 %v888, %v890
        %v892 = vrot.slane %v884, %v891
        %v894 = vunpack.c.l.s4 1983009808
        %v895 = vunpack.c.0.s8 %v894
        %v896 = vlaneseq
        %v897 = vshrl.u32 %v896, 7
        %v898 = vsub.s32 %v895, %v897
        %v899 = vrot.slane %v885, %v898
        %v900 = vcombine.low %v876, %v892
        %v901 = vcombine.high %v876, %v892
        %v903 = vunpack.c.l.s4 1934713408
        %v904 = vunpack.c.0.s8 %v903
        %v905 = vlaneseq
        %v906 = vshrl.u32 %v905, 7
        %v907 = vsub.s32 %v904, %v906
        %v908 = vrot.slane %v900, %v907
        %v910 = vunpack.c.l.s4 1934713408
        %v911 = vunpack.c.0.s8 %v910
        %v912 = vlaneseq
        %v913 = vshrl.u32 %v912, 7
        %v914 = vsub.s32 %v911, %v913
        %v915 = vrot.slane %v901, %v914
        %v916 = vcombine.low %v883, %v899
        %v917 = vcombine.high %v883, %v899
        %v919 = vunpack.c.l.s4 1934713408
        %v920 = vunpack.c.0.s8 %v919
        %v921 = vlaneseq
        %v922 = vshrl.u32 %v921, 7
        %v923 = vsub.s32 %v920, %v922
        %v924 = vrot.slane %v916, %v923
        %v926 = vunpack.c.l.s4 1934713408
        %v927 = vunpack.c.0.s8 %v926
        %v928 = vlaneseq
        %v929 = vshrl.u32 %v928, 7
        %v930 = vsub.s32 %v927, %v929
        %v931 = vrot.slane %v917, %v930
        %v932 = vcombine.high %v908, 0.0
        %v933 = vcombine.high %v915, 0.0
        %v934 = vcombine.high %v924, 0.0
        %v935 = vcombine.high %v931, 0.0
        %v936 = vcombine.low %v803, %v859
        %v937 = vcombine.high %v803, %v859
        %v939 = vunpack.c.l.s4 1983009808
        %v940 = vunpack.c.0.s8 %v939
        %v941 = vlaneseq
        %v942 = vshrl.u32 %v941, 7
        %v943 = vsub.s32 %v940, %v942
        %v944 = vrot.slane %v936, %v943
        %v946 = vunpack.c.l.s4 1983009808
        %v947 = vunpack.c.0.s8 %v946
        %v948 = vlaneseq
        %v949 = vshrl.u32 %v948, 7
        %v950 = vsub.s32 %v947, %v949
        %v951 = vrot.slane %v937, %v950
        %v952 = vcombine.low %v853, %v865
        %v953 = vcombine.high %v853, %v865
        %v955 = vunpack.c.l.s4 1983009808
        %v956 = vunpack.c.0.s8 %v955
        %v957 = vlaneseq
        %v958 = vshrl.u32 %v957, 7
        %v959 = vsub.s32 %v956, %v958
        %v960 = vrot.slane %v952, %v959
        %v962 = vunpack.c.l.s4 1983009808
        %v963 = vunpack.c.0.s8 %v962
        %v964 = vlaneseq
        %v965 = vshrl.u32 %v964, 7
        %v966 = vsub.s32 %v963, %v965
        %v967 = vrot.slane %v953, %v966
        %v968 = vcombine.low %v944, %v960
        %v969 = vcombine.high %v944, %v960
        %v971 = vunpack.c.l.s4 1934713408
        %v972 = vunpack.c.0.s8 %v971
        %v973 = vlaneseq
        %v974 = vshrl.u32 %v973, 7
        %v975 = vsub.s32 %v972, %v974
        %v976 = vrot.slane %v968, %v975
        %v978 = vunpack.c.l.s4 1934713408
        %v979 = vunpack.c.0.s8 %v978
        %v980 = vlaneseq
        %v981 = vshrl.u32 %v980, 7
        %v982 = vsub.s32 %v979, %v981
        %v983 = vrot.slane %v969, %v982
        %v984 = vcombine.low %v951, %v967
        %v985 = vcombine.high %v951, %v967
        %v987 = vunpack.c.l.s4 1934713408
        %v988 = vunpack.c.0.s8 %v987
        %v989 = vlaneseq
        %v990 = vshrl.u32 %v989, 7
        %v991 = vsub.s32 %v988, %v990
        %v992 = vrot.slane %v984, %v991
        %v994 = vunpack.c.l.s4 1934713408
        %v995 = vunpack.c.0.s8 %v994
        %v996 = vlaneseq
        %v997 = vshrl.u32 %v996, 7
        %v998 = vsub.s32 %v995, %v997
        %v999 = vrot.slane %v985, %v998
        %v1000 = vcombine.high %v976, 0.0
        %v1001 = vcombine.high %v983, 0.0
        %v1002 = vcombine.high %v992, 0.0
        %v1003 = vcombine.high %v999, 0.0
        %v1004 = vcombine.low %v908, %v915
        %v1006 = vunpack.c.l.s4 1983009808
        %v1007 = vunpack.c.0.s8 %v1006
        %v1008 = vlaneseq
        %v1009 = vshrl.u32 %v1008, 7
        %v1010 = vsub.s32 %v1007, %v1009
        %v1011 = vrot.slane %v1004, %v1010
        %v1012 = vcombine.low %v932, %v933
        %v1014 = vunpack.c.l.s4 1983009808
        %v1015 = vunpack.c.0.s8 %v1014
        %v1016 = vlaneseq
        %v1017 = vshrl.u32 %v1016, 7
        %v1018 = vsub.s32 %v1015, %v1017
        %v1019 = vrot.slane %v1012, %v1018
        %v1020 = vcombine.low %v924, %v931
        %v1022 = vunpack.c.l.s4 1983009808
        %v1023 = vunpack.c.0.s8 %v1022
        %v1024 = vlaneseq
        %v1025 = vshrl.u32 %v1024, 7
        %v1026 = vsub.s32 %v1023, %v1025
        %v1027 = vrot.slane %v1020, %v1026
        %v1028 = vcombine.low %v934, %v935
        %v1030 = vunpack.c.l.s4 1983009808
        %v1031 = vunpack.c.0.s8 %v1030
        %v1032 = vlaneseq
        %v1033 = vshrl.u32 %v1032, 7
        %v1034 = vsub.s32 %v1031, %v1033
        %v1035 = vrot.slane %v1028, %v1034
        %v1036 = vcombine.low %v1011, %v1019
        %v1037 = vcombine.high %v1011, %v1019
        %v1039 = vunpack.c.l.s4 1934713408
        %v1040 = vunpack.c.0.s8 %v1039
        %v1041 = vlaneseq
        %v1042 = vshrl.u32 %v1041, 7
        %v1043 = vsub.s32 %v1040, %v1042
        %v1044 = vrot.slane %v1036, %v1043
        %v1046 = vunpack.c.l.s4 1934713408
        %v1047 = vunpack.c.0.s8 %v1046
        %v1048 = vlaneseq
        %v1049 = vshrl.u32 %v1048, 7
        %v1050 = vsub.s32 %v1047, %v1049
        %v1051 = vrot.slane %v1037, %v1050
        %v1052 = vcombine.low %v1027, %v1035
        %v1053 = vcombine.high %v1027, %v1035
        %v1055 = vunpack.c.l.s4 1934713408
        %v1056 = vunpack.c.0.s8 %v1055
        %v1057 = vlaneseq
        %v1058 = vshrl.u32 %v1057, 7
        %v1059 = vsub.s32 %v1056, %v1058
        %v1060 = vrot.slane %v1052, %v1059
        %v1062 = vunpack.c.l.s4 1934713408
        %v1063 = vunpack.c.0.s8 %v1062
        %v1064 = vlaneseq
        %v1065 = vshrl.u32 %v1064, 7
        %v1066 = vsub.s32 %v1063, %v1065
        %v1067 = vrot.slane %v1053, %v1066
        %v1068 = vcombine.low %v1044, %v1060
        %v1069 = vcombine.high %v1044, %v1060
        %v1070 = vcombine.low %v1051, %v1067
        %v1071 = vcombine.high %v1051, %v1067
        %v1072 = vcombine.low %v976, %v983
        %v1074 = vunpack.c.l.s4 1983009808
        %v1075 = vunpack.c.0.s8 %v1074
        %v1076 = vlaneseq
        %v1077 = vshrl.u32 %v1076, 7
        %v1078 = vsub.s32 %v1075, %v1077
        %v1079 = vrot.slane %v1072, %v1078
        %v1080 = vcombine.low %v1000, %v1001
        %v1082 = vunpack.c.l.s4 1983009808
        %v1083 = vunpack.c.0.s8 %v1082
        %v1084 = vlaneseq
        %v1085 = vshrl.u32 %v1084, 7
        %v1086 = vsub.s32 %v1083, %v1085
        %v1087 = vrot.slane %v1080, %v1086
        %v1088 = vcombine.low %v992, %v999
        %v1090 = vunpack.c.l.s4 1983009808
        %v1091 = vunpack.c.0.s8 %v1090
        %v1092 = vlaneseq
        %v1093 = vshrl.u32 %v1092, 7
        %v1094 = vsub.s32 %v1091, %v1093
        %v1095 = vrot.slane %v1088, %v1094
        %v1096 = vcombine.low %v1002, %v1003
        %v1098 = vunpack.c.l.s4 1983009808
        %v1099 = vunpack.c.0.s8 %v1098
        %v1100 = vlaneseq
        %v1101 = vshrl.u32 %v1100, 7
        %v1102 = vsub.s32 %v1099, %v1101
        %v1103 = vrot.slane %v1096, %v1102
        %v1104 = vcombine.low %v1079, %v1087
        %v1105 = vcombine.high %v1079, %v1087
        %v1107 = vunpack.c.l.s4 1934713408
        %v1108 = vunpack.c.0.s8 %v1107
        %v1109 = vlaneseq
        %v1110 = vshrl.u32 %v1109, 7
        %v1111 = vsub.s32 %v1108, %v1110
        %v1112 = vrot.slane %v1104, %v1111
        %v1114 = vunpack.c.l.s4 1934713408
        %v1115 = vunpack.c.0.s8 %v1114
        %v1116 = vlaneseq
        %v1117 = vshrl.u32 %v1116, 7
        %v1118 = vsub.s32 %v1115, %v1117
        %v1119 = vrot.slane %v1105, %v1118
        %v1120 = vcombine.low %v1095, %v1103
        %v1121 = vcombine.high %v1095, %v1103
        %v1123 = vunpack.c.l.s4 1934713408
        %v1124 = vunpack.c.0.s8 %v1123
        %v1125 = vlaneseq
        %v1126 = vshrl.u32 %v1125, 7
        %v1127 = vsub.s32 %v1124, %v1126
        %v1128 = vrot.slane %v1120, %v1127
        %v1130 = vunpack.c.l.s4 1934713408
        %v1131 = vunpack.c.0.s8 %v1130
        %v1132 = vlaneseq
        %v1133 = vshrl.u32 %v1132, 7
        %v1134 = vsub.s32 %v1131, %v1133
        %v1135 = vrot.slane %v1121, %v1134
        %v1136 = vcombine.low %v1112, %v1128
        %v1137 = vcombine.high %v1112, %v1128
        %v1138 = vcombine.low %v1119, %v1135
        %v1139 = vcombine.high %v1119, %v1135
        %v1140 = vpack.c.bf16 %v1136, %v1068
        %v1141 = vpack.c.bf16 %v1137, %v1069
        %v1142 = vpack.c.bf16 %v1138, %v1070
        %v1143 = vpack.c.bf16 %v1139, %v1071
        %1146 = vrot.lane.b32.xlu0 %v801, 96
        %v1147 = vpop.permute.xlu0 %1146
        %1148 = vrot.lane.b32.xlu0 %v805, 96
        %v1149 = vpop.permute.xlu0 %1148
        %1152 = vrot.lane.b32.xlu0 %v801, 64
        %v1153 = vpop.permute.xlu0 %1152
        %1154 = vrot.lane.b32.xlu0 %v805, 64
        %v1155 = vpop.permute.xlu0 %1154
        %1158 = vrot.lane.b32.xlu0 %v801, 32
        %v1159 = vpop.permute.xlu0 %1158
        %1160 = vrot.lane.b32.xlu0 %v805, 32
        %v1161 = vpop.permute.xlu0 %1160
        %v1164 = vcombine.low %v801, %v1153
        %v1165 = vcombine.high %v801, %v1153
        %v1167 = vunpack.c.l.s4 1983009808
        %v1168 = vunpack.c.0.s8 %v1167
        %v1169 = vlaneseq
        %v1170 = vshrl.u32 %v1169, 7
        %v1171 = vsub.s32 %v1168, %v1170
        %v1172 = vrot.slane %v1164, %v1171
        %v1174 = vunpack.c.l.s4 1983009808
        %v1175 = vunpack.c.0.s8 %v1174
        %v1176 = vlaneseq
        %v1177 = vshrl.u32 %v1176, 7
        %v1178 = vsub.s32 %v1175, %v1177
        %v1179 = vrot.slane %v1165, %v1178
        %v1180 = vcombine.low %v1147, %v1159
        %v1181 = vcombine.high %v1147, %v1159
        %v1183 = vunpack.c.l.s4 1983009808
        %v1184 = vunpack.c.0.s8 %v1183
        %v1185 = vlaneseq
        %v1186 = vshrl.u32 %v1185, 7
        %v1187 = vsub.s32 %v1184, %v1186
        %v1188 = vrot.slane %v1180, %v1187
        %v1190 = vunpack.c.l.s4 1983009808
        %v1191 = vunpack.c.0.s8 %v1190
        %v1192 = vlaneseq
        %v1193 = vshrl.u32 %v1192, 7
        %v1194 = vsub.s32 %v1191, %v1193
        %v1195 = vrot.slane %v1181, %v1194
        %v1196 = vcombine.low %v1172, %v1188
        %v1197 = vcombine.high %v1172, %v1188
        %v1199 = vunpack.c.l.s4 1934713408
        %v1200 = vunpack.c.0.s8 %v1199
        %v1201 = vlaneseq
        %v1202 = vshrl.u32 %v1201, 7
        %v1203 = vsub.s32 %v1200, %v1202
        %v1204 = vrot.slane %v1196, %v1203
        %v1206 = vunpack.c.l.s4 1934713408
        %v1207 = vunpack.c.0.s8 %v1206
        %v1208 = vlaneseq
        %v1209 = vshrl.u32 %v1208, 7
        %v1210 = vsub.s32 %v1207, %v1209
        %v1211 = vrot.slane %v1197, %v1210
        %v1212 = vcombine.low %v1179, %v1195
        %v1213 = vcombine.high %v1179, %v1195
        %v1215 = vunpack.c.l.s4 1934713408
        %v1216 = vunpack.c.0.s8 %v1215
        %v1217 = vlaneseq
        %v1218 = vshrl.u32 %v1217, 7
        %v1219 = vsub.s32 %v1216, %v1218
        %v1220 = vrot.slane %v1212, %v1219
        %v1222 = vunpack.c.l.s4 1934713408
        %v1223 = vunpack.c.0.s8 %v1222
        %v1224 = vlaneseq
        %v1225 = vshrl.u32 %v1224, 7
        %v1226 = vsub.s32 %v1223, %v1225
        %v1227 = vrot.slane %v1213, %v1226
        %v1228 = vcombine.high %v1204, 0.0
        %v1229 = vcombine.high %v1211, 0.0
        %v1230 = vcombine.high %v1220, 0.0
        %v1231 = vcombine.high %v1227, 0.0
        %v1232 = vcombine.low %v805, %v1155
        %v1233 = vcombine.high %v805, %v1155
        %v1235 = vunpack.c.l.s4 1983009808
        %v1236 = vunpack.c.0.s8 %v1235
        %v1237 = vlaneseq
        %v1238 = vshrl.u32 %v1237, 7
        %v1239 = vsub.s32 %v1236, %v1238
        %v1240 = vrot.slane %v1232, %v1239
        %v1242 = vunpack.c.l.s4 1983009808
        %v1243 = vunpack.c.0.s8 %v1242
        %v1244 = vlaneseq
        %v1245 = vshrl.u32 %v1244, 7
        %v1246 = vsub.s32 %v1243, %v1245
        %v1247 = vrot.slane %v1233, %v1246
        %v1248 = vcombine.low %v1149, %v1161
        %v1249 = vcombine.high %v1149, %v1161
        %v1251 = vunpack.c.l.s4 1983009808
        %v1252 = vunpack.c.0.s8 %v1251
        %v1253 = vlaneseq
        %v1254 = vshrl.u32 %v1253, 7
        %v1255 = vsub.s32 %v1252, %v1254
        %v1256 = vrot.slane %v1248, %v1255
        %v1258 = vunpack.c.l.s4 1983009808
        %v1259 = vunpack.c.0.s8 %v1258
        %v1260 = vlaneseq
        %v1261 = vshrl.u32 %v1260, 7
        %v1262 = vsub.s32 %v1259, %v1261
        %v1263 = vrot.slane %v1249, %v1262
        %v1264 = vcombine.low %v1240, %v1256
        %v1265 = vcombine.high %v1240, %v1256
        %v1267 = vunpack.c.l.s4 1934713408
        %v1268 = vunpack.c.0.s8 %v1267
        %v1269 = vlaneseq
        %v1270 = vshrl.u32 %v1269, 7
        %v1271 = vsub.s32 %v1268, %v1270
        %v1272 = vrot.slane %v1264, %v1271
        %v1274 = vunpack.c.l.s4 1934713408
        %v1275 = vunpack.c.0.s8 %v1274
        %v1276 = vlaneseq
        %v1277 = vshrl.u32 %v1276, 7
        %v1278 = vsub.s32 %v1275, %v1277
        %v1279 = vrot.slane %v1265, %v1278
        %v1280 = vcombine.low %v1247, %v1263
        %v1281 = vcombine.high %v1247, %v1263
        %v1283 = vunpack.c.l.s4 1934713408
        %v1284 = vunpack.c.0.s8 %v1283
        %v1285 = vlaneseq
        %v1286 = vshrl.u32 %v1285, 7
        %v1287 = vsub.s32 %v1284, %v1286
        %v1288 = vrot.slane %v1280, %v1287
        %v1290 = vunpack.c.l.s4 1934713408
        %v1291 = vunpack.c.0.s8 %v1290
        %v1292 = vlaneseq
        %v1293 = vshrl.u32 %v1292, 7
        %v1294 = vsub.s32 %v1291, %v1293
        %v1295 = vrot.slane %v1281, %v1294
        %v1296 = vcombine.high %v1272, 0.0
        %v1297 = vcombine.high %v1279, 0.0
        %v1298 = vcombine.high %v1288, 0.0
        %v1299 = vcombine.high %v1295, 0.0
        %v1300 = vcombine.low %v1204, %v1211
        %v1302 = vunpack.c.l.s4 1983009808
        %v1303 = vunpack.c.0.s8 %v1302
        %v1304 = vlaneseq
        %v1305 = vshrl.u32 %v1304, 7
        %v1306 = vsub.s32 %v1303, %v1305
        %v1307 = vrot.slane %v1300, %v1306
        %v1308 = vcombine.low %v1228, %v1229
        %v1310 = vunpack.c.l.s4 1983009808
        %v1311 = vunpack.c.0.s8 %v1310
        %v1312 = vlaneseq
        %v1313 = vshrl.u32 %v1312, 7
        %v1314 = vsub.s32 %v1311, %v1313
        %v1315 = vrot.slane %v1308, %v1314
        %v1316 = vcombine.low %v1220, %v1227
        %v1318 = vunpack.c.l.s4 1983009808
        %v1319 = vunpack.c.0.s8 %v1318
        %v1320 = vlaneseq
        %v1321 = vshrl.u32 %v1320, 7
        %v1322 = vsub.s32 %v1319, %v1321
        %v1323 = vrot.slane %v1316, %v1322
        %v1324 = vcombine.low %v1230, %v1231
        %v1326 = vunpack.c.l.s4 1983009808
        %v1327 = vunpack.c.0.s8 %v1326
        %v1328 = vlaneseq
        %v1329 = vshrl.u32 %v1328, 7
        %v1330 = vsub.s32 %v1327, %v1329
        %v1331 = vrot.slane %v1324, %v1330
        %v1332 = vcombine.low %v1307, %v1315
        %v1333 = vcombine.high %v1307, %v1315
        %v1335 = vunpack.c.l.s4 1934713408
        %v1336 = vunpack.c.0.s8 %v1335
        %v1337 = vlaneseq
        %v1338 = vshrl.u32 %v1337, 7
        %v1339 = vsub.s32 %v1336, %v1338
        %v1340 = vrot.slane %v1332, %v1339
        %v1342 = vunpack.c.l.s4 1934713408
        %v1343 = vunpack.c.0.s8 %v1342
        %v1344 = vlaneseq
        %v1345 = vshrl.u32 %v1344, 7
        %v1346 = vsub.s32 %v1343, %v1345
        %v1347 = vrot.slane %v1333, %v1346
        %v1348 = vcombine.low %v1323, %v1331
        %v1349 = vcombine.high %v1323, %v1331
        %v1351 = vunpack.c.l.s4 1934713408
        %v1352 = vunpack.c.0.s8 %v1351
        %v1353 = vlaneseq
        %v1354 = vshrl.u32 %v1353, 7
        %v1355 = vsub.s32 %v1352, %v1354
        %v1356 = vrot.slane %v1348, %v1355
        %v1358 = vunpack.c.l.s4 1934713408
        %v1359 = vunpack.c.0.s8 %v1358
        %v1360 = vlaneseq
        %v1361 = vshrl.u32 %v1360, 7
        %v1362 = vsub.s32 %v1359, %v1361
        %v1363 = vrot.slane %v1349, %v1362
        %v1364 = vcombine.low %v1340, %v1356
        %v1365 = vcombine.high %v1340, %v1356
        %v1366 = vcombine.low %v1347, %v1363
        %v1367 = vcombine.high %v1347, %v1363
        %v1368 = vcombine.low %v1272, %v1279
        %v1370 = vunpack.c.l.s4 1983009808
        %v1371 = vunpack.c.0.s8 %v1370
        %v1372 = vlaneseq
        %v1373 = vshrl.u32 %v1372, 7
        %v1374 = vsub.s32 %v1371, %v1373
        %v1375 = vrot.slane %v1368, %v1374
        %v1376 = vcombine.low %v1296, %v1297
        %v1378 = vunpack.c.l.s4 1983009808
        %v1379 = vunpack.c.0.s8 %v1378
        %v1380 = vlaneseq
        %v1381 = vshrl.u32 %v1380, 7
        %v1382 = vsub.s32 %v1379, %v1381
        %v1383 = vrot.slane %v1376, %v1382
        %v1384 = vcombine.low %v1288, %v1295
        %v1386 = vunpack.c.l.s4 1983009808
        %v1387 = vunpack.c.0.s8 %v1386
        %v1388 = vlaneseq
        %v1389 = vshrl.u32 %v1388, 7
        %v1390 = vsub.s32 %v1387, %v1389
        %v1391 = vrot.slane %v1384, %v1390
        %v1392 = vcombine.low %v1298, %v1299
        %v1394 = vunpack.c.l.s4 1983009808
        %v1395 = vunpack.c.0.s8 %v1394
        %v1396 = vlaneseq
        %v1397 = vshrl.u32 %v1396, 7
        %v1398 = vsub.s32 %v1395, %v1397
        %v1399 = vrot.slane %v1392, %v1398
        %v1400 = vcombine.low %v1375, %v1383
        %v1401 = vcombine.high %v1375, %v1383
        %v1403 = vunpack.c.l.s4 1934713408
        %v1404 = vunpack.c.0.s8 %v1403
        %v1405 = vlaneseq
        %v1406 = vshrl.u32 %v1405, 7
        %v1407 = vsub.s32 %v1404, %v1406
        %v1408 = vrot.slane %v1400, %v1407
        %v1410 = vunpack.c.l.s4 1934713408
        %v1411 = vunpack.c.0.s8 %v1410
        %v1412 = vlaneseq
        %v1413 = vshrl.u32 %v1412, 7
        %v1414 = vsub.s32 %v1411, %v1413
        %v1415 = vrot.slane %v1401, %v1414
        %v1416 = vcombine.low %v1391, %v1399
        %v1417 = vcombine.high %v1391, %v1399
        %v1419 = vunpack.c.l.s4 1934713408
        %v1420 = vunpack.c.0.s8 %v1419
        %v1421 = vlaneseq
        %v1422 = vshrl.u32 %v1421, 7
        %v1423 = vsub.s32 %v1420, %v1422
        %v1424 = vrot.slane %v1416, %v1423
        %v1426 = vunpack.c.l.s4 1934713408
        %v1427 = vunpack.c.0.s8 %v1426
        %v1428 = vlaneseq
        %v1429 = vshrl.u32 %v1428, 7
        %v1430 = vsub.s32 %v1427, %v1429
        %v1431 = vrot.slane %v1417, %v1430
        %v1432 = vcombine.low %v1408, %v1424
        %v1433 = vcombine.high %v1408, %v1424
        %v1434 = vcombine.low %v1415, %v1431
        %v1435 = vcombine.high %v1415, %v1431
        %v1436 = vpack.c.bf16 %v1432, %v1364
        %v1437 = vpack.c.bf16 %v1433, %v1365
        %v1438 = vpack.c.bf16 %v1434, %v1366
        %v1439 = vpack.c.bf16 %v1435, %v1367
        %1442 = vrot.lane.b32.xlu0 %v842, 96
        %v1443 = vpop.permute.xlu0 %1442
        %1444 = vrot.lane.b32.xlu0 %v845, 96
        %v1445 = vpop.permute.xlu0 %1444
        %1448 = vrot.lane.b32.xlu0 %v842, 64
        %v1449 = vpop.permute.xlu0 %1448
        %1450 = vrot.lane.b32.xlu0 %v845, 64
        %v1451 = vpop.permute.xlu0 %1450
        %1454 = vrot.lane.b32.xlu0 %v842, 32
        %v1455 = vpop.permute.xlu0 %1454
        %1456 = vrot.lane.b32.xlu0 %v845, 32
        %v1457 = vpop.permute.xlu0 %1456
        %v1460 = vcombine.low %v842, %v1449
        %v1461 = vcombine.high %v842, %v1449
        %v1463 = vunpack.c.l.s4 1983009808
        %v1464 = vunpack.c.0.s8 %v1463
        %v1465 = vlaneseq
        %v1466 = vshrl.u32 %v1465, 7
        %v1467 = vsub.s32 %v1464, %v1466
        %v1468 = vrot.slane %v1460, %v1467
        %v1470 = vunpack.c.l.s4 1983009808
        %v1471 = vunpack.c.0.s8 %v1470
        %v1472 = vlaneseq
        %v1473 = vshrl.u32 %v1472, 7
        %v1474 = vsub.s32 %v1471, %v1473
        %v1475 = vrot.slane %v1461, %v1474
        %v1476 = vcombine.low %v1443, %v1455
        %v1477 = vcombine.high %v1443, %v1455
        %v1479 = vunpack.c.l.s4 1983009808
        %v1480 = vunpack.c.0.s8 %v1479
        %v1481 = vlaneseq
        %v1482 = vshrl.u32 %v1481, 7
        %v1483 = vsub.s32 %v1480, %v1482
        %v1484 = vrot.slane %v1476, %v1483
        %v1486 = vunpack.c.l.s4 1983009808
        %v1487 = vunpack.c.0.s8 %v1486
        %v1488 = vlaneseq
        %v1489 = vshrl.u32 %v1488, 7
        %v1490 = vsub.s32 %v1487, %v1489
        %v1491 = vrot.slane %v1477, %v1490
        %v1492 = vcombine.low %v1468, %v1484
        %v1493 = vcombine.high %v1468, %v1484
        %v1495 = vunpack.c.l.s4 1934713408
        %v1496 = vunpack.c.0.s8 %v1495
        %v1497 = vlaneseq
        %v1498 = vshrl.u32 %v1497, 7
        %v1499 = vsub.s32 %v1496, %v1498
        %v1500 = vrot.slane %v1492, %v1499
        %v1502 = vunpack.c.l.s4 1934713408
        %v1503 = vunpack.c.0.s8 %v1502
        %v1504 = vlaneseq
        %v1505 = vshrl.u32 %v1504, 7
        %v1506 = vsub.s32 %v1503, %v1505
        %v1507 = vrot.slane %v1493, %v1506
        %v1508 = vcombine.low %v1475, %v1491
        %v1509 = vcombine.high %v1475, %v1491
        %v1511 = vunpack.c.l.s4 1934713408
        %v1512 = vunpack.c.0.s8 %v1511
        %v1513 = vlaneseq
        %v1514 = vshrl.u32 %v1513, 7
        %v1515 = vsub.s32 %v1512, %v1514
        %v1516 = vrot.slane %v1508, %v1515
        %v1518 = vunpack.c.l.s4 1934713408
        %v1519 = vunpack.c.0.s8 %v1518
        %v1520 = vlaneseq
        %v1521 = vshrl.u32 %v1520, 7
        %v1522 = vsub.s32 %v1519, %v1521
        %v1523 = vrot.slane %v1509, %v1522
        %v1524 = vcombine.high %v1500, 0.0
        %v1525 = vcombine.high %v1507, 0.0
        %v1526 = vcombine.high %v1516, 0.0
        %v1527 = vcombine.high %v1523, 0.0
        %v1528 = vcombine.low %v845, %v1451
        %v1529 = vcombine.high %v845, %v1451
        %v1531 = vunpack.c.l.s4 1983009808
        %v1532 = vunpack.c.0.s8 %v1531
        %v1533 = vlaneseq
        %v1534 = vshrl.u32 %v1533, 7
        %v1535 = vsub.s32 %v1532, %v1534
        %v1536 = vrot.slane %v1528, %v1535
        %v1538 = vunpack.c.l.s4 1983009808
        %v1539 = vunpack.c.0.s8 %v1538
        %v1540 = vlaneseq
        %v1541 = vshrl.u32 %v1540, 7
        %v1542 = vsub.s32 %v1539, %v1541
        %v1543 = vrot.slane %v1529, %v1542
        %v1544 = vcombine.low %v1445, %v1457
        %v1545 = vcombine.high %v1445, %v1457
        %v1547 = vunpack.c.l.s4 1983009808
        %v1548 = vunpack.c.0.s8 %v1547
        %v1549 = vlaneseq
        %v1550 = vshrl.u32 %v1549, 7
        %v1551 = vsub.s32 %v1548, %v1550
        %v1552 = vrot.slane %v1544, %v1551
        %v1554 = vunpack.c.l.s4 1983009808
        %v1555 = vunpack.c.0.s8 %v1554
        %v1556 = vlaneseq
        %v1557 = vshrl.u32 %v1556, 7
        %v1558 = vsub.s32 %v1555, %v1557
        %v1559 = vrot.slane %v1545, %v1558
        %v1560 = vcombine.low %v1536, %v1552
        %v1561 = vcombine.high %v1536, %v1552
        %v1563 = vunpack.c.l.s4 1934713408
        %v1564 = vunpack.c.0.s8 %v1563
        %v1565 = vlaneseq
        %v1566 = vshrl.u32 %v1565, 7
        %v1567 = vsub.s32 %v1564, %v1566
        %v1568 = vrot.slane %v1560, %v1567
        %v1570 = vunpack.c.l.s4 1934713408
        %v1571 = vunpack.c.0.s8 %v1570
        %v1572 = vlaneseq
        %v1573 = vshrl.u32 %v1572, 7
        %v1574 = vsub.s32 %v1571, %v1573
        %v1575 = vrot.slane %v1561, %v1574
        %v1576 = vcombine.low %v1543, %v1559
        %v1577 = vcombine.high %v1543, %v1559
        %v1579 = vunpack.c.l.s4 1934713408
        %v1580 = vunpack.c.0.s8 %v1579
        %v1581 = vlaneseq
        %v1582 = vshrl.u32 %v1581, 7
        %v1583 = vsub.s32 %v1580, %v1582
        %v1584 = vrot.slane %v1576, %v1583
        %v1586 = vunpack.c.l.s4 1934713408
        %v1587 = vunpack.c.0.s8 %v1586
        %v1588 = vlaneseq
        %v1589 = vshrl.u32 %v1588, 7
        %v1590 = vsub.s32 %v1587, %v1589
        %v1591 = vrot.slane %v1577, %v1590
        %v1592 = vcombine.high %v1568, 0.0
        %v1593 = vcombine.high %v1575, 0.0
        %v1594 = vcombine.high %v1584, 0.0
        %v1595 = vcombine.high %v1591, 0.0
        %v1596 = vcombine.low %v1500, %v1507
        %v1598 = vunpack.c.l.s4 1983009808
        %v1599 = vunpack.c.0.s8 %v1598
        %v1600 = vlaneseq
        %v1601 = vshrl.u32 %v1600, 7
        %v1602 = vsub.s32 %v1599, %v1601
        %v1603 = vrot.slane %v1596, %v1602
        %v1604 = vcombine.low %v1524, %v1525
        %v1606 = vunpack.c.l.s4 1983009808
        %v1607 = vunpack.c.0.s8 %v1606
        %v1608 = vlaneseq
        %v1609 = vshrl.u32 %v1608, 7
        %v1610 = vsub.s32 %v1607, %v1609
        %v1611 = vrot.slane %v1604, %v1610
        %v1612 = vcombine.low %v1516, %v1523
        %v1614 = vunpack.c.l.s4 1983009808
        %v1615 = vunpack.c.0.s8 %v1614
        %v1616 = vlaneseq
        %v1617 = vshrl.u32 %v1616, 7
        %v1618 = vsub.s32 %v1615, %v1617
        %v1619 = vrot.slane %v1612, %v1618
        %v1620 = vcombine.low %v1526, %v1527
        %v1622 = vunpack.c.l.s4 1983009808
        %v1623 = vunpack.c.0.s8 %v1622
        %v1624 = vlaneseq
        %v1625 = vshrl.u32 %v1624, 7
        %v1626 = vsub.s32 %v1623, %v1625
        %v1627 = vrot.slane %v1620, %v1626
        %v1628 = vcombine.low %v1603, %v1611
        %v1629 = vcombine.high %v1603, %v1611
        %v1631 = vunpack.c.l.s4 1934713408
        %v1632 = vunpack.c.0.s8 %v1631
        %v1633 = vlaneseq
        %v1634 = vshrl.u32 %v1633, 7
        %v1635 = vsub.s32 %v1632, %v1634
        %v1636 = vrot.slane %v1628, %v1635
        %v1638 = vunpack.c.l.s4 1934713408
        %v1639 = vunpack.c.0.s8 %v1638
        %v1640 = vlaneseq
        %v1641 = vshrl.u32 %v1640, 7
        %v1642 = vsub.s32 %v1639, %v1641
        %v1643 = vrot.slane %v1629, %v1642
        %v1644 = vcombine.low %v1619, %v1627
        %v1645 = vcombine.high %v1619, %v1627
        %v1647 = vunpack.c.l.s4 1934713408
        %v1648 = vunpack.c.0.s8 %v1647
        %v1649 = vlaneseq
        %v1650 = vshrl.u32 %v1649, 7
        %v1651 = vsub.s32 %v1648, %v1650
        %v1652 = vrot.slane %v1644, %v1651
        %v1654 = vunpack.c.l.s4 1934713408
        %v1655 = vunpack.c.0.s8 %v1654
        %v1656 = vlaneseq
        %v1657 = vshrl.u32 %v1656, 7
        %v1658 = vsub.s32 %v1655, %v1657
        %v1659 = vrot.slane %v1645, %v1658
        %v1660 = vcombine.low %v1636, %v1652
        %v1661 = vcombine.high %v1636, %v1652
        %v1662 = vcombine.low %v1643, %v1659
        %v1663 = vcombine.high %v1643, %v1659
        %v1664 = vcombine.low %v1568, %v1575
        %v1666 = vunpack.c.l.s4 1983009808
        %v1667 = vunpack.c.0.s8 %v1666
        %v1668 = vlaneseq
        %v1669 = vshrl.u32 %v1668, 7
        %v1670 = vsub.s32 %v1667, %v1669
        %v1671 = vrot.slane %v1664, %v1670
        %v1672 = vcombine.low %v1592, %v1593
        %v1674 = vunpack.c.l.s4 1983009808
        %v1675 = vunpack.c.0.s8 %v1674
        %v1676 = vlaneseq
        %v1677 = vshrl.u32 %v1676, 7
        %v1678 = vsub.s32 %v1675, %v1677
        %v1679 = vrot.slane %v1672, %v1678
        %v1680 = vcombine.low %v1584, %v1591
        %v1682 = vunpack.c.l.s4 1983009808
        %v1683 = vunpack.c.0.s8 %v1682
        %v1684 = vlaneseq
        %v1685 = vshrl.u32 %v1684, 7
        %v1686 = vsub.s32 %v1683, %v1685
        %v1687 = vrot.slane %v1680, %v1686
        %v1688 = vcombine.low %v1594, %v1595
        %v1690 = vunpack.c.l.s4 1983009808
        %v1691 = vunpack.c.0.s8 %v1690
        %v1692 = vlaneseq
        %v1693 = vshrl.u32 %v1692, 7
        %v1694 = vsub.s32 %v1691, %v1693
        %v1695 = vrot.slane %v1688, %v1694
        %v1696 = vcombine.low %v1671, %v1679
        %v1697 = vcombine.high %v1671, %v1679
        %v1699 = vunpack.c.l.s4 1934713408
        %v1700 = vunpack.c.0.s8 %v1699
        %v1701 = vlaneseq
        %v1702 = vshrl.u32 %v1701, 7
        %v1703 = vsub.s32 %v1700, %v1702
        %v1704 = vrot.slane %v1696, %v1703
        %v1706 = vunpack.c.l.s4 1934713408
        %v1707 = vunpack.c.0.s8 %v1706
        %v1708 = vlaneseq
        %v1709 = vshrl.u32 %v1708, 7
        %v1710 = vsub.s32 %v1707, %v1709
        %v1711 = vrot.slane %v1697, %v1710
        %v1712 = vcombine.low %v1687, %v1695
        %v1713 = vcombine.high %v1687, %v1695
        %v1715 = vunpack.c.l.s4 1934713408
        %v1716 = vunpack.c.0.s8 %v1715
        %v1717 = vlaneseq
        %v1718 = vshrl.u32 %v1717, 7
        %v1719 = vsub.s32 %v1716, %v1718
        %v1720 = vrot.slane %v1712, %v1719
        %v1722 = vunpack.c.l.s4 1934713408
        %v1723 = vunpack.c.0.s8 %v1722
        %v1724 = vlaneseq
        %v1725 = vshrl.u32 %v1724, 7
        %v1726 = vsub.s32 %v1723, %v1725
        %v1727 = vrot.slane %v1713, %v1726
        %v1728 = vcombine.low %v1704, %v1720
        %v1729 = vcombine.high %v1704, %v1720
        %v1730 = vcombine.low %v1711, %v1727
        %v1731 = vcombine.high %v1711, %v1727
        %v1732 = vpack.c.bf16 %v1728, %v1660
        %v1733 = vpack.c.bf16 %v1729, %v1661
        %v1734 = vpack.c.bf16 %v1730, %v1662
        %v1735 = vpack.c.bf16 %v1731, %v1663
        %vm1736 = vcmask 261120
        %v1738 = vsel %vm1736, %v1140, 0
        %v1741 = vsel %vm1736, %v1436, 0
        %1743 = vmatprep.subr.bf16.mxu0 0
        %1744 = vmatpush1.bf16.xpose.msra.mxu0 %v1741
        %1745 = vmatprep.subr.bf16.mxu0 0
        %1746 = vmatpush1.bf16.xpose.msra.mxu0 0
        %1747 = vmatprep.subr.bf16.mxu0 0
        %1748 = vmatpush1.bf16.xpose.msra.mxu0 0
        %1749 = vmatprep.subr.bf16.mxu0 0
        %1750 = vmatpush1.bf16.xpose.msra.mxu0 0
        %1751 = vmatprep.subr.bf16.mxu0 0
        %1752 = vmatpush1.bf16.xpose.msra.mxu0 0
        %1753 = vmatprep.subr.bf16.mxu0 0
        %1754 = vmatpush1.bf16.xpose.msra.mxu0 0
        %1755 = vmatprep.subr.bf16.mxu0 0
        %1756 = vmatpush1.bf16.xpose.msra.mxu0 0
        %1757 = vmatprep.subr.bf16.mxu0 0
        %1758 = vmatpush1.bf16.xpose.msra.mxu0 0
        %1759 = vmatprep.subr.bf16.mxu0 0
        %1760 = vmatpush1.bf16.xpose.msra.mxu0 0
        %1761 = vmatprep.subr.bf16.mxu0 0
        %1762 = vmatpush1.bf16.xpose.msra.mxu0 0
        %1763 = vmatprep.subr.bf16.mxu0 0
        %1764 = vmatpush1.bf16.xpose.msra.mxu0 0
        %1765 = vmatprep.subr.bf16.mxu0 0
        %1766 = vmatpush1.bf16.xpose.msra.mxu0 0
        %1767 = vmatprep.subr.bf16.mxu0 0
        %1768 = vmatpush1.bf16.xpose.msra.mxu0 0
        %1769 = vmatprep.subr.bf16.mxu0 0
        %1770 = vmatpush1.bf16.xpose.msra.mxu0 0
        %1771 = vmatprep.subr.bf16.mxu0 0
        %1772 = vmatpush1.bf16.xpose.msra.mxu0 0
        %1773 = vmatprep.subr.bf16.mxu0 0
        %1774 = vmatpush1.bf16.xpose.msra.mxu0 0
        %1775 = vmatprep.mubr.bf16.mxu0 0
        %1776 = vmatmul.mubr.bf16.gmra.mrb[0].mxu0 %v1738
        %v1777 = vpop.f32.mrb[0].mxu0
        %v1778 = vadd.f32 0.0, %v1777
        %v1779 = vpop.f32.mrb[0].mxu0
        %v1780 = vpop.f32.mrb[0].mxu0
        %v1781 = vadd.f32 0.0, %v1780
        %v1782 = vpop.f32.mrb[0].mxu0
        %1783 = vdwg.mxu0
        %v1785 = vsel %vm1736, %v1141, 0
        %v1788 = vsel %vm1736, %v1437, 0
        %1790 = vmatprep.subr.bf16.mxu0 0
        %1791 = vmatpush1.bf16.xpose.msra.mxu0 %v1788
        %1792 = vmatprep.subr.bf16.mxu0 0
        %1793 = vmatpush1.bf16.xpose.msra.mxu0 0
        %1794 = vmatprep.subr.bf16.mxu0 0
        %1795 = vmatpush1.bf16.xpose.msra.mxu0 0
        %1796 = vmatprep.subr.bf16.mxu0 0
        %1797 = vmatpush1.bf16.xpose.msra.mxu0 0
        %1798 = vmatprep.subr.bf16.mxu0 0
        %1799 = vmatpush1.bf16.xpose.msra.mxu0 0
        %1800 = vmatprep.subr.bf16.mxu0 0
        %1801 = vmatpush1.bf16.xpose.msra.mxu0 0
        %1802 = vmatprep.subr.bf16.mxu0 0
        %1803 = vmatpush1.bf16.xpose.msra.mxu0 0
        %1804 = vmatprep.subr.bf16.mxu0 0
        %1805 = vmatpush1.bf16.xpose.msra.mxu0 0
        %1806 = vmatprep.subr.bf16.mxu0 0
        %1807 = vmatpush1.bf16.xpose.msra.mxu0 0
        %1808 = vmatprep.subr.bf16.mxu0 0
        %1809 = vmatpush1.bf16.xpose.msra.mxu0 0
        %1810 = vmatprep.subr.bf16.mxu0 0
        %1811 = vmatpush1.bf16.xpose.msra.mxu0 0
        %1812 = vmatprep.subr.bf16.mxu0 0
        %1813 = vmatpush1.bf16.xpose.msra.mxu0 0
        %1814 = vmatprep.subr.bf16.mxu0 0
        %1815 = vmatpush1.bf16.xpose.msra.mxu0 0
        %1816 = vmatprep.subr.bf16.mxu0 0
        %1817 = vmatpush1.bf16.xpose.msra.mxu0 0
        %1818 = vmatprep.subr.bf16.mxu0 0
        %1819 = vmatpush1.bf16.xpose.msra.mxu0 0
        %1820 = vmatprep.subr.bf16.mxu0 0
        %1821 = vmatpush1.bf16.xpose.msra.mxu0 0
        %1822 = vmatprep.mubr.bf16.mxu0 0
        %1823 = vmatmul.mubr.bf16.gmra.mrb[0].mxu0 %v1785
        %v1824 = vpop.f32.mrb[0].mxu0
        %v1825 = vadd.f32 0.0, %v1824
        %v1826 = vpop.f32.mrb[0].mxu0
        %v1827 = vpop.f32.mrb[0].mxu0
        %v1828 = vadd.f32 0.0, %v1827
        %v1829 = vpop.f32.mrb[0].mxu0
        %1830 = vdwg.mxu0
        %v1832 = vsel %vm1736, %v1142, 0
        %v1835 = vsel %vm1736, %v1438, 0
        %1837 = vmatprep.subr.bf16.mxu0 0
        %1838 = vmatpush1.bf16.xpose.msra.mxu0 %v1835
        %1839 = vmatprep.subr.bf16.mxu0 0
        %1840 = vmatpush1.bf16.xpose.msra.mxu0 0
        %1841 = vmatprep.subr.bf16.mxu0 0
        %1842 = vmatpush1.bf16.xpose.msra.mxu0 0
        %1843 = vmatprep.subr.bf16.mxu0 0
        %1844 = vmatpush1.bf16.xpose.msra.mxu0 0
        %1845 = vmatprep.subr.bf16.mxu0 0
        %1846 = vmatpush1.bf16.xpose.msra.mxu0 0
        %1847 = vmatprep.subr.bf16.mxu0 0
        %1848 = vmatpush1.bf16.xpose.msra.mxu0 0
        %1849 = vmatprep.subr.bf16.mxu0 0
        %1850 = vmatpush1.bf16.xpose.msra.mxu0 0
        %1851 = vmatprep.subr.bf16.mxu0 0
        %1852 = vmatpush1.bf16.xpose.msra.mxu0 0
        %1853 = vmatprep.subr.bf16.mxu0 0
        %1854 = vmatpush1.bf16.xpose.msra.mxu0 0
        %1855 = vmatprep.subr.bf16.mxu0 0
        %1856 = vmatpush1.bf16.xpose.msra.mxu0 0
        %1857 = vmatprep.subr.bf16.mxu0 0
        %1858 = vmatpush1.bf16.xpose.msra.mxu0 0
        %1859 = vmatprep.subr.bf16.mxu0 0
        %1860 = vmatpush1.bf16.xpose.msra.mxu0 0
        %1861 = vmatprep.subr.bf16.mxu0 0
        %1862 = vmatpush1.bf16.xpose.msra.mxu0 0
        %1863 = vmatprep.subr.bf16.mxu0 0
        %1864 = vmatpush1.bf16.xpose.msra.mxu0 0
        %1865 = vmatprep.subr.bf16.mxu0 0
        %1866 = vmatpush1.bf16.xpose.msra.mxu0 0
        %1867 = vmatprep.subr.bf16.mxu0 0
        %1868 = vmatpush1.bf16.xpose.msra.mxu0 0
        %1869 = vmatprep.mubr.bf16.mxu0 0
        %1870 = vmatmul.mubr.bf16.gmra.mrb[0].mxu0 %v1832
        %v1871 = vpop.f32.mrb[0].mxu0
        %v1872 = vadd.f32 0.0, %v1871
        %v1873 = vpop.f32.mrb[0].mxu0
        %v1874 = vpop.f32.mrb[0].mxu0
        %v1875 = vadd.f32 0.0, %v1874
        %v1876 = vpop.f32.mrb[0].mxu0
        %1877 = vdwg.mxu0
        %v1879 = vsel %vm1736, %v1143, 0
        %v1882 = vsel %vm1736, %v1439, 0
        %1884 = vmatprep.subr.bf16.mxu0 0
        %1885 = vmatpush1.bf16.xpose.msra.mxu0 %v1882
        %1886 = vmatprep.subr.bf16.mxu0 0
        %1887 = vmatpush1.bf16.xpose.msra.mxu0 0
        %1888 = vmatprep.subr.bf16.mxu0 0
        %1889 = vmatpush1.bf16.xpose.msra.mxu0 0
        %1890 = vmatprep.subr.bf16.mxu0 0
        %1891 = vmatpush1.bf16.xpose.msra.mxu0 0
        %1892 = vmatprep.subr.bf16.mxu0 0
        %1893 = vmatpush1.bf16.xpose.msra.mxu0 0
        %1894 = vmatprep.subr.bf16.mxu0 0
        %1895 = vmatpush1.bf16.xpose.msra.mxu0 0
        %1896 = vmatprep.subr.bf16.mxu0 0
        %1897 = vmatpush1.bf16.xpose.msra.mxu0 0
        %1898 = vmatprep.subr.bf16.mxu0 0
        %1899 = vmatpush1.bf16.xpose.msra.mxu0 0
        %1900 = vmatprep.subr.bf16.mxu0 0
        %1901 = vmatpush1.bf16.xpose.msra.mxu0 0
        %1902 = vmatprep.subr.bf16.mxu0 0
        %1903 = vmatpush1.bf16.xpose.msra.mxu0 0
        %1904 = vmatprep.subr.bf16.mxu0 0
        %1905 = vmatpush1.bf16.xpose.msra.mxu0 0
        %1906 = vmatprep.subr.bf16.mxu0 0
        %1907 = vmatpush1.bf16.xpose.msra.mxu0 0
        %1908 = vmatprep.subr.bf16.mxu0 0
        %1909 = vmatpush1.bf16.xpose.msra.mxu0 0
        %1910 = vmatprep.subr.bf16.mxu0 0
        %1911 = vmatpush1.bf16.xpose.msra.mxu0 0
        %1912 = vmatprep.subr.bf16.mxu0 0
        %1913 = vmatpush1.bf16.xpose.msra.mxu0 0
        %1914 = vmatprep.subr.bf16.mxu0 0
        %1915 = vmatpush1.bf16.xpose.msra.mxu0 0
        %1916 = vmatprep.mubr.bf16.mxu0 0
        %1917 = vmatmul.mubr.bf16.gmra.mrb[0].mxu0 %v1879
        %v1918 = vpop.f32.mrb[0].mxu0
        %v1919 = vadd.f32 0.0, %v1918
        %v1920 = vpop.f32.mrb[0].mxu0
        %v1921 = vpop.f32.mrb[0].mxu0
        %v1922 = vadd.f32 0.0, %v1921
        %v1923 = vpop.f32.mrb[0].mxu0
        %1924 = vdwg.mxu0
        %vm1925 = vcmask 130048
        %v1926 = vsel %vm1925, %v1778, -inf
        %1927 = vmax.xlane.f32.xlu0 %v1926
        %v1928 = vpop.xlane.xlu0 %1927
        %v1929 = vsel %vm1925, %v1781, -inf
        %1930 = vmax.xlane.f32.xlu0 %v1929
        %v1931 = vpop.xlane.xlu0 %1930
        %v1932 = vsel %vm1925, %v1825, -inf
        %1933 = vmax.xlane.f32.xlu0 %v1932
        %v1934 = vpop.xlane.xlu0 %1933
        %v1935 = vsel %vm1925, %v1828, -inf
        %1936 = vmax.xlane.f32.xlu0 %v1935
        %v1937 = vpop.xlane.xlu0 %1936
        %v1938 = vsel %vm1925, %v1872, -inf
        %1939 = vmax.xlane.f32.xlu0 %v1938
        %v1940 = vpop.xlane.xlu0 %1939
        %v1941 = vsel %vm1925, %v1875, -inf
        %1942 = vmax.xlane.f32.xlu0 %v1941
        %v1943 = vpop.xlane.xlu0 %1942
        %v1944 = vsel %vm1925, %v1919, -inf
        %1945 = vmax.xlane.f32.xlu0 %v1944
        %v1946 = vpop.xlane.xlu0 %1945
        %v1947 = vsel %vm1925, %v1922, -inf
        %1948 = vmax.xlane.f32.xlu0 %v1947
        %v1949 = vpop.xlane.xlu0 %1948
        %v1950 = vsub.f32 %v1778, %v1928
        %v1951 = vsub.f32 %v1781, %v1931
        %v1952 = vsub.f32 %v1825, %v1934
        %v1953 = vsub.f32 %v1828, %v1937
        %v1954 = vsub.f32 %v1872, %v1940
        %v1955 = vsub.f32 %v1875, %v1943
        %v1956 = vsub.f32 %v1919, %v1946
        %v1957 = vsub.f32 %v1922, %v1949
        %v1958 = vmul.f32 %v1950, 1.442695
        %v1959 = vpow.pop %v1958
        %v1960 = vmul.f32 %v1951, 1.442695
        %v1961 = vpow.pop %v1960
        %v1962 = vmul.f32 %v1952, 1.442695
        %v1963 = vpow.pop %v1962
        %v1964 = vmul.f32 %v1953, 1.442695
        %v1965 = vpow.pop %v1964
        %v1966 = vmul.f32 %v1954, 1.442695
        %v1967 = vpow.pop %v1966
        %v1968 = vmul.f32 %v1955, 1.442695
        %v1969 = vpow.pop %v1968
        %v1970 = vmul.f32 %v1956, 1.442695
        %v1971 = vpow.pop %v1970
        %v1972 = vmul.f32 %v1957, 1.442695
        %v1973 = vpow.pop %v1972
        %v1974 = vsel %vm1925, %v1959, 0.0
        %1975 = vadd.xlane.f32.xlu0 %v1974
        %v1976 = vpop.xlane.xlu0 %1975
        %v1977 = vsel %vm1925, %v1961, 0.0
        %1978 = vadd.xlane.f32.xlu0 %v1977
        %v1979 = vpop.xlane.xlu0 %1978
        %v1980 = vsel %vm1925, %v1963, 0.0
        %1981 = vadd.xlane.f32.xlu0 %v1980
        %v1982 = vpop.xlane.xlu0 %1981
        %v1983 = vsel %vm1925, %v1965, 0.0
        %1984 = vadd.xlane.f32.xlu0 %v1983
        %v1985 = vpop.xlane.xlu0 %1984
        %v1986 = vsel %vm1925, %v1967, 0.0
        %1987 = vadd.xlane.f32.xlu0 %v1986
        %v1988 = vpop.xlane.xlu0 %1987
        %v1989 = vsel %vm1925, %v1969, 0.0
        %1990 = vadd.xlane.f32.xlu0 %v1989
        %v1991 = vpop.xlane.xlu0 %1990
        %v1992 = vsel %vm1925, %v1971, 0.0
        %1993 = vadd.xlane.f32.xlu0 %v1992
        %v1994 = vpop.xlane.xlu0 %1993
        %v1995 = vsel %vm1925, %v1973, 0.0
        %1996 = vadd.xlane.f32.xlu0 %v1995
        %v1997 = vpop.xlane.xlu0 %1996
        %v1998 = vrcp.pop %v1976
        %v1999 = vrcp.pop %v1979
        %v2000 = vrcp.pop %v1982
        %v2001 = vrcp.pop %v1985
        %v2002 = vrcp.pop %v1988
        %v2003 = vrcp.pop %v1991
        %v2004 = vrcp.pop %v1994
        %v2005 = vrcp.pop %v1997
        %v2006 = vmul.f32 %v1959, %v1998
        %v2007 = vmul.f32 %v1961, %v1999
        %v2008 = vmul.f32 %v1963, %v2000
        %v2009 = vmul.f32 %v1965, %v2001
        %v2010 = vmul.f32 %v1967, %v2002
        %v2011 = vmul.f32 %v1969, %v2003
        %v2012 = vmul.f32 %v1971, %v2004
        %v2013 = vmul.f32 %v1973, %v2005
        %v2014 = vpack.c.bf16 %v2007, %v2006
        %v2015 = vpack.c.bf16 %v2009, %v2008
        %v2016 = vpack.c.bf16 %v2011, %v2010
        %v2017 = vpack.c.bf16 %v2013, %v2012
        %v2019 = vsel %vm1925, %v2014, 0
        %2021 = vmatprep.subr.bf16.mxu0 0
        %2022 = vmatpush1.bf16.msra.mxu0 %v1732
        %2023 = vmatprep.subr.bf16.mxu0 0
        %2024 = vmatpush1.bf16.msra.mxu0 0
        %2025 = vmatprep.subr.bf16.mxu0 0
        %2026 = vmatpush1.bf16.msra.mxu0 0
        %2027 = vmatprep.subr.bf16.mxu0 0
        %2028 = vmatpush1.bf16.msra.mxu0 0
        %2029 = vmatprep.subr.bf16.mxu0 0
        %2030 = vmatpush1.bf16.msra.mxu0 0
        %2031 = vmatprep.subr.bf16.mxu0 0
        %2032 = vmatpush1.bf16.msra.mxu0 0
        %2033 = vmatprep.subr.bf16.mxu0 0
        %2034 = vmatpush1.bf16.msra.mxu0 0
        %2035 = vmatprep.subr.bf16.mxu0 0
        %2036 = vmatpush1.bf16.msra.mxu0 0
        %2037 = vmatprep.subr.bf16.mxu0 0
        %2038 = vmatpush1.bf16.msra.mxu0 0
        %2039 = vmatprep.subr.bf16.mxu0 0
        %2040 = vmatpush1.bf16.msra.mxu0 0
        %2041 = vmatprep.subr.bf16.mxu0 0
        %2042 = vmatpush1.bf16.msra.mxu0 0
        %2043 = vmatprep.subr.bf16.mxu0 0
        %2044 = vmatpush1.bf16.msra.mxu0 0
        %2045 = vmatprep.subr.bf16.mxu0 0
        %2046 = vmatpush1.bf16.msra.mxu0 0
        %2047 = vmatprep.subr.bf16.mxu0 0
        %2048 = vmatpush1.bf16.msra.mxu0 0
        %2049 = vmatprep.subr.bf16.mxu0 0
        %2050 = vmatpush1.bf16.msra.mxu0 0
        %2051 = vmatprep.subr.bf16.mxu0 0
        %2052 = vmatpush1.bf16.msra.mxu0 0
        %2053 = vmatprep.mubr.bf16.mxu0 0
        %2054 = vmatmul.mubr.bf16.gmra.mrb[0].mxu0 %v2019
        %v2055 = vpop.f32.mrb[0].mxu0
        %v2056 = vadd.f32 0.0, %v2055
        %v2057 = vpop.f32.mrb[0].mxu0
        %v2058 = vpop.f32.mrb[0].mxu0
        %v2059 = vadd.f32 0.0, %v2058
        %v2060 = vpop.f32.mrb[0].mxu0
        %2061 = vdwg.mxu0
        %v2063 = vsel %vm1925, %v2015, 0
        %2065 = vmatprep.subr.bf16.mxu0 0
        %2066 = vmatpush1.bf16.msra.mxu0 %v1733
        %2067 = vmatprep.subr.bf16.mxu0 0
        %2068 = vmatpush1.bf16.msra.mxu0 0
        %2069 = vmatprep.subr.bf16.mxu0 0
        %2070 = vmatpush1.bf16.msra.mxu0 0
        %2071 = vmatprep.subr.bf16.mxu0 0
        %2072 = vmatpush1.bf16.msra.mxu0 0
        %2073 = vmatprep.subr.bf16.mxu0 0
        %2074 = vmatpush1.bf16.msra.mxu0 0
        %2075 = vmatprep.subr.bf16.mxu0 0
        %2076 = vmatpush1.bf16.msra.mxu0 0
        %2077 = vmatprep.subr.bf16.mxu0 0
        %2078 = vmatpush1.bf16.msra.mxu0 0
        %2079 = vmatprep.subr.bf16.mxu0 0
        %2080 = vmatpush1.bf16.msra.mxu0 0
        %2081 = vmatprep.subr.bf16.mxu0 0
        %2082 = vmatpush1.bf16.msra.mxu0 0
        %2083 = vmatprep.subr.bf16.mxu0 0
        %2084 = vmatpush1.bf16.msra.mxu0 0
        %2085 = vmatprep.subr.bf16.mxu0 0
        %2086 = vmatpush1.bf16.msra.mxu0 0
        %2087 = vmatprep.subr.bf16.mxu0 0
        %2088 = vmatpush1.bf16.msra.mxu0 0
        %2089 = vmatprep.subr.bf16.mxu0 0
        %2090 = vmatpush1.bf16.msra.mxu0 0
        %2091 = vmatprep.subr.bf16.mxu0 0
        %2092 = vmatpush1.bf16.msra.mxu0 0
        %2093 = vmatprep.subr.bf16.mxu0 0
        %2094 = vmatpush1.bf16.msra.mxu0 0
        %2095 = vmatprep.subr.bf16.mxu0 0
        %2096 = vmatpush1.bf16.msra.mxu0 0
        %2097 = vmatprep.mubr.bf16.mxu0 0
        %2098 = vmatmul.mubr.bf16.gmra.mrb[0].mxu0 %v2063
        %v2099 = vpop.f32.mrb[0].mxu0
        %v2100 = vadd.f32 0.0, %v2099
        %v2101 = vpop.f32.mrb[0].mxu0
        %v2102 = vpop.f32.mrb[0].mxu0
        %v2103 = vadd.f32 0.0, %v2102
        %v2104 = vpop.f32.mrb[0].mxu0
        %2105 = vdwg.mxu0
        %v2107 = vsel %vm1925, %v2016, 0
        %2109 = vmatprep.subr.bf16.mxu0 0
        %2110 = vmatpush1.bf16.msra.mxu0 %v1734
        %2111 = vmatprep.subr.bf16.mxu0 0
        %2112 = vmatpush1.bf16.msra.mxu0 0
        %2113 = vmatprep.subr.bf16.mxu0 0
        %2114 = vmatpush1.bf16.msra.mxu0 0
        %2115 = vmatprep.subr.bf16.mxu0 0
        %2116 = vmatpush1.bf16.msra.mxu0 0
        %2117 = vmatprep.subr.bf16.mxu0 0
        %2118 = vmatpush1.bf16.msra.mxu0 0
        %2119 = vmatprep.subr.bf16.mxu0 0
        %2120 = vmatpush1.bf16.msra.mxu0 0
        %2121 = vmatprep.subr.bf16.mxu0 0
        %2122 = vmatpush1.bf16.msra.mxu0 0
        %2123 = vmatprep.subr.bf16.mxu0 0
        %2124 = vmatpush1.bf16.msra.mxu0 0
        %2125 = vmatprep.subr.bf16.mxu0 0
        %2126 = vmatpush1.bf16.msra.mxu0 0
        %2127 = vmatprep.subr.bf16.mxu0 0
        %2128 = vmatpush1.bf16.msra.mxu0 0
        %2129 = vmatprep.subr.bf16.mxu0 0
        %2130 = vmatpush1.bf16.msra.mxu0 0
        %2131 = vmatprep.subr.bf16.mxu0 0
        %2132 = vmatpush1.bf16.msra.mxu0 0
        %2133 = vmatprep.subr.bf16.mxu0 0
        %2134 = vmatpush1.bf16.msra.mxu0 0
        %2135 = vmatprep.subr.bf16.mxu0 0
        %2136 = vmatpush1.bf16.msra.mxu0 0
        %2137 = vmatprep.subr.bf16.mxu0 0
        %2138 = vmatpush1.bf16.msra.mxu0 0
        %2139 = vmatprep.subr.bf16.mxu0 0
        %2140 = vmatpush1.bf16.msra.mxu0 0
        %2141 = vmatprep.mubr.bf16.mxu0 0
        %2142 = vmatmul.mubr.bf16.gmra.mrb[0].mxu0 %v2107
        %v2143 = vpop.f32.mrb[0].mxu0
        %v2144 = vadd.f32 0.0, %v2143
        %v2145 = vpop.f32.mrb[0].mxu0
        %v2146 = vpop.f32.mrb[0].mxu0
        %v2147 = vadd.f32 0.0, %v2146
        %v2148 = vpop.f32.mrb[0].mxu0
        %2149 = vdwg.mxu0
        %v2151 = vsel %vm1925, %v2017, 0
        %2153 = vmatprep.subr.bf16.mxu0 0
        %2154 = vmatpush1.bf16.msra.mxu0 %v1735
        %2155 = vmatprep.subr.bf16.mxu0 0
        %2156 = vmatpush1.bf16.msra.mxu0 0
        %2157 = vmatprep.subr.bf16.mxu0 0
        %2158 = vmatpush1.bf16.msra.mxu0 0
        %2159 = vmatprep.subr.bf16.mxu0 0
        %2160 = vmatpush1.bf16.msra.mxu0 0
        %2161 = vmatprep.subr.bf16.mxu0 0
        %2162 = vmatpush1.bf16.msra.mxu0 0
        %2163 = vmatprep.subr.bf16.mxu0 0
        %2164 = vmatpush1.bf16.msra.mxu0 0
        %2165 = vmatprep.subr.bf16.mxu0 0
        %2166 = vmatpush1.bf16.msra.mxu0 0
        %2167 = vmatprep.subr.bf16.mxu0 0
        %2168 = vmatpush1.bf16.msra.mxu0 0
        %2169 = vmatprep.subr.bf16.mxu0 0
        %2170 = vmatpush1.bf16.msra.mxu0 0
        %2171 = vmatprep.subr.bf16.mxu0 0
        %2172 = vmatpush1.bf16.msra.mxu0 0
        %2173 = vmatprep.subr.bf16.mxu0 0
        %2174 = vmatpush1.bf16.msra.mxu0 0
        %2175 = vmatprep.subr.bf16.mxu0 0
        %2176 = vmatpush1.bf16.msra.mxu0 0
        %2177 = vmatprep.subr.bf16.mxu0 0
        %2178 = vmatpush1.bf16.msra.mxu0 0
        %2179 = vmatprep.subr.bf16.mxu0 0
        %2180 = vmatpush1.bf16.msra.mxu0 0
        %2181 = vmatprep.subr.bf16.mxu0 0
        %2182 = vmatpush1.bf16.msra.mxu0 0
        %2183 = vmatprep.subr.bf16.mxu0 0
        %2184 = vmatpush1.bf16.msra.mxu0 0
        %2185 = vmatprep.mubr.bf16.mxu0 0
        %2186 = vmatmul.mubr.bf16.gmra.mrb[0].mxu0 %v2151
        %v2187 = vpop.f32.mrb[0].mxu0
        %v2188 = vadd.f32 0.0, %v2187
        %v2189 = vpop.f32.mrb[0].mxu0
        %v2190 = vpop.f32.mrb[0].mxu0
        %v2191 = vadd.f32 0.0, %v2190
        %v2192 = vpop.f32.mrb[0].mxu0
        %2193 = vdwg.mxu0
        %v2194 = vcombine.low %v2056, %v2144
        %v2195 = vcombine.high %v2056, %v2144
        %v2197 = vunpack.c.l.s4 1983009808
        %v2198 = vunpack.c.0.s8 %v2197
        %v2199 = vlaneseq
        %v2200 = vshrl.u32 %v2199, 7
        %v2201 = vsub.s32 %v2198, %v2200
        %v2202 = vrot.slane %v2194, %v2201
        %v2204 = vunpack.c.l.s4 1983009808
        %v2205 = vunpack.c.0.s8 %v2204
        %v2206 = vlaneseq
        %v2207 = vshrl.u32 %v2206, 7
        %v2208 = vsub.s32 %v2205, %v2207
        %v2209 = vrot.slane %v2195, %v2208
        %v2210 = vcombine.low %v2100, %v2188
        %v2211 = vcombine.high %v2100, %v2188
        %v2213 = vunpack.c.l.s4 1983009808
        %v2214 = vunpack.c.0.s8 %v2213
        %v2215 = vlaneseq
        %v2216 = vshrl.u32 %v2215, 7
        %v2217 = vsub.s32 %v2214, %v2216
        %v2218 = vrot.slane %v2210, %v2217
        %v2220 = vunpack.c.l.s4 1983009808
        %v2221 = vunpack.c.0.s8 %v2220
        %v2222 = vlaneseq
        %v2223 = vshrl.u32 %v2222, 7
        %v2224 = vsub.s32 %v2221, %v2223
        %v2225 = vrot.slane %v2211, %v2224
        %v2226 = vcombine.low %v2202, %v2218
        %v2227 = vcombine.high %v2202, %v2218
        %v2229 = vunpack.c.l.s4 1934713408
        %v2230 = vunpack.c.0.s8 %v2229
        %v2231 = vlaneseq
        %v2232 = vshrl.u32 %v2231, 7
        %v2233 = vsub.s32 %v2230, %v2232
        %v2234 = vrot.slane %v2226, %v2233
        %v2236 = vunpack.c.l.s4 1934713408
        %v2237 = vunpack.c.0.s8 %v2236
        %v2238 = vlaneseq
        %v2239 = vshrl.u32 %v2238, 7
        %v2240 = vsub.s32 %v2237, %v2239
        %v2241 = vrot.slane %v2227, %v2240
        %v2242 = vcombine.low %v2209, %v2225
        %v2243 = vcombine.high %v2209, %v2225
        %v2245 = vunpack.c.l.s4 1934713408
        %v2246 = vunpack.c.0.s8 %v2245
        %v2247 = vlaneseq
        %v2248 = vshrl.u32 %v2247, 7
        %v2249 = vsub.s32 %v2246, %v2248
        %v2250 = vrot.slane %v2242, %v2249
        %v2252 = vunpack.c.l.s4 1934713408
        %v2253 = vunpack.c.0.s8 %v2252
        %v2254 = vlaneseq
        %v2255 = vshrl.u32 %v2254, 7
        %v2256 = vsub.s32 %v2253, %v2255
        %v2257 = vrot.slane %v2243, %v2256
        %v2258 = vcombine.high %v2234, 0.0
        %v2259 = vcombine.high %v2241, 0.0
        %v2260 = vcombine.high %v2250, 0.0
        %v2261 = vcombine.high %v2257, 0.0
        %v2262 = vcombine.low %v2059, %v2147
        %v2263 = vcombine.high %v2059, %v2147
        %v2265 = vunpack.c.l.s4 1983009808
        %v2266 = vunpack.c.0.s8 %v2265
        %v2267 = vlaneseq
        %v2268 = vshrl.u32 %v2267, 7
        %v2269 = vsub.s32 %v2266, %v2268
        %v2270 = vrot.slane %v2262, %v2269
        %v2272 = vunpack.c.l.s4 1983009808
        %v2273 = vunpack.c.0.s8 %v2272
        %v2274 = vlaneseq
        %v2275 = vshrl.u32 %v2274, 7
        %v2276 = vsub.s32 %v2273, %v2275
        %v2277 = vrot.slane %v2263, %v2276
        %v2278 = vcombine.low %v2103, %v2191
        %v2279 = vcombine.high %v2103, %v2191
        %v2281 = vunpack.c.l.s4 1983009808
        %v2282 = vunpack.c.0.s8 %v2281
        %v2283 = vlaneseq
        %v2284 = vshrl.u32 %v2283, 7
        %v2285 = vsub.s32 %v2282, %v2284
        %v2286 = vrot.slane %v2278, %v2285
        %v2288 = vunpack.c.l.s4 1983009808
        %v2289 = vunpack.c.0.s8 %v2288
        %v2290 = vlaneseq
        %v2291 = vshrl.u32 %v2290, 7
        %v2292 = vsub.s32 %v2289, %v2291
        %v2293 = vrot.slane %v2279, %v2292
        %v2294 = vcombine.low %v2270, %v2286
        %v2295 = vcombine.high %v2270, %v2286
        %v2297 = vunpack.c.l.s4 1934713408
        %v2298 = vunpack.c.0.s8 %v2297
        %v2299 = vlaneseq
        %v2300 = vshrl.u32 %v2299, 7
        %v2301 = vsub.s32 %v2298, %v2300
        %v2302 = vrot.slane %v2294, %v2301
        %v2304 = vunpack.c.l.s4 1934713408
        %v2305 = vunpack.c.0.s8 %v2304
        %v2306 = vlaneseq
        %v2307 = vshrl.u32 %v2306, 7
        %v2308 = vsub.s32 %v2305, %v2307
        %v2309 = vrot.slane %v2295, %v2308
        %v2310 = vcombine.low %v2277, %v2293
        %v2311 = vcombine.high %v2277, %v2293
        %v2313 = vunpack.c.l.s4 1934713408
        %v2314 = vunpack.c.0.s8 %v2313
        %v2315 = vlaneseq
        %v2316 = vshrl.u32 %v2315, 7
        %v2317 = vsub.s32 %v2314, %v2316
        %v2318 = vrot.slane %v2310, %v2317
        %v2320 = vunpack.c.l.s4 1934713408
        %v2321 = vunpack.c.0.s8 %v2320
        %v2322 = vlaneseq
        %v2323 = vshrl.u32 %v2322, 7
        %v2324 = vsub.s32 %v2321, %v2323
        %v2325 = vrot.slane %v2311, %v2324
        %v2326 = vcombine.high %v2302, 0.0
        %v2327 = vcombine.high %v2309, 0.0
        %v2328 = vcombine.high %v2318, 0.0
        %v2329 = vcombine.high %v2325, 0.0
        %v2330 = vcombine.low %v2234, %v2241
        %v2332 = vunpack.c.l.s4 1983009808
        %v2333 = vunpack.c.0.s8 %v2332
        %v2334 = vlaneseq
        %v2335 = vshrl.u32 %v2334, 7
        %v2336 = vsub.s32 %v2333, %v2335
        %v2337 = vrot.slane %v2330, %v2336
        %v2338 = vcombine.low %v2258, %v2259
        %v2340 = vunpack.c.l.s4 1983009808
        %v2341 = vunpack.c.0.s8 %v2340
        %v2342 = vlaneseq
        %v2343 = vshrl.u32 %v2342, 7
        %v2344 = vsub.s32 %v2341, %v2343
        %v2345 = vrot.slane %v2338, %v2344
        %v2346 = vcombine.low %v2250, %v2257
        %v2348 = vunpack.c.l.s4 1983009808
        %v2349 = vunpack.c.0.s8 %v2348
        %v2350 = vlaneseq
        %v2351 = vshrl.u32 %v2350, 7
        %v2352 = vsub.s32 %v2349, %v2351
        %v2353 = vrot.slane %v2346, %v2352
        %v2354 = vcombine.low %v2260, %v2261
        %v2356 = vunpack.c.l.s4 1983009808
        %v2357 = vunpack.c.0.s8 %v2356
        %v2358 = vlaneseq
        %v2359 = vshrl.u32 %v2358, 7
        %v2360 = vsub.s32 %v2357, %v2359
        %v2361 = vrot.slane %v2354, %v2360
        %v2362 = vcombine.low %v2337, %v2345
        %v2363 = vcombine.high %v2337, %v2345
        %v2365 = vunpack.c.l.s4 1934713408
        %v2366 = vunpack.c.0.s8 %v2365
        %v2367 = vlaneseq
        %v2368 = vshrl.u32 %v2367, 7
        %v2369 = vsub.s32 %v2366, %v2368
        %v2370 = vrot.slane %v2362, %v2369
        %v2372 = vunpack.c.l.s4 1934713408
        %v2373 = vunpack.c.0.s8 %v2372
        %v2374 = vlaneseq
        %v2375 = vshrl.u32 %v2374, 7
        %v2376 = vsub.s32 %v2373, %v2375
        %v2377 = vrot.slane %v2363, %v2376
        %v2378 = vcombine.low %v2353, %v2361
        %v2379 = vcombine.high %v2353, %v2361
        %v2381 = vunpack.c.l.s4 1934713408
        %v2382 = vunpack.c.0.s8 %v2381
        %v2383 = vlaneseq
        %v2384 = vshrl.u32 %v2383, 7
        %v2385 = vsub.s32 %v2382, %v2384
        %v2386 = vrot.slane %v2378, %v2385
        %v2388 = vunpack.c.l.s4 1934713408
        %v2389 = vunpack.c.0.s8 %v2388
        %v2390 = vlaneseq
        %v2391 = vshrl.u32 %v2390, 7
        %v2392 = vsub.s32 %v2389, %v2391
        %v2393 = vrot.slane %v2379, %v2392
        %v2394 = vcombine.low %v2370, %v2386
        %v2395 = vcombine.high %v2370, %v2386
        %v2396 = vcombine.low %v2377, %v2393
        %v2397 = vcombine.high %v2377, %v2393
        %v2398 = vcombine.low %v2302, %v2309
        %v2400 = vunpack.c.l.s4 1983009808
        %v2401 = vunpack.c.0.s8 %v2400
        %v2402 = vlaneseq
        %v2403 = vshrl.u32 %v2402, 7
        %v2404 = vsub.s32 %v2401, %v2403
        %v2405 = vrot.slane %v2398, %v2404
        %v2406 = vcombine.low %v2326, %v2327
        %v2408 = vunpack.c.l.s4 1983009808
        %v2409 = vunpack.c.0.s8 %v2408
        %v2410 = vlaneseq
        %v2411 = vshrl.u32 %v2410, 7
        %v2412 = vsub.s32 %v2409, %v2411
        %v2413 = vrot.slane %v2406, %v2412
        %v2414 = vcombine.low %v2318, %v2325
        %v2416 = vunpack.c.l.s4 1983009808
        %v2417 = vunpack.c.0.s8 %v2416
        %v2418 = vlaneseq
        %v2419 = vshrl.u32 %v2418, 7
        %v2420 = vsub.s32 %v2417, %v2419
        %v2421 = vrot.slane %v2414, %v2420
        %v2422 = vcombine.low %v2328, %v2329
        %v2424 = vunpack.c.l.s4 1983009808
        %v2425 = vunpack.c.0.s8 %v2424
        %v2426 = vlaneseq
        %v2427 = vshrl.u32 %v2426, 7
        %v2428 = vsub.s32 %v2425, %v2427
        %v2429 = vrot.slane %v2422, %v2428
        %v2430 = vcombine.low %v2405, %v2413
        %v2431 = vcombine.high %v2405, %v2413
        %v2433 = vunpack.c.l.s4 1934713408
        %v2434 = vunpack.c.0.s8 %v2433
        %v2435 = vlaneseq
        %v2436 = vshrl.u32 %v2435, 7
        %v2437 = vsub.s32 %v2434, %v2436
        %v2438 = vrot.slane %v2430, %v2437
        %v2440 = vunpack.c.l.s4 1934713408
        %v2441 = vunpack.c.0.s8 %v2440
        %v2442 = vlaneseq
        %v2443 = vshrl.u32 %v2442, 7
        %v2444 = vsub.s32 %v2441, %v2443
        %v2445 = vrot.slane %v2431, %v2444
        %v2446 = vcombine.low %v2421, %v2429
        %v2447 = vcombine.high %v2421, %v2429
        %v2449 = vunpack.c.l.s4 1934713408
        %v2450 = vunpack.c.0.s8 %v2449
        %v2451 = vlaneseq
        %v2452 = vshrl.u32 %v2451, 7
        %v2453 = vsub.s32 %v2450, %v2452
        %v2454 = vrot.slane %v2446, %v2453
        %v2456 = vunpack.c.l.s4 1934713408
        %v2457 = vunpack.c.0.s8 %v2456
        %v2458 = vlaneseq
        %v2459 = vshrl.u32 %v2458, 7
        %v2460 = vsub.s32 %v2457, %v2459
        %v2461 = vrot.slane %v2447, %v2460
        %v2462 = vcombine.low %v2438, %v2454
        %v2463 = vcombine.high %v2438, %v2454
        %v2464 = vcombine.low %v2445, %v2461
        %v2465 = vcombine.high %v2445, %v2461
        %2468 = vrot.lane.b32.xlu0 %v2395, 32
        %v2469 = vpop.permute.xlu0 %2468
        %2470 = vrot.lane.b32.xlu0 %v2463, 32
        %v2471 = vpop.permute.xlu0 %2470
        %2476 = vrot.lane.b32.xlu0 %v2396, 64
        %v2477 = vpop.permute.xlu0 %2476
        %2478 = vrot.lane.b32.xlu0 %v2464, 64
        %v2479 = vpop.permute.xlu0 %2478
        %2484 = vrot.lane.b32.xlu0 %v2397, 96
        %v2485 = vpop.permute.xlu0 %2484
        %2486 = vrot.lane.b32.xlu0 %v2465, 96
        %v2487 = vpop.permute.xlu0 %2486
        %v2490 = vsel %vm1736, %v2394, %v2469
        %v2491 = vsel %vm1736, %v2462, %v2471
        %vm2492 = vcmask 523264
        %v2493 = vsel %vm2492, %v2490, %v2477
        %v2494 = vsel %vm2492, %v2491, %v2479
        %vm2495 = vcmask 785408
        %v2496 = vsel %vm2495, %v2493, %v2485
        %v2497 = vsel %vm2495, %v2494, %v2487
        %v2498 = vpack.c.bf16 %v2497, %v2496
        %v2499 = vld [vmem:[#allocation10] sm:$0xf]
        %v2500 = vld [vmem:[#allocation10 + $0x4] sm:$0xf]
        %v2501 = vld [vmem:[#allocation10 + $0x8] sm:$0xf]
        %v2502 = vld [vmem:[#allocation10 + $0xc] sm:$0xf]
        %v2503 = vld [vmem:[#allocation10 + $0x10] sm:$0xf]
        %v2504 = vld [vmem:[#allocation10 + $0x14] sm:$0xf]
        %v2505 = vld [vmem:[#allocation10 + $0x18] sm:$0xf]
        %v2506 = vld [vmem:[#allocation10 + $0x1c] sm:$0xf]
        %v2507 = vld [vmem:[#allocation10 + $0x20] sm:$0xf]
        %v2508 = vld [vmem:[#allocation10 + $0x24] sm:$0xf]
        %v2509 = vld [vmem:[#allocation10 + $0x28] sm:$0xf]
        %v2510 = vld [vmem:[#allocation10 + $0x2c] sm:$0xf]
        %v2511 = vld [vmem:[#allocation10 + $0x30] sm:$0xf]
        %v2512 = vld [vmem:[#allocation10 + $0x34] sm:$0xf]
        %v2513 = vld [vmem:[#allocation10 + $0x38] sm:$0xf]
        %v2514 = vld [vmem:[#allocation10 + $0x3c] sm:$0xf]
        %v2515 = vld [vmem:[%s6] sm:$0x1]
        %v2517 = vlaneseq
        %v2518 = vshrl.u32 %v2517, 7
        %v2519 = vsub.s32 0, %v2518
        %v2520 = vrot.slane %v2515, %v2519
        %v2538 = vunpack.c.l.b16 %v2499
        %v2539 = vunpack.c.l.b16 %v2500
        %v2540 = vunpack.c.l.b16 %v2501
        %v2541 = vunpack.c.l.b16 %v2502
        %v2542 = vunpack.c.l.b16 %v2503
        %v2543 = vunpack.c.l.b16 %v2504
        %v2544 = vunpack.c.l.b16 %v2505
        %v2545 = vunpack.c.l.b16 %v2506
        %v2546 = vunpack.c.l.b16 %v2507
        %v2547 = vunpack.c.l.b16 %v2508
        %v2548 = vunpack.c.l.b16 %v2509
        %v2549 = vunpack.c.l.b16 %v2510
        %v2550 = vunpack.c.l.b16 %v2511
        %v2551 = vunpack.c.l.b16 %v2512
        %v2552 = vunpack.c.l.b16 %v2513
        %v2553 = vunpack.c.l.b16 %v2514
        %v2554 = vpack.c.b16 %v2539, %v2538
        %v2555 = vpack.c.b16 %v2541, %v2540
        %v2556 = vpack.c.b16 %v2543, %v2542
        %v2557 = vpack.c.b16 %v2545, %v2544
        %v2558 = vpack.c.b16 %v2547, %v2546
        %v2559 = vpack.c.b16 %v2549, %v2548
        %v2560 = vpack.c.b16 %v2551, %v2550
        %v2561 = vpack.c.b16 %v2553, %v2552
        %2570 = vmatprep.subr.bf16.mxu0 0
        %2571 = vmatpush1.bf16.msra.mxu0 %v2554
        %2572 = vmatprep.subr.bf16.mxu0 0
        %2573 = vmatpush1.bf16.msra.mxu0 %v2555
        %2574 = vmatprep.subr.bf16.mxu0 0
        %2575 = vmatpush1.bf16.msra.mxu0 %v2556
        %2576 = vmatprep.subr.bf16.mxu0 0
        %2577 = vmatpush1.bf16.msra.mxu0 %v2557
        %2578 = vmatprep.subr.bf16.mxu0 0
        %2579 = vmatpush1.bf16.msra.mxu0 %v2558
        %2580 = vmatprep.subr.bf16.mxu0 0
        %2581 = vmatpush1.bf16.msra.mxu0 %v2559
        %2582 = vmatprep.subr.bf16.mxu0 0
        %2583 = vmatpush1.bf16.msra.mxu0 %v2560
        %2584 = vmatprep.subr.bf16.mxu0 0
        %2585 = vmatpush1.bf16.msra.mxu0 %v2561
        %2586 = vmatprep.subr.bf16.mxu0 0
        %2587 = vmatpush1.bf16.msra.mxu0 0
        %2588 = vmatprep.subr.bf16.mxu0 0
        %2589 = vmatpush1.bf16.msra.mxu0 0
        %2590 = vmatprep.subr.bf16.mxu0 0
        %2591 = vmatpush1.bf16.msra.mxu0 0
        %2592 = vmatprep.subr.bf16.mxu0 0
        %2593 = vmatpush1.bf16.msra.mxu0 0
        %2594 = vmatprep.subr.bf16.mxu0 0
        %2595 = vmatpush1.bf16.msra.mxu0 0
        %2596 = vmatprep.subr.bf16.mxu0 0
        %2597 = vmatpush1.bf16.msra.mxu0 0
        %2598 = vmatprep.subr.bf16.mxu0 0
        %2599 = vmatpush1.bf16.msra.mxu0 0
        %2600 = vmatprep.subr.bf16.mxu0 0
        %2601 = vmatpush1.bf16.msra.mxu0 0
        %2602 = vmatprep.mubr.bf16.mxu0 0
        %2603 = vmatmul.mubr.bf16.gmra.mrb[0].mxu0 %v2498
        %v2604 = vpop.f32.mrb[0].mxu0
        %v2605 = vadd.f32 %v2520, %v2604
        %v2606 = vpop.f32.mrb[0].mxu0
        %v2607 = vpop.f32.mrb[0].mxu0
        %v2608 = vadd.f32 %v2520, %v2607
        %v2609 = vpop.f32.mrb[0].mxu0
        %2610 = vdwg.mxu0
        %v2611 = vadd.f32 %v543, %v2605
        %v2612 = vadd.f32 %v544, %v2608
        %v2613 = vld [vmem:[%s7] sm:$0x1]
        %v2614 = vld [vmem:[%s8] sm:$0x1]
        %2615 = vadd.xlane.f32.xlu0 %v2611
        %v2616 = vpop.xlane.xlu0 %2615
        %2617 = vadd.xlane.f32.xlu0 %v2612
        %v2618 = vpop.xlane.xlu0 %2617
        %v2619 = vmul.f32 %v2616, %v551
        %v2620 = vmul.f32 %v2618, %v551
        %v2621 = vsub.f32 %v2611, %v2619
        %v2622 = vsub.f32 %v2612, %v2620
        %v2623 = vmul.f32 %v2621, %v2621
        %v2624 = vmul.f32 %v2622, %v2622
        %2625 = vadd.xlane.f32.xlu0 %v2623
        %v2626 = vpop.xlane.xlu0 %2625
        %2627 = vadd.xlane.f32.xlu0 %v2624
        %v2628 = vpop.xlane.xlu0 %2627
        %v2629 = vmul.f32 %v2626, %v551
        %v2630 = vmul.f32 %v2628, %v551
        %v2631 = vadd.f32 %v2629, 1e-05
        %v2632 = vadd.f32 %v2630, 1e-05
        %v2633 = vrsqrt.pop %v2631
        %v2634 = vrsqrt.pop %v2632
        %v2635 = vmul.f32 %v2621, %v2633
        %v2636 = vmul.f32 %v2622, %v2634
        %v2638 = vlaneseq
        %v2639 = vshrl.u32 %v2638, 7
        %v2640 = vsub.s32 0, %v2639
        %v2641 = vrot.slane %v2613, %v2640
        %v2643 = vmul.f32 %v2635, %v2641
        %v2644 = vmul.f32 %v2636, %v2641
        %v2646 = vlaneseq
        %v2647 = vshrl.u32 %v2646, 7
        %v2648 = vsub.s32 0, %v2647
        %v2649 = vrot.slane %v2614, %v2648
        %v2651 = vadd.f32 %v2643, %v2649
        %v2652 = vadd.f32 %v2644, %v2649
        %v2653 = vpack.c.bf16 %v2652, %v2651
        %v2654 = vld [vmem:[#allocation11] sm:$0xff]
        %v2655 = vld [vmem:[#allocation11 + $0x8] sm:$0xff]
        %v2656 = vld [vmem:[#allocation11 + $0x10] sm:$0xff]
        %v2657 = vld [vmem:[#allocation11 + $0x18] sm:$0xff]
        %v2658 = vld [vmem:[#allocation11 + $0x20] sm:$0xff]
        %v2659 = vld [vmem:[#allocation11 + $0x28] sm:$0xff]
        %v2660 = vld [vmem:[#allocation11 + $0x30] sm:$0xff]
        %v2661 = vld [vmem:[#allocation11 + $0x38] sm:$0xff]
        %v2662 = vld [vmem:[#allocation11 + $0x40] sm:$0xff]
        %v2663 = vld [vmem:[#allocation11 + $0x48] sm:$0xff]
        %v2664 = vld [vmem:[#allocation11 + $0x50] sm:$0xff]
        %v2665 = vld [vmem:[#allocation11 + $0x58] sm:$0xff]
        %v2666 = vld [vmem:[#allocation11 + $0x60] sm:$0xff]
        %v2667 = vld [vmem:[#allocation11 + $0x68] sm:$0xff]
        %v2668 = vld [vmem:[#allocation11 + $0x70] sm:$0xff]
        %v2669 = vld [vmem:[#allocation11 + $0x78] sm:$0xff]
        %v2670 = vld [vmem:[#allocation11 + $0x80] sm:$0xff]
        %v2671 = vld [vmem:[#allocation11 + $0x88] sm:$0xff]
        %v2672 = vld [vmem:[#allocation11 + $0x90] sm:$0xff]
        %v2673 = vld [vmem:[#allocation11 + $0x98] sm:$0xff]
        %v2674 = vld [vmem:[#allocation11 + $0xa0] sm:$0xff]
        %v2675 = vld [vmem:[#allocation11 + $0xa8] sm:$0xff]
        %v2676 = vld [vmem:[#allocation11 + $0xb0] sm:$0xff]
        %v2677 = vld [vmem:[#allocation11 + $0xb8] sm:$0xff]
        %v2678 = vld [vmem:[#allocation11 + $0xc0] sm:$0xff]
        %v2679 = vld [vmem:[#allocation11 + $0xc8] sm:$0xff]
        %v2680 = vld [vmem:[#allocation11 + $0xd0] sm:$0xff]
        %v2681 = vld [vmem:[#allocation11 + $0xd8] sm:$0xff]
        %v2682 = vld [vmem:[#allocation11 + $0xe0] sm:$0xff]
        %v2683 = vld [vmem:[#allocation11 + $0xe8] sm:$0xff]
        %v2684 = vld [vmem:[#allocation11 + $0xf0] sm:$0xff]
        %v2685 = vld [vmem:[#allocation11 + $0xf8] sm:$0xff]
        %v2686 = vld [vmem:[%s10] sm:$0xf]
        %v2688 = vlaneseq
        %v2689 = vshrl.u32 %v2688, 7
        %v2690 = vsub.s32 0, %v2689
        %v2691 = vrot.slane %v2686, %v2690
        %v2692 = vlaneseq
        %v2693 = vshrl.u32 %v2692, 7
        %v2694 = vsub.s32 1, %v2693
        %v2695 = vrot.slane %v2686, %v2694
        %v2696 = vlaneseq
        %v2697 = vshrl.u32 %v2696, 7
        %v2698 = vsub.s32 2, %v2697
        %v2699 = vrot.slane %v2686, %v2698
        %v2700 = vlaneseq
        %v2701 = vshrl.u32 %v2700, 7
        %v2702 = vsub.s32 3, %v2701
        %v2703 = vrot.slane %v2686, %v2702
        %v2740 = vunpack.c.l.b16 %v2654
        %v2741 = vunpack.c.h.b16 %v2654
        %v2742 = vunpack.c.l.b16 %v2655
        %v2743 = vunpack.c.h.b16 %v2655
        %v2744 = vunpack.c.l.b16 %v2656
        %v2745 = vunpack.c.h.b16 %v2656
        %v2746 = vunpack.c.l.b16 %v2657
        %v2747 = vunpack.c.h.b16 %v2657
        %v2748 = vunpack.c.l.b16 %v2658
        %v2749 = vunpack.c.h.b16 %v2658
        %v2750 = vunpack.c.l.b16 %v2659
        %v2751 = vunpack.c.h.b16 %v2659
        %v2752 = vunpack.c.l.b16 %v2660
        %v2753 = vunpack.c.h.b16 %v2660
        %v2754 = vunpack.c.l.b16 %v2661
        %v2755 = vunpack.c.h.b16 %v2661
        %v2756 = vunpack.c.l.b16 %v2662
        %v2757 = vunpack.c.h.b16 %v2662
        %v2758 = vunpack.c.l.b16 %v2663
        %v2759 = vunpack.c.h.b16 %v2663
        %v2760 = vunpack.c.l.b16 %v2664
        %v2761 = vunpack.c.h.b16 %v2664
        %v2762 = vunpack.c.l.b16 %v2665
        %v2763 = vunpack.c.h.b16 %v2665
        %v2764 = vunpack.c.l.b16 %v2666
        %v2765 = vunpack.c.h.b16 %v2666
        %v2766 = vunpack.c.l.b16 %v2667
        %v2767 = vunpack.c.h.b16 %v2667
        %v2768 = vunpack.c.l.b16 %v2668
        %v2769 = vunpack.c.h.b16 %v2668
        %v2770 = vunpack.c.l.b16 %v2669
        %v2771 = vunpack.c.h.b16 %v2669
        %v2772 = vunpack.c.l.b16 %v2670
        %v2773 = vunpack.c.h.b16 %v2670
        %v2774 = vunpack.c.l.b16 %v2671
        %v2775 = vunpack.c.h.b16 %v2671
        %v2776 = vunpack.c.l.b16 %v2672
        %v2777 = vunpack.c.h.b16 %v2672
        %v2778 = vunpack.c.l.b16 %v2673
        %v2779 = vunpack.c.h.b16 %v2673
        %v2780 = vunpack.c.l.b16 %v2674
        %v2781 = vunpack.c.h.b16 %v2674
        %v2782 = vunpack.c.l.b16 %v2675
        %v2783 = vunpack.c.h.b16 %v2675
        %v2784 = vunpack.c.l.b16 %v2676
        %v2785 = vunpack.c.h.b16 %v2676
        %v2786 = vunpack.c.l.b16 %v2677
        %v2787 = vunpack.c.h.b16 %v2677
        %v2788 = vunpack.c.l.b16 %v2678
        %v2789 = vunpack.c.h.b16 %v2678
        %v2790 = vunpack.c.l.b16 %v2679
        %v2791 = vunpack.c.h.b16 %v2679
        %v2792 = vunpack.c.l.b16 %v2680
        %v2793 = vunpack.c.h.b16 %v2680
        %v2794 = vunpack.c.l.b16 %v2681
        %v2795 = vunpack.c.h.b16 %v2681
        %v2796 = vunpack.c.l.b16 %v2682
        %v2797 = vunpack.c.h.b16 %v2682
        %v2798 = vunpack.c.l.b16 %v2683
        %v2799 = vunpack.c.h.b16 %v2683
        %v2800 = vunpack.c.l.b16 %v2684
        %v2801 = vunpack.c.h.b16 %v2684
        %v2802 = vunpack.c.l.b16 %v2685
        %v2803 = vunpack.c.h.b16 %v2685
        %v2804 = vpack.c.b16 %v2744, %v2740
        %v2805 = vpack.c.b16 %v2745, %v2741
        %v2806 = vpack.c.b16 %v2746, %v2742
        %v2807 = vpack.c.b16 %v2747, %v2743
        %v2808 = vpack.c.b16 %v2752, %v2748
        %v2809 = vpack.c.b16 %v2753, %v2749
        %v2810 = vpack.c.b16 %v2754, %v2750
        %v2811 = vpack.c.b16 %v2755, %v2751
        %v2812 = vpack.c.b16 %v2760, %v2756
        %v2813 = vpack.c.b16 %v2761, %v2757
        %v2814 = vpack.c.b16 %v2762, %v2758
        %v2815 = vpack.c.b16 %v2763, %v2759
        %v2816 = vpack.c.b16 %v2768, %v2764
        %v2817 = vpack.c.b16 %v2769, %v2765
        %v2818 = vpack.c.b16 %v2770, %v2766
        %v2819 = vpack.c.b16 %v2771, %v2767
        %v2820 = vpack.c.b16 %v2776, %v2772
        %v2821 = vpack.c.b16 %v2777, %v2773
        %v2822 = vpack.c.b16 %v2778, %v2774
        %v2823 = vpack.c.b16 %v2779, %v2775
        %v2824 = vpack.c.b16 %v2784, %v2780
        %v2825 = vpack.c.b16 %v2785, %v2781
        %v2826 = vpack.c.b16 %v2786, %v2782
        %v2827 = vpack.c.b16 %v2787, %v2783
        %v2828 = vpack.c.b16 %v2792, %v2788
        %v2829 = vpack.c.b16 %v2793, %v2789
        %v2830 = vpack.c.b16 %v2794, %v2790
        %v2831 = vpack.c.b16 %v2795, %v2791
        %v2832 = vpack.c.b16 %v2800, %v2796
        %v2833 = vpack.c.b16 %v2801, %v2797
        %v2834 = vpack.c.b16 %v2802, %v2798
        %v2835 = vpack.c.b16 %v2803, %v2799
        %2868 = vmatprep.subr.bf16.mxu0 %v2805
        %2869 = vmatpush1.bf16.msra.mxu0 %v2804
        %2870 = vmatprep.subr.bf16.mxu0 %v2809
        %2871 = vmatpush1.bf16.msra.mxu0 %v2808
        %2872 = vmatprep.subr.bf16.mxu0 %v2813
        %2873 = vmatpush1.bf16.msra.mxu0 %v2812
        %2874 = vmatprep.subr.bf16.mxu0 %v2817
        %2875 = vmatpush1.bf16.msra.mxu0 %v2816
        %2876 = vmatprep.subr.bf16.mxu0 %v2821
        %2877 = vmatpush1.bf16.msra.mxu0 %v2820
        %2878 = vmatprep.subr.bf16.mxu0 %v2825
        %2879 = vmatpush1.bf16.msra.mxu0 %v2824
        %2880 = vmatprep.subr.bf16.mxu0 %v2829
        %2881 = vmatpush1.bf16.msra.mxu0 %v2828
        %2882 = vmatprep.subr.bf16.mxu0 %v2833
        %2883 = vmatpush1.bf16.msra.mxu0 %v2832
        %2884 = vmatprep.subr.bf16.mxu0 0
        %2885 = vmatpush1.bf16.msra.mxu0 0
        %2886 = vmatprep.subr.bf16.mxu0 0
        %2887 = vmatpush1.bf16.msra.mxu0 0
        %2888 = vmatprep.subr.bf16.mxu0 0
        %2889 = vmatpush1.bf16.msra.mxu0 0
        %2890 = vmatprep.subr.bf16.mxu0 0
        %2891 = vmatpush1.bf16.msra.mxu0 0
        %2892 = vmatprep.subr.bf16.mxu0 0
        %2893 = vmatpush1.bf16.msra.mxu0 0
        %2894 = vmatprep.subr.bf16.mxu0 0
        %2895 = vmatpush1.bf16.msra.mxu0 0
        %2896 = vmatprep.subr.bf16.mxu0 0
        %2897 = vmatpush1.bf16.msra.mxu0 0
        %2898 = vmatprep.subr.bf16.mxu0 0
        %2899 = vmatpush1.bf16.msra.mxu0 0
        %2900 = vmatprep.mubr.bf16.mxu0 0
        %2901 = vmatmul.mubr.bf16.gmra.mrb[0].mxu0 %v2653
        %v2902 = vpop.f32.mrb[0].mxu0
        %v2903 = vadd.f32 %v2691, %v2902
        %v2904 = vpop.f32.mrb[0].mxu0
        %v2905 = vadd.f32 %v2695, %v2904
        %v2906 = vpop.f32.mrb[0].mxu0
        %v2907 = vadd.f32 %v2691, %v2906
        %v2908 = vpop.f32.mrb[0].mxu0
        %v2909 = vadd.f32 %v2695, %v2908
        %2910 = vdwg.mxu0
        %2911 = vmatprep.subr.bf16.mxu0 %v2807
        %2912 = vmatpush1.bf16.msra.mxu0 %v2806
        %2913 = vmatprep.subr.bf16.mxu0 %v2811
        %2914 = vmatpush1.bf16.msra.mxu0 %v2810
        %2915 = vmatprep.subr.bf16.mxu0 %v2815
        %2916 = vmatpush1.bf16.msra.mxu0 %v2814
        %2917 = vmatprep.subr.bf16.mxu0 %v2819
        %2918 = vmatpush1.bf16.msra.mxu0 %v2818
        %2919 = vmatprep.subr.bf16.mxu0 %v2823
        %2920 = vmatpush1.bf16.msra.mxu0 %v2822
        %2921 = vmatprep.subr.bf16.mxu0 %v2827
        %2922 = vmatpush1.bf16.msra.mxu0 %v2826
        %2923 = vmatprep.subr.bf16.mxu0 %v2831
        %2924 = vmatpush1.bf16.msra.mxu0 %v2830
        %2925 = vmatprep.subr.bf16.mxu0 %v2835
        %2926 = vmatpush1.bf16.msra.mxu0 %v2834
        %2927 = vmatprep.subr.bf16.mxu0 0
        %2928 = vmatpush1.bf16.msra.mxu0 0
        %2929 = vmatprep.subr.bf16.mxu0 0
        %2930 = vmatpush1.bf16.msra.mxu0 0
        %2931 = vmatprep.subr.bf16.mxu0 0
        %2932 = vmatpush1.bf16.msra.mxu0 0
        %2933 = vmatprep.subr.bf16.mxu0 0
        %2934 = vmatpush1.bf16.msra.mxu0 0
        %2935 = vmatprep.subr.bf16.mxu0 0
        %2936 = vmatpush1.bf16.msra.mxu0 0
        %2937 = vmatprep.subr.bf16.mxu0 0
        %2938 = vmatpush1.bf16.msra.mxu0 0
        %2939 = vmatprep.subr.bf16.mxu0 0
        %2940 = vmatpush1.bf16.msra.mxu0 0
        %2941 = vmatprep.subr.bf16.mxu0 0
        %2942 = vmatpush1.bf16.msra.mxu0 0
        %2943 = vmatprep.mubr.bf16.mxu0 0
        %2944 = vmatmul.mubr.bf16.gmra.mrb[0].mxu0 %v2653
        %v2945 = vpop.f32.mrb[0].mxu0
        %v2946 = vadd.f32 %v2699, %v2945
        %v2947 = vpop.f32.mrb[0].mxu0
        %v2948 = vadd.f32 %v2703, %v2947
        %v2949 = vpop.f32.mrb[0].mxu0
        %v2950 = vadd.f32 %v2699, %v2949
        %v2951 = vpop.f32.mrb[0].mxu0
        %v2952 = vadd.f32 %v2703, %v2951
        %2953 = vdwg.mxu0
        %v2954 = vmul.f32 %v2903, 0.5
        %v2955 = vmul.f32 %v2905, 0.5
        %v2956 = vmul.f32 %v2946, 0.5
        %v2957 = vmul.f32 %v2948, 0.5
        %v2958 = vmul.f32 %v2907, 0.5
        %v2959 = vmul.f32 %v2909, 0.5
        %v2960 = vmul.f32 %v2950, 0.5
        %v2961 = vmul.f32 %v2952, 0.5
        %v2962 = vmul.f32 %v2903, 0.70710677
        %v2963 = vmul.f32 %v2905, 0.70710677
        %v2964 = vmul.f32 %v2946, 0.70710677
        %v2965 = vmul.f32 %v2948, 0.70710677
        %v2966 = vmul.f32 %v2907, 0.70710677
        %v2967 = vmul.f32 %v2909, 0.70710677
        %v2968 = vmul.f32 %v2950, 0.70710677
        %v2969 = vmul.f32 %v2952, 0.70710677
        %v2970 = verf.f32.pop %v2962
        %v2971 = verf.f32.pop %v2963
        %v2972 = verf.f32.pop %v2964
        %v2973 = verf.f32.pop %v2965
        %v2974 = verf.f32.pop %v2966
        %v2975 = verf.f32.pop %v2967
        %v2976 = verf.f32.pop %v2968
        %v2977 = verf.f32.pop %v2969
        %v2978 = vadd.f32 %v2970, 1.0
        %v2979 = vadd.f32 %v2971, 1.0
        %v2980 = vadd.f32 %v2972, 1.0
        %v2981 = vadd.f32 %v2973, 1.0
        %v2982 = vadd.f32 %v2974, 1.0
        %v2983 = vadd.f32 %v2975, 1.0
        %v2984 = vadd.f32 %v2976, 1.0
        %v2985 = vadd.f32 %v2977, 1.0
        %v2986 = vmul.f32 %v2954, %v2978
        %v2987 = vmul.f32 %v2955, %v2979
        %v2988 = vmul.f32 %v2956, %v2980
        %v2989 = vmul.f32 %v2957, %v2981
        %v2990 = vmul.f32 %v2958, %v2982
        %v2991 = vmul.f32 %v2959, %v2983
        %v2992 = vmul.f32 %v2960, %v2984
        %v2993 = vmul.f32 %v2961, %v2985
        %v2994 = vpack.c.bf16 %v2990, %v2986
        %v2995 = vpack.c.bf16 %v2991, %v2987
        %v2996 = vpack.c.bf16 %v2992, %v2988
        %v2997 = vpack.c.bf16 %v2993, %v2989
        %v2998 = vld [vmem:[#allocation13] sm:$0xf]
        %v2999 = vld [vmem:[#allocation13 + $0x4] sm:$0xf]
        %v3000 = vld [vmem:[#allocation13 + $0x8] sm:$0xf]
        %v3001 = vld [vmem:[#allocation13 + $0xc] sm:$0xf]
        %v3002 = vld [vmem:[#allocation13 + $0x10] sm:$0xf]
        %v3003 = vld [vmem:[#allocation13 + $0x14] sm:$0xf]
        %v3004 = vld [vmem:[#allocation13 + $0x18] sm:$0xf]
        %v3005 = vld [vmem:[#allocation13 + $0x1c] sm:$0xf]
        %v3006 = vld [vmem:[#allocation13 + $0x20] sm:$0xf]
        %v3007 = vld [vmem:[#allocation13 + $0x24] sm:$0xf]
        %v3008 = vld [vmem:[#allocation13 + $0x28] sm:$0xf]
        %v3009 = vld [vmem:[#allocation13 + $0x2c] sm:$0xf]
        %v3010 = vld [vmem:[#allocation13 + $0x30] sm:$0xf]
        %v3011 = vld [vmem:[#allocation13 + $0x34] sm:$0xf]
        %v3012 = vld [vmem:[#allocation13 + $0x38] sm:$0xf]
        %v3013 = vld [vmem:[#allocation13 + $0x3c] sm:$0xf]
        %v3014 = vld [vmem:[#allocation13 + $0x40] sm:$0xf]
        %v3015 = vld [vmem:[#allocation13 + $0x44] sm:$0xf]
        %v3016 = vld [vmem:[#allocation13 + $0x48] sm:$0xf]
        %v3017 = vld [vmem:[#allocation13 + $0x4c] sm:$0xf]
        %v3018 = vld [vmem:[#allocation13 + $0x50] sm:$0xf]
        %v3019 = vld [vmem:[#allocation13 + $0x54] sm:$0xf]
        %v3020 = vld [vmem:[#allocation13 + $0x58] sm:$0xf]
        %v3021 = vld [vmem:[#allocation13 + $0x5c] sm:$0xf]
        %v3022 = vld [vmem:[#allocation13 + $0x60] sm:$0xf]
        %v3023 = vld [vmem:[#allocation13 + $0x64] sm:$0xf]
        %v3024 = vld [vmem:[#allocation13 + $0x68] sm:$0xf]
        %v3025 = vld [vmem:[#allocation13 + $0x6c] sm:$0xf]
        %v3026 = vld [vmem:[#allocation13 + $0x70] sm:$0xf]
        %v3027 = vld [vmem:[#allocation13 + $0x74] sm:$0xf]
        %v3028 = vld [vmem:[#allocation13 + $0x78] sm:$0xf]
        %v3029 = vld [vmem:[#allocation13 + $0x7c] sm:$0xf]
        %v3030 = vld [vmem:[#allocation13 + $0x80] sm:$0xf]
        %v3031 = vld [vmem:[#allocation13 + $0x84] sm:$0xf]
        %v3032 = vld [vmem:[#allocation13 + $0x88] sm:$0xf]
        %v3033 = vld [vmem:[#allocation13 + $0x8c] sm:$0xf]
        %v3034 = vld [vmem:[#allocation13 + $0x90] sm:$0xf]
        %v3035 = vld [vmem:[#allocation13 + $0x94] sm:$0xf]
        %v3036 = vld [vmem:[#allocation13 + $0x98] sm:$0xf]
        %v3037 = vld [vmem:[#allocation13 + $0x9c] sm:$0xf]
        %v3038 = vld [vmem:[#allocation13 + $0xa0] sm:$0xf]
        %v3039 = vld [vmem:[#allocation13 + $0xa4] sm:$0xf]
        %v3040 = vld [vmem:[#allocation13 + $0xa8] sm:$0xf]
        %v3041 = vld [vmem:[#allocation13 + $0xac] sm:$0xf]
        %v3042 = vld [vmem:[#allocation13 + $0xb0] sm:$0xf]
        %v3043 = vld [vmem:[#allocation13 + $0xb4] sm:$0xf]
        %v3044 = vld [vmem:[#allocation13 + $0xb8] sm:$0xf]
        %v3045 = vld [vmem:[#allocation13 + $0xbc] sm:$0xf]
        %v3046 = vld [vmem:[#allocation13 + $0xc0] sm:$0xf]
        %v3047 = vld [vmem:[#allocation13 + $0xc4] sm:$0xf]
        %v3048 = vld [vmem:[#allocation13 + $0xc8] sm:$0xf]
        %v3049 = vld [vmem:[#allocation13 + $0xcc] sm:$0xf]
        %v3050 = vld [vmem:[#allocation13 + $0xd0] sm:$0xf]
        %v3051 = vld [vmem:[#allocation13 + $0xd4] sm:$0xf]
        %v3052 = vld [vmem:[#allocation13 + $0xd8] sm:$0xf]
        %v3053 = vld [vmem:[#allocation13 + $0xdc] sm:$0xf]
        %v3054 = vld [vmem:[#allocation13 + $0xe0] sm:$0xf]
        %v3055 = vld [vmem:[#allocation13 + $0xe4] sm:$0xf]
        %v3056 = vld [vmem:[#allocation13 + $0xe8] sm:$0xf]
        %v3057 = vld [vmem:[#allocation13 + $0xec] sm:$0xf]
        %v3058 = vld [vmem:[#allocation13 + $0xf0] sm:$0xf]
        %v3059 = vld [vmem:[#allocation13 + $0xf4] sm:$0xf]
        %v3060 = vld [vmem:[#allocation13 + $0xf8] sm:$0xf]
        %v3061 = vld [vmem:[#allocation13 + $0xfc] sm:$0xf]
        %v3062 = vld [vmem:[%s12] sm:$0x1]
        %v3064 = vlaneseq
        %v3065 = vshrl.u32 %v3064, 7
        %v3066 = vsub.s32 0, %v3065
        %v3067 = vrot.slane %v3062, %v3066
        %v3133 = vunpack.c.l.b16 %v2998
        %v3134 = vunpack.c.l.b16 %v2999
        %v3135 = vunpack.c.l.b16 %v3000
        %v3136 = vunpack.c.l.b16 %v3001
        %v3137 = vunpack.c.l.b16 %v3002
        %v3138 = vunpack.c.l.b16 %v3003
        %v3139 = vunpack.c.l.b16 %v3004
        %v3140 = vunpack.c.l.b16 %v3005
        %v3141 = vunpack.c.l.b16 %v3006
        %v3142 = vunpack.c.l.b16 %v3007
        %v3143 = vunpack.c.l.b16 %v3008
        %v3144 = vunpack.c.l.b16 %v3009
        %v3145 = vunpack.c.l.b16 %v3010
        %v3146 = vunpack.c.l.b16 %v3011
        %v3147 = vunpack.c.l.b16 %v3012
        %v3148 = vunpack.c.l.b16 %v3013
        %v3149 = vunpack.c.l.b16 %v3014
        %v3150 = vunpack.c.l.b16 %v3015
        %v3151 = vunpack.c.l.b16 %v3016
        %v3152 = vunpack.c.l.b16 %v3017
        %v3153 = vunpack.c.l.b16 %v3018
        %v3154 = vunpack.c.l.b16 %v3019
        %v3155 = vunpack.c.l.b16 %v3020
        %v3156 = vunpack.c.l.b16 %v3021
        %v3157 = vunpack.c.l.b16 %v3022
        %v3158 = vunpack.c.l.b16 %v3023
        %v3159 = vunpack.c.l.b16 %v3024
        %v3160 = vunpack.c.l.b16 %v3025
        %v3161 = vunpack.c.l.b16 %v3026
        %v3162 = vunpack.c.l.b16 %v3027
        %v3163 = vunpack.c.l.b16 %v3028
        %v3164 = vunpack.c.l.b16 %v3029
        %v3165 = vunpack.c.l.b16 %v3030
        %v3166 = vunpack.c.l.b16 %v3031
        %v3167 = vunpack.c.l.b16 %v3032
        %v3168 = vunpack.c.l.b16 %v3033
        %v3169 = vunpack.c.l.b16 %v3034
        %v3170 = vunpack.c.l.b16 %v3035
        %v3171 = vunpack.c.l.b16 %v3036
        %v3172 = vunpack.c.l.b16 %v3037
        %v3173 = vunpack.c.l.b16 %v3038
        %v3174 = vunpack.c.l.b16 %v3039
        %v3175 = vunpack.c.l.b16 %v3040
        %v3176 = vunpack.c.l.b16 %v3041
        %v3177 = vunpack.c.l.b16 %v3042
        %v3178 = vunpack.c.l.b16 %v3043
        %v3179 = vunpack.c.l.b16 %v3044
        %v3180 = vunpack.c.l.b16 %v3045
        %v3181 = vunpack.c.l.b16 %v3046
        %v3182 = vunpack.c.l.b16 %v3047
        %v3183 = vunpack.c.l.b16 %v3048
        %v3184 = vunpack.c.l.b16 %v3049
        %v3185 = vunpack.c.l.b16 %v3050
        %v3186 = vunpack.c.l.b16 %v3051
        %v3187 = vunpack.c.l.b16 %v3052
        %v3188 = vunpack.c.l.b16 %v3053
        %v3189 = vunpack.c.l.b16 %v3054
        %v3190 = vunpack.c.l.b16 %v3055
        %v3191 = vunpack.c.l.b16 %v3056
        %v3192 = vunpack.c.l.b16 %v3057
        %v3193 = vunpack.c.l.b16 %v3058
        %v3194 = vunpack.c.l.b16 %v3059
        %v3195 = vunpack.c.l.b16 %v3060
        %v3196 = vunpack.c.l.b16 %v3061
        %v3197 = vpack.c.b16 %v3134, %v3133
        %v3198 = vpack.c.b16 %v3136, %v3135
        %v3199 = vpack.c.b16 %v3138, %v3137
        %v3200 = vpack.c.b16 %v3140, %v3139
        %v3201 = vpack.c.b16 %v3142, %v3141
        %v3202 = vpack.c.b16 %v3144, %v3143
        %v3203 = vpack.c.b16 %v3146, %v3145
        %v3204 = vpack.c.b16 %v3148, %v3147
        %v3205 = vpack.c.b16 %v3150, %v3149
        %v3206 = vpack.c.b16 %v3152, %v3151
        %v3207 = vpack.c.b16 %v3154, %v3153
        %v3208 = vpack.c.b16 %v3156, %v3155
        %v3209 = vpack.c.b16 %v3158, %v3157
        %v3210 = vpack.c.b16 %v3160, %v3159
        %v3211 = vpack.c.b16 %v3162, %v3161
        %v3212 = vpack.c.b16 %v3164, %v3163
        %v3213 = vpack.c.b16 %v3166, %v3165
        %v3214 = vpack.c.b16 %v3168, %v3167
        %v3215 = vpack.c.b16 %v3170, %v3169
        %v3216 = vpack.c.b16 %v3172, %v3171
        %v3217 = vpack.c.b16 %v3174, %v3173
        %v3218 = vpack.c.b16 %v3176, %v3175
        %v3219 = vpack.c.b16 %v3178, %v3177
        %v3220 = vpack.c.b16 %v3180, %v3179
        %v3221 = vpack.c.b16 %v3182, %v3181
        %v3222 = vpack.c.b16 %v3184, %v3183
        %v3223 = vpack.c.b16 %v3186, %v3185
        %v3224 = vpack.c.b16 %v3188, %v3187
        %v3225 = vpack.c.b16 %v3190, %v3189
        %v3226 = vpack.c.b16 %v3192, %v3191
        %v3227 = vpack.c.b16 %v3194, %v3193
        %v3228 = vpack.c.b16 %v3196, %v3195
        %3261 = vmatprep.subr.bf16.mxu0 0
        %3262 = vmatpush1.bf16.msra.mxu0 %v3197
        %3263 = vmatprep.subr.bf16.mxu0 0
        %3264 = vmatpush1.bf16.msra.mxu0 %v3198
        %3265 = vmatprep.subr.bf16.mxu0 0
        %3266 = vmatpush1.bf16.msra.mxu0 %v3199
        %3267 = vmatprep.subr.bf16.mxu0 0
        %3268 = vmatpush1.bf16.msra.mxu0 %v3200
        %3269 = vmatprep.subr.bf16.mxu0 0
        %3270 = vmatpush1.bf16.msra.mxu0 %v3201
        %3271 = vmatprep.subr.bf16.mxu0 0
        %3272 = vmatpush1.bf16.msra.mxu0 %v3202
        %3273 = vmatprep.subr.bf16.mxu0 0
        %3274 = vmatpush1.bf16.msra.mxu0 %v3203
        %3275 = vmatprep.subr.bf16.mxu0 0
        %3276 = vmatpush1.bf16.msra.mxu0 %v3204
        %3277 = vmatprep.subr.bf16.mxu0 0
        %3278 = vmatpush1.bf16.msra.mxu0 %v3205
        %3279 = vmatprep.subr.bf16.mxu0 0
        %3280 = vmatpush1.bf16.msra.mxu0 %v3206
        %3281 = vmatprep.subr.bf16.mxu0 0
        %3282 = vmatpush1.bf16.msra.mxu0 %v3207
        %3283 = vmatprep.subr.bf16.mxu0 0
        %3284 = vmatpush1.bf16.msra.mxu0 %v3208
        %3285 = vmatprep.subr.bf16.mxu0 0
        %3286 = vmatpush1.bf16.msra.mxu0 %v3209
        %3287 = vmatprep.subr.bf16.mxu0 0
        %3288 = vmatpush1.bf16.msra.mxu0 %v3210
        %3289 = vmatprep.subr.bf16.mxu0 0
        %3290 = vmatpush1.bf16.msra.mxu0 %v3211
        %3291 = vmatprep.subr.bf16.mxu0 0
        %3292 = vmatpush1.bf16.msra.mxu0 %v3212
        %3293 = vmatprep.mubr.bf16.mxu0 %v2995
        %3294 = vmatmul.mubr.bf16.gmra.mrb[0].mxu0 %v2994
        %v3295 = vpop.f32.mrb[0].mxu0
        %v3296 = vadd.f32 %v3067, %v3295
        %v3297 = vpop.f32.mrb[0].mxu0
        %v3298 = vpop.f32.mrb[0].mxu0
        %v3299 = vadd.f32 %v3067, %v3298
        %v3300 = vpop.f32.mrb[0].mxu0
        %3301 = vdwg.mxu0
        %3302 = vmatprep.subr.bf16.mxu0 0
        %3303 = vmatpush1.bf16.msra.mxu0 %v3213
        %3304 = vmatprep.subr.bf16.mxu0 0
        %3305 = vmatpush1.bf16.msra.mxu0 %v3214
        %3306 = vmatprep.subr.bf16.mxu0 0
        %3307 = vmatpush1.bf16.msra.mxu0 %v3215
        %3308 = vmatprep.subr.bf16.mxu0 0
        %3309 = vmatpush1.bf16.msra.mxu0 %v3216
        %3310 = vmatprep.subr.bf16.mxu0 0
        %3311 = vmatpush1.bf16.msra.mxu0 %v3217
        %3312 = vmatprep.subr.bf16.mxu0 0
        %3313 = vmatpush1.bf16.msra.mxu0 %v3218
        %3314 = vmatprep.subr.bf16.mxu0 0
        %3315 = vmatpush1.bf16.msra.mxu0 %v3219
        %3316 = vmatprep.subr.bf16.mxu0 0
        %3317 = vmatpush1.bf16.msra.mxu0 %v3220
        %3318 = vmatprep.subr.bf16.mxu0 0
        %3319 = vmatpush1.bf16.msra.mxu0 %v3221
        %3320 = vmatprep.subr.bf16.mxu0 0
        %3321 = vmatpush1.bf16.msra.mxu0 %v3222
        %3322 = vmatprep.subr.bf16.mxu0 0
        %3323 = vmatpush1.bf16.msra.mxu0 %v3223
        %3324 = vmatprep.subr.bf16.mxu0 0
        %3325 = vmatpush1.bf16.msra.mxu0 %v3224
        %3326 = vmatprep.subr.bf16.mxu0 0
        %3327 = vmatpush1.bf16.msra.mxu0 %v3225
        %3328 = vmatprep.subr.bf16.mxu0 0
        %3329 = vmatpush1.bf16.msra.mxu0 %v3226
        %3330 = vmatprep.subr.bf16.mxu0 0
        %3331 = vmatpush1.bf16.msra.mxu0 %v3227
        %3332 = vmatprep.subr.bf16.mxu0 0
        %3333 = vmatpush1.bf16.msra.mxu0 %v3228
        %3334 = vmatprep.mubr.bf16.mxu0 %v2997
        %3335 = vmatmul.mubr.bf16.gmra.mrb[0].mxu0 %v2996
        %v3336 = vpop.f32.mrb[0].mxu0
        %v3337 = vadd.f32 %v3296, %v3336
        %v3338 = vpop.f32.mrb[0].mxu0
        %v3339 = vpop.f32.mrb[0].mxu0
        %v3340 = vadd.f32 %v3299, %v3339
        %v3341 = vpop.f32.mrb[0].mxu0
        %3342 = vdwg.mxu0
        %v3343 = vadd.f32 %v2611, %v3337
        %v3344 = vadd.f32 %v2612, %v3340
        %3345 = vst [vmem:[%s541] sm:$0xff] %v3343
        %3346 = vst [vmem:[%s541 + $0x8] sm:$0xff] %v3344
        %s3347 = sand.u32 %s319, 1
        %s3348 = scalar_lea.sflag [#allocation4], %s3347
        %s3349 = sand.u32 %s319, 1
        %s3350 = smul.addr %s3349, 16
        %s3351 = scalar_lea.vmem [#allocation14], %s3350
        // Predicated region
        $region101: #{tpu_custom_call.1} parent=71 // pred_check
          %p3352 = pneg %p329
        $region102: #{tpu_custom_call.1} parent=71 // pred_check_branch
          %3354 = sbr.rel (%p3352) target = $region104
        $region103: #{tpu_custom_call.1} parent=71 // pred_region
          %s3356 = ssub.s32 256, 256
          %3357 = vsyncadd %s3348, %s3356
          %s3358 = smul.addr %s33, 2
          %s3359 = smul.addr %s3358, 128
          %s3360 = scalar_lea.hbm %s13, %s3359
          %s3361 = sshll.u32 %s3351, 4
          %s3362 = int_to_ptr.vmem [resolvable:$true] %s3361
          %3367 = dma.vmem_to_hbm [thread:$0]  %s3362, 256, %s3360, %s3348, 128, 128, 8
        $region104: #{tpu_custom_call.1} parent=71 // pred_fallthru
          _
      $region72: #{tpu_custom_call.1} parent=5 // pred_fallthru
        _
      %p3368 = scmp.le.s32.totalorder 2, %s28
      // Predicated region
      $region105: #{tpu_custom_call.1} parent=5 // pred_check
        %p3369 = pneg %p3368
      $region106: #{tpu_custom_call.1} parent=5 // pred_check_branch
        %3371 = sbr.rel (%p3369) target = $region108
      $region107: #{tpu_custom_call.1} parent=5 // pred_region
        %s3372 = ssub.s32 %s28, 2
        // Predicated region
        $region109: #{tpu_custom_call.1} parent=107 // pred_check
          %p3373 = pneg %p335
        $region110: #{tpu_custom_call.1} parent=107 // pred_check_branch
          %3375 = sbr.rel (%p3373) target = $region112
        $region111: #{tpu_custom_call.1} parent=107 // pred_region
          %s3376 = sand.u32 %s320, 1
          %s3377 = scalar_lea.sflag [#allocation4], %s3376
          %s3378 = sand.u32 %s320, 1
          %s3379 = smul.addr %s3378, 16
          %s3380 = scalar_lea.vmem [#allocation14], %s3379
          %3381 = dma.done %s3377, 256
        $region112: #{tpu_custom_call.1} parent=107 // pred_fallthru
          _
      $region108: #{tpu_custom_call.1} parent=5 // pred_fallthru
        _
    $region6: #{tpu_custom_call.1} parent=1 // loop_footer
      %s32 = sadd.s32 1, %s28
    $region7: #{tpu_custom_call.1} parent=1 // loop_footer_branch
      %27 = sbr.rel target = $region3
    $region8: #{tpu_custom_call.1} parent=1 // loop_exit
      _
    %3382 = vsyncpa [#allocation3], 1
    %s3383 = scalar_lea.sflag [#allocation3], 1
    %3384 = vsyncpa %s3383, 1
    %3385 = vsyncpa [#allocation6], 1
    %3386 = vsyncpa [#allocation9], 1
    %3387 = vsyncpa [#allocation12], 1
    %3388 = vsyncpa [#allocation4], 1
    %s3389 = scalar_lea.sflag [#allocation4], 1
    %3390 = vsyncpa %s3389, 1

</llo_original>
